<compile_context>
chip_gen: v6e
topology: v6e:2x2x1
jax: 0.10.0
libtpu: 0.0.40
codegen_flags: <defaults>
</compile_context>

<pallas_src>
import functools

import numpy as np
import jax
import jax.numpy as jnp
from jax.experimental import pallas as pl
from jax.experimental.pallas import tpu as pltpu


def _pad8(n):
    return max(8, ((n + 7) // 8) * 8)


# ----------------------------------------------------------------------------
# Synthetic fused-RepVGG parameters (HWIO weights + per-channel bias).
# ----------------------------------------------------------------------------
def init_backbone_params(key, cin=4, widths=(8, 16, 32, 64, 128)):
    def conv_init(k, ci, co):
        k1, k2 = jax.random.split(k)
        w = jax.random.normal(k1, (3, 3, ci, co), jnp.float32)
        w = w * (1.0 / (3 * 3 * ci) ** 0.5)
        b = 0.01 * jax.random.normal(k2, (co,), jnp.float32)
        return {"w": w, "b": b}

    keys = jax.random.split(key, 1 + 2 * (len(widths) - 1))
    params = {"stem": conv_init(keys[0], cin, widths[0])}
    prev = widths[0]
    for i, co in enumerate(widths[1:]):
        params[f"ERBlock_{i + 2}_down"] = conv_init(keys[1 + 2 * i], prev, co)
        params[f"ERBlock_{i + 2}_rep"] = conv_init(keys[2 + 2 * i], co, co)
        prev = co
    return params


# ----------------------------------------------------------------------------
# Host-side weight preprocessing: row-selection (S) and width-Toeplitz (T)
# matrices so every conv becomes plain 2-D matmuls inside the kernel.
# ----------------------------------------------------------------------------
def prepare_backbone_operands(params, in_hw, dtype=jnp.bfloat16):
    names, strides = ["stem"], [2]
    for st in (2, 3, 4, 5):
        names += [f"ERBlock_{st}_down", f"ERBlock_{st}_rep"]
        strides += [2, 1]

    ih, iw = in_hw
    assert ih % 32 == 0 and iw % 32 == 0, "spatial dims must survive 5 stride-2 convs"

    s_mats, t_list, b_list, meta = [], [], [], []
    ih_pad = _pad8(ih)
    for name, stride in zip(names, strides):
        w = np.asarray(params[name]["w"], np.float32)   # (3, 3, Cin, Cout)
        b = np.asarray(params[name]["b"], np.float32)
        _, _, ci, co = w.shape
        oh, ow = ih // stride, iw // stride
        oh_pad = _pad8(oh)

        # S[ky, i, r] = 1  iff input row r == stride*i + ky - 1 (zero pad outside).
        S = np.zeros((3, oh_pad, ih_pad), np.float32)
        for ky in range(3):
            for i in range(oh):
                r = stride * i + ky - 1
                if 0 <= r < ih:
                    S[ky, i, r] = 1.0

        # T_ky[w*Cin+ci, j*Cout+co] = W3[ky, w - stride*j + 1, ci, co] (if valid).
        T = np.zeros((3, iw * ci, ow * co), np.float32)
        for ky in range(3):
            for j in range(ow):
                for kx in range(3):
                    wcol = stride * j + kx - 1
                    if 0 <= wcol < iw:
                        T[ky, wcol * ci:(wcol + 1) * ci,
                          j * co:(j + 1) * co] = w[ky, kx]
        # stack the three ky slabs along rows -> one (3*IW*Cin, OW*Cout) matmul.
        t_list.append(T.reshape(3 * iw * ci, ow * co))

        s_mats.append(jnp.asarray(S, dtype))
        b_list.append(np.tile(b, ow)[None, :])           # (1, OW*Cout)
        meta.append(dict(name=name, oh=oh, ow=ow, cout=co,
                         oh_pad=oh_pad, lanes=ow * co))
        ih, iw, ih_pad = oh, ow, oh_pad

    assert all(t.shape == t_list[0].shape for t in t_list), \
        "stage widths must keep IW*Cin and OW*Cout constant for stacking"
    t_all = jnp.asarray(np.stack(t_list, 0), dtype)       # (9, 3*256, 256)
    b_all = jnp.asarray(np.stack(b_list, 0), jnp.float32)  # (9, 1, 256)
    operands = dict(s_mats=s_mats, t_all=t_all, b_all=b_all)
    return operands, meta


# ----------------------------------------------------------------------------
# The fused whole-backbone kernel (runs once per image via the grid).
# ----------------------------------------------------------------------------
def _backbone_kernel(meta, x_ref, *refs):
    n_conv = len(meta)
    s_refs = refs[:n_conv]
    t_ref = refs[n_conv]
    b_ref = refs[n_conv + 1]
    out_refs = refs[n_conv + 2:]

    act = x_ref[...]                                      # (H, W*Cin) bf16
    out_i = 0
    for c, m in enumerate(meta):
        # Gather the three ky-shifted row sets with 0/1 selection matmuls, then
        # one wide MXU matmul against the stacked width-Toeplitz weights.
        rows = [jnp.dot(s_refs[c][ky], act, preferred_element_type=jnp.float32)
                for ky in range(3)]
        g = jnp.concatenate(rows, axis=-1).astype(jnp.bfloat16)  # (OHp, 3*256)
        acc = jnp.dot(g, t_ref[c], preferred_element_type=jnp.float32)
        y = jnp.maximum(acc + b_ref[c], 0.0)              # (OHp, OW*Cout) f32

        if m["name"].endswith("_rep"):                    # ERBlock_{2..5} outputs
            out_refs[out_i][...] = y.astype(out_refs[out_i].dtype)
            out_i += 1
        act = y.astype(jnp.bfloat16)


# ----------------------------------------------------------------------------
# Forward pass (equivalent of BackboneBase.forward -> [C2, C3, C4, C5], NCHW).
# ----------------------------------------------------------------------------
def backbone_base_forward(operands, x_nchw, *, meta):
    N, C, H, W = x_nchw.shape
    # one cheap layout op on the tiny input; everything else stays lane-dense
    x_flat = jnp.transpose(x_nchw, (0, 2, 3, 1)).reshape(N * H, W * C)
    x_flat = x_flat.astype(jnp.bfloat16)

    stage_meta = [m for m in meta if m["name"].endswith("_rep")]
    out_shape = [jax.ShapeDtypeStruct((N * m["oh_pad"], m["lanes"]), jnp.float32)
                 for m in stage_meta]

    in_specs = [pl.BlockSpec((H, W * C), lambda n: (n, 0))]
    in_specs += [pl.BlockSpec(s.shape, lambda n: (0, 0, 0))
                 for s in operands["s_mats"]]
    in_specs += [pl.BlockSpec(operands["t_all"].shape, lambda n: (0, 0, 0)),
                 pl.BlockSpec(operands["b_all"].shape, lambda n: (0, 0, 0))]
    out_specs = [pl.BlockSpec((m["oh_pad"], m["lanes"]), lambda n: (n, 0))
                 for m in stage_meta]

    outs = pl.pallas_call(
        functools.partial(_backbone_kernel, meta),
        out_shape=out_shape,
        grid_spec=pltpu.PrefetchScalarGridSpec(
            num_scalar_prefetch=0,
            grid=(N,),                       # one image per grid step
            in_specs=in_specs,
            out_specs=out_specs,
        ),
        compiler_params=pltpu.CompilerParams(
            dimension_semantics=("parallel",),   # megacore: 2 images -> 2 TCs on v7x
            vmem_limit_bytes=32 * 1024 * 1024,
        ),
    )(x_flat, *operands["s_mats"], operands["t_all"], operands["b_all"])

    # single layout fix-up per returned feature map (NHWC-flat -> NCHW)
    fmp_list = []
    for m, o in zip(stage_meta, outs):
        y = o.reshape(N, m["oh_pad"], m["ow"], m["cout"])[:, :m["oh"]]
        fmp_list.append(jnp.transpose(y, (0, 3, 1, 2)))
    return fmp_list


if __name__ == "__main__":
    key = jax.random.PRNGKey(0)
    k_x, k_p = jax.random.split(key)
    # batch=2, in-channels=4, spatial=64 (so the stride-32 features are still 2x2)
    x = jax.random.normal(k_x, (2, 4, 64, 64), jnp.float32)
    params = init_backbone_params(k_p, cin=4, widths=(8, 16, 32, 64, 128))

    operands, meta = prepare_backbone_operands(params, in_hw=(64, 64))
    fwd = jax.jit(functools.partial(backbone_base_forward, meta=meta))

    fmp_list = fwd(operands, x)
    for fmp in fmp_list:
        jax.block_until_ready(fmp)

    expected = [(2, 16, 16, 16), (2, 32, 8, 8), (2, 64, 4, 4), (2, 128, 2, 2)]
    assert [tuple(f.shape) for f in fmp_list] == expected
    assert all(bool(jnp.all(jnp.isfinite(f))) for f in fmp_list)
    print("KERNEL_OK")
</pallas_src>

<mosaic_0001>
module attributes {stable_mosaic.version = 11 : i64} {
  func.func @_backbone_kernel(%arg0: i32, %arg1: memref<64x256xbf16, #tpu.memory_space<vmem>>, %arg2: memref<3x32x64xbf16, #tpu.memory_space<vmem>>, %arg3: memref<3x16x32xbf16, #tpu.memory_space<vmem>>, %arg4: memref<3x16x16xbf16, #tpu.memory_space<vmem>>, %arg5: memref<3x8x16xbf16, #tpu.memory_space<vmem>>, %arg6: memref<3x8x8xbf16, #tpu.memory_space<vmem>>, %arg7: memref<3x8x8xbf16, #tpu.memory_space<vmem>>, %arg8: memref<3x8x8xbf16, #tpu.memory_space<vmem>>, %arg9: memref<3x8x8xbf16, #tpu.memory_space<vmem>>, %arg10: memref<3x8x8xbf16, #tpu.memory_space<vmem>>, %arg11: memref<9x768x256xbf16, #tpu.memory_space<vmem>>, %arg12: memref<9x1x256xf32, #tpu.memory_space<vmem>>, %arg13: memref<16x256xf32, #tpu.memory_space<vmem>>, %arg14: memref<8x256xf32, #tpu.memory_space<vmem>>, %arg15: memref<8x256xf32, #tpu.memory_space<vmem>>, %arg16: memref<8x256xf32, #tpu.memory_space<vmem>>) attributes {dimension_semantics = [#tpu.dimension_semantics<parallel>], iteration_bounds = array<i64: 2>, scalar_prefetch = 0 : i64, scratch_operands = 0 : i64, tpu.core_type = #tpu.core_type<tc>, window_params = [{transform_indices = @transform_0, window_bounds = array<i64: 64, 256>}, {pipeline_mode = #tpu.pipeline_mode<synchronous>, transform_indices = @transform_1, window_bounds = array<i64: 3, 32, 64>}, {pipeline_mode = #tpu.pipeline_mode<synchronous>, transform_indices = @transform_2, window_bounds = array<i64: 3, 16, 32>}, {pipeline_mode = #tpu.pipeline_mode<synchronous>, transform_indices = @transform_3, window_bounds = array<i64: 3, 16, 16>}, {pipeline_mode = #tpu.pipeline_mode<synchronous>, transform_indices = @transform_4, window_bounds = array<i64: 3, 8, 16>}, {pipeline_mode = #tpu.pipeline_mode<synchronous>, transform_indices = @transform_5, window_bounds = array<i64: 3, 8, 8>}, {pipeline_mode = #tpu.pipeline_mode<synchronous>, transform_indices = @transform_6, window_bounds = array<i64: 3, 8, 8>}, {pipeline_mode = #tpu.pipeline_mode<synchronous>, transform_indices = @transform_7, window_bounds = array<i64: 3, 8, 8>}, {pipeline_mode = #tpu.pipeline_mode<synchronous>, transform_indices = @transform_8, window_bounds = array<i64: 3, 8, 8>}, {pipeline_mode = #tpu.pipeline_mode<synchronous>, transform_indices = @transform_9, window_bounds = array<i64: 3, 8, 8>}, {pipeline_mode = #tpu.pipeline_mode<synchronous>, transform_indices = @transform_10, window_bounds = array<i64: 9, 768, 256>}, {pipeline_mode = #tpu.pipeline_mode<synchronous>, transform_indices = @transform_11, window_bounds = array<i64: 9, 1, 256>}, {transform_indices = @transform_12, window_bounds = array<i64: 16, 256>}, {transform_indices = @transform_13, window_bounds = array<i64: 8, 256>}, {transform_indices = @transform_14, window_bounds = array<i64: 8, 256>}, {transform_indices = @transform_15, window_bounds = array<i64: 8, 256>}]} {
    %c0 = arith.constant 0 : index
    %c0_0 = arith.constant 0 : index
    %0 = vector.load %arg1[%c0, %c0_0] : memref<64x256xbf16, #tpu.memory_space<vmem>>, vector<64x256xbf16>
    %c0_1 = arith.constant 0 : index
    %c0_2 = arith.constant 0 : index
    %c0_3 = arith.constant 0 : index
    %1 = vector.load %arg2[%c0_1, %c0_2, %c0_3] : memref<3x32x64xbf16, #tpu.memory_space<vmem>>, vector<1x32x64xbf16>
    %2 = vector.shape_cast %1 : vector<1x32x64xbf16> to vector<32x64xbf16>
    %cst = arith.constant dense<0.000000e+00> : vector<32x256xf32>
    %3 = tpu.matmul %2, %0, %cst {dimension_numbers = #tpu.dot_dimension_numbers<[1], [0], [0], [1], [0, 0, 1, 1], [], []>} : vector<32x64xbf16>, vector<64x256xbf16>, vector<32x256xf32> -> vector<32x256xf32>
    %c1 = arith.constant 1 : index
    %c0_4 = arith.constant 0 : index
    %c0_5 = arith.constant 0 : index
    %4 = vector.load %arg2[%c1, %c0_4, %c0_5] : memref<3x32x64xbf16, #tpu.memory_space<vmem>>, vector<1x32x64xbf16>
    %5 = vector.shape_cast %4 : vector<1x32x64xbf16> to vector<32x64xbf16>
    %cst_6 = arith.constant dense<0.000000e+00> : vector<32x256xf32>
    %6 = tpu.matmul %5, %0, %cst_6 {dimension_numbers = #tpu.dot_dimension_numbers<[1], [0], [0], [1], [0, 0, 1, 1], [], []>} : vector<32x64xbf16>, vector<64x256xbf16>, vector<32x256xf32> -> vector<32x256xf32>
    %c2 = arith.constant 2 : index
    %c0_7 = arith.constant 0 : index
    %c0_8 = arith.constant 0 : index
    %7 = vector.load %arg2[%c2, %c0_7, %c0_8] : memref<3x32x64xbf16, #tpu.memory_space<vmem>>, vector<1x32x64xbf16>
    %8 = vector.shape_cast %7 : vector<1x32x64xbf16> to vector<32x64xbf16>
    %cst_9 = arith.constant dense<0.000000e+00> : vector<32x256xf32>
    %9 = tpu.matmul %8, %0, %cst_9 {dimension_numbers = #tpu.dot_dimension_numbers<[1], [0], [0], [1], [0, 0, 1, 1], [], []>} : vector<32x64xbf16>, vector<64x256xbf16>, vector<32x256xf32> -> vector<32x256xf32>
    %10 = tpu.concatenate %3, %6, %9 in 1 : vector<32x256xf32>, vector<32x256xf32>, vector<32x256xf32> -> vector<32x768xf32>
    %11 = arith.truncf %10 : vector<32x768xf32> to vector<32x768xbf16>
    %c0_10 = arith.constant 0 : index
    %c0_11 = arith.constant 0 : index
    %c0_12 = arith.constant 0 : index
    %12 = vector.load %arg11[%c0_10, %c0_11, %c0_12] : memref<9x768x256xbf16, #tpu.memory_space<vmem>>, vector<1x768x256xbf16>
    %13 = vector.shape_cast %12 : vector<1x768x256xbf16> to vector<768x256xbf16>
    %cst_13 = arith.constant dense<0.000000e+00> : vector<32x256xf32>
    %14 = tpu.matmul %11, %13, %cst_13 {dimension_numbers = #tpu.dot_dimension_numbers<[1], [0], [0], [1], [0, 0, 1, 1], [], []>} : vector<32x768xbf16>, vector<768x256xbf16>, vector<32x256xf32> -> vector<32x256xf32>
    %c0_14 = arith.constant 0 : index
    %c0_15 = arith.constant 0 : index
    %c0_16 = arith.constant 0 : index
    %15 = vector.load %arg12[%c0_14, %c0_15, %c0_16] : memref<9x1x256xf32, #tpu.memory_space<vmem>>, vector<1x1x256xf32>
    %16 = vector.shape_cast %15 : vector<1x1x256xf32> to vector<1x256xf32>
    %17 = vector.broadcast %16 : vector<1x256xf32> to vector<32x256xf32>
    %18 = arith.addf %14, %17 : vector<32x256xf32>
    %cst_17 = arith.constant 0.000000e+00 : f32
    %19 = vector.broadcast %cst_17 : f32 to vector<32x256xf32>
    %20 = arith.maximumf %18, %19 : vector<32x256xf32>
    %21 = arith.truncf %20 : vector<32x256xf32> to vector<32x256xbf16>
    %c0_18 = arith.constant 0 : index
    %c0_19 = arith.constant 0 : index
    %c0_20 = arith.constant 0 : index
    %22 = vector.load %arg3[%c0_18, %c0_19, %c0_20] : memref<3x16x32xbf16, #tpu.memory_space<vmem>>, vector<1x16x32xbf16>
    %23 = vector.shape_cast %22 : vector<1x16x32xbf16> to vector<16x32xbf16>
    %cst_21 = arith.constant dense<0.000000e+00> : vector<16x256xf32>
    %24 = tpu.matmul %23, %21, %cst_21 {dimension_numbers = #tpu.dot_dimension_numbers<[1], [0], [0], [1], [0, 0, 1, 1], [], []>} : vector<16x32xbf16>, vector<32x256xbf16>, vector<16x256xf32> -> vector<16x256xf32>
    %c1_22 = arith.constant 1 : index
    %c0_23 = arith.constant 0 : index
    %c0_24 = arith.constant 0 : index
    %25 = vector.load %arg3[%c1_22, %c0_23, %c0_24] : memref<3x16x32xbf16, #tpu.memory_space<vmem>>, vector<1x16x32xbf16>
    %26 = vector.shape_cast %25 : vector<1x16x32xbf16> to vector<16x32xbf16>
    %cst_25 = arith.constant dense<0.000000e+00> : vector<16x256xf32>
    %27 = tpu.matmul %26, %21, %cst_25 {dimension_numbers = #tpu.dot_dimension_numbers<[1], [0], [0], [1], [0, 0, 1, 1], [], []>} : vector<16x32xbf16>, vector<32x256xbf16>, vector<16x256xf32> -> vector<16x256xf32>
    %c2_26 = arith.constant 2 : index
    %c0_27 = arith.constant 0 : index
    %c0_28 = arith.constant 0 : index
    %28 = vector.load %arg3[%c2_26, %c0_27, %c0_28] : memref<3x16x32xbf16, #tpu.memory_space<vmem>>, vector<1x16x32xbf16>
    %29 = vector.shape_cast %28 : vector<1x16x32xbf16> to vector<16x32xbf16>
    %cst_29 = arith.constant dense<0.000000e+00> : vector<16x256xf32>
    %30 = tpu.matmul %29, %21, %cst_29 {dimension_numbers = #tpu.dot_dimension_numbers<[1], [0], [0], [1], [0, 0, 1, 1], [], []>} : vector<16x32xbf16>, vector<32x256xbf16>, vector<16x256xf32> -> vector<16x256xf32>
    %31 = tpu.concatenate %24, %27, %30 in 1 : vector<16x256xf32>, vector<16x256xf32>, vector<16x256xf32> -> vector<16x768xf32>
    %32 = arith.truncf %31 : vector<16x768xf32> to vector<16x768xbf16>
    %c1_30 = arith.constant 1 : index
    %c0_31 = arith.constant 0 : index
    %c0_32 = arith.constant 0 : index
    %33 = vector.load %arg11[%c1_30, %c0_31, %c0_32] : memref<9x768x256xbf16, #tpu.memory_space<vmem>>, vector<1x768x256xbf16>
    %34 = vector.shape_cast %33 : vector<1x768x256xbf16> to vector<768x256xbf16>
    %cst_33 = arith.constant dense<0.000000e+00> : vector<16x256xf32>
    %35 = tpu.matmul %32, %34, %cst_33 {dimension_numbers = #tpu.dot_dimension_numbers<[1], [0], [0], [1], [0, 0, 1, 1], [], []>} : vector<16x768xbf16>, vector<768x256xbf16>, vector<16x256xf32> -> vector<16x256xf32>
    %c1_34 = arith.constant 1 : index
    %c0_35 = arith.constant 0 : index
    %c0_36 = arith.constant 0 : index
    %36 = vector.load %arg12[%c1_34, %c0_35, %c0_36] : memref<9x1x256xf32, #tpu.memory_space<vmem>>, vector<1x1x256xf32>
    %37 = vector.shape_cast %36 : vector<1x1x256xf32> to vector<1x256xf32>
    %38 = vector.broadcast %37 : vector<1x256xf32> to vector<16x256xf32>
    %39 = arith.addf %35, %38 : vector<16x256xf32>
    %cst_37 = arith.constant 0.000000e+00 : f32
    %40 = vector.broadcast %cst_37 : f32 to vector<16x256xf32>
    %41 = arith.maximumf %39, %40 : vector<16x256xf32>
    %42 = arith.truncf %41 : vector<16x256xf32> to vector<16x256xbf16>
    %c0_38 = arith.constant 0 : index
    %c0_39 = arith.constant 0 : index
    %c0_40 = arith.constant 0 : index
    %43 = vector.load %arg4[%c0_38, %c0_39, %c0_40] : memref<3x16x16xbf16, #tpu.memory_space<vmem>>, vector<1x16x16xbf16>
    %44 = vector.shape_cast %43 : vector<1x16x16xbf16> to vector<16x16xbf16>
    %cst_41 = arith.constant dense<0.000000e+00> : vector<16x256xf32>
    %45 = tpu.matmul %44, %42, %cst_41 {dimension_numbers = #tpu.dot_dimension_numbers<[1], [0], [0], [1], [0, 0, 1, 1], [], []>} : vector<16x16xbf16>, vector<16x256xbf16>, vector<16x256xf32> -> vector<16x256xf32>
    %c1_42 = arith.constant 1 : index
    %c0_43 = arith.constant 0 : index
    %c0_44 = arith.constant 0 : index
    %46 = vector.load %arg4[%c1_42, %c0_43, %c0_44] : memref<3x16x16xbf16, #tpu.memory_space<vmem>>, vector<1x16x16xbf16>
    %47 = vector.shape_cast %46 : vector<1x16x16xbf16> to vector<16x16xbf16>
    %cst_45 = arith.constant dense<0.000000e+00> : vector<16x256xf32>
    %48 = tpu.matmul %47, %42, %cst_45 {dimension_numbers = #tpu.dot_dimension_numbers<[1], [0], [0], [1], [0, 0, 1, 1], [], []>} : vector<16x16xbf16>, vector<16x256xbf16>, vector<16x256xf32> -> vector<16x256xf32>
    %c2_46 = arith.constant 2 : index
    %c0_47 = arith.constant 0 : index
    %c0_48 = arith.constant 0 : index
    %49 = vector.load %arg4[%c2_46, %c0_47, %c0_48] : memref<3x16x16xbf16, #tpu.memory_space<vmem>>, vector<1x16x16xbf16>
    %50 = vector.shape_cast %49 : vector<1x16x16xbf16> to vector<16x16xbf16>
    %cst_49 = arith.constant dense<0.000000e+00> : vector<16x256xf32>
    %51 = tpu.matmul %50, %42, %cst_49 {dimension_numbers = #tpu.dot_dimension_numbers<[1], [0], [0], [1], [0, 0, 1, 1], [], []>} : vector<16x16xbf16>, vector<16x256xbf16>, vector<16x256xf32> -> vector<16x256xf32>
    %52 = tpu.concatenate %45, %48, %51 in 1 : vector<16x256xf32>, vector<16x256xf32>, vector<16x256xf32> -> vector<16x768xf32>
    %53 = arith.truncf %52 : vector<16x768xf32> to vector<16x768xbf16>
    %c2_50 = arith.constant 2 : index
    %c0_51 = arith.constant 0 : index
    %c0_52 = arith.constant 0 : index
    %54 = vector.load %arg11[%c2_50, %c0_51, %c0_52] : memref<9x768x256xbf16, #tpu.memory_space<vmem>>, vector<1x768x256xbf16>
    %55 = vector.shape_cast %54 : vector<1x768x256xbf16> to vector<768x256xbf16>
    %cst_53 = arith.constant dense<0.000000e+00> : vector<16x256xf32>
    %56 = tpu.matmul %53, %55, %cst_53 {dimension_numbers = #tpu.dot_dimension_numbers<[1], [0], [0], [1], [0, 0, 1, 1], [], []>} : vector<16x768xbf16>, vector<768x256xbf16>, vector<16x256xf32> -> vector<16x256xf32>
    %c2_54 = arith.constant 2 : index
    %c0_55 = arith.constant 0 : index
    %c0_56 = arith.constant 0 : index
    %57 = vector.load %arg12[%c2_54, %c0_55, %c0_56] : memref<9x1x256xf32, #tpu.memory_space<vmem>>, vector<1x1x256xf32>
    %58 = vector.shape_cast %57 : vector<1x1x256xf32> to vector<1x256xf32>
    %59 = vector.broadcast %58 : vector<1x256xf32> to vector<16x256xf32>
    %60 = arith.addf %56, %59 : vector<16x256xf32>
    %cst_57 = arith.constant 0.000000e+00 : f32
    %61 = vector.broadcast %cst_57 : f32 to vector<16x256xf32>
    %62 = arith.maximumf %60, %61 : vector<16x256xf32>
    %c0_58 = arith.constant 0 : index
    %c0_59 = arith.constant 0 : index
    %63 = vector.load %arg13[%c0_58, %c0_59] : memref<16x256xf32, #tpu.memory_space<vmem>>, vector<16x256xf32>
    tpu.vector_store %arg13[%c0_58, %c0_59], %62 {strides = array<i32>} : memref<16x256xf32, #tpu.memory_space<vmem>>, vector<16x256xf32>,
    %64 = arith.truncf %62 : vector<16x256xf32> to vector<16x256xbf16>
    %c0_60 = arith.constant 0 : index
    %c0_61 = arith.constant 0 : index
    %c0_62 = arith.constant 0 : index
    %65 = vector.load %arg5[%c0_60, %c0_61, %c0_62] : memref<3x8x16xbf16, #tpu.memory_space<vmem>>, vector<1x8x16xbf16>
    %66 = vector.shape_cast %65 : vector<1x8x16xbf16> to vector<8x16xbf16>
    %cst_63 = arith.constant dense<0.000000e+00> : vector<8x256xf32>
    %67 = tpu.matmul %66, %64, %cst_63 {dimension_numbers = #tpu.dot_dimension_numbers<[1], [0], [0], [1], [0, 0, 1, 1], [], []>} : vector<8x16xbf16>, vector<16x256xbf16>, vector<8x256xf32> -> vector<8x256xf32>
    %c1_64 = arith.constant 1 : index
    %c0_65 = arith.constant 0 : index
    %c0_66 = arith.constant 0 : index
    %68 = vector.load %arg5[%c1_64, %c0_65, %c0_66] : memref<3x8x16xbf16, #tpu.memory_space<vmem>>, vector<1x8x16xbf16>
    %69 = vector.shape_cast %68 : vector<1x8x16xbf16> to vector<8x16xbf16>
    %cst_67 = arith.constant dense<0.000000e+00> : vector<8x256xf32>
    %70 = tpu.matmul %69, %64, %cst_67 {dimension_numbers = #tpu.dot_dimension_numbers<[1], [0], [0], [1], [0, 0, 1, 1], [], []>} : vector<8x16xbf16>, vector<16x256xbf16>, vector<8x256xf32> -> vector<8x256xf32>
    %c2_68 = arith.constant 2 : index
    %c0_69 = arith.constant 0 : index
    %c0_70 = arith.constant 0 : index
    %71 = vector.load %arg5[%c2_68, %c0_69, %c0_70] : memref<3x8x16xbf16, #tpu.memory_space<vmem>>, vector<1x8x16xbf16>
    %72 = vector.shape_cast %71 : vector<1x8x16xbf16> to vector<8x16xbf16>
    %cst_71 = arith.constant dense<0.000000e+00> : vector<8x256xf32>
    %73 = tpu.matmul %72, %64, %cst_71 {dimension_numbers = #tpu.dot_dimension_numbers<[1], [0], [0], [1], [0, 0, 1, 1], [], []>} : vector<8x16xbf16>, vector<16x256xbf16>, vector<8x256xf32> -> vector<8x256xf32>
    %74 = tpu.concatenate %67, %70, %73 in 1 : vector<8x256xf32>, vector<8x256xf32>, vector<8x256xf32> -> vector<8x768xf32>
    %75 = arith.truncf %74 : vector<8x768xf32> to vector<8x768xbf16>
    %c3 = arith.constant 3 : index
    %c0_72 = arith.constant 0 : index
    %c0_73 = arith.constant 0 : index
    %76 = vector.load %arg11[%c3, %c0_72, %c0_73] : memref<9x768x256xbf16, #tpu.memory_space<vmem>>, vector<1x768x256xbf16>
    %77 = vector.shape_cast %76 : vector<1x768x256xbf16> to vector<768x256xbf16>
    %cst_74 = arith.constant dense<0.000000e+00> : vector<8x256xf32>
    %78 = tpu.matmul %75, %77, %cst_74 {dimension_numbers = #tpu.dot_dimension_numbers<[1], [0], [0], [1], [0, 0, 1, 1], [], []>} : vector<8x768xbf16>, vector<768x256xbf16>, vector<8x256xf32> -> vector<8x256xf32>
    %c3_75 = arith.constant 3 : index
    %c0_76 = arith.constant 0 : index
    %c0_77 = arith.constant 0 : index
    %79 = vector.load %arg12[%c3_75, %c0_76, %c0_77] : memref<9x1x256xf32, #tpu.memory_space<vmem>>, vector<1x1x256xf32>
    %80 = vector.shape_cast %79 : vector<1x1x256xf32> to vector<1x256xf32>
    %81 = vector.broadcast %80 : vector<1x256xf32> to vector<8x256xf32>
    %82 = arith.addf %78, %81 : vector<8x256xf32>
    %cst_78 = arith.constant 0.000000e+00 : f32
    %83 = vector.broadcast %cst_78 : f32 to vector<8x256xf32>
    %84 = arith.maximumf %82, %83 : vector<8x256xf32>
    %85 = arith.truncf %84 : vector<8x256xf32> to vector<8x256xbf16>
    %c0_79 = arith.constant 0 : index
    %c0_80 = arith.constant 0 : index
    %c0_81 = arith.constant 0 : index
    %86 = vector.load %arg6[%c0_79, %c0_80, %c0_81] : memref<3x8x8xbf16, #tpu.memory_space<vmem>>, vector<1x8x8xbf16>
    %87 = vector.shape_cast %86 : vector<1x8x8xbf16> to vector<8x8xbf16>
    %cst_82 = arith.constant dense<0.000000e+00> : vector<8x256xf32>
    %88 = tpu.matmul %87, %85, %cst_82 {dimension_numbers = #tpu.dot_dimension_numbers<[1], [0], [0], [1], [0, 0, 1, 1], [], []>} : vector<8x8xbf16>, vector<8x256xbf16>, vector<8x256xf32> -> vector<8x256xf32>
    %c1_83 = arith.constant 1 : index
    %c0_84 = arith.constant 0 : index
    %c0_85 = arith.constant 0 : index
    %89 = vector.load %arg6[%c1_83, %c0_84, %c0_85] : memref<3x8x8xbf16, #tpu.memory_space<vmem>>, vector<1x8x8xbf16>
    %90 = vector.shape_cast %89 : vector<1x8x8xbf16> to vector<8x8xbf16>
    %cst_86 = arith.constant dense<0.000000e+00> : vector<8x256xf32>
    %91 = tpu.matmul %90, %85, %cst_86 {dimension_numbers = #tpu.dot_dimension_numbers<[1], [0], [0], [1], [0, 0, 1, 1], [], []>} : vector<8x8xbf16>, vector<8x256xbf16>, vector<8x256xf32> -> vector<8x256xf32>
    %c2_87 = arith.constant 2 : index
    %c0_88 = arith.constant 0 : index
    %c0_89 = arith.constant 0 : index
    %92 = vector.load %arg6[%c2_87, %c0_88, %c0_89] : memref<3x8x8xbf16, #tpu.memory_space<vmem>>, vector<1x8x8xbf16>
    %93 = vector.shape_cast %92 : vector<1x8x8xbf16> to vector<8x8xbf16>
    %cst_90 = arith.constant dense<0.000000e+00> : vector<8x256xf32>
    %94 = tpu.matmul %93, %85, %cst_90 {dimension_numbers = #tpu.dot_dimension_numbers<[1], [0], [0], [1], [0, 0, 1, 1], [], []>} : vector<8x8xbf16>, vector<8x256xbf16>, vector<8x256xf32> -> vector<8x256xf32>
    %95 = tpu.concatenate %88, %91, %94 in 1 : vector<8x256xf32>, vector<8x256xf32>, vector<8x256xf32> -> vector<8x768xf32>
    %96 = arith.truncf %95 : vector<8x768xf32> to vector<8x768xbf16>
    %c4 = arith.constant 4 : index
    %c0_91 = arith.constant 0 : index
    %c0_92 = arith.constant 0 : index
    %97 = vector.load %arg11[%c4, %c0_91, %c0_92] : memref<9x768x256xbf16, #tpu.memory_space<vmem>>, vector<1x768x256xbf16>
    %98 = vector.shape_cast %97 : vector<1x768x256xbf16> to vector<768x256xbf16>
    %cst_93 = arith.constant dense<0.000000e+00> : vector<8x256xf32>
    %99 = tpu.matmul %96, %98, %cst_93 {dimension_numbers = #tpu.dot_dimension_numbers<[1], [0], [0], [1], [0, 0, 1, 1], [], []>} : vector<8x768xbf16>, vector<768x256xbf16>, vector<8x256xf32> -> vector<8x256xf32>
    %c4_94 = arith.constant 4 : index
    %c0_95 = arith.constant 0 : index
    %c0_96 = arith.constant 0 : index
    %100 = vector.load %arg12[%c4_94, %c0_95, %c0_96] : memref<9x1x256xf32, #tpu.memory_space<vmem>>, vector<1x1x256xf32>
    %101 = vector.shape_cast %100 : vector<1x1x256xf32> to vector<1x256xf32>
    %102 = vector.broadcast %101 : vector<1x256xf32> to vector<8x256xf32>
    %103 = arith.addf %99, %102 : vector<8x256xf32>
    %cst_97 = arith.constant 0.000000e+00 : f32
    %104 = vector.broadcast %cst_97 : f32 to vector<8x256xf32>
    %105 = arith.maximumf %103, %104 : vector<8x256xf32>
    %c0_98 = arith.constant 0 : index
    %c0_99 = arith.constant 0 : index
    %106 = vector.load %arg14[%c0_98, %c0_99] : memref<8x256xf32, #tpu.memory_space<vmem>>, vector<8x256xf32>
    tpu.vector_store %arg14[%c0_98, %c0_99], %105 {strides = array<i32>} : memref<8x256xf32, #tpu.memory_space<vmem>>, vector<8x256xf32>,
    %107 = arith.truncf %105 : vector<8x256xf32> to vector<8x256xbf16>
    %c0_100 = arith.constant 0 : index
    %c0_101 = arith.constant 0 : index
    %c0_102 = arith.constant 0 : index
    %108 = vector.load %arg7[%c0_100, %c0_101, %c0_102] : memref<3x8x8xbf16, #tpu.memory_space<vmem>>, vector<1x8x8xbf16>
    %109 = vector.shape_cast %108 : vector<1x8x8xbf16> to vector<8x8xbf16>
    %cst_103 = arith.constant dense<0.000000e+00> : vector<8x256xf32>
    %110 = tpu.matmul %109, %107, %cst_103 {dimension_numbers = #tpu.dot_dimension_numbers<[1], [0], [0], [1], [0, 0, 1, 1], [], []>} : vector<8x8xbf16>, vector<8x256xbf16>, vector<8x256xf32> -> vector<8x256xf32>
    %c1_104 = arith.constant 1 : index
    %c0_105 = arith.constant 0 : index
    %c0_106 = arith.constant 0 : index
    %111 = vector.load %arg7[%c1_104, %c0_105, %c0_106] : memref<3x8x8xbf16, #tpu.memory_space<vmem>>, vector<1x8x8xbf16>
    %112 = vector.shape_cast %111 : vector<1x8x8xbf16> to vector<8x8xbf16>
    %cst_107 = arith.constant dense<0.000000e+00> : vector<8x256xf32>
    %113 = tpu.matmul %112, %107, %cst_107 {dimension_numbers = #tpu.dot_dimension_numbers<[1], [0], [0], [1], [0, 0, 1, 1], [], []>} : vector<8x8xbf16>, vector<8x256xbf16>, vector<8x256xf32> -> vector<8x256xf32>
    %c2_108 = arith.constant 2 : index
    %c0_109 = arith.constant 0 : index
    %c0_110 = arith.constant 0 : index
    %114 = vector.load %arg7[%c2_108, %c0_109, %c0_110] : memref<3x8x8xbf16, #tpu.memory_space<vmem>>, vector<1x8x8xbf16>
    %115 = vector.shape_cast %114 : vector<1x8x8xbf16> to vector<8x8xbf16>
    %cst_111 = arith.constant dense<0.000000e+00> : vector<8x256xf32>
    %116 = tpu.matmul %115, %107, %cst_111 {dimension_numbers = #tpu.dot_dimension_numbers<[1], [0], [0], [1], [0, 0, 1, 1], [], []>} : vector<8x8xbf16>, vector<8x256xbf16>, vector<8x256xf32> -> vector<8x256xf32>
    %117 = tpu.concatenate %110, %113, %116 in 1 : vector<8x256xf32>, vector<8x256xf32>, vector<8x256xf32> -> vector<8x768xf32>
    %118 = arith.truncf %117 : vector<8x768xf32> to vector<8x768xbf16>
    %c5 = arith.constant 5 : index
    %c0_112 = arith.constant 0 : index
    %c0_113 = arith.constant 0 : index
    %119 = vector.load %arg11[%c5, %c0_112, %c0_113] : memref<9x768x256xbf16, #tpu.memory_space<vmem>>, vector<1x768x256xbf16>
    %120 = vector.shape_cast %119 : vector<1x768x256xbf16> to vector<768x256xbf16>
    %cst_114 = arith.constant dense<0.000000e+00> : vector<8x256xf32>
    %121 = tpu.matmul %118, %120, %cst_114 {dimension_numbers = #tpu.dot_dimension_numbers<[1], [0], [0], [1], [0, 0, 1, 1], [], []>} : vector<8x768xbf16>, vector<768x256xbf16>, vector<8x256xf32> -> vector<8x256xf32>
    %c5_115 = arith.constant 5 : index
    %c0_116 = arith.constant 0 : index
    %c0_117 = arith.constant 0 : index
    %122 = vector.load %arg12[%c5_115, %c0_116, %c0_117] : memref<9x1x256xf32, #tpu.memory_space<vmem>>, vector<1x1x256xf32>
    %123 = vector.shape_cast %122 : vector<1x1x256xf32> to vector<1x256xf32>
    %124 = vector.broadcast %123 : vector<1x256xf32> to vector<8x256xf32>
    %125 = arith.addf %121, %124 : vector<8x256xf32>
    %cst_118 = arith.constant 0.000000e+00 : f32
    %126 = vector.broadcast %cst_118 : f32 to vector<8x256xf32>
    %127 = arith.maximumf %125, %126 : vector<8x256xf32>
    %128 = arith.truncf %127 : vector<8x256xf32> to vector<8x256xbf16>
    %c0_119 = arith.constant 0 : index
    %c0_120 = arith.constant 0 : index
    %c0_121 = arith.constant 0 : index
    %129 = vector.load %arg8[%c0_119, %c0_120, %c0_121] : memref<3x8x8xbf16, #tpu.memory_space<vmem>>, vector<1x8x8xbf16>
    %130 = vector.shape_cast %129 : vector<1x8x8xbf16> to vector<8x8xbf16>
    %cst_122 = arith.constant dense<0.000000e+00> : vector<8x256xf32>
    %131 = tpu.matmul %130, %128, %cst_122 {dimension_numbers = #tpu.dot_dimension_numbers<[1], [0], [0], [1], [0, 0, 1, 1], [], []>} : vector<8x8xbf16>, vector<8x256xbf16>, vector<8x256xf32> -> vector<8x256xf32>
    %c1_123 = arith.constant 1 : index
    %c0_124 = arith.constant 0 : index
    %c0_125 = arith.constant 0 : index
    %132 = vector.load %arg8[%c1_123, %c0_124, %c0_125] : memref<3x8x8xbf16, #tpu.memory_space<vmem>>, vector<1x8x8xbf16>
    %133 = vector.shape_cast %132 : vector<1x8x8xbf16> to vector<8x8xbf16>
    %cst_126 = arith.constant dense<0.000000e+00> : vector<8x256xf32>
    %134 = tpu.matmul %133, %128, %cst_126 {dimension_numbers = #tpu.dot_dimension_numbers<[1], [0], [0], [1], [0, 0, 1, 1], [], []>} : vector<8x8xbf16>, vector<8x256xbf16>, vector<8x256xf32> -> vector<8x256xf32>
    %c2_127 = arith.constant 2 : index
    %c0_128 = arith.constant 0 : index
    %c0_129 = arith.constant 0 : index
    %135 = vector.load %arg8[%c2_127, %c0_128, %c0_129] : memref<3x8x8xbf16, #tpu.memory_space<vmem>>, vector<1x8x8xbf16>
    %136 = vector.shape_cast %135 : vector<1x8x8xbf16> to vector<8x8xbf16>
    %cst_130 = arith.constant dense<0.000000e+00> : vector<8x256xf32>
    %137 = tpu.matmul %136, %128, %cst_130 {dimension_numbers = #tpu.dot_dimension_numbers<[1], [0], [0], [1], [0, 0, 1, 1], [], []>} : vector<8x8xbf16>, vector<8x256xbf16>, vector<8x256xf32> -> vector<8x256xf32>
    %138 = tpu.concatenate %131, %134, %137 in 1 : vector<8x256xf32>, vector<8x256xf32>, vector<8x256xf32> -> vector<8x768xf32>
    %139 = arith.truncf %138 : vector<8x768xf32> to vector<8x768xbf16>
    %c6 = arith.constant 6 : index
    %c0_131 = arith.constant 0 : index
    %c0_132 = arith.constant 0 : index
    %140 = vector.load %arg11[%c6, %c0_131, %c0_132] : memref<9x768x256xbf16, #tpu.memory_space<vmem>>, vector<1x768x256xbf16>
    %141 = vector.shape_cast %140 : vector<1x768x256xbf16> to vector<768x256xbf16>
    %cst_133 = arith.constant dense<0.000000e+00> : vector<8x256xf32>
    %142 = tpu.matmul %139, %141, %cst_133 {dimension_numbers = #tpu.dot_dimension_numbers<[1], [0], [0], [1], [0, 0, 1, 1], [], []>} : vector<8x768xbf16>, vector<768x256xbf16>, vector<8x256xf32> -> vector<8x256xf32>
    %c6_134 = arith.constant 6 : index
    %c0_135 = arith.constant 0 : index
    %c0_136 = arith.constant 0 : index
    %143 = vector.load %arg12[%c6_134, %c0_135, %c0_136] : memref<9x1x256xf32, #tpu.memory_space<vmem>>, vector<1x1x256xf32>
    %144 = vector.shape_cast %143 : vector<1x1x256xf32> to vector<1x256xf32>
    %145 = vector.broadcast %144 : vector<1x256xf32> to vector<8x256xf32>
    %146 = arith.addf %142, %145 : vector<8x256xf32>
    %cst_137 = arith.constant 0.000000e+00 : f32
    %147 = vector.broadcast %cst_137 : f32 to vector<8x256xf32>
    %148 = arith.maximumf %146, %147 : vector<8x256xf32>
    %c0_138 = arith.constant 0 : index
    %c0_139 = arith.constant 0 : index
    %149 = vector.load %arg15[%c0_138, %c0_139] : memref<8x256xf32, #tpu.memory_space<vmem>>, vector<8x256xf32>
    tpu.vector_store %arg15[%c0_138, %c0_139], %148 {strides = array<i32>} : memref<8x256xf32, #tpu.memory_space<vmem>>, vector<8x256xf32>,
    %150 = arith.truncf %148 : vector<8x256xf32> to vector<8x256xbf16>
    %c0_140 = arith.constant 0 : index
    %c0_141 = arith.constant 0 : index
    %c0_142 = arith.constant 0 : index
    %151 = vector.load %arg9[%c0_140, %c0_141, %c0_142] : memref<3x8x8xbf16, #tpu.memory_space<vmem>>, vector<1x8x8xbf16>
    %152 = vector.shape_cast %151 : vector<1x8x8xbf16> to vector<8x8xbf16>
    %cst_143 = arith.constant dense<0.000000e+00> : vector<8x256xf32>
    %153 = tpu.matmul %152, %150, %cst_143 {dimension_numbers = #tpu.dot_dimension_numbers<[1], [0], [0], [1], [0, 0, 1, 1], [], []>} : vector<8x8xbf16>, vector<8x256xbf16>, vector<8x256xf32> -> vector<8x256xf32>
    %c1_144 = arith.constant 1 : index
    %c0_145 = arith.constant 0 : index
    %c0_146 = arith.constant 0 : index
    %154 = vector.load %arg9[%c1_144, %c0_145, %c0_146] : memref<3x8x8xbf16, #tpu.memory_space<vmem>>, vector<1x8x8xbf16>
    %155 = vector.shape_cast %154 : vector<1x8x8xbf16> to vector<8x8xbf16>
    %cst_147 = arith.constant dense<0.000000e+00> : vector<8x256xf32>
    %156 = tpu.matmul %155, %150, %cst_147 {dimension_numbers = #tpu.dot_dimension_numbers<[1], [0], [0], [1], [0, 0, 1, 1], [], []>} : vector<8x8xbf16>, vector<8x256xbf16>, vector<8x256xf32> -> vector<8x256xf32>
    %c2_148 = arith.constant 2 : index
    %c0_149 = arith.constant 0 : index
    %c0_150 = arith.constant 0 : index
    %157 = vector.load %arg9[%c2_148, %c0_149, %c0_150] : memref<3x8x8xbf16, #tpu.memory_space<vmem>>, vector<1x8x8xbf16>
    %158 = vector.shape_cast %157 : vector<1x8x8xbf16> to vector<8x8xbf16>
    %cst_151 = arith.constant dense<0.000000e+00> : vector<8x256xf32>
    %159 = tpu.matmul %158, %150, %cst_151 {dimension_numbers = #tpu.dot_dimension_numbers<[1], [0], [0], [1], [0, 0, 1, 1], [], []>} : vector<8x8xbf16>, vector<8x256xbf16>, vector<8x256xf32> -> vector<8x256xf32>
    %160 = tpu.concatenate %153, %156, %159 in 1 : vector<8x256xf32>, vector<8x256xf32>, vector<8x256xf32> -> vector<8x768xf32>
    %161 = arith.truncf %160 : vector<8x768xf32> to vector<8x768xbf16>
    %c7 = arith.constant 7 : index
    %c0_152 = arith.constant 0 : index
    %c0_153 = arith.constant 0 : index
    %162 = vector.load %arg11[%c7, %c0_152, %c0_153] : memref<9x768x256xbf16, #tpu.memory_space<vmem>>, vector<1x768x256xbf16>
    %163 = vector.shape_cast %162 : vector<1x768x256xbf16> to vector<768x256xbf16>
    %cst_154 = arith.constant dense<0.000000e+00> : vector<8x256xf32>
    %164 = tpu.matmul %161, %163, %cst_154 {dimension_numbers = #tpu.dot_dimension_numbers<[1], [0], [0], [1], [0, 0, 1, 1], [], []>} : vector<8x768xbf16>, vector<768x256xbf16>, vector<8x256xf32> -> vector<8x256xf32>
    %c7_155 = arith.constant 7 : index
    %c0_156 = arith.constant 0 : index
    %c0_157 = arith.constant 0 : index
    %165 = vector.load %arg12[%c7_155, %c0_156, %c0_157] : memref<9x1x256xf32, #tpu.memory_space<vmem>>, vector<1x1x256xf32>
    %166 = vector.shape_cast %165 : vector<1x1x256xf32> to vector<1x256xf32>
    %167 = vector.broadcast %166 : vector<1x256xf32> to vector<8x256xf32>
    %168 = arith.addf %164, %167 : vector<8x256xf32>
    %cst_158 = arith.constant 0.000000e+00 : f32
    %169 = vector.broadcast %cst_158 : f32 to vector<8x256xf32>
    %170 = arith.maximumf %168, %169 : vector<8x256xf32>
    %171 = arith.truncf %170 : vector<8x256xf32> to vector<8x256xbf16>
    %c0_159 = arith.constant 0 : index
    %c0_160 = arith.constant 0 : index
    %c0_161 = arith.constant 0 : index
    %172 = vector.load %arg10[%c0_159, %c0_160, %c0_161] : memref<3x8x8xbf16, #tpu.memory_space<vmem>>, vector<1x8x8xbf16>
    %173 = vector.shape_cast %172 : vector<1x8x8xbf16> to vector<8x8xbf16>
    %cst_162 = arith.constant dense<0.000000e+00> : vector<8x256xf32>
    %174 = tpu.matmul %173, %171, %cst_162 {dimension_numbers = #tpu.dot_dimension_numbers<[1], [0], [0], [1], [0, 0, 1, 1], [], []>} : vector<8x8xbf16>, vector<8x256xbf16>, vector<8x256xf32> -> vector<8x256xf32>
    %c1_163 = arith.constant 1 : index
    %c0_164 = arith.constant 0 : index
    %c0_165 = arith.constant 0 : index
    %175 = vector.load %arg10[%c1_163, %c0_164, %c0_165] : memref<3x8x8xbf16, #tpu.memory_space<vmem>>, vector<1x8x8xbf16>
    %176 = vector.shape_cast %175 : vector<1x8x8xbf16> to vector<8x8xbf16>
    %cst_166 = arith.constant dense<0.000000e+00> : vector<8x256xf32>
    %177 = tpu.matmul %176, %171, %cst_166 {dimension_numbers = #tpu.dot_dimension_numbers<[1], [0], [0], [1], [0, 0, 1, 1], [], []>} : vector<8x8xbf16>, vector<8x256xbf16>, vector<8x256xf32> -> vector<8x256xf32>
    %c2_167 = arith.constant 2 : index
    %c0_168 = arith.constant 0 : index
    %c0_169 = arith.constant 0 : index
    %178 = vector.load %arg10[%c2_167, %c0_168, %c0_169] : memref<3x8x8xbf16, #tpu.memory_space<vmem>>, vector<1x8x8xbf16>
    %179 = vector.shape_cast %178 : vector<1x8x8xbf16> to vector<8x8xbf16>
    %cst_170 = arith.constant dense<0.000000e+00> : vector<8x256xf32>
    %180 = tpu.matmul %179, %171, %cst_170 {dimension_numbers = #tpu.dot_dimension_numbers<[1], [0], [0], [1], [0, 0, 1, 1], [], []>} : vector<8x8xbf16>, vector<8x256xbf16>, vector<8x256xf32> -> vector<8x256xf32>
    %181 = tpu.concatenate %174, %177, %180 in 1 : vector<8x256xf32>, vector<8x256xf32>, vector<8x256xf32> -> vector<8x768xf32>
    %182 = arith.truncf %181 : vector<8x768xf32> to vector<8x768xbf16>
    %c8 = arith.constant 8 : index
    %c0_171 = arith.constant 0 : index
    %c0_172 = arith.constant 0 : index
    %183 = vector.load %arg11[%c8, %c0_171, %c0_172] : memref<9x768x256xbf16, #tpu.memory_space<vmem>>, vector<1x768x256xbf16>
    %184 = vector.shape_cast %183 : vector<1x768x256xbf16> to vector<768x256xbf16>
    %cst_173 = arith.constant dense<0.000000e+00> : vector<8x256xf32>
    %185 = tpu.matmul %182, %184, %cst_173 {dimension_numbers = #tpu.dot_dimension_numbers<[1], [0], [0], [1], [0, 0, 1, 1], [], []>} : vector<8x768xbf16>, vector<768x256xbf16>, vector<8x256xf32> -> vector<8x256xf32>
    %c8_174 = arith.constant 8 : index
    %c0_175 = arith.constant 0 : index
    %c0_176 = arith.constant 0 : index
    %186 = vector.load %arg12[%c8_174, %c0_175, %c0_176] : memref<9x1x256xf32, #tpu.memory_space<vmem>>, vector<1x1x256xf32>
    %187 = vector.shape_cast %186 : vector<1x1x256xf32> to vector<1x256xf32>
    %188 = vector.broadcast %187 : vector<1x256xf32> to vector<8x256xf32>
    %189 = arith.addf %185, %188 : vector<8x256xf32>
    %cst_177 = arith.constant 0.000000e+00 : f32
    %190 = vector.broadcast %cst_177 : f32 to vector<8x256xf32>
    %191 = arith.maximumf %189, %190 : vector<8x256xf32>
    %c0_178 = arith.constant 0 : index
    %c0_179 = arith.constant 0 : index
    %192 = vector.load %arg16[%c0_178, %c0_179] : memref<8x256xf32, #tpu.memory_space<vmem>>, vector<8x256xf32>
    tpu.vector_store %arg16[%c0_178, %c0_179], %191 {strides = array<i32>} : memref<8x256xf32, #tpu.memory_space<vmem>>, vector<8x256xf32>,
    return
  }
  func.func @transform_0(%arg0: i32) -> (i32, i32) {
    %c0_i32 = arith.constant 0 : i32
    %c0_i32_0 = arith.constant 0 : i32
    return %arg0, %c0_i32 : i32, i32
  }
  func.func @transform_1(%arg0: i32) -> (i32, i32, i32) {
    %c0_i32 = arith.constant 0 : i32
    %c0_i32_0 = arith.constant 0 : i32
    %c0_i32_1 = arith.constant 0 : i32
    %c0_i32_2 = arith.constant 0 : i32
    return %c0_i32, %c0_i32_0, %c0_i32_1 : i32, i32, i32
  }
  func.func @transform_2(%arg0: i32) -> (i32, i32, i32) {
    %c0_i32 = arith.constant 0 : i32
    %c0_i32_0 = arith.constant 0 : i32
    %c0_i32_1 = arith.constant 0 : i32
    %c0_i32_2 = arith.constant 0 : i32
    return %c0_i32, %c0_i32_0, %c0_i32_1 : i32, i32, i32
  }
  func.func @transform_3(%arg0: i32) -> (i32, i32, i32) {
    %c0_i32 = arith.constant 0 : i32
    %c0_i32_0 = arith.constant 0 : i32
    %c0_i32_1 = arith.constant 0 : i32
    %c0_i32_2 = arith.constant 0 : i32
    return %c0_i32, %c0_i32_0, %c0_i32_1 : i32, i32, i32
  }
  func.func @transform_4(%arg0: i32) -> (i32, i32, i32) {
    %c0_i32 = arith.constant 0 : i32
    %c0_i32_0 = arith.constant 0 : i32
    %c0_i32_1 = arith.constant 0 : i32
    %c0_i32_2 = arith.constant 0 : i32
    return %c0_i32, %c0_i32_0, %c0_i32_1 : i32, i32, i32
  }
  func.func @transform_5(%arg0: i32) -> (i32, i32, i32) {
    %c0_i32 = arith.constant 0 : i32
    %c0_i32_0 = arith.constant 0 : i32
    %c0_i32_1 = arith.constant 0 : i32
    %c0_i32_2 = arith.constant 0 : i32
    return %c0_i32, %c0_i32_0, %c0_i32_1 : i32, i32, i32
  }
  func.func @transform_6(%arg0: i32) -> (i32, i32, i32) {
    %c0_i32 = arith.constant 0 : i32
    %c0_i32_0 = arith.constant 0 : i32
    %c0_i32_1 = arith.constant 0 : i32
    %c0_i32_2 = arith.constant 0 : i32
    return %c0_i32, %c0_i32_0, %c0_i32_1 : i32, i32, i32
  }
  func.func @transform_7(%arg0: i32) -> (i32, i32, i32) {
    %c0_i32 = arith.constant 0 : i32
    %c0_i32_0 = arith.constant 0 : i32
    %c0_i32_1 = arith.constant 0 : i32
    %c0_i32_2 = arith.constant 0 : i32
    return %c0_i32, %c0_i32_0, %c0_i32_1 : i32, i32, i32
  }
  func.func @transform_8(%arg0: i32) -> (i32, i32, i32) {
    %c0_i32 = arith.constant 0 : i32
    %c0_i32_0 = arith.constant 0 : i32
    %c0_i32_1 = arith.constant 0 : i32
    %c0_i32_2 = arith.constant 0 : i32
    return %c0_i32, %c0_i32_0, %c0_i32_1 : i32, i32, i32
  }
  func.func @transform_9(%arg0: i32) -> (i32, i32, i32) {
    %c0_i32 = arith.constant 0 : i32
    %c0_i32_0 = arith.constant 0 : i32
    %c0_i32_1 = arith.constant 0 : i32
    %c0_i32_2 = arith.constant 0 : i32
    return %c0_i32, %c0_i32_0, %c0_i32_1 : i32, i32, i32
  }
  func.func @transform_10(%arg0: i32) -> (i32, i32, i32) {
    %c0_i32 = arith.constant 0 : i32
    %c0_i32_0 = arith.constant 0 : i32
    %c0_i32_1 = arith.constant 0 : i32
    %c0_i32_2 = arith.constant 0 : i32
    return %c0_i32, %c0_i32_0, %c0_i32_1 : i32, i32, i32
  }
  func.func @transform_11(%arg0: i32) -> (i32, i32, i32) {
    %c0_i32 = arith.constant 0 : i32
    %c0_i32_0 = arith.constant 0 : i32
    %c0_i32_1 = arith.constant 0 : i32
    %c0_i32_2 = arith.constant 0 : i32
    return %c0_i32, %c0_i32_0, %c0_i32_1 : i32, i32, i32
  }
  func.func @transform_12(%arg0: i32) -> (i32, i32) {
    %c0_i32 = arith.constant 0 : i32
    %c0_i32_0 = arith.constant 0 : i32
    return %arg0, %c0_i32 : i32, i32
  }
  func.func @transform_13(%arg0: i32) -> (i32, i32) {
    %c0_i32 = arith.constant 0 : i32
    %c0_i32_0 = arith.constant 0 : i32
    return %arg0, %c0_i32 : i32, i32
  }
  func.func @transform_14(%arg0: i32) -> (i32, i32) {
    %c0_i32 = arith.constant 0 : i32
    %c0_i32_0 = arith.constant 0 : i32
    return %arg0, %c0_i32 : i32, i32
  }
  func.func @transform_15(%arg0: i32) -> (i32, i32) {
    %c0_i32 = arith.constant 0 : i32
    %c0_i32_0 = arith.constant 0 : i32
    return %arg0, %c0_i32 : i32, i32
  }
}

</mosaic_0001>

<llo_original>
// kernel: backbone_base_forward.1
$region0: #{backbone_base_forward.1}
  #allocation0 [shape = 'u32[]', space=smem, size = 0x4, offset = 0x4, fixed_abs, tag = 'smem constant byte address 0x4 - core index']
  #allocation1 [shape = 'u32[144,128]{1,0:T(1,128)}', space=vmem, size = 0x12000, scoped, tag = 'internal scratch']
  %s0 = inlined_call_operand.vmem [shape: bf16[128,256], index: 0, kind: input, shape index: {}]
  %s1 = inlined_call_operand.hbm [shape: bf16[3,32,64], index: 1, kind: input, shape index: {}]
  %s2 = inlined_call_operand.hbm [shape: bf16[3,16,32], index: 2, kind: input, shape index: {}]
  %s3 = inlined_call_operand.hbm [shape: bf16[3,16,16], index: 3, kind: input, shape index: {}]
  %s4 = inlined_call_operand.hbm [shape: bf16[3,8,16], index: 4, kind: input, shape index: {}]
  %s5 = inlined_call_operand.hbm [shape: bf16[3,8,8], index: 5, kind: input, shape index: {}]
  %s6 = inlined_call_operand.hbm [shape: bf16[3,8,8], index: 6, kind: input, shape index: {}]
  %s7 = inlined_call_operand.hbm [shape: bf16[3,8,8], index: 7, kind: input, shape index: {}]
  %s8 = inlined_call_operand.hbm [shape: bf16[3,8,8], index: 8, kind: input, shape index: {}]
  %s9 = inlined_call_operand.hbm [shape: bf16[3,8,8], index: 9, kind: input, shape index: {}]
  %s10 = inlined_call_operand.hbm [shape: bf16[9,768,256], index: 10, kind: input, shape index: {}]
  %s11 = inlined_call_operand.hbm [shape: f32[9,1,256], index: 11, kind: input, shape index: {}]
  %s12 = inlined_call_operand.vmem [shape: f32[32,256], index: 12, kind: output, shape index: {0}]
  %s13 = inlined_call_operand.vmem [shape: f32[16,256], index: 13, kind: output, shape index: {1}]
  %s14 = inlined_call_operand.vmem [shape: f32[16,256], index: 14, kind: output, shape index: {2}]
  %s15 = inlined_call_operand.vmem [shape: f32[16,256], index: 15, kind: output, shape index: {3}]
  %16 = xla_tuple %s12, %s13, %s14, %s15
  %s17 = sld [smem:[#allocation0]]
  $region149: #{backbone_base_forward.1} parent=0
    _
  %s19 = ssub.s32 1, %s17
  %s20 = scalar_select 0, %s19, %s17
  $region1: #{backbone_base_forward.1} parent=0
    #allocation2 [shape = 'u8[24576]{0}', space=vmem, size = 0x6000, scoped, tag = 'input window, operand 1, single buffered']
    #allocation3 [shape = 's32[2]{0}', space=sflag, size = 0x8, scoped, tag = 'scoped memory for backbone_base_forward.1']
    #allocation4 [shape = 'u8[12288]{0}', space=vmem, size = 0x3000, scoped, tag = 'input window, operand 2, single buffered']
    #allocation5 [shape = 's32[1]{0}', space=sflag, size = 0x4, scoped, tag = 'scoped memory for backbone_base_forward.1']
    #allocation6 [shape = 'u8[12288]{0}', space=vmem, size = 0x3000, scoped, tag = 'input window, operand 3, single buffered']
    #allocation7 [shape = 'u8[6144]{0}', space=vmem, size = 0x1800, scoped, tag = 'input window, operand 4, single buffered']
    #allocation8 [shape = 's32[1]{0}', space=sflag, size = 0x4, scoped, tag = 'scoped memory for backbone_base_forward.1']
    #allocation9 [shape = 'u8[6144]{0}', space=vmem, size = 0x1800, scoped, tag = 'input window, operand 5, single buffered']
    #allocation10 [shape = 'u8[6144]{0}', space=vmem, size = 0x1800, scoped, tag = 'input window, operand 6, single buffered']
    #allocation11 [shape = 's32[1]{0}', space=sflag, size = 0x4, scoped, tag = 'scoped memory for backbone_base_forward.1']
    #allocation12 [shape = 'u8[6144]{0}', space=vmem, size = 0x1800, scoped, tag = 'input window, operand 7, single buffered']
    #allocation13 [shape = 'u8[6144]{0}', space=vmem, size = 0x1800, scoped, tag = 'input window, operand 8, single buffered']
    #allocation14 [shape = 's32[1]{0}', space=sflag, size = 0x4, scoped, tag = 'scoped memory for backbone_base_forward.1']
    #allocation15 [shape = 'u8[6144]{0}', space=vmem, size = 0x1800, scoped, tag = 'input window, operand 9, single buffered']
    #allocation16 [shape = 'u8[3538944]{0}', space=vmem, size = 0x360000, scoped, tag = 'input window, operand 10, single buffered']
    #allocation17 [shape = 's32[1]{0}', space=sflag, size = 0x4, scoped, tag = 'scoped memory for backbone_base_forward.1']
    #allocation18 [shape = 'u8[9216]{0}', space=vmem, size = 0x2400, scoped, tag = 'input window, operand 11, single buffered']
    %21 = vsyncpa [#allocation3], 0
    %22 = vsyncpa [#allocation5], 0
    %23 = vsyncpa [#allocation8], 0
    %24 = vsyncpa [#allocation11], 0
    %25 = vsyncpa [#allocation14], 0
    %26 = vsyncpa [#allocation17], 0
    loop: start=0, step=1, limit=4
    $region2: #{backbone_base_forward.1} parent=1 // loop_pre_header
      _
    $region3: #{backbone_base_forward.1} parent=1 // loop_header
      %s28 = sphi 0, %s32
      %p29 = scmp.ge.s32.totalorder %s28, 4
      %s38 = sphi 0, %s40
      %s41 = sphi 0, %s38
      %s42 = sphi 0, %s41
      %s58 = sphi 0, %s42
      %s62 = sphi 0, %s62
      %s64 = sphi 0, %s62
      %s65 = sphi 0, %s64
      %s79 = sphi 0, %s65
      %s83 = sphi 0, %s83
      %s85 = sphi 0, %s83
      %s86 = sphi 0, %s85
      %s100 = sphi 0, %s86
      %s104 = sphi 0, %s104
      %s106 = sphi 0, %s104
      %s107 = sphi 0, %s106
      %s121 = sphi 0, %s107
      %s125 = sphi 0, %s125
      %s127 = sphi 0, %s125
      %s128 = sphi 0, %s127
      %s142 = sphi 0, %s128
      %s146 = sphi 0, %s146
      %s148 = sphi 0, %s146
      %s149 = sphi 0, %s148
      %s163 = sphi 0, %s149
      %s167 = sphi 0, %s167
      %s169 = sphi 0, %s167
      %s170 = sphi 0, %s169
      %s184 = sphi 0, %s170
      %s188 = sphi 0, %s188
      %s190 = sphi 0, %s188
      %s191 = sphi 0, %s190
      %s205 = sphi 0, %s191
      %s209 = sphi 0, %s209
      %s211 = sphi 0, %s209
      %s212 = sphi 0, %s211
      %s226 = sphi 0, %s212
      %s230 = sphi 0, %s230
      %s232 = sphi 0, %s230
      %s233 = sphi 0, %s232
      %s247 = sphi 0, %s233
      %s251 = sphi 0, %s251
      %s253 = sphi 0, %s251
      %s254 = sphi 0, %s253
      %s268 = sphi 0, %s254
      %s272 = sphi 0, %s272
      %s274 = sphi 0, %s272
      %s275 = sphi 0, %s274
      %s289 = sphi 0, %s275
      %s295 = sphi 0, %s297
      %s298 = sphi 0, %s295
      %s299 = sphi 0, %s298
      %s315 = sphi 0, %s299
      %s321 = sphi 0, %s323
      %s324 = sphi 0, %s321
      %s325 = sphi 0, %s324
      %s341 = sphi 0, %s325
      %s347 = sphi 0, %s349
      %s350 = sphi 0, %s347
      %s351 = sphi 0, %s350
      %s367 = sphi 0, %s351
      %s373 = sphi 0, %s375
      %s376 = sphi 0, %s373
      %s377 = sphi 0, %s376
      %s393 = sphi 0, %s377
    $region4: #{backbone_base_forward.1} parent=1 // loop_header_branch
      %31 = sbr.rel (%p29) target = $region8
    $region5: #{backbone_base_forward.1} parent=1 // loop_body
      %s33 = ssub.s32 %s28, 1
      %s34 = ssub.s32 %s28, 2
      %s35 = sadd.s32 %s28, 1
      %s36 = ssub.s32 %s28, %s35
      %p37 = scmp.eq.s32.totalorder %s36, 0
      %s39 = sadd.s32 %s38, 1
      %s40 = scalar_select %p37, %s38, %s39
      %p43 = pneg %p37
      %p44 = scmp.eq.s32.totalorder %s28, 1
      %p45 = por %p43, %p44
      %p46 = scmp.ne.s32.totalorder %s38, %s41
      %p47 = scmp.eq.s32.totalorder %s28, 0
      %p48 = por %p46, %p47
      %p49 = scmp.ne.s32.totalorder %s38, %s41
      %p50 = scmp.eq.s32.totalorder %s33, 1
      %p51 = por %p49, %p50
      %p52 = scmp.ne.s32.totalorder %s41, %s42
      %p53 = scmp.eq.s32.totalorder %s33, 0
      %p54 = por %p52, %p53
      %p55 = scmp.ne.s32.totalorder %s41, %s42
      %p56 = scmp.eq.s32.totalorder %s34, 1
      %p57 = por %p55, %p56
      %p59 = scmp.ne.s32.totalorder %s42, %s58
      %p60 = scmp.eq.s32.totalorder %s34, 0
      %p61 = por %p59, %p60
      %s63 = sadd.s32 %s62, 1
      %p66 = scmp.eq.s32.totalorder %s28, 1
      %p67 = scmp.ne.s32.totalorder %s62, %s64
      %p68 = scmp.eq.s32.totalorder %s28, 0
      %p69 = por %p67, %p68
      %p70 = scmp.ne.s32.totalorder %s62, %s64
      %p71 = scmp.eq.s32.totalorder %s33, 1
      %p72 = por %p70, %p71
      %p73 = scmp.ne.s32.totalorder %s64, %s65
      %p74 = scmp.eq.s32.totalorder %s33, 0
      %p75 = por %p73, %p74
      %p76 = scmp.ne.s32.totalorder %s64, %s65
      %p77 = scmp.eq.s32.totalorder %s34, 1
      %p78 = por %p76, %p77
      %p80 = scmp.ne.s32.totalorder %s65, %s79
      %p81 = scmp.eq.s32.totalorder %s34, 0
      %p82 = por %p80, %p81
      %s84 = sadd.s32 %s83, 1
      %p87 = scmp.eq.s32.totalorder %s28, 1
      %p88 = scmp.ne.s32.totalorder %s83, %s85
      %p89 = scmp.eq.s32.totalorder %s28, 0
      %p90 = por %p88, %p89
      %p91 = scmp.ne.s32.totalorder %s83, %s85
      %p92 = scmp.eq.s32.totalorder %s33, 1
      %p93 = por %p91, %p92
      %p94 = scmp.ne.s32.totalorder %s85, %s86
      %p95 = scmp.eq.s32.totalorder %s33, 0
      %p96 = por %p94, %p95
      %p97 = scmp.ne.s32.totalorder %s85, %s86
      %p98 = scmp.eq.s32.totalorder %s34, 1
      %p99 = por %p97, %p98
      %p101 = scmp.ne.s32.totalorder %s86, %s100
      %p102 = scmp.eq.s32.totalorder %s34, 0
      %p103 = por %p101, %p102
      %s105 = sadd.s32 %s104, 1
      %p108 = scmp.eq.s32.totalorder %s28, 1
      %p109 = scmp.ne.s32.totalorder %s104, %s106
      %p110 = scmp.eq.s32.totalorder %s28, 0
      %p111 = por %p109, %p110
      %p112 = scmp.ne.s32.totalorder %s104, %s106
      %p113 = scmp.eq.s32.totalorder %s33, 1
      %p114 = por %p112, %p113
      %p115 = scmp.ne.s32.totalorder %s106, %s107
      %p116 = scmp.eq.s32.totalorder %s33, 0
      %p117 = por %p115, %p116
      %p118 = scmp.ne.s32.totalorder %s106, %s107
      %p119 = scmp.eq.s32.totalorder %s34, 1
      %p120 = por %p118, %p119
      %p122 = scmp.ne.s32.totalorder %s107, %s121
      %p123 = scmp.eq.s32.totalorder %s34, 0
      %p124 = por %p122, %p123
      %s126 = sadd.s32 %s125, 1
      %p129 = scmp.eq.s32.totalorder %s28, 1
      %p130 = scmp.ne.s32.totalorder %s125, %s127
      %p131 = scmp.eq.s32.totalorder %s28, 0
      %p132 = por %p130, %p131
      %p133 = scmp.ne.s32.totalorder %s125, %s127
      %p134 = scmp.eq.s32.totalorder %s33, 1
      %p135 = por %p133, %p134
      %p136 = scmp.ne.s32.totalorder %s127, %s128
      %p137 = scmp.eq.s32.totalorder %s33, 0
      %p138 = por %p136, %p137
      %p139 = scmp.ne.s32.totalorder %s127, %s128
      %p140 = scmp.eq.s32.totalorder %s34, 1
      %p141 = por %p139, %p140
      %p143 = scmp.ne.s32.totalorder %s128, %s142
      %p144 = scmp.eq.s32.totalorder %s34, 0
      %p145 = por %p143, %p144
      %s147 = sadd.s32 %s146, 1
      %p150 = scmp.eq.s32.totalorder %s28, 1
      %p151 = scmp.ne.s32.totalorder %s146, %s148
      %p152 = scmp.eq.s32.totalorder %s28, 0
      %p153 = por %p151, %p152
      %p154 = scmp.ne.s32.totalorder %s146, %s148
      %p155 = scmp.eq.s32.totalorder %s33, 1
      %p156 = por %p154, %p155
      %p157 = scmp.ne.s32.totalorder %s148, %s149
      %p158 = scmp.eq.s32.totalorder %s33, 0
      %p159 = por %p157, %p158
      %p160 = scmp.ne.s32.totalorder %s148, %s149
      %p161 = scmp.eq.s32.totalorder %s34, 1
      %p162 = por %p160, %p161
      %p164 = scmp.ne.s32.totalorder %s149, %s163
      %p165 = scmp.eq.s32.totalorder %s34, 0
      %p166 = por %p164, %p165
      %s168 = sadd.s32 %s167, 1
      %p171 = scmp.eq.s32.totalorder %s28, 1
      %p172 = scmp.ne.s32.totalorder %s167, %s169
      %p173 = scmp.eq.s32.totalorder %s28, 0
      %p174 = por %p172, %p173
      %p175 = scmp.ne.s32.totalorder %s167, %s169
      %p176 = scmp.eq.s32.totalorder %s33, 1
      %p177 = por %p175, %p176
      %p178 = scmp.ne.s32.totalorder %s169, %s170
      %p179 = scmp.eq.s32.totalorder %s33, 0
      %p180 = por %p178, %p179
      %p181 = scmp.ne.s32.totalorder %s169, %s170
      %p182 = scmp.eq.s32.totalorder %s34, 1
      %p183 = por %p181, %p182
      %p185 = scmp.ne.s32.totalorder %s170, %s184
      %p186 = scmp.eq.s32.totalorder %s34, 0
      %p187 = por %p185, %p186
      %s189 = sadd.s32 %s188, 1
      %p192 = scmp.eq.s32.totalorder %s28, 1
      %p193 = scmp.ne.s32.totalorder %s188, %s190
      %p194 = scmp.eq.s32.totalorder %s28, 0
      %p195 = por %p193, %p194
      %p196 = scmp.ne.s32.totalorder %s188, %s190
      %p197 = scmp.eq.s32.totalorder %s33, 1
      %p198 = por %p196, %p197
      %p199 = scmp.ne.s32.totalorder %s190, %s191
      %p200 = scmp.eq.s32.totalorder %s33, 0
      %p201 = por %p199, %p200
      %p202 = scmp.ne.s32.totalorder %s190, %s191
      %p203 = scmp.eq.s32.totalorder %s34, 1
      %p204 = por %p202, %p203
      %p206 = scmp.ne.s32.totalorder %s191, %s205
      %p207 = scmp.eq.s32.totalorder %s34, 0
      %p208 = por %p206, %p207
      %s210 = sadd.s32 %s209, 1
      %p213 = scmp.eq.s32.totalorder %s28, 1
      %p214 = scmp.ne.s32.totalorder %s209, %s211
      %p215 = scmp.eq.s32.totalorder %s28, 0
      %p216 = por %p214, %p215
      %p217 = scmp.ne.s32.totalorder %s209, %s211
      %p218 = scmp.eq.s32.totalorder %s33, 1
      %p219 = por %p217, %p218
      %p220 = scmp.ne.s32.totalorder %s211, %s212
      %p221 = scmp.eq.s32.totalorder %s33, 0
      %p222 = por %p220, %p221
      %p223 = scmp.ne.s32.totalorder %s211, %s212
      %p224 = scmp.eq.s32.totalorder %s34, 1
      %p225 = por %p223, %p224
      %p227 = scmp.ne.s32.totalorder %s212, %s226
      %p228 = scmp.eq.s32.totalorder %s34, 0
      %p229 = por %p227, %p228
      %s231 = sadd.s32 %s230, 1
      %p234 = scmp.eq.s32.totalorder %s28, 1
      %p235 = scmp.ne.s32.totalorder %s230, %s232
      %p236 = scmp.eq.s32.totalorder %s28, 0
      %p237 = por %p235, %p236
      %p238 = scmp.ne.s32.totalorder %s230, %s232
      %p239 = scmp.eq.s32.totalorder %s33, 1
      %p240 = por %p238, %p239
      %p241 = scmp.ne.s32.totalorder %s232, %s233
      %p242 = scmp.eq.s32.totalorder %s33, 0
      %p243 = por %p241, %p242
      %p244 = scmp.ne.s32.totalorder %s232, %s233
      %p245 = scmp.eq.s32.totalorder %s34, 1
      %p246 = por %p244, %p245
      %p248 = scmp.ne.s32.totalorder %s233, %s247
      %p249 = scmp.eq.s32.totalorder %s34, 0
      %p250 = por %p248, %p249
      %s252 = sadd.s32 %s251, 1
      %p255 = scmp.eq.s32.totalorder %s28, 1
      %p256 = scmp.ne.s32.totalorder %s251, %s253
      %p257 = scmp.eq.s32.totalorder %s28, 0
      %p258 = por %p256, %p257
      %p259 = scmp.ne.s32.totalorder %s251, %s253
      %p260 = scmp.eq.s32.totalorder %s33, 1
      %p261 = por %p259, %p260
      %p262 = scmp.ne.s32.totalorder %s253, %s254
      %p263 = scmp.eq.s32.totalorder %s33, 0
      %p264 = por %p262, %p263
      %p265 = scmp.ne.s32.totalorder %s253, %s254
      %p266 = scmp.eq.s32.totalorder %s34, 1
      %p267 = por %p265, %p266
      %p269 = scmp.ne.s32.totalorder %s254, %s268
      %p270 = scmp.eq.s32.totalorder %s34, 0
      %p271 = por %p269, %p270
      %s273 = sadd.s32 %s272, 1
      %p276 = scmp.eq.s32.totalorder %s28, 1
      %p277 = scmp.ne.s32.totalorder %s272, %s274
      %p278 = scmp.eq.s32.totalorder %s28, 0
      %p279 = por %p277, %p278
      %p280 = scmp.ne.s32.totalorder %s272, %s274
      %p281 = scmp.eq.s32.totalorder %s33, 1
      %p282 = por %p280, %p281
      %p283 = scmp.ne.s32.totalorder %s274, %s275
      %p284 = scmp.eq.s32.totalorder %s33, 0
      %p285 = por %p283, %p284
      %p286 = scmp.ne.s32.totalorder %s274, %s275
      %p287 = scmp.eq.s32.totalorder %s34, 1
      %p288 = por %p286, %p287
      %p290 = scmp.ne.s32.totalorder %s275, %s289
      %p291 = scmp.eq.s32.totalorder %s34, 0
      %p292 = por %p290, %p291
      %s293 = ssub.s32 %s28, %s35
      %p294 = scmp.eq.s32.totalorder %s293, 0
      %s296 = sadd.s32 %s295, 1
      %s297 = scalar_select %p294, %s295, %s296
      %p300 = pneg %p294
      %p301 = scmp.eq.s32.totalorder %s28, 1
      %p302 = por %p300, %p301
      %p303 = scmp.ne.s32.totalorder %s295, %s298
      %p304 = scmp.eq.s32.totalorder %s28, 0
      %p305 = por %p303, %p304
      %p306 = scmp.ne.s32.totalorder %s295, %s298
      %p307 = scmp.eq.s32.totalorder %s33, 1
      %p308 = por %p306, %p307
      %p309 = scmp.ne.s32.totalorder %s298, %s299
      %p310 = scmp.eq.s32.totalorder %s33, 0
      %p311 = por %p309, %p310
      %p312 = scmp.ne.s32.totalorder %s298, %s299
      %p313 = scmp.eq.s32.totalorder %s34, 1
      %p314 = por %p312, %p313
      %p316 = scmp.ne.s32.totalorder %s299, %s315
      %p317 = scmp.eq.s32.totalorder %s34, 0
      %p318 = por %p316, %p317
      %s319 = ssub.s32 %s28, %s35
      %p320 = scmp.eq.s32.totalorder %s319, 0
      %s322 = sadd.s32 %s321, 1
      %s323 = scalar_select %p320, %s321, %s322
      %p326 = pneg %p320
      %p327 = scmp.eq.s32.totalorder %s28, 1
      %p328 = por %p326, %p327
      %p329 = scmp.ne.s32.totalorder %s321, %s324
      %p330 = scmp.eq.s32.totalorder %s28, 0
      %p331 = por %p329, %p330
      %p332 = scmp.ne.s32.totalorder %s321, %s324
      %p333 = scmp.eq.s32.totalorder %s33, 1
      %p334 = por %p332, %p333
      %p335 = scmp.ne.s32.totalorder %s324, %s325
      %p336 = scmp.eq.s32.totalorder %s33, 0
      %p337 = por %p335, %p336
      %p338 = scmp.ne.s32.totalorder %s324, %s325
      %p339 = scmp.eq.s32.totalorder %s34, 1
      %p340 = por %p338, %p339
      %p342 = scmp.ne.s32.totalorder %s325, %s341
      %p343 = scmp.eq.s32.totalorder %s34, 0
      %p344 = por %p342, %p343
      %s345 = ssub.s32 %s28, %s35
      %p346 = scmp.eq.s32.totalorder %s345, 0
      %s348 = sadd.s32 %s347, 1
      %s349 = scalar_select %p346, %s347, %s348
      %p352 = pneg %p346
      %p353 = scmp.eq.s32.totalorder %s28, 1
      %p354 = por %p352, %p353
      %p355 = scmp.ne.s32.totalorder %s347, %s350
      %p356 = scmp.eq.s32.totalorder %s28, 0
      %p357 = por %p355, %p356
      %p358 = scmp.ne.s32.totalorder %s347, %s350
      %p359 = scmp.eq.s32.totalorder %s33, 1
      %p360 = por %p358, %p359
      %p361 = scmp.ne.s32.totalorder %s350, %s351
      %p362 = scmp.eq.s32.totalorder %s33, 0
      %p363 = por %p361, %p362
      %p364 = scmp.ne.s32.totalorder %s350, %s351
      %p365 = scmp.eq.s32.totalorder %s34, 1
      %p366 = por %p364, %p365
      %p368 = scmp.ne.s32.totalorder %s351, %s367
      %p369 = scmp.eq.s32.totalorder %s34, 0
      %p370 = por %p368, %p369
      %s371 = ssub.s32 %s28, %s35
      %p372 = scmp.eq.s32.totalorder %s371, 0
      %s374 = sadd.s32 %s373, 1
      %s375 = scalar_select %p372, %s373, %s374
      %p378 = pneg %p372
      %p379 = scmp.eq.s32.totalorder %s28, 1
      %p380 = por %p378, %p379
      %p381 = scmp.ne.s32.totalorder %s373, %s376
      %p382 = scmp.eq.s32.totalorder %s28, 0
      %p383 = por %p381, %p382
      %p384 = scmp.ne.s32.totalorder %s373, %s376
      %p385 = scmp.eq.s32.totalorder %s33, 1
      %p386 = por %p384, %p385
      %p387 = scmp.ne.s32.totalorder %s376, %s377
      %p388 = scmp.eq.s32.totalorder %s33, 0
      %p389 = por %p387, %p388
      %p390 = scmp.ne.s32.totalorder %s376, %s377
      %p391 = scmp.eq.s32.totalorder %s34, 1
      %p392 = por %p390, %p391
      %p394 = scmp.ne.s32.totalorder %s377, %s393
      %p395 = scmp.eq.s32.totalorder %s34, 0
      %p396 = por %p394, %p395
      %p397 = scmp.le.s32.totalorder 1, %s28
      %p398 = scmp.lt.s32.totalorder %s28, 3
      %p399 = pnand %p397, %p398
      %p400 = pneg %p399
      // Predicated region
      $region9: #{backbone_base_forward.1} parent=5 // pred_check
        _
      $region10: #{backbone_base_forward.1} parent=5 // pred_check_branch
        %402 = sbr.rel (%p399) target = $region12
      $region11: #{backbone_base_forward.1} parent=5 // pred_region
        %s403 = ssub.s32 %s28, 1
        // Predicated region
        $region13: #{backbone_base_forward.1} parent=11 // pred_check
          %p404 = pneg %p75
        $region14: #{backbone_base_forward.1} parent=11 // pred_check_branch
          %406 = sbr.rel (%p404) target = $region16
        $region15: #{backbone_base_forward.1} parent=11 // pred_region
          %s408 = ssub.s32 768, 768
          %409 = vsyncadd [#allocation3], %s408
          %s410 = sshll.u32 [#allocation2], 4
          %s411 = int_to_ptr.vmem [resolvable:$true] %s410
          %416 = dma.hbm_to_vmem [thread:$0]  %s1, 768, %s411, [#allocation3], 64, 64, 4
        $region16: #{backbone_base_forward.1} parent=11 // pred_fallthru
          _
        // Predicated region
        $region17: #{backbone_base_forward.1} parent=11 // pred_check
          %p417 = pneg %p96
        $region18: #{backbone_base_forward.1} parent=11 // pred_check_branch
          %419 = sbr.rel (%p417) target = $region20
        $region19: #{backbone_base_forward.1} parent=11 // pred_region
          %s421 = ssub.s32 384, 384
          %422 = vsyncadd [#allocation5], %s421
          %s423 = sshll.u32 [#allocation4], 4
          %s424 = int_to_ptr.vmem [resolvable:$true] %s423
          %429 = dma.hbm_to_vmem [thread:$0]  %s2, 384, %s424, [#allocation5], 64, 64, 4
        $region20: #{backbone_base_forward.1} parent=11 // pred_fallthru
          _
        // Predicated region
        $region21: #{backbone_base_forward.1} parent=11 // pred_check
          %p430 = pneg %p117
        $region22: #{backbone_base_forward.1} parent=11 // pred_check_branch
          %432 = sbr.rel (%p430) target = $region24
        $region23: #{backbone_base_forward.1} parent=11 // pred_region
          %s434 = ssub.s32 384, 384
          %435 = vsyncadd [#allocation5], %s434
          %s436 = sshll.u32 [#allocation6], 4
          %s437 = int_to_ptr.vmem [resolvable:$true] %s436
          %442 = dma.hbm_to_vmem [thread:$0]  %s3, 384, %s437, [#allocation5], 64, 64, 4
        $region24: #{backbone_base_forward.1} parent=11 // pred_fallthru
          _
        // Predicated region
        $region25: #{backbone_base_forward.1} parent=11 // pred_check
          %p443 = pneg %p138
        $region26: #{backbone_base_forward.1} parent=11 // pred_check_branch
          %445 = sbr.rel (%p443) target = $region28
        $region27: #{backbone_base_forward.1} parent=11 // pred_region
          %s447 = ssub.s32 192, 192
          %448 = vsyncadd [#allocation8], %s447
          %s449 = sshll.u32 [#allocation7], 4
          %s450 = int_to_ptr.vmem [resolvable:$true] %s449
          %455 = dma.hbm_to_vmem [thread:$0]  %s4, 192, %s450, [#allocation8], 64, 64, 4
        $region28: #{backbone_base_forward.1} parent=11 // pred_fallthru
          _
        // Predicated region
        $region29: #{backbone_base_forward.1} parent=11 // pred_check
          %p456 = pneg %p159
        $region30: #{backbone_base_forward.1} parent=11 // pred_check_branch
          %458 = sbr.rel (%p456) target = $region32
        $region31: #{backbone_base_forward.1} parent=11 // pred_region
          %s460 = ssub.s32 192, 192
          %461 = vsyncadd [#allocation8], %s460
          %s462 = sshll.u32 [#allocation9], 4
          %s463 = int_to_ptr.vmem [resolvable:$true] %s462
          %468 = dma.hbm_to_vmem [thread:$0]  %s5, 192, %s463, [#allocation8], 64, 64, 4
        $region32: #{backbone_base_forward.1} parent=11 // pred_fallthru
          _
        // Predicated region
        $region33: #{backbone_base_forward.1} parent=11 // pred_check
          %p469 = pneg %p180
        $region34: #{backbone_base_forward.1} parent=11 // pred_check_branch
          %471 = sbr.rel (%p469) target = $region36
        $region35: #{backbone_base_forward.1} parent=11 // pred_region
          %s473 = ssub.s32 192, 192
          %474 = vsyncadd [#allocation11], %s473
          %s475 = sshll.u32 [#allocation10], 4
          %s476 = int_to_ptr.vmem [resolvable:$true] %s475
          %481 = dma.hbm_to_vmem [thread:$0]  %s6, 192, %s476, [#allocation11], 64, 64, 4
        $region36: #{backbone_base_forward.1} parent=11 // pred_fallthru
          _
        // Predicated region
        $region37: #{backbone_base_forward.1} parent=11 // pred_check
          %p482 = pneg %p201
        $region38: #{backbone_base_forward.1} parent=11 // pred_check_branch
          %484 = sbr.rel (%p482) target = $region40
        $region39: #{backbone_base_forward.1} parent=11 // pred_region
          %s486 = ssub.s32 192, 192
          %487 = vsyncadd [#allocation11], %s486
          %s488 = sshll.u32 [#allocation12], 4
          %s489 = int_to_ptr.vmem [resolvable:$true] %s488
          %494 = dma.hbm_to_vmem [thread:$0]  %s7, 192, %s489, [#allocation11], 64, 64, 4
        $region40: #{backbone_base_forward.1} parent=11 // pred_fallthru
          _
        // Predicated region
        $region41: #{backbone_base_forward.1} parent=11 // pred_check
          %p495 = pneg %p222
        $region42: #{backbone_base_forward.1} parent=11 // pred_check_branch
          %497 = sbr.rel (%p495) target = $region44
        $region43: #{backbone_base_forward.1} parent=11 // pred_region
          %s499 = ssub.s32 192, 192
          %500 = vsyncadd [#allocation14], %s499
          %s501 = sshll.u32 [#allocation13], 4
          %s502 = int_to_ptr.vmem [resolvable:$true] %s501
          %507 = dma.hbm_to_vmem [thread:$0]  %s8, 192, %s502, [#allocation14], 64, 64, 4
        $region44: #{backbone_base_forward.1} parent=11 // pred_fallthru
          _
        // Predicated region
        $region45: #{backbone_base_forward.1} parent=11 // pred_check
          %p508 = pneg %p243
        $region46: #{backbone_base_forward.1} parent=11 // pred_check_branch
          %510 = sbr.rel (%p508) target = $region48
        $region47: #{backbone_base_forward.1} parent=11 // pred_region
          %s512 = ssub.s32 192, 192
          %513 = vsyncadd [#allocation14], %s512
          %s514 = sshll.u32 [#allocation15], 4
          %s515 = int_to_ptr.vmem [resolvable:$true] %s514
          %520 = dma.hbm_to_vmem [thread:$0]  %s9, 192, %s515, [#allocation14], 64, 64, 4
        $region48: #{backbone_base_forward.1} parent=11 // pred_fallthru
          _
        // Predicated region
        $region49: #{backbone_base_forward.1} parent=11 // pred_check
          %p521 = pneg %p264
        $region50: #{backbone_base_forward.1} parent=11 // pred_check_branch
          %523 = sbr.rel (%p521) target = $region52
        $region51: #{backbone_base_forward.1} parent=11 // pred_region
          %s525 = ssub.s32 110592, 110592
          %526 = vsyncadd [#allocation17], %s525
          %s527 = sshll.u32 [#allocation16], 4
          %s528 = int_to_ptr.vmem [resolvable:$true] %s527
          %533 = dma.hbm_to_vmem [thread:$0]  %s10, 110592, %s528, [#allocation17], 128, 128, 8
        $region52: #{backbone_base_forward.1} parent=11 // pred_fallthru
          _
        // Predicated region
        $region53: #{backbone_base_forward.1} parent=11 // pred_check
          %p534 = pneg %p285
        $region54: #{backbone_base_forward.1} parent=11 // pred_check_branch
          %536 = sbr.rel (%p534) target = $region56
        $region55: #{backbone_base_forward.1} parent=11 // pred_region
          %s538 = ssub.s32 288, 288
          %539 = vsyncadd [#allocation17], %s538
          %s540 = sshll.u32 [#allocation18], 4
          %s541 = int_to_ptr.vmem [resolvable:$true] %s540
          %546 = dma.hbm_to_vmem [thread:$0]  %s11, 288, %s541, [#allocation17], 32, 32, 2
        $region56: #{backbone_base_forward.1} parent=11 // pred_fallthru
          _
      $region12: #{backbone_base_forward.1} parent=5 // pred_fallthru
        _
      %p547 = scmp.lt.s32.totalorder %s28, 2
      // Predicated region
      $region57: #{backbone_base_forward.1} parent=5 // pred_check
        %p548 = pneg %p547
      $region58: #{backbone_base_forward.1} parent=5 // pred_check_branch
        %550 = sbr.rel (%p548) target = $region60
      $region59: #{backbone_base_forward.1} parent=5 // pred_region
        // Predicated region
        $region61: #{backbone_base_forward.1} parent=59 // pred_check
          %p551 = pneg %p48
        $region62: #{backbone_base_forward.1} parent=59 // pred_check_branch
          %553 = sbr.rel (%p551) target = $region64
        $region63: #{backbone_base_forward.1} parent=59 // pred_region
          %s554 = smul.u32 8, %s28
          %p555 = scmp.lt.s32.totalorder %s554, 15
          %s556 = scalar_select %p555, %s554, 15
          %s557 = smul.addr %s556, 2
          %s558 = smul.addr %s557, 4
          %s559 = scalar_lea.vmem %s0, %s558
          %s560 = smul.u32 8, %s28
        $region64: #{backbone_base_forward.1} parent=59 // pred_fallthru
          _
      $region60: #{backbone_base_forward.1} parent=5 // pred_fallthru
        _
      %p561 = scmp.le.s32.totalorder 1, %s28
      %p562 = scmp.lt.s32.totalorder %s28, 3
      %p563 = pnand %p561, %p562
      %p564 = pneg %p563
      // Predicated region
      $region65: #{backbone_base_forward.1} parent=5 // pred_check
        _
      $region66: #{backbone_base_forward.1} parent=5 // pred_check_branch
        %566 = sbr.rel (%p563) target = $region68
      $region67: #{backbone_base_forward.1} parent=5 // pred_region
        %s567 = ssub.s32 %s28, 1
        // Predicated region
        $region69: #{backbone_base_forward.1} parent=67 // pred_check
          %p568 = pneg %p75
        $region70: #{backbone_base_forward.1} parent=67 // pred_check_branch
          %570 = sbr.rel (%p568) target = $region72
        $region71: #{backbone_base_forward.1} parent=67 // pred_region
          %571 = dma.done [#allocation3], 768
        $region72: #{backbone_base_forward.1} parent=67 // pred_fallthru
          _
        // Predicated region
        $region73: #{backbone_base_forward.1} parent=67 // pred_check
          %p572 = pneg %p96
        $region74: #{backbone_base_forward.1} parent=67 // pred_check_branch
          %574 = sbr.rel (%p572) target = $region76
        $region75: #{backbone_base_forward.1} parent=67 // pred_region
          %575 = dma.done [#allocation5], 384
        $region76: #{backbone_base_forward.1} parent=67 // pred_fallthru
          _
        // Predicated region
        $region77: #{backbone_base_forward.1} parent=67 // pred_check
          %p576 = pneg %p117
        $region78: #{backbone_base_forward.1} parent=67 // pred_check_branch
          %578 = sbr.rel (%p576) target = $region80
        $region79: #{backbone_base_forward.1} parent=67 // pred_region
          %579 = dma.done [#allocation5], 384
        $region80: #{backbone_base_forward.1} parent=67 // pred_fallthru
          _
        // Predicated region
        $region81: #{backbone_base_forward.1} parent=67 // pred_check
          %p580 = pneg %p138
        $region82: #{backbone_base_forward.1} parent=67 // pred_check_branch
          %582 = sbr.rel (%p580) target = $region84
        $region83: #{backbone_base_forward.1} parent=67 // pred_region
          %583 = dma.done [#allocation8], 192
        $region84: #{backbone_base_forward.1} parent=67 // pred_fallthru
          _
        // Predicated region
        $region85: #{backbone_base_forward.1} parent=67 // pred_check
          %p584 = pneg %p159
        $region86: #{backbone_base_forward.1} parent=67 // pred_check_branch
          %586 = sbr.rel (%p584) target = $region88
        $region87: #{backbone_base_forward.1} parent=67 // pred_region
          %587 = dma.done [#allocation8], 192
        $region88: #{backbone_base_forward.1} parent=67 // pred_fallthru
          _
        // Predicated region
        $region89: #{backbone_base_forward.1} parent=67 // pred_check
          %p588 = pneg %p180
        $region90: #{backbone_base_forward.1} parent=67 // pred_check_branch
          %590 = sbr.rel (%p588) target = $region92
        $region91: #{backbone_base_forward.1} parent=67 // pred_region
          %591 = dma.done [#allocation11], 192
        $region92: #{backbone_base_forward.1} parent=67 // pred_fallthru
          _
        // Predicated region
        $region93: #{backbone_base_forward.1} parent=67 // pred_check
          %p592 = pneg %p201
        $region94: #{backbone_base_forward.1} parent=67 // pred_check_branch
          %594 = sbr.rel (%p592) target = $region96
        $region95: #{backbone_base_forward.1} parent=67 // pred_region
          %595 = dma.done [#allocation11], 192
        $region96: #{backbone_base_forward.1} parent=67 // pred_fallthru
          _
        // Predicated region
        $region97: #{backbone_base_forward.1} parent=67 // pred_check
          %p596 = pneg %p222
        $region98: #{backbone_base_forward.1} parent=67 // pred_check_branch
          %598 = sbr.rel (%p596) target = $region100
        $region99: #{backbone_base_forward.1} parent=67 // pred_region
          %599 = dma.done [#allocation14], 192
        $region100: #{backbone_base_forward.1} parent=67 // pred_fallthru
          _
        // Predicated region
        $region101: #{backbone_base_forward.1} parent=67 // pred_check
          %p600 = pneg %p243
        $region102: #{backbone_base_forward.1} parent=67 // pred_check_branch
          %602 = sbr.rel (%p600) target = $region104
        $region103: #{backbone_base_forward.1} parent=67 // pred_region
          %603 = dma.done [#allocation14], 192
        $region104: #{backbone_base_forward.1} parent=67 // pred_fallthru
          _
        // Predicated region
        $region105: #{backbone_base_forward.1} parent=67 // pred_check
          %p604 = pneg %p264
        $region106: #{backbone_base_forward.1} parent=67 // pred_check_branch
          %606 = sbr.rel (%p604) target = $region108
        $region107: #{backbone_base_forward.1} parent=67 // pred_region
          %607 = dma.done [#allocation17], 110592
        $region108: #{backbone_base_forward.1} parent=67 // pred_fallthru
          _
        // Predicated region
        $region109: #{backbone_base_forward.1} parent=67 // pred_check
          %p608 = pneg %p285
        $region110: #{backbone_base_forward.1} parent=67 // pred_check_branch
          %610 = sbr.rel (%p608) target = $region112
        $region111: #{backbone_base_forward.1} parent=67 // pred_region
          %611 = dma.done [#allocation17], 288
        $region112: #{backbone_base_forward.1} parent=67 // pred_fallthru
          _
        %s612 = smul.u32 8, %s33
        %p613 = scmp.lt.s32.totalorder %s612, 15
        %s614 = scalar_select %p613, %s612, 15
        %s615 = smul.addr %s614, 2
        %s616 = smul.addr %s615, 4
        %s617 = scalar_lea.vmem %s0, %s616
        %p618 = pneg %p54
        %p619 = pneg %p51
        %p620 = pneg %p75
        %p621 = pneg %p72
        %p622 = pneg %p96
        %p623 = pneg %p93
        %p624 = pneg %p117
        %p625 = pneg %p114
        %p626 = pneg %p138
        %p627 = pneg %p135
        %p628 = pneg %p159
        %p629 = pneg %p156
        %p630 = pneg %p180
        %p631 = pneg %p177
        %p632 = pneg %p201
        %p633 = pneg %p198
        %p634 = pneg %p222
        %p635 = pneg %p219
        %p636 = pneg %p243
        %p637 = pneg %p240
        %p638 = pneg %p264
        %p639 = pneg %p261
        %p640 = pneg %p285
        %p641 = pneg %p282
        %p642 = pneg %p311
        %p643 = pneg %p308
        %s644 = smul.u32 2, %s33
        %p645 = scmp.lt.s32.totalorder %s644, 3
        %s646 = scalar_select %p645, %s644, 3
        %s647 = smul.addr %s646, 2
        %s648 = smul.addr %s647, 8
        %s649 = scalar_lea.vmem %s12, %s648
        %p650 = pneg %p337
        %p651 = pneg %p334
        %p652 = scmp.lt.s32.totalorder %s33, 1
        %s653 = scalar_select %p652, %s33, 1
        %s654 = smul.addr %s653, 2
        %s655 = smul.addr %s654, 8
        %s656 = scalar_lea.vmem %s13, %s655
        %p657 = pneg %p363
        %p658 = pneg %p360
        %p659 = scmp.lt.s32.totalorder %s33, 1
        %s660 = scalar_select %p659, %s33, 1
        %s661 = smul.addr %s660, 2
        %s662 = smul.addr %s661, 8
        %s663 = scalar_lea.vmem %s14, %s662
        %p664 = pneg %p389
        %p665 = pneg %p386
        %p666 = scmp.lt.s32.totalorder %s33, 1
        %s667 = scalar_select %p666, %s33, 1
        %s668 = smul.addr %s667, 2
        %s669 = smul.addr %s668, 8
        %s670 = scalar_lea.vmem %s15, %s669
        %s671 = smul.u32 8, %s33
        %p672 = scmp.lt.s32.totalorder %s671, 15
        %s673 = scalar_select %p672, %s671, 15
        %s674 = smul.addr %s673, 2
        %s675 = smul.addr %s674, 4
        %s676 = scalar_lea.vmem %s0, %s675
        %s677 = smul.u32 8, %s33
        %s678 = smul.u32 2, %s33
        %p679 = scmp.lt.s32.totalorder %s678, 3
        %s680 = scalar_select %p679, %s678, 3
        %s681 = smul.addr %s680, 2
        %s682 = smul.addr %s681, 8
        %s683 = scalar_lea.vmem %s12, %s682
        %s684 = smul.u32 2, %s33
        %p685 = scmp.lt.s32.totalorder %s33, 1
        %s686 = scalar_select %p685, %s33, 1
        %s687 = smul.addr %s686, 2
        %s688 = smul.addr %s687, 8
        %s689 = scalar_lea.vmem %s13, %s688
        %p690 = scmp.lt.s32.totalorder %s33, 1
        %s691 = scalar_select %p690, %s33, 1
        %s692 = smul.addr %s691, 2
        %s693 = smul.addr %s692, 8
        %s694 = scalar_lea.vmem %s14, %s693
        %p695 = scmp.lt.s32.totalorder %s33, 1
        %s696 = scalar_select %p695, %s33, 1
        %s697 = smul.addr %s696, 2
        %s698 = smul.addr %s697, 8
        %s699 = scalar_lea.vmem %s15, %s698
        %v701 = vld [vmem:[%s676] sm:$0xff]
        %v702 = vld [vmem:[%s676 + $0x8] sm:$0xff]
        %v703 = vld [vmem:[%s676 + $0x10] sm:$0xff]
        %v704 = vld [vmem:[%s676 + $0x18] sm:$0xff]
        %v705 = vld [vmem:[%s676 + $0x20] sm:$0xff]
        %v706 = vld [vmem:[%s676 + $0x28] sm:$0xff]
        %v707 = vld [vmem:[%s676 + $0x30] sm:$0xff]
        %v708 = vld [vmem:[%s676 + $0x38] sm:$0xff]
        %v709 = vld [vmem:[#allocation2] sm:$0xf]
        %v710 = vld [vmem:[#allocation2 + $0x4] sm:$0xf]
        %v711 = vld [vmem:[#allocation2 + $0x8] sm:$0xf]
        %v712 = vld [vmem:[#allocation2 + $0xc] sm:$0xf]
        %v717 = vunpack.c.l.b16 %v709
        %v718 = vunpack.c.l.b16 %v710
        %v719 = vunpack.c.l.b16 %v711
        %v720 = vunpack.c.l.b16 %v712
        %v721 = vpack.c.b16 %v718, %v717
        %v722 = vpack.c.b16 %v720, %v719
        %v731 = vunpack.c.l.b16 %v701
        %v732 = vunpack.c.h.b16 %v701
        %v733 = vunpack.c.l.b16 %v702
        %v734 = vunpack.c.h.b16 %v702
        %v735 = vunpack.c.l.b16 %v703
        %v736 = vunpack.c.h.b16 %v703
        %v737 = vunpack.c.l.b16 %v704
        %v738 = vunpack.c.h.b16 %v704
        %v739 = vunpack.c.l.b16 %v705
        %v740 = vunpack.c.h.b16 %v705
        %v741 = vunpack.c.l.b16 %v706
        %v742 = vunpack.c.h.b16 %v706
        %v743 = vunpack.c.l.b16 %v707
        %v744 = vunpack.c.h.b16 %v707
        %v745 = vunpack.c.l.b16 %v708
        %v746 = vunpack.c.h.b16 %v708
        %v747 = vpack.c.b16 %v733, %v731
        %v748 = vpack.c.b16 %v734, %v732
        %v749 = vpack.c.b16 %v737, %v735
        %v750 = vpack.c.b16 %v738, %v736
        %v751 = vpack.c.b16 %v741, %v739
        %v752 = vpack.c.b16 %v742, %v740
        %v753 = vpack.c.b16 %v745, %v743
        %v754 = vpack.c.b16 %v746, %v744
        %vm763 = vcmask 523264
        %v765 = vsel %vm763, %v721, 0
        %v768 = vsel %vm763, %v722, 0
        %770 = vmatprep.subr.bf16.mxu0 0
        %771 = vmatpush1.bf16.msra.mxu0 0
        %772 = vmatprep.subr.bf16.mxu0 0
        %773 = vmatpush1.bf16.msra.mxu0 0
        %774 = vmatprep.subr.bf16.mxu0 0
        %775 = vmatpush1.bf16.msra.mxu0 0
        %776 = vmatprep.subr.bf16.mxu0 0
        %777 = vmatpush1.bf16.msra.mxu0 0
        %778 = vmatprep.subr.bf16.mxu0 %v754
        %779 = vmatpush1.bf16.msra.mxu0 %v753
        %780 = vmatprep.subr.bf16.mxu0 %v752
        %781 = vmatpush1.bf16.msra.mxu0 %v751
        %782 = vmatprep.subr.bf16.mxu0 %v750
        %783 = vmatpush1.bf16.msra.mxu0 %v749
        %784 = vmatprep.subr.bf16.mxu0 %v748
        %785 = vmatpush1.bf16.msra.mxu0 %v747
        %786 = vmatprep.subr.bf16.mxu0 0
        %787 = vmatpush2.bf16.msra.mxu0 0
        %788 = vmatprep.subr.bf16.mxu0 0
        %789 = vmatpush2.bf16.msra.mxu0 0
        %790 = vmatprep.subr.bf16.mxu0 0
        %791 = vmatpush2.bf16.msra.mxu0 0
        %792 = vmatprep.subr.bf16.mxu0 0
        %793 = vmatpush2.bf16.msra.mxu0 0
        %794 = vmatprep.subr.bf16.mxu0 0
        %795 = vmatpush2.bf16.msra.mxu0 0
        %796 = vmatprep.subr.bf16.mxu0 0
        %797 = vmatpush2.bf16.msra.mxu0 0
        %798 = vmatprep.subr.bf16.mxu0 0
        %799 = vmatpush2.bf16.msra.mxu0 0
        %800 = vmatprep.subr.bf16.mxu0 0
        %801 = vmatpush2.bf16.msra.mxu0 0
        %802 = vmatprep.mubr.bf16.mxu0 0
        %803 = vmatmul.mubr.bf16.gmra.mxu0 %v765
        %v804 = vpop.f32.mrf.mxu0
        %v805 = vadd.f32 0.0, %v804
        %v806 = vpop.f32.mrf.mxu0
        %v807 = vadd.f32 0.0, %v806
        %v808 = vpop.f32.mrf.mxu0
        %v809 = vadd.f32 0.0, %v808
        %v810 = vpop.f32.mrf.mxu0
        %v811 = vadd.f32 0.0, %v810
        %812 = vmatprep.mubr.bf16.mxu0 0
        %813 = vmatmul.mubr.bf16.gmra.mxu0 %v768
        %v814 = vpop.f32.mrf.mxu0
        %v815 = vadd.f32 0.0, %v814
        %v816 = vpop.f32.mrf.mxu0
        %v817 = vadd.f32 0.0, %v816
        %v818 = vpop.f32.mrf.mxu0
        %v819 = vadd.f32 0.0, %v818
        %v820 = vpop.f32.mrf.mxu0
        %v821 = vadd.f32 0.0, %v820
        %822 = vdwg.mxu0
        %s823 = scalar_lea.vmem [#allocation2], 16
        %v824 = vld [vmem:[%s823] sm:$0xf]
        %v825 = vld [vmem:[%s823 + $0x4] sm:$0xf]
        %v826 = vld [vmem:[%s823 + $0x8] sm:$0xf]
        %v827 = vld [vmem:[%s823 + $0xc] sm:$0xf]
        %v832 = vunpack.c.l.b16 %v824
        %v833 = vunpack.c.l.b16 %v825
        %v834 = vunpack.c.l.b16 %v826
        %v835 = vunpack.c.l.b16 %v827
        %v836 = vpack.c.b16 %v833, %v832
        %v837 = vpack.c.b16 %v835, %v834
        %v839 = vsel %vm763, %v836, 0
        %v842 = vsel %vm763, %v837, 0
        %844 = vmatprep.subr.bf16.mxu0 0
        %845 = vmatpush1.bf16.msra.mxu0 0
        %846 = vmatprep.subr.bf16.mxu0 0
        %847 = vmatpush1.bf16.msra.mxu0 0
        %848 = vmatprep.subr.bf16.mxu0 0
        %849 = vmatpush1.bf16.msra.mxu0 0
        %850 = vmatprep.subr.bf16.mxu0 0
        %851 = vmatpush1.bf16.msra.mxu0 0
        %852 = vmatprep.subr.bf16.mxu0 %v754
        %853 = vmatpush1.bf16.msra.mxu0 %v753
        %854 = vmatprep.subr.bf16.mxu0 %v752
        %855 = vmatpush1.bf16.msra.mxu0 %v751
        %856 = vmatprep.subr.bf16.mxu0 %v750
        %857 = vmatpush1.bf16.msra.mxu0 %v749
        %858 = vmatprep.subr.bf16.mxu0 %v748
        %859 = vmatpush1.bf16.msra.mxu0 %v747
        %860 = vmatprep.subr.bf16.mxu0 0
        %861 = vmatpush2.bf16.msra.mxu0 0
        %862 = vmatprep.subr.bf16.mxu0 0
        %863 = vmatpush2.bf16.msra.mxu0 0
        %864 = vmatprep.subr.bf16.mxu0 0
        %865 = vmatpush2.bf16.msra.mxu0 0
        %866 = vmatprep.subr.bf16.mxu0 0
        %867 = vmatpush2.bf16.msra.mxu0 0
        %868 = vmatprep.subr.bf16.mxu0 0
        %869 = vmatpush2.bf16.msra.mxu0 0
        %870 = vmatprep.subr.bf16.mxu0 0
        %871 = vmatpush2.bf16.msra.mxu0 0
        %872 = vmatprep.subr.bf16.mxu0 0
        %873 = vmatpush2.bf16.msra.mxu0 0
        %874 = vmatprep.subr.bf16.mxu0 0
        %875 = vmatpush2.bf16.msra.mxu0 0
        %876 = vmatprep.mubr.bf16.mxu0 0
        %877 = vmatmul.mubr.bf16.gmra.mxu0 %v839
        %v878 = vpop.f32.mrf.mxu0
        %v879 = vadd.f32 0.0, %v878
        %v880 = vpop.f32.mrf.mxu0
        %v881 = vadd.f32 0.0, %v880
        %v882 = vpop.f32.mrf.mxu0
        %v883 = vadd.f32 0.0, %v882
        %v884 = vpop.f32.mrf.mxu0
        %v885 = vadd.f32 0.0, %v884
        %886 = vmatprep.mubr.bf16.mxu0 0
        %887 = vmatmul.mubr.bf16.gmra.mxu0 %v842
        %v888 = vpop.f32.mrf.mxu0
        %v889 = vadd.f32 0.0, %v888
        %v890 = vpop.f32.mrf.mxu0
        %v891 = vadd.f32 0.0, %v890
        %v892 = vpop.f32.mrf.mxu0
        %v893 = vadd.f32 0.0, %v892
        %v894 = vpop.f32.mrf.mxu0
        %v895 = vadd.f32 0.0, %v894
        %896 = vdwg.mxu0
        %s897 = scalar_lea.vmem [#allocation2], 32
        %v898 = vld [vmem:[%s897] sm:$0xf]
        %v899 = vld [vmem:[%s897 + $0x4] sm:$0xf]
        %v900 = vld [vmem:[%s897 + $0x8] sm:$0xf]
        %v901 = vld [vmem:[%s897 + $0xc] sm:$0xf]
        %v906 = vunpack.c.l.b16 %v898
        %v907 = vunpack.c.l.b16 %v899
        %v908 = vunpack.c.l.b16 %v900
        %v909 = vunpack.c.l.b16 %v901
        %v910 = vpack.c.b16 %v907, %v906
        %v911 = vpack.c.b16 %v909, %v908
        %v913 = vsel %vm763, %v910, 0
        %v916 = vsel %vm763, %v911, 0
        %918 = vmatprep.subr.bf16.mxu0 0
        %919 = vmatpush1.bf16.msra.mxu0 0
        %920 = vmatprep.subr.bf16.mxu0 0
        %921 = vmatpush1.bf16.msra.mxu0 0
        %922 = vmatprep.subr.bf16.mxu0 0
        %923 = vmatpush1.bf16.msra.mxu0 0
        %924 = vmatprep.subr.bf16.mxu0 0
        %925 = vmatpush1.bf16.msra.mxu0 0
        %926 = vmatprep.subr.bf16.mxu0 %v754
        %927 = vmatpush1.bf16.msra.mxu0 %v753
        %928 = vmatprep.subr.bf16.mxu0 %v752
        %929 = vmatpush1.bf16.msra.mxu0 %v751
        %930 = vmatprep.subr.bf16.mxu0 %v750
        %931 = vmatpush1.bf16.msra.mxu0 %v749
        %932 = vmatprep.subr.bf16.mxu0 %v748
        %933 = vmatpush1.bf16.msra.mxu0 %v747
        %934 = vmatprep.subr.bf16.mxu0 0
        %935 = vmatpush2.bf16.msra.mxu0 0
        %936 = vmatprep.subr.bf16.mxu0 0
        %937 = vmatpush2.bf16.msra.mxu0 0
        %938 = vmatprep.subr.bf16.mxu0 0
        %939 = vmatpush2.bf16.msra.mxu0 0
        %940 = vmatprep.subr.bf16.mxu0 0
        %941 = vmatpush2.bf16.msra.mxu0 0
        %942 = vmatprep.subr.bf16.mxu0 0
        %943 = vmatpush2.bf16.msra.mxu0 0
        %944 = vmatprep.subr.bf16.mxu0 0
        %945 = vmatpush2.bf16.msra.mxu0 0
        %946 = vmatprep.subr.bf16.mxu0 0
        %947 = vmatpush2.bf16.msra.mxu0 0
        %948 = vmatprep.subr.bf16.mxu0 0
        %949 = vmatpush2.bf16.msra.mxu0 0
        %950 = vmatprep.mubr.bf16.mxu0 0
        %951 = vmatmul.mubr.bf16.gmra.mxu0 %v913
        %v952 = vpop.f32.mrf.mxu0
        %v953 = vadd.f32 0.0, %v952
        %v954 = vpop.f32.mrf.mxu0
        %v955 = vadd.f32 0.0, %v954
        %v956 = vpop.f32.mrf.mxu0
        %v957 = vadd.f32 0.0, %v956
        %v958 = vpop.f32.mrf.mxu0
        %v959 = vadd.f32 0.0, %v958
        %960 = vmatprep.mubr.bf16.mxu0 0
        %961 = vmatmul.mubr.bf16.gmra.mxu0 %v916
        %v962 = vpop.f32.mrf.mxu0
        %v963 = vadd.f32 0.0, %v962
        %v964 = vpop.f32.mrf.mxu0
        %v965 = vadd.f32 0.0, %v964
        %v966 = vpop.f32.mrf.mxu0
        %v967 = vadd.f32 0.0, %v966
        %v968 = vpop.f32.mrf.mxu0
        %v969 = vadd.f32 0.0, %v968
        %970 = vdwg.mxu0
        %v971 = vpack.c.bf16 %v809, %v805
        %v972 = vpack.c.bf16 %v811, %v807
        %v973 = vpack.c.bf16 %v883, %v879
        %v974 = vpack.c.bf16 %v885, %v881
        %v975 = vpack.c.bf16 %v957, %v953
        %v976 = vpack.c.bf16 %v959, %v955
        %v977 = vpack.c.bf16 %v819, %v815
        %v978 = vpack.c.bf16 %v821, %v817
        %v979 = vpack.c.bf16 %v893, %v889
        %v980 = vpack.c.bf16 %v895, %v891
        %v981 = vpack.c.bf16 %v967, %v963
        %v982 = vpack.c.bf16 %v969, %v965
        %v983 = vld [vmem:[#allocation16] sm:$0xff]
        %v984 = vld [vmem:[#allocation16 + $0x8] sm:$0xff]
        %v985 = vld [vmem:[#allocation16 + $0x10] sm:$0xff]
        %v986 = vld [vmem:[#allocation16 + $0x18] sm:$0xff]
        %v987 = vld [vmem:[#allocation16 + $0x20] sm:$0xff]
        %v988 = vld [vmem:[#allocation16 + $0x28] sm:$0xff]
        %v989 = vld [vmem:[#allocation16 + $0x30] sm:$0xff]
        %v990 = vld [vmem:[#allocation16 + $0x38] sm:$0xff]
        %v991 = vld [vmem:[#allocation16 + $0x40] sm:$0xff]
        %v992 = vld [vmem:[#allocation16 + $0x48] sm:$0xff]
        %v993 = vld [vmem:[#allocation16 + $0x50] sm:$0xff]
        %v994 = vld [vmem:[#allocation16 + $0x58] sm:$0xff]
        %v995 = vld [vmem:[#allocation16 + $0x60] sm:$0xff]
        %v996 = vld [vmem:[#allocation16 + $0x68] sm:$0xff]
        %v997 = vld [vmem:[#allocation16 + $0x70] sm:$0xff]
        %v998 = vld [vmem:[#allocation16 + $0x78] sm:$0xff]
        %v999 = vld [vmem:[#allocation16 + $0x80] sm:$0xff]
        %v1000 = vld [vmem:[#allocation16 + $0x88] sm:$0xff]
        %v1001 = vld [vmem:[#allocation16 + $0x90] sm:$0xff]
        %v1002 = vld [vmem:[#allocation16 + $0x98] sm:$0xff]
        %v1003 = vld [vmem:[#allocation16 + $0xa0] sm:$0xff]
        %v1004 = vld [vmem:[#allocation16 + $0xa8] sm:$0xff]
        %v1005 = vld [vmem:[#allocation16 + $0xb0] sm:$0xff]
        %v1006 = vld [vmem:[#allocation16 + $0xb8] sm:$0xff]
        %v1007 = vld [vmem:[#allocation16 + $0xc0] sm:$0xff]
        %v1008 = vld [vmem:[#allocation16 + $0xc8] sm:$0xff]
        %v1009 = vld [vmem:[#allocation16 + $0xd0] sm:$0xff]
        %v1010 = vld [vmem:[#allocation16 + $0xd8] sm:$0xff]
        %v1011 = vld [vmem:[#allocation16 + $0xe0] sm:$0xff]
        %v1012 = vld [vmem:[#allocation16 + $0xe8] sm:$0xff]
        %v1013 = vld [vmem:[#allocation16 + $0xf0] sm:$0xff]
        %v1014 = vld [vmem:[#allocation16 + $0xf8] sm:$0xff]
        %v1015 = vld [vmem:[#allocation16 + $0x100] sm:$0xff]
        %v1016 = vld [vmem:[#allocation16 + $0x108] sm:$0xff]
        %v1017 = vld [vmem:[#allocation16 + $0x110] sm:$0xff]
        %v1018 = vld [vmem:[#allocation16 + $0x118] sm:$0xff]
        %v1019 = vld [vmem:[#allocation16 + $0x120] sm:$0xff]
        %v1020 = vld [vmem:[#allocation16 + $0x128] sm:$0xff]
        %v1021 = vld [vmem:[#allocation16 + $0x130] sm:$0xff]
        %v1022 = vld [vmem:[#allocation16 + $0x138] sm:$0xff]
        %v1023 = vld [vmem:[#allocation16 + $0x140] sm:$0xff]
        %v1024 = vld [vmem:[#allocation16 + $0x148] sm:$0xff]
        %v1025 = vld [vmem:[#allocation16 + $0x150] sm:$0xff]
        %v1026 = vld [vmem:[#allocation16 + $0x158] sm:$0xff]
        %v1027 = vld [vmem:[#allocation16 + $0x160] sm:$0xff]
        %v1028 = vld [vmem:[#allocation16 + $0x168] sm:$0xff]
        %v1029 = vld [vmem:[#allocation16 + $0x170] sm:$0xff]
        %v1030 = vld [vmem:[#allocation16 + $0x178] sm:$0xff]
        %v1031 = vld [vmem:[#allocation16 + $0x180] sm:$0xff]
        %v1032 = vld [vmem:[#allocation16 + $0x188] sm:$0xff]
        %v1033 = vld [vmem:[#allocation16 + $0x190] sm:$0xff]
        %v1034 = vld [vmem:[#allocation16 + $0x198] sm:$0xff]
        %v1035 = vld [vmem:[#allocation16 + $0x1a0] sm:$0xff]
        %v1036 = vld [vmem:[#allocation16 + $0x1a8] sm:$0xff]
        %v1037 = vld [vmem:[#allocation16 + $0x1b0] sm:$0xff]
        %v1038 = vld [vmem:[#allocation16 + $0x1b8] sm:$0xff]
        %v1039 = vld [vmem:[#allocation16 + $0x1c0] sm:$0xff]
        %v1040 = vld [vmem:[#allocation16 + $0x1c8] sm:$0xff]
        %v1041 = vld [vmem:[#allocation16 + $0x1d0] sm:$0xff]
        %v1042 = vld [vmem:[#allocation16 + $0x1d8] sm:$0xff]
        %v1043 = vld [vmem:[#allocation16 + $0x1e0] sm:$0xff]
        %v1044 = vld [vmem:[#allocation16 + $0x1e8] sm:$0xff]
        %v1045 = vld [vmem:[#allocation16 + $0x1f0] sm:$0xff]
        %v1046 = vld [vmem:[#allocation16 + $0x1f8] sm:$0xff]
        %v1047 = vld [vmem:[#allocation16 + $0x200] sm:$0xff]
        %v1048 = vld [vmem:[#allocation16 + $0x208] sm:$0xff]
        %v1049 = vld [vmem:[#allocation16 + $0x210] sm:$0xff]
        %v1050 = vld [vmem:[#allocation16 + $0x218] sm:$0xff]
        %v1051 = vld [vmem:[#allocation16 + $0x220] sm:$0xff]
        %v1052 = vld [vmem:[#allocation16 + $0x228] sm:$0xff]
        %v1053 = vld [vmem:[#allocation16 + $0x230] sm:$0xff]
        %v1054 = vld [vmem:[#allocation16 + $0x238] sm:$0xff]
        %v1055 = vld [vmem:[#allocation16 + $0x240] sm:$0xff]
        %v1056 = vld [vmem:[#allocation16 + $0x248] sm:$0xff]
        %v1057 = vld [vmem:[#allocation16 + $0x250] sm:$0xff]
        %v1058 = vld [vmem:[#allocation16 + $0x258] sm:$0xff]
        %v1059 = vld [vmem:[#allocation16 + $0x260] sm:$0xff]
        %v1060 = vld [vmem:[#allocation16 + $0x268] sm:$0xff]
        %v1061 = vld [vmem:[#allocation16 + $0x270] sm:$0xff]
        %v1062 = vld [vmem:[#allocation16 + $0x278] sm:$0xff]
        %v1063 = vld [vmem:[#allocation16 + $0x280] sm:$0xff]
        %v1064 = vld [vmem:[#allocation16 + $0x288] sm:$0xff]
        %v1065 = vld [vmem:[#allocation16 + $0x290] sm:$0xff]
        %v1066 = vld [vmem:[#allocation16 + $0x298] sm:$0xff]
        %v1067 = vld [vmem:[#allocation16 + $0x2a0] sm:$0xff]
        %v1068 = vld [vmem:[#allocation16 + $0x2a8] sm:$0xff]
        %v1069 = vld [vmem:[#allocation16 + $0x2b0] sm:$0xff]
        %v1070 = vld [vmem:[#allocation16 + $0x2b8] sm:$0xff]
        %v1071 = vld [vmem:[#allocation16 + $0x2c0] sm:$0xff]
        %v1072 = vld [vmem:[#allocation16 + $0x2c8] sm:$0xff]
        %v1073 = vld [vmem:[#allocation16 + $0x2d0] sm:$0xff]
        %v1074 = vld [vmem:[#allocation16 + $0x2d8] sm:$0xff]
        %v1075 = vld [vmem:[#allocation16 + $0x2e0] sm:$0xff]
        %v1076 = vld [vmem:[#allocation16 + $0x2e8] sm:$0xff]
        %v1077 = vld [vmem:[#allocation16 + $0x2f0] sm:$0xff]
        %v1078 = vld [vmem:[#allocation16 + $0x2f8] sm:$0xff]
        %v1079 = vld [vmem:[#allocation18] sm:$0x3]
        %v1081 = vlaneseq
        %v1082 = vshrl.u32 %v1081, 7
        %v1083 = vsub.s32 0, %v1082
        %v1084 = vrot.slane %v1079, %v1083
        %v1085 = vlaneseq
        %v1086 = vshrl.u32 %v1085, 7
        %v1087 = vsub.s32 1, %v1086
        %v1088 = vrot.slane %v1079, %v1087
        %v1187 = vunpack.c.l.b16 %v983
        %v1188 = vunpack.c.h.b16 %v983
        %v1189 = vunpack.c.l.b16 %v984
        %v1190 = vunpack.c.h.b16 %v984
        %v1191 = vunpack.c.l.b16 %v985
        %v1192 = vunpack.c.h.b16 %v985
        %v1193 = vunpack.c.l.b16 %v986
        %v1194 = vunpack.c.h.b16 %v986
        %v1195 = vunpack.c.l.b16 %v987
        %v1196 = vunpack.c.h.b16 %v987
        %v1197 = vunpack.c.l.b16 %v988
        %v1198 = vunpack.c.h.b16 %v988
        %v1199 = vunpack.c.l.b16 %v989
        %v1200 = vunpack.c.h.b16 %v989
        %v1201 = vunpack.c.l.b16 %v990
        %v1202 = vunpack.c.h.b16 %v990
        %v1203 = vunpack.c.l.b16 %v991
        %v1204 = vunpack.c.h.b16 %v991
        %v1205 = vunpack.c.l.b16 %v992
        %v1206 = vunpack.c.h.b16 %v992
        %v1207 = vunpack.c.l.b16 %v993
        %v1208 = vunpack.c.h.b16 %v993
        %v1209 = vunpack.c.l.b16 %v994
        %v1210 = vunpack.c.h.b16 %v994
        %v1211 = vunpack.c.l.b16 %v995
        %v1212 = vunpack.c.h.b16 %v995
        %v1213 = vunpack.c.l.b16 %v996
        %v1214 = vunpack.c.h.b16 %v996
        %v1215 = vunpack.c.l.b16 %v997
        %v1216 = vunpack.c.h.b16 %v997
        %v1217 = vunpack.c.l.b16 %v998
        %v1218 = vunpack.c.h.b16 %v998
        %v1219 = vunpack.c.l.b16 %v999
        %v1220 = vunpack.c.h.b16 %v999
        %v1221 = vunpack.c.l.b16 %v1000
        %v1222 = vunpack.c.h.b16 %v1000
        %v1223 = vunpack.c.l.b16 %v1001
        %v1224 = vunpack.c.h.b16 %v1001
        %v1225 = vunpack.c.l.b16 %v1002
        %v1226 = vunpack.c.h.b16 %v1002
        %v1227 = vunpack.c.l.b16 %v1003
        %v1228 = vunpack.c.h.b16 %v1003
        %v1229 = vunpack.c.l.b16 %v1004
        %v1230 = vunpack.c.h.b16 %v1004
        %v1231 = vunpack.c.l.b16 %v1005
        %v1232 = vunpack.c.h.b16 %v1005
        %v1233 = vunpack.c.l.b16 %v1006
        %v1234 = vunpack.c.h.b16 %v1006
        %v1235 = vunpack.c.l.b16 %v1007
        %v1236 = vunpack.c.h.b16 %v1007
        %v1237 = vunpack.c.l.b16 %v1008
        %v1238 = vunpack.c.h.b16 %v1008
        %v1239 = vunpack.c.l.b16 %v1009
        %v1240 = vunpack.c.h.b16 %v1009
        %v1241 = vunpack.c.l.b16 %v1010
        %v1242 = vunpack.c.h.b16 %v1010
        %v1243 = vunpack.c.l.b16 %v1011
        %v1244 = vunpack.c.h.b16 %v1011
        %v1245 = vunpack.c.l.b16 %v1012
        %v1246 = vunpack.c.h.b16 %v1012
        %v1247 = vunpack.c.l.b16 %v1013
        %v1248 = vunpack.c.h.b16 %v1013
        %v1249 = vunpack.c.l.b16 %v1014
        %v1250 = vunpack.c.h.b16 %v1014
        %v1251 = vunpack.c.l.b16 %v1015
        %v1252 = vunpack.c.h.b16 %v1015
        %v1253 = vunpack.c.l.b16 %v1016
        %v1254 = vunpack.c.h.b16 %v1016
        %v1255 = vunpack.c.l.b16 %v1017
        %v1256 = vunpack.c.h.b16 %v1017
        %v1257 = vunpack.c.l.b16 %v1018
        %v1258 = vunpack.c.h.b16 %v1018
        %v1259 = vunpack.c.l.b16 %v1019
        %v1260 = vunpack.c.h.b16 %v1019
        %v1261 = vunpack.c.l.b16 %v1020
        %v1262 = vunpack.c.h.b16 %v1020
        %v1263 = vunpack.c.l.b16 %v1021
        %v1264 = vunpack.c.h.b16 %v1021
        %v1265 = vunpack.c.l.b16 %v1022
        %v1266 = vunpack.c.h.b16 %v1022
        %v1267 = vunpack.c.l.b16 %v1023
        %v1268 = vunpack.c.h.b16 %v1023
        %v1269 = vunpack.c.l.b16 %v1024
        %v1270 = vunpack.c.h.b16 %v1024
        %v1271 = vunpack.c.l.b16 %v1025
        %v1272 = vunpack.c.h.b16 %v1025
        %v1273 = vunpack.c.l.b16 %v1026
        %v1274 = vunpack.c.h.b16 %v1026
        %v1275 = vunpack.c.l.b16 %v1027
        %v1276 = vunpack.c.h.b16 %v1027
        %v1277 = vunpack.c.l.b16 %v1028
        %v1278 = vunpack.c.h.b16 %v1028
        %v1279 = vunpack.c.l.b16 %v1029
        %v1280 = vunpack.c.h.b16 %v1029
        %v1281 = vunpack.c.l.b16 %v1030
        %v1282 = vunpack.c.h.b16 %v1030
        %v1283 = vunpack.c.l.b16 %v1031
        %v1284 = vunpack.c.h.b16 %v1031
        %v1285 = vunpack.c.l.b16 %v1032
        %v1286 = vunpack.c.h.b16 %v1032
        %v1287 = vunpack.c.l.b16 %v1033
        %v1288 = vunpack.c.h.b16 %v1033
        %v1289 = vunpack.c.l.b16 %v1034
        %v1290 = vunpack.c.h.b16 %v1034
        %v1291 = vunpack.c.l.b16 %v1035
        %v1292 = vunpack.c.h.b16 %v1035
        %v1293 = vunpack.c.l.b16 %v1036
        %v1294 = vunpack.c.h.b16 %v1036
        %v1295 = vunpack.c.l.b16 %v1037
        %v1296 = vunpack.c.h.b16 %v1037
        %v1297 = vunpack.c.l.b16 %v1038
        %v1298 = vunpack.c.h.b16 %v1038
        %v1299 = vunpack.c.l.b16 %v1039
        %v1300 = vunpack.c.h.b16 %v1039
        %v1301 = vunpack.c.l.b16 %v1040
        %v1302 = vunpack.c.h.b16 %v1040
        %v1303 = vunpack.c.l.b16 %v1041
        %v1304 = vunpack.c.h.b16 %v1041
        %v1305 = vunpack.c.l.b16 %v1042
        %v1306 = vunpack.c.h.b16 %v1042
        %v1307 = vunpack.c.l.b16 %v1043
        %v1308 = vunpack.c.h.b16 %v1043
        %v1309 = vunpack.c.l.b16 %v1044
        %v1310 = vunpack.c.h.b16 %v1044
        %v1311 = vunpack.c.l.b16 %v1045
        %v1312 = vunpack.c.h.b16 %v1045
        %v1313 = vunpack.c.l.b16 %v1046
        %v1314 = vunpack.c.h.b16 %v1046
        %v1315 = vunpack.c.l.b16 %v1047
        %v1316 = vunpack.c.h.b16 %v1047
        %v1317 = vunpack.c.l.b16 %v1048
        %v1318 = vunpack.c.h.b16 %v1048
        %v1319 = vunpack.c.l.b16 %v1049
        %v1320 = vunpack.c.h.b16 %v1049
        %v1321 = vunpack.c.l.b16 %v1050
        %v1322 = vunpack.c.h.b16 %v1050
        %v1323 = vunpack.c.l.b16 %v1051
        %v1324 = vunpack.c.h.b16 %v1051
        %v1325 = vunpack.c.l.b16 %v1052
        %v1326 = vunpack.c.h.b16 %v1052
        %v1327 = vunpack.c.l.b16 %v1053
        %v1328 = vunpack.c.h.b16 %v1053
        %v1329 = vunpack.c.l.b16 %v1054
        %v1330 = vunpack.c.h.b16 %v1054
        %v1331 = vunpack.c.l.b16 %v1055
        %v1332 = vunpack.c.h.b16 %v1055
        %v1333 = vunpack.c.l.b16 %v1056
        %v1334 = vunpack.c.h.b16 %v1056
        %v1335 = vunpack.c.l.b16 %v1057
        %v1336 = vunpack.c.h.b16 %v1057
        %v1337 = vunpack.c.l.b16 %v1058
        %v1338 = vunpack.c.h.b16 %v1058
        %v1339 = vunpack.c.l.b16 %v1059
        %v1340 = vunpack.c.h.b16 %v1059
        %v1341 = vunpack.c.l.b16 %v1060
        %v1342 = vunpack.c.h.b16 %v1060
        %v1343 = vunpack.c.l.b16 %v1061
        %v1344 = vunpack.c.h.b16 %v1061
        %v1345 = vunpack.c.l.b16 %v1062
        %v1346 = vunpack.c.h.b16 %v1062
        %v1347 = vunpack.c.l.b16 %v1063
        %v1348 = vunpack.c.h.b16 %v1063
        %v1349 = vunpack.c.l.b16 %v1064
        %v1350 = vunpack.c.h.b16 %v1064
        %v1351 = vunpack.c.l.b16 %v1065
        %v1352 = vunpack.c.h.b16 %v1065
        %v1353 = vunpack.c.l.b16 %v1066
        %v1354 = vunpack.c.h.b16 %v1066
        %v1355 = vunpack.c.l.b16 %v1067
        %v1356 = vunpack.c.h.b16 %v1067
        %v1357 = vunpack.c.l.b16 %v1068
        %v1358 = vunpack.c.h.b16 %v1068
        %v1359 = vunpack.c.l.b16 %v1069
        %v1360 = vunpack.c.h.b16 %v1069
        %v1361 = vunpack.c.l.b16 %v1070
        %v1362 = vunpack.c.h.b16 %v1070
        %v1363 = vunpack.c.l.b16 %v1071
        %v1364 = vunpack.c.h.b16 %v1071
        %v1365 = vunpack.c.l.b16 %v1072
        %v1366 = vunpack.c.h.b16 %v1072
        %v1367 = vunpack.c.l.b16 %v1073
        %v1368 = vunpack.c.h.b16 %v1073
        %v1369 = vunpack.c.l.b16 %v1074
        %v1370 = vunpack.c.h.b16 %v1074
        %v1371 = vunpack.c.l.b16 %v1075
        %v1372 = vunpack.c.h.b16 %v1075
        %v1373 = vunpack.c.l.b16 %v1076
        %v1374 = vunpack.c.h.b16 %v1076
        %v1375 = vunpack.c.l.b16 %v1077
        %v1376 = vunpack.c.h.b16 %v1077
        %v1377 = vunpack.c.l.b16 %v1078
        %v1378 = vunpack.c.h.b16 %v1078
        %v1379 = vpack.c.b16 %v1189, %v1187
        %v1380 = vpack.c.b16 %v1190, %v1188
        %v1381 = vpack.c.b16 %v1193, %v1191
        %v1382 = vpack.c.b16 %v1194, %v1192
        %v1383 = vpack.c.b16 %v1197, %v1195
        %v1384 = vpack.c.b16 %v1198, %v1196
        %v1385 = vpack.c.b16 %v1201, %v1199
        %v1386 = vpack.c.b16 %v1202, %v1200
        %v1387 = vpack.c.b16 %v1205, %v1203
        %v1388 = vpack.c.b16 %v1206, %v1204
        %v1389 = vpack.c.b16 %v1209, %v1207
        %v1390 = vpack.c.b16 %v1210, %v1208
        %v1391 = vpack.c.b16 %v1213, %v1211
        %v1392 = vpack.c.b16 %v1214, %v1212
        %v1393 = vpack.c.b16 %v1217, %v1215
        %v1394 = vpack.c.b16 %v1218, %v1216
        %v1395 = vpack.c.b16 %v1221, %v1219
        %v1396 = vpack.c.b16 %v1222, %v1220
        %v1397 = vpack.c.b16 %v1225, %v1223
        %v1398 = vpack.c.b16 %v1226, %v1224
        %v1399 = vpack.c.b16 %v1229, %v1227
        %v1400 = vpack.c.b16 %v1230, %v1228
        %v1401 = vpack.c.b16 %v1233, %v1231
        %v1402 = vpack.c.b16 %v1234, %v1232
        %v1403 = vpack.c.b16 %v1237, %v1235
        %v1404 = vpack.c.b16 %v1238, %v1236
        %v1405 = vpack.c.b16 %v1241, %v1239
        %v1406 = vpack.c.b16 %v1242, %v1240
        %v1407 = vpack.c.b16 %v1245, %v1243
        %v1408 = vpack.c.b16 %v1246, %v1244
        %v1409 = vpack.c.b16 %v1249, %v1247
        %v1410 = vpack.c.b16 %v1250, %v1248
        %v1411 = vpack.c.b16 %v1253, %v1251
        %v1412 = vpack.c.b16 %v1254, %v1252
        %v1413 = vpack.c.b16 %v1257, %v1255
        %v1414 = vpack.c.b16 %v1258, %v1256
        %v1415 = vpack.c.b16 %v1261, %v1259
        %v1416 = vpack.c.b16 %v1262, %v1260
        %v1417 = vpack.c.b16 %v1265, %v1263
        %v1418 = vpack.c.b16 %v1266, %v1264
        %v1419 = vpack.c.b16 %v1269, %v1267
        %v1420 = vpack.c.b16 %v1270, %v1268
        %v1421 = vpack.c.b16 %v1273, %v1271
        %v1422 = vpack.c.b16 %v1274, %v1272
        %v1423 = vpack.c.b16 %v1277, %v1275
        %v1424 = vpack.c.b16 %v1278, %v1276
        %v1425 = vpack.c.b16 %v1281, %v1279
        %v1426 = vpack.c.b16 %v1282, %v1280
        %v1427 = vpack.c.b16 %v1285, %v1283
        %v1428 = vpack.c.b16 %v1286, %v1284
        %v1429 = vpack.c.b16 %v1289, %v1287
        %v1430 = vpack.c.b16 %v1290, %v1288
        %v1431 = vpack.c.b16 %v1293, %v1291
        %v1432 = vpack.c.b16 %v1294, %v1292
        %v1433 = vpack.c.b16 %v1297, %v1295
        %v1434 = vpack.c.b16 %v1298, %v1296
        %v1435 = vpack.c.b16 %v1301, %v1299
        %v1436 = vpack.c.b16 %v1302, %v1300
        %v1437 = vpack.c.b16 %v1305, %v1303
        %v1438 = vpack.c.b16 %v1306, %v1304
        %v1439 = vpack.c.b16 %v1309, %v1307
        %v1440 = vpack.c.b16 %v1310, %v1308
        %v1441 = vpack.c.b16 %v1313, %v1311
        %v1442 = vpack.c.b16 %v1314, %v1312
        %v1443 = vpack.c.b16 %v1317, %v1315
        %v1444 = vpack.c.b16 %v1318, %v1316
        %v1445 = vpack.c.b16 %v1321, %v1319
        %v1446 = vpack.c.b16 %v1322, %v1320
        %v1447 = vpack.c.b16 %v1325, %v1323
        %v1448 = vpack.c.b16 %v1326, %v1324
        %v1449 = vpack.c.b16 %v1329, %v1327
        %v1450 = vpack.c.b16 %v1330, %v1328
        %v1451 = vpack.c.b16 %v1333, %v1331
        %v1452 = vpack.c.b16 %v1334, %v1332
        %v1453 = vpack.c.b16 %v1337, %v1335
        %v1454 = vpack.c.b16 %v1338, %v1336
        %v1455 = vpack.c.b16 %v1341, %v1339
        %v1456 = vpack.c.b16 %v1342, %v1340
        %v1457 = vpack.c.b16 %v1345, %v1343
        %v1458 = vpack.c.b16 %v1346, %v1344
        %v1459 = vpack.c.b16 %v1349, %v1347
        %v1460 = vpack.c.b16 %v1350, %v1348
        %v1461 = vpack.c.b16 %v1353, %v1351
        %v1462 = vpack.c.b16 %v1354, %v1352
        %v1463 = vpack.c.b16 %v1357, %v1355
        %v1464 = vpack.c.b16 %v1358, %v1356
        %v1465 = vpack.c.b16 %v1361, %v1359
        %v1466 = vpack.c.b16 %v1362, %v1360
        %v1467 = vpack.c.b16 %v1365, %v1363
        %v1468 = vpack.c.b16 %v1366, %v1364
        %v1469 = vpack.c.b16 %v1369, %v1367
        %v1470 = vpack.c.b16 %v1370, %v1368
        %v1471 = vpack.c.b16 %v1373, %v1371
        %v1472 = vpack.c.b16 %v1374, %v1372
        %v1473 = vpack.c.b16 %v1377, %v1375
        %v1474 = vpack.c.b16 %v1378, %v1376
        %1571 = vmatprep.subr.bf16.mxu0 %v1394
        %1572 = vmatpush1.bf16.msra.mxu0 %v1393
        %1573 = vmatprep.subr.bf16.mxu0 %v1392
        %1574 = vmatpush1.bf16.msra.mxu0 %v1391
        %1575 = vmatprep.subr.bf16.mxu0 %v1390
        %1576 = vmatpush1.bf16.msra.mxu0 %v1389
        %1577 = vmatprep.subr.bf16.mxu0 %v1388
        %1578 = vmatpush1.bf16.msra.mxu0 %v1387
        %1579 = vmatprep.subr.bf16.mxu0 %v1386
        %1580 = vmatpush1.bf16.msra.mxu0 %v1385
        %1581 = vmatprep.subr.bf16.mxu0 %v1384
        %1582 = vmatpush1.bf16.msra.mxu0 %v1383
        %1583 = vmatprep.subr.bf16.mxu0 %v1382
        %1584 = vmatpush1.bf16.msra.mxu0 %v1381
        %1585 = vmatprep.subr.bf16.mxu0 %v1380
        %1586 = vmatpush1.bf16.msra.mxu0 %v1379
        %1587 = vmatprep.subr.bf16.mxu0 %v1410
        %1588 = vmatpush2.bf16.msra.mxu0 %v1409
        %1589 = vmatprep.subr.bf16.mxu0 %v1408
        %1590 = vmatpush2.bf16.msra.mxu0 %v1407
        %1591 = vmatprep.subr.bf16.mxu0 %v1406
        %1592 = vmatpush2.bf16.msra.mxu0 %v1405
        %1593 = vmatprep.subr.bf16.mxu0 %v1404
        %1594 = vmatpush2.bf16.msra.mxu0 %v1403
        %1595 = vmatprep.subr.bf16.mxu0 %v1402
        %1596 = vmatpush2.bf16.msra.mxu0 %v1401
        %1597 = vmatprep.subr.bf16.mxu0 %v1400
        %1598 = vmatpush2.bf16.msra.mxu0 %v1399
        %1599 = vmatprep.subr.bf16.mxu0 %v1398
        %1600 = vmatpush2.bf16.msra.mxu0 %v1397
        %1601 = vmatprep.subr.bf16.mxu0 %v1396
        %1602 = vmatpush2.bf16.msra.mxu0 %v1395
        %1603 = vmatprep.mubr.bf16.mxu0 %v972
        %1604 = vmatmul.mubr.bf16.gmra.mxu0 %v971
        %v1605 = vpop.f32.mrf.mxu0
        %v1606 = vadd.f32 %v1084, %v1605
        %v1607 = vpop.f32.mrf.mxu0
        %v1608 = vadd.f32 %v1088, %v1607
        %v1609 = vpop.f32.mrf.mxu0
        %v1610 = vadd.f32 %v1084, %v1609
        %v1611 = vpop.f32.mrf.mxu0
        %v1612 = vadd.f32 %v1088, %v1611
        %1613 = vmatprep.mubr.bf16.mxu0 %v978
        %1614 = vmatmul.mubr.bf16.gmra.mxu0 %v977
        %v1615 = vpop.f32.mrf.mxu0
        %v1616 = vadd.f32 %v1084, %v1615
        %v1617 = vpop.f32.mrf.mxu0
        %v1618 = vadd.f32 %v1088, %v1617
        %v1619 = vpop.f32.mrf.mxu0
        %v1620 = vadd.f32 %v1084, %v1619
        %v1621 = vpop.f32.mrf.mxu0
        %v1622 = vadd.f32 %v1088, %v1621
        %1623 = vdwg.mxu0
        %1624 = vmatprep.subr.bf16.mxu0 %v1426
        %1625 = vmatpush1.bf16.msra.mxu0 %v1425
        %1626 = vmatprep.subr.bf16.mxu0 %v1424
        %1627 = vmatpush1.bf16.msra.mxu0 %v1423
        %1628 = vmatprep.subr.bf16.mxu0 %v1422
        %1629 = vmatpush1.bf16.msra.mxu0 %v1421
        %1630 = vmatprep.subr.bf16.mxu0 %v1420
        %1631 = vmatpush1.bf16.msra.mxu0 %v1419
        %1632 = vmatprep.subr.bf16.mxu0 %v1418
        %1633 = vmatpush1.bf16.msra.mxu0 %v1417
        %1634 = vmatprep.subr.bf16.mxu0 %v1416
        %1635 = vmatpush1.bf16.msra.mxu0 %v1415
        %1636 = vmatprep.subr.bf16.mxu0 %v1414
        %1637 = vmatpush1.bf16.msra.mxu0 %v1413
        %1638 = vmatprep.subr.bf16.mxu0 %v1412
        %1639 = vmatpush1.bf16.msra.mxu0 %v1411
        %1640 = vmatprep.subr.bf16.mxu0 %v1442
        %1641 = vmatpush2.bf16.msra.mxu0 %v1441
        %1642 = vmatprep.subr.bf16.mxu0 %v1440
        %1643 = vmatpush2.bf16.msra.mxu0 %v1439
        %1644 = vmatprep.subr.bf16.mxu0 %v1438
        %1645 = vmatpush2.bf16.msra.mxu0 %v1437
        %1646 = vmatprep.subr.bf16.mxu0 %v1436
        %1647 = vmatpush2.bf16.msra.mxu0 %v1435
        %1648 = vmatprep.subr.bf16.mxu0 %v1434
        %1649 = vmatpush2.bf16.msra.mxu0 %v1433
        %1650 = vmatprep.subr.bf16.mxu0 %v1432
        %1651 = vmatpush2.bf16.msra.mxu0 %v1431
        %1652 = vmatprep.subr.bf16.mxu0 %v1430
        %1653 = vmatpush2.bf16.msra.mxu0 %v1429
        %1654 = vmatprep.subr.bf16.mxu0 %v1428
        %1655 = vmatpush2.bf16.msra.mxu0 %v1427
        %1656 = vmatprep.mubr.bf16.mxu0 %v974
        %1657 = vmatmul.mubr.bf16.gmra.mxu0 %v973
        %v1658 = vpop.f32.mrf.mxu0
        %v1659 = vadd.f32 %v1606, %v1658
        %v1660 = vpop.f32.mrf.mxu0
        %v1661 = vadd.f32 %v1608, %v1660
        %v1662 = vpop.f32.mrf.mxu0
        %v1663 = vadd.f32 %v1610, %v1662
        %v1664 = vpop.f32.mrf.mxu0
        %v1665 = vadd.f32 %v1612, %v1664
        %1666 = vmatprep.mubr.bf16.mxu0 %v980
        %1667 = vmatmul.mubr.bf16.gmra.mxu0 %v979
        %v1668 = vpop.f32.mrf.mxu0
        %v1669 = vadd.f32 %v1616, %v1668
        %v1670 = vpop.f32.mrf.mxu0
        %v1671 = vadd.f32 %v1618, %v1670
        %v1672 = vpop.f32.mrf.mxu0
        %v1673 = vadd.f32 %v1620, %v1672
        %v1674 = vpop.f32.mrf.mxu0
        %v1675 = vadd.f32 %v1622, %v1674
        %1676 = vdwg.mxu0
        %1677 = vmatprep.subr.bf16.mxu0 %v1458
        %1678 = vmatpush1.bf16.msra.mxu0 %v1457
        %1679 = vmatprep.subr.bf16.mxu0 %v1456
        %1680 = vmatpush1.bf16.msra.mxu0 %v1455
        %1681 = vmatprep.subr.bf16.mxu0 %v1454
        %1682 = vmatpush1.bf16.msra.mxu0 %v1453
        %1683 = vmatprep.subr.bf16.mxu0 %v1452
        %1684 = vmatpush1.bf16.msra.mxu0 %v1451
        %1685 = vmatprep.subr.bf16.mxu0 %v1450
        %1686 = vmatpush1.bf16.msra.mxu0 %v1449
        %1687 = vmatprep.subr.bf16.mxu0 %v1448
        %1688 = vmatpush1.bf16.msra.mxu0 %v1447
        %1689 = vmatprep.subr.bf16.mxu0 %v1446
        %1690 = vmatpush1.bf16.msra.mxu0 %v1445
        %1691 = vmatprep.subr.bf16.mxu0 %v1444
        %1692 = vmatpush1.bf16.msra.mxu0 %v1443
        %1693 = vmatprep.subr.bf16.mxu0 %v1474
        %1694 = vmatpush2.bf16.msra.mxu0 %v1473
        %1695 = vmatprep.subr.bf16.mxu0 %v1472
        %1696 = vmatpush2.bf16.msra.mxu0 %v1471
        %1697 = vmatprep.subr.bf16.mxu0 %v1470
        %1698 = vmatpush2.bf16.msra.mxu0 %v1469
        %1699 = vmatprep.subr.bf16.mxu0 %v1468
        %1700 = vmatpush2.bf16.msra.mxu0 %v1467
        %1701 = vmatprep.subr.bf16.mxu0 %v1466
        %1702 = vmatpush2.bf16.msra.mxu0 %v1465
        %1703 = vmatprep.subr.bf16.mxu0 %v1464
        %1704 = vmatpush2.bf16.msra.mxu0 %v1463
        %1705 = vmatprep.subr.bf16.mxu0 %v1462
        %1706 = vmatpush2.bf16.msra.mxu0 %v1461
        %1707 = vmatprep.subr.bf16.mxu0 %v1460
        %1708 = vmatpush2.bf16.msra.mxu0 %v1459
        %1709 = vmatprep.mubr.bf16.mxu0 %v976
        %1710 = vmatmul.mubr.bf16.gmra.mxu0 %v975
        %v1711 = vpop.f32.mrf.mxu0
        %v1712 = vadd.f32 %v1659, %v1711
        %v1713 = vpop.f32.mrf.mxu0
        %v1714 = vadd.f32 %v1661, %v1713
        %v1715 = vpop.f32.mrf.mxu0
        %v1716 = vadd.f32 %v1663, %v1715
        %v1717 = vpop.f32.mrf.mxu0
        %v1718 = vadd.f32 %v1665, %v1717
        %1719 = vmatprep.mubr.bf16.mxu0 %v982
        %1720 = vmatmul.mubr.bf16.gmra.mxu0 %v981
        %v1721 = vpop.f32.mrf.mxu0
        %v1722 = vadd.f32 %v1669, %v1721
        %v1723 = vpop.f32.mrf.mxu0
        %v1724 = vadd.f32 %v1671, %v1723
        %v1725 = vpop.f32.mrf.mxu0
        %v1726 = vadd.f32 %v1673, %v1725
        %v1727 = vpop.f32.mrf.mxu0
        %v1728 = vadd.f32 %v1675, %v1727
        %1729 = vdwg.mxu0
        %v1730 = vmax.f32 %v1712, 0.0
        %v1731 = vmax.f32 %v1714, 0.0
        %v1732 = vmax.f32 %v1716, 0.0
        %v1733 = vmax.f32 %v1718, 0.0
        %v1734 = vmax.f32 %v1722, 0.0
        %v1735 = vmax.f32 %v1724, 0.0
        %v1736 = vmax.f32 %v1726, 0.0
        %v1737 = vmax.f32 %v1728, 0.0
        %v1738 = vpack.c.bf16 %v1732, %v1730
        %v1739 = vpack.c.bf16 %v1733, %v1731
        %v1740 = vpack.c.bf16 %v1736, %v1734
        %v1741 = vpack.c.bf16 %v1737, %v1735
        %v1742 = vld [vmem:[#allocation4] sm:$0xf]
        %v1743 = vld [vmem:[#allocation4 + $0x4] sm:$0xf]
        %v1746 = vunpack.c.l.b16 %v1742
        %v1747 = vunpack.c.l.b16 %v1743
        %v1748 = vpack.c.b16 %v1747, %v1746
        %vm1749 = vcmask 261120
        %v1751 = vsel %vm1749, %v1748, 0
        %1753 = vmatprep.subr.bf16.mxu0 0
        %1754 = vmatpush1.bf16.msra.mxu0 0
        %1755 = vmatprep.subr.bf16.mxu0 0
        %1756 = vmatpush1.bf16.msra.mxu0 0
        %1757 = vmatprep.subr.bf16.mxu0 0
        %1758 = vmatpush1.bf16.msra.mxu0 0
        %1759 = vmatprep.subr.bf16.mxu0 0
        %1760 = vmatpush1.bf16.msra.mxu0 0
        %1761 = vmatprep.subr.bf16.mxu0 0
        %1762 = vmatpush1.bf16.msra.mxu0 0
        %1763 = vmatprep.subr.bf16.mxu0 0
        %1764 = vmatpush1.bf16.msra.mxu0 0
        %1765 = vmatprep.subr.bf16.mxu0 %v1741
        %1766 = vmatpush1.bf16.msra.mxu0 %v1740
        %1767 = vmatprep.subr.bf16.mxu0 %v1739
        %1768 = vmatpush1.bf16.msra.mxu0 %v1738
        %1769 = vmatprep.subr.bf16.mxu0 0
        %1770 = vmatpush2.bf16.msra.mxu0 0
        %1771 = vmatprep.subr.bf16.mxu0 0
        %1772 = vmatpush2.bf16.msra.mxu0 0
        %1773 = vmatprep.subr.bf16.mxu0 0
        %1774 = vmatpush2.bf16.msra.mxu0 0
        %1775 = vmatprep.subr.bf16.mxu0 0
        %1776 = vmatpush2.bf16.msra.mxu0 0
        %1777 = vmatprep.subr.bf16.mxu0 0
        %1778 = vmatpush2.bf16.msra.mxu0 0
        %1779 = vmatprep.subr.bf16.mxu0 0
        %1780 = vmatpush2.bf16.msra.mxu0 0
        %1781 = vmatprep.subr.bf16.mxu0 0
        %1782 = vmatpush2.bf16.msra.mxu0 0
        %1783 = vmatprep.subr.bf16.mxu0 0
        %1784 = vmatpush2.bf16.msra.mxu0 0
        %1785 = vmatprep.mubr.bf16.mxu0 0
        %1786 = vmatmul.mubr.bf16.gmra.mxu0 %v1751
        %v1787 = vpop.f32.mrf.mxu0
        %v1788 = vadd.f32 0.0, %v1787
        %v1789 = vpop.f32.mrf.mxu0
        %v1790 = vadd.f32 0.0, %v1789
        %v1791 = vpop.f32.mrf.mxu0
        %v1792 = vadd.f32 0.0, %v1791
        %v1793 = vpop.f32.mrf.mxu0
        %v1794 = vadd.f32 0.0, %v1793
        %1795 = vdwg.mxu0
        %s1796 = scalar_lea.vmem [#allocation4], 8
        %v1797 = vld [vmem:[%s1796] sm:$0xf]
        %v1798 = vld [vmem:[%s1796 + $0x4] sm:$0xf]
        %v1801 = vunpack.c.l.b16 %v1797
        %v1802 = vunpack.c.l.b16 %v1798
        %v1803 = vpack.c.b16 %v1802, %v1801
        %v1805 = vsel %vm1749, %v1803, 0
        %1807 = vmatprep.subr.bf16.mxu0 0
        %1808 = vmatpush1.bf16.msra.mxu0 0
        %1809 = vmatprep.subr.bf16.mxu0 0
        %1810 = vmatpush1.bf16.msra.mxu0 0
        %1811 = vmatprep.subr.bf16.mxu0 0
        %1812 = vmatpush1.bf16.msra.mxu0 0
        %1813 = vmatprep.subr.bf16.mxu0 0
        %1814 = vmatpush1.bf16.msra.mxu0 0
        %1815 = vmatprep.subr.bf16.mxu0 0
        %1816 = vmatpush1.bf16.msra.mxu0 0
        %1817 = vmatprep.subr.bf16.mxu0 0
        %1818 = vmatpush1.bf16.msra.mxu0 0
        %1819 = vmatprep.subr.bf16.mxu0 %v1741
        %1820 = vmatpush1.bf16.msra.mxu0 %v1740
        %1821 = vmatprep.subr.bf16.mxu0 %v1739
        %1822 = vmatpush1.bf16.msra.mxu0 %v1738
        %1823 = vmatprep.subr.bf16.mxu0 0
        %1824 = vmatpush2.bf16.msra.mxu0 0
        %1825 = vmatprep.subr.bf16.mxu0 0
        %1826 = vmatpush2.bf16.msra.mxu0 0
        %1827 = vmatprep.subr.bf16.mxu0 0
        %1828 = vmatpush2.bf16.msra.mxu0 0
        %1829 = vmatprep.subr.bf16.mxu0 0
        %1830 = vmatpush2.bf16.msra.mxu0 0
        %1831 = vmatprep.subr.bf16.mxu0 0
        %1832 = vmatpush2.bf16.msra.mxu0 0
        %1833 = vmatprep.subr.bf16.mxu0 0
        %1834 = vmatpush2.bf16.msra.mxu0 0
        %1835 = vmatprep.subr.bf16.mxu0 0
        %1836 = vmatpush2.bf16.msra.mxu0 0
        %1837 = vmatprep.subr.bf16.mxu0 0
        %1838 = vmatpush2.bf16.msra.mxu0 0
        %1839 = vmatprep.mubr.bf16.mxu0 0
        %1840 = vmatmul.mubr.bf16.gmra.mxu0 %v1805
        %v1841 = vpop.f32.mrf.mxu0
        %v1842 = vadd.f32 0.0, %v1841
        %v1843 = vpop.f32.mrf.mxu0
        %v1844 = vadd.f32 0.0, %v1843
        %v1845 = vpop.f32.mrf.mxu0
        %v1846 = vadd.f32 0.0, %v1845
        %v1847 = vpop.f32.mrf.mxu0
        %v1848 = vadd.f32 0.0, %v1847
        %1849 = vdwg.mxu0
        %s1850 = scalar_lea.vmem [#allocation4], 16
        %v1851 = vld [vmem:[%s1850] sm:$0xf]
        %v1852 = vld [vmem:[%s1850 + $0x4] sm:$0xf]
        %v1855 = vunpack.c.l.b16 %v1851
        %v1856 = vunpack.c.l.b16 %v1852
        %v1857 = vpack.c.b16 %v1856, %v1855
        %v1859 = vsel %vm1749, %v1857, 0
        %1861 = vmatprep.subr.bf16.mxu0 0
        %1862 = vmatpush1.bf16.msra.mxu0 0
        %1863 = vmatprep.subr.bf16.mxu0 0
        %1864 = vmatpush1.bf16.msra.mxu0 0
        %1865 = vmatprep.subr.bf16.mxu0 0
        %1866 = vmatpush1.bf16.msra.mxu0 0
        %1867 = vmatprep.subr.bf16.mxu0 0
        %1868 = vmatpush1.bf16.msra.mxu0 0
        %1869 = vmatprep.subr.bf16.mxu0 0
        %1870 = vmatpush1.bf16.msra.mxu0 0
        %1871 = vmatprep.subr.bf16.mxu0 0
        %1872 = vmatpush1.bf16.msra.mxu0 0
        %1873 = vmatprep.subr.bf16.mxu0 %v1741
        %1874 = vmatpush1.bf16.msra.mxu0 %v1740
        %1875 = vmatprep.subr.bf16.mxu0 %v1739
        %1876 = vmatpush1.bf16.msra.mxu0 %v1738
        %1877 = vmatprep.subr.bf16.mxu0 0
        %1878 = vmatpush2.bf16.msra.mxu0 0
        %1879 = vmatprep.subr.bf16.mxu0 0
        %1880 = vmatpush2.bf16.msra.mxu0 0
        %1881 = vmatprep.subr.bf16.mxu0 0
        %1882 = vmatpush2.bf16.msra.mxu0 0
        %1883 = vmatprep.subr.bf16.mxu0 0
        %1884 = vmatpush2.bf16.msra.mxu0 0
        %1885 = vmatprep.subr.bf16.mxu0 0
        %1886 = vmatpush2.bf16.msra.mxu0 0
        %1887 = vmatprep.subr.bf16.mxu0 0
        %1888 = vmatpush2.bf16.msra.mxu0 0
        %1889 = vmatprep.subr.bf16.mxu0 0
        %1890 = vmatpush2.bf16.msra.mxu0 0
        %1891 = vmatprep.subr.bf16.mxu0 0
        %1892 = vmatpush2.bf16.msra.mxu0 0
        %1893 = vmatprep.mubr.bf16.mxu0 0
        %1894 = vmatmul.mubr.bf16.gmra.mxu0 %v1859
        %v1895 = vpop.f32.mrf.mxu0
        %v1896 = vadd.f32 0.0, %v1895
        %v1897 = vpop.f32.mrf.mxu0
        %v1898 = vadd.f32 0.0, %v1897
        %v1899 = vpop.f32.mrf.mxu0
        %v1900 = vadd.f32 0.0, %v1899
        %v1901 = vpop.f32.mrf.mxu0
        %v1902 = vadd.f32 0.0, %v1901
        %1903 = vdwg.mxu0
        %v1904 = vpack.c.bf16 %v1792, %v1788
        %v1905 = vpack.c.bf16 %v1794, %v1790
        %v1906 = vpack.c.bf16 %v1846, %v1842
        %v1907 = vpack.c.bf16 %v1848, %v1844
        %v1908 = vpack.c.bf16 %v1900, %v1896
        %v1909 = vpack.c.bf16 %v1902, %v1898
        %s1910 = scalar_lea.vmem [#allocation16], 768
        %v1911 = vld [vmem:[%s1910] sm:$0xff]
        %v1912 = vld [vmem:[%s1910 + $0x8] sm:$0xff]
        %v1913 = vld [vmem:[%s1910 + $0x10] sm:$0xff]
        %v1914 = vld [vmem:[%s1910 + $0x18] sm:$0xff]
        %v1915 = vld [vmem:[%s1910 + $0x20] sm:$0xff]
        %v1916 = vld [vmem:[%s1910 + $0x28] sm:$0xff]
        %v1917 = vld [vmem:[%s1910 + $0x30] sm:$0xff]
        %v1918 = vld [vmem:[%s1910 + $0x38] sm:$0xff]
        %v1919 = vld [vmem:[%s1910 + $0x40] sm:$0xff]
        %v1920 = vld [vmem:[%s1910 + $0x48] sm:$0xff]
        %v1921 = vld [vmem:[%s1910 + $0x50] sm:$0xff]
        %v1922 = vld [vmem:[%s1910 + $0x58] sm:$0xff]
        %v1923 = vld [vmem:[%s1910 + $0x60] sm:$0xff]
        %v1924 = vld [vmem:[%s1910 + $0x68] sm:$0xff]
        %v1925 = vld [vmem:[%s1910 + $0x70] sm:$0xff]
        %v1926 = vld [vmem:[%s1910 + $0x78] sm:$0xff]
        %v1927 = vld [vmem:[%s1910 + $0x80] sm:$0xff]
        %v1928 = vld [vmem:[%s1910 + $0x88] sm:$0xff]
        %v1929 = vld [vmem:[%s1910 + $0x90] sm:$0xff]
        %v1930 = vld [vmem:[%s1910 + $0x98] sm:$0xff]
        %v1931 = vld [vmem:[%s1910 + $0xa0] sm:$0xff]
        %v1932 = vld [vmem:[%s1910 + $0xa8] sm:$0xff]
        %v1933 = vld [vmem:[%s1910 + $0xb0] sm:$0xff]
        %v1934 = vld [vmem:[%s1910 + $0xb8] sm:$0xff]
        %v1935 = vld [vmem:[%s1910 + $0xc0] sm:$0xff]
        %v1936 = vld [vmem:[%s1910 + $0xc8] sm:$0xff]
        %v1937 = vld [vmem:[%s1910 + $0xd0] sm:$0xff]
        %v1938 = vld [vmem:[%s1910 + $0xd8] sm:$0xff]
        %v1939 = vld [vmem:[%s1910 + $0xe0] sm:$0xff]
        %v1940 = vld [vmem:[%s1910 + $0xe8] sm:$0xff]
        %v1941 = vld [vmem:[%s1910 + $0xf0] sm:$0xff]
        %v1942 = vld [vmem:[%s1910 + $0xf8] sm:$0xff]
        %v1943 = vld [vmem:[%s1910 + $0x100] sm:$0xff]
        %v1944 = vld [vmem:[%s1910 + $0x108] sm:$0xff]
        %v1945 = vld [vmem:[%s1910 + $0x110] sm:$0xff]
        %v1946 = vld [vmem:[%s1910 + $0x118] sm:$0xff]
        %v1947 = vld [vmem:[%s1910 + $0x120] sm:$0xff]
        %v1948 = vld [vmem:[%s1910 + $0x128] sm:$0xff]
        %v1949 = vld [vmem:[%s1910 + $0x130] sm:$0xff]
        %v1950 = vld [vmem:[%s1910 + $0x138] sm:$0xff]
        %v1951 = vld [vmem:[%s1910 + $0x140] sm:$0xff]
        %v1952 = vld [vmem:[%s1910 + $0x148] sm:$0xff]
        %v1953 = vld [vmem:[%s1910 + $0x150] sm:$0xff]
        %v1954 = vld [vmem:[%s1910 + $0x158] sm:$0xff]
        %v1955 = vld [vmem:[%s1910 + $0x160] sm:$0xff]
        %v1956 = vld [vmem:[%s1910 + $0x168] sm:$0xff]
        %v1957 = vld [vmem:[%s1910 + $0x170] sm:$0xff]
        %v1958 = vld [vmem:[%s1910 + $0x178] sm:$0xff]
        %v1959 = vld [vmem:[%s1910 + $0x180] sm:$0xff]
        %v1960 = vld [vmem:[%s1910 + $0x188] sm:$0xff]
        %v1961 = vld [vmem:[%s1910 + $0x190] sm:$0xff]
        %v1962 = vld [vmem:[%s1910 + $0x198] sm:$0xff]
        %v1963 = vld [vmem:[%s1910 + $0x1a0] sm:$0xff]
        %v1964 = vld [vmem:[%s1910 + $0x1a8] sm:$0xff]
        %v1965 = vld [vmem:[%s1910 + $0x1b0] sm:$0xff]
        %v1966 = vld [vmem:[%s1910 + $0x1b8] sm:$0xff]
        %v1967 = vld [vmem:[%s1910 + $0x1c0] sm:$0xff]
        %v1968 = vld [vmem:[%s1910 + $0x1c8] sm:$0xff]
        %v1969 = vld [vmem:[%s1910 + $0x1d0] sm:$0xff]
        %v1970 = vld [vmem:[%s1910 + $0x1d8] sm:$0xff]
        %v1971 = vld [vmem:[%s1910 + $0x1e0] sm:$0xff]
        %v1972 = vld [vmem:[%s1910 + $0x1e8] sm:$0xff]
        %v1973 = vld [vmem:[%s1910 + $0x1f0] sm:$0xff]
        %v1974 = vld [vmem:[%s1910 + $0x1f8] sm:$0xff]
        %v1975 = vld [vmem:[%s1910 + $0x200] sm:$0xff]
        %v1976 = vld [vmem:[%s1910 + $0x208] sm:$0xff]
        %v1977 = vld [vmem:[%s1910 + $0x210] sm:$0xff]
        %v1978 = vld [vmem:[%s1910 + $0x218] sm:$0xff]
        %v1979 = vld [vmem:[%s1910 + $0x220] sm:$0xff]
        %v1980 = vld [vmem:[%s1910 + $0x228] sm:$0xff]
        %v1981 = vld [vmem:[%s1910 + $0x230] sm:$0xff]
        %v1982 = vld [vmem:[%s1910 + $0x238] sm:$0xff]
        %v1983 = vld [vmem:[%s1910 + $0x240] sm:$0xff]
        %v1984 = vld [vmem:[%s1910 + $0x248] sm:$0xff]
        %v1985 = vld [vmem:[%s1910 + $0x250] sm:$0xff]
        %v1986 = vld [vmem:[%s1910 + $0x258] sm:$0xff]
        %v1987 = vld [vmem:[%s1910 + $0x260] sm:$0xff]
        %v1988 = vld [vmem:[%s1910 + $0x268] sm:$0xff]
        %v1989 = vld [vmem:[%s1910 + $0x270] sm:$0xff]
        %v1990 = vld [vmem:[%s1910 + $0x278] sm:$0xff]
        %v1991 = vld [vmem:[%s1910 + $0x280] sm:$0xff]
        %v1992 = vld [vmem:[%s1910 + $0x288] sm:$0xff]
        %v1993 = vld [vmem:[%s1910 + $0x290] sm:$0xff]
        %v1994 = vld [vmem:[%s1910 + $0x298] sm:$0xff]
        %v1995 = vld [vmem:[%s1910 + $0x2a0] sm:$0xff]
        %v1996 = vld [vmem:[%s1910 + $0x2a8] sm:$0xff]
        %v1997 = vld [vmem:[%s1910 + $0x2b0] sm:$0xff]
        %v1998 = vld [vmem:[%s1910 + $0x2b8] sm:$0xff]
        %v1999 = vld [vmem:[%s1910 + $0x2c0] sm:$0xff]
        %v2000 = vld [vmem:[%s1910 + $0x2c8] sm:$0xff]
        %v2001 = vld [vmem:[%s1910 + $0x2d0] sm:$0xff]
        %v2002 = vld [vmem:[%s1910 + $0x2d8] sm:$0xff]
        %v2003 = vld [vmem:[%s1910 + $0x2e0] sm:$0xff]
        %v2004 = vld [vmem:[%s1910 + $0x2e8] sm:$0xff]
        %v2005 = vld [vmem:[%s1910 + $0x2f0] sm:$0xff]
        %v2006 = vld [vmem:[%s1910 + $0x2f8] sm:$0xff]
        %s2007 = scalar_lea.vmem [#allocation18], 2
        %v2008 = vld [vmem:[%s2007] sm:$0x3]
        %v2010 = vlaneseq
        %v2011 = vshrl.u32 %v2010, 7
        %v2012 = vsub.s32 0, %v2011
        %v2013 = vrot.slane %v2008, %v2012
        %v2014 = vlaneseq
        %v2015 = vshrl.u32 %v2014, 7
        %v2016 = vsub.s32 1, %v2015
        %v2017 = vrot.slane %v2008, %v2016
        %v2116 = vunpack.c.l.b16 %v1911
        %v2117 = vunpack.c.h.b16 %v1911
        %v2118 = vunpack.c.l.b16 %v1912
        %v2119 = vunpack.c.h.b16 %v1912
        %v2120 = vunpack.c.l.b16 %v1913
        %v2121 = vunpack.c.h.b16 %v1913
        %v2122 = vunpack.c.l.b16 %v1914
        %v2123 = vunpack.c.h.b16 %v1914
        %v2124 = vunpack.c.l.b16 %v1915
        %v2125 = vunpack.c.h.b16 %v1915
        %v2126 = vunpack.c.l.b16 %v1916
        %v2127 = vunpack.c.h.b16 %v1916
        %v2128 = vunpack.c.l.b16 %v1917
        %v2129 = vunpack.c.h.b16 %v1917
        %v2130 = vunpack.c.l.b16 %v1918
        %v2131 = vunpack.c.h.b16 %v1918
        %v2132 = vunpack.c.l.b16 %v1919
        %v2133 = vunpack.c.h.b16 %v1919
        %v2134 = vunpack.c.l.b16 %v1920
        %v2135 = vunpack.c.h.b16 %v1920
        %v2136 = vunpack.c.l.b16 %v1921
        %v2137 = vunpack.c.h.b16 %v1921
        %v2138 = vunpack.c.l.b16 %v1922
        %v2139 = vunpack.c.h.b16 %v1922
        %v2140 = vunpack.c.l.b16 %v1923
        %v2141 = vunpack.c.h.b16 %v1923
        %v2142 = vunpack.c.l.b16 %v1924
        %v2143 = vunpack.c.h.b16 %v1924
        %v2144 = vunpack.c.l.b16 %v1925
        %v2145 = vunpack.c.h.b16 %v1925
        %v2146 = vunpack.c.l.b16 %v1926
        %v2147 = vunpack.c.h.b16 %v1926
        %v2148 = vunpack.c.l.b16 %v1927
        %v2149 = vunpack.c.h.b16 %v1927
        %v2150 = vunpack.c.l.b16 %v1928
        %v2151 = vunpack.c.h.b16 %v1928
        %v2152 = vunpack.c.l.b16 %v1929
        %v2153 = vunpack.c.h.b16 %v1929
        %v2154 = vunpack.c.l.b16 %v1930
        %v2155 = vunpack.c.h.b16 %v1930
        %v2156 = vunpack.c.l.b16 %v1931
        %v2157 = vunpack.c.h.b16 %v1931
        %v2158 = vunpack.c.l.b16 %v1932
        %v2159 = vunpack.c.h.b16 %v1932
        %v2160 = vunpack.c.l.b16 %v1933
        %v2161 = vunpack.c.h.b16 %v1933
        %v2162 = vunpack.c.l.b16 %v1934
        %v2163 = vunpack.c.h.b16 %v1934
        %v2164 = vunpack.c.l.b16 %v1935
        %v2165 = vunpack.c.h.b16 %v1935
        %v2166 = vunpack.c.l.b16 %v1936
        %v2167 = vunpack.c.h.b16 %v1936
        %v2168 = vunpack.c.l.b16 %v1937
        %v2169 = vunpack.c.h.b16 %v1937
        %v2170 = vunpack.c.l.b16 %v1938
        %v2171 = vunpack.c.h.b16 %v1938
        %v2172 = vunpack.c.l.b16 %v1939
        %v2173 = vunpack.c.h.b16 %v1939
        %v2174 = vunpack.c.l.b16 %v1940
        %v2175 = vunpack.c.h.b16 %v1940
        %v2176 = vunpack.c.l.b16 %v1941
        %v2177 = vunpack.c.h.b16 %v1941
        %v2178 = vunpack.c.l.b16 %v1942
        %v2179 = vunpack.c.h.b16 %v1942
        %v2180 = vunpack.c.l.b16 %v1943
        %v2181 = vunpack.c.h.b16 %v1943
        %v2182 = vunpack.c.l.b16 %v1944
        %v2183 = vunpack.c.h.b16 %v1944
        %v2184 = vunpack.c.l.b16 %v1945
        %v2185 = vunpack.c.h.b16 %v1945
        %v2186 = vunpack.c.l.b16 %v1946
        %v2187 = vunpack.c.h.b16 %v1946
        %v2188 = vunpack.c.l.b16 %v1947
        %v2189 = vunpack.c.h.b16 %v1947
        %v2190 = vunpack.c.l.b16 %v1948
        %v2191 = vunpack.c.h.b16 %v1948
        %v2192 = vunpack.c.l.b16 %v1949
        %v2193 = vunpack.c.h.b16 %v1949
        %v2194 = vunpack.c.l.b16 %v1950
        %v2195 = vunpack.c.h.b16 %v1950
        %v2196 = vunpack.c.l.b16 %v1951
        %v2197 = vunpack.c.h.b16 %v1951
        %v2198 = vunpack.c.l.b16 %v1952
        %v2199 = vunpack.c.h.b16 %v1952
        %v2200 = vunpack.c.l.b16 %v1953
        %v2201 = vunpack.c.h.b16 %v1953
        %v2202 = vunpack.c.l.b16 %v1954
        %v2203 = vunpack.c.h.b16 %v1954
        %v2204 = vunpack.c.l.b16 %v1955
        %v2205 = vunpack.c.h.b16 %v1955
        %v2206 = vunpack.c.l.b16 %v1956
        %v2207 = vunpack.c.h.b16 %v1956
        %v2208 = vunpack.c.l.b16 %v1957
        %v2209 = vunpack.c.h.b16 %v1957
        %v2210 = vunpack.c.l.b16 %v1958
        %v2211 = vunpack.c.h.b16 %v1958
        %v2212 = vunpack.c.l.b16 %v1959
        %v2213 = vunpack.c.h.b16 %v1959
        %v2214 = vunpack.c.l.b16 %v1960
        %v2215 = vunpack.c.h.b16 %v1960
        %v2216 = vunpack.c.l.b16 %v1961
        %v2217 = vunpack.c.h.b16 %v1961
        %v2218 = vunpack.c.l.b16 %v1962
        %v2219 = vunpack.c.h.b16 %v1962
        %v2220 = vunpack.c.l.b16 %v1963
        %v2221 = vunpack.c.h.b16 %v1963
        %v2222 = vunpack.c.l.b16 %v1964
        %v2223 = vunpack.c.h.b16 %v1964
        %v2224 = vunpack.c.l.b16 %v1965
        %v2225 = vunpack.c.h.b16 %v1965
        %v2226 = vunpack.c.l.b16 %v1966
        %v2227 = vunpack.c.h.b16 %v1966
        %v2228 = vunpack.c.l.b16 %v1967
        %v2229 = vunpack.c.h.b16 %v1967
        %v2230 = vunpack.c.l.b16 %v1968
        %v2231 = vunpack.c.h.b16 %v1968
        %v2232 = vunpack.c.l.b16 %v1969
        %v2233 = vunpack.c.h.b16 %v1969
        %v2234 = vunpack.c.l.b16 %v1970
        %v2235 = vunpack.c.h.b16 %v1970
        %v2236 = vunpack.c.l.b16 %v1971
        %v2237 = vunpack.c.h.b16 %v1971
        %v2238 = vunpack.c.l.b16 %v1972
        %v2239 = vunpack.c.h.b16 %v1972
        %v2240 = vunpack.c.l.b16 %v1973
        %v2241 = vunpack.c.h.b16 %v1973
        %v2242 = vunpack.c.l.b16 %v1974
        %v2243 = vunpack.c.h.b16 %v1974
        %v2244 = vunpack.c.l.b16 %v1975
        %v2245 = vunpack.c.h.b16 %v1975
        %v2246 = vunpack.c.l.b16 %v1976
        %v2247 = vunpack.c.h.b16 %v1976
        %v2248 = vunpack.c.l.b16 %v1977
        %v2249 = vunpack.c.h.b16 %v1977
        %v2250 = vunpack.c.l.b16 %v1978
        %v2251 = vunpack.c.h.b16 %v1978
        %v2252 = vunpack.c.l.b16 %v1979
        %v2253 = vunpack.c.h.b16 %v1979
        %v2254 = vunpack.c.l.b16 %v1980
        %v2255 = vunpack.c.h.b16 %v1980
        %v2256 = vunpack.c.l.b16 %v1981
        %v2257 = vunpack.c.h.b16 %v1981
        %v2258 = vunpack.c.l.b16 %v1982
        %v2259 = vunpack.c.h.b16 %v1982
        %v2260 = vunpack.c.l.b16 %v1983
        %v2261 = vunpack.c.h.b16 %v1983
        %v2262 = vunpack.c.l.b16 %v1984
        %v2263 = vunpack.c.h.b16 %v1984
        %v2264 = vunpack.c.l.b16 %v1985
        %v2265 = vunpack.c.h.b16 %v1985
        %v2266 = vunpack.c.l.b16 %v1986
        %v2267 = vunpack.c.h.b16 %v1986
        %v2268 = vunpack.c.l.b16 %v1987
        %v2269 = vunpack.c.h.b16 %v1987
        %v2270 = vunpack.c.l.b16 %v1988
        %v2271 = vunpack.c.h.b16 %v1988
        %v2272 = vunpack.c.l.b16 %v1989
        %v2273 = vunpack.c.h.b16 %v1989
        %v2274 = vunpack.c.l.b16 %v1990
        %v2275 = vunpack.c.h.b16 %v1990
        %v2276 = vunpack.c.l.b16 %v1991
        %v2277 = vunpack.c.h.b16 %v1991
        %v2278 = vunpack.c.l.b16 %v1992
        %v2279 = vunpack.c.h.b16 %v1992
        %v2280 = vunpack.c.l.b16 %v1993
        %v2281 = vunpack.c.h.b16 %v1993
        %v2282 = vunpack.c.l.b16 %v1994
        %v2283 = vunpack.c.h.b16 %v1994
        %v2284 = vunpack.c.l.b16 %v1995
        %v2285 = vunpack.c.h.b16 %v1995
        %v2286 = vunpack.c.l.b16 %v1996
        %v2287 = vunpack.c.h.b16 %v1996
        %v2288 = vunpack.c.l.b16 %v1997
        %v2289 = vunpack.c.h.b16 %v1997
        %v2290 = vunpack.c.l.b16 %v1998
        %v2291 = vunpack.c.h.b16 %v1998
        %v2292 = vunpack.c.l.b16 %v1999
        %v2293 = vunpack.c.h.b16 %v1999
        %v2294 = vunpack.c.l.b16 %v2000
        %v2295 = vunpack.c.h.b16 %v2000
        %v2296 = vunpack.c.l.b16 %v2001
        %v2297 = vunpack.c.h.b16 %v2001
        %v2298 = vunpack.c.l.b16 %v2002
        %v2299 = vunpack.c.h.b16 %v2002
        %v2300 = vunpack.c.l.b16 %v2003
        %v2301 = vunpack.c.h.b16 %v2003
        %v2302 = vunpack.c.l.b16 %v2004
        %v2303 = vunpack.c.h.b16 %v2004
        %v2304 = vunpack.c.l.b16 %v2005
        %v2305 = vunpack.c.h.b16 %v2005
        %v2306 = vunpack.c.l.b16 %v2006
        %v2307 = vunpack.c.h.b16 %v2006
        %v2308 = vpack.c.b16 %v2118, %v2116
        %v2309 = vpack.c.b16 %v2119, %v2117
        %v2310 = vpack.c.b16 %v2122, %v2120
        %v2311 = vpack.c.b16 %v2123, %v2121
        %v2312 = vpack.c.b16 %v2126, %v2124
        %v2313 = vpack.c.b16 %v2127, %v2125
        %v2314 = vpack.c.b16 %v2130, %v2128
        %v2315 = vpack.c.b16 %v2131, %v2129
        %v2316 = vpack.c.b16 %v2134, %v2132
        %v2317 = vpack.c.b16 %v2135, %v2133
        %v2318 = vpack.c.b16 %v2138, %v2136
        %v2319 = vpack.c.b16 %v2139, %v2137
        %v2320 = vpack.c.b16 %v2142, %v2140
        %v2321 = vpack.c.b16 %v2143, %v2141
        %v2322 = vpack.c.b16 %v2146, %v2144
        %v2323 = vpack.c.b16 %v2147, %v2145
        %v2324 = vpack.c.b16 %v2150, %v2148
        %v2325 = vpack.c.b16 %v2151, %v2149
        %v2326 = vpack.c.b16 %v2154, %v2152
        %v2327 = vpack.c.b16 %v2155, %v2153
        %v2328 = vpack.c.b16 %v2158, %v2156
        %v2329 = vpack.c.b16 %v2159, %v2157
        %v2330 = vpack.c.b16 %v2162, %v2160
        %v2331 = vpack.c.b16 %v2163, %v2161
        %v2332 = vpack.c.b16 %v2166, %v2164
        %v2333 = vpack.c.b16 %v2167, %v2165
        %v2334 = vpack.c.b16 %v2170, %v2168
        %v2335 = vpack.c.b16 %v2171, %v2169
        %v2336 = vpack.c.b16 %v2174, %v2172
        %v2337 = vpack.c.b16 %v2175, %v2173
        %v2338 = vpack.c.b16 %v2178, %v2176
        %v2339 = vpack.c.b16 %v2179, %v2177
        %v2340 = vpack.c.b16 %v2182, %v2180
        %v2341 = vpack.c.b16 %v2183, %v2181
        %v2342 = vpack.c.b16 %v2186, %v2184
        %v2343 = vpack.c.b16 %v2187, %v2185
        %v2344 = vpack.c.b16 %v2190, %v2188
        %v2345 = vpack.c.b16 %v2191, %v2189
        %v2346 = vpack.c.b16 %v2194, %v2192
        %v2347 = vpack.c.b16 %v2195, %v2193
        %v2348 = vpack.c.b16 %v2198, %v2196
        %v2349 = vpack.c.b16 %v2199, %v2197
        %v2350 = vpack.c.b16 %v2202, %v2200
        %v2351 = vpack.c.b16 %v2203, %v2201
        %v2352 = vpack.c.b16 %v2206, %v2204
        %v2353 = vpack.c.b16 %v2207, %v2205
        %v2354 = vpack.c.b16 %v2210, %v2208
        %v2355 = vpack.c.b16 %v2211, %v2209
        %v2356 = vpack.c.b16 %v2214, %v2212
        %v2357 = vpack.c.b16 %v2215, %v2213
        %v2358 = vpack.c.b16 %v2218, %v2216
        %v2359 = vpack.c.b16 %v2219, %v2217
        %v2360 = vpack.c.b16 %v2222, %v2220
        %v2361 = vpack.c.b16 %v2223, %v2221
        %v2362 = vpack.c.b16 %v2226, %v2224
        %v2363 = vpack.c.b16 %v2227, %v2225
        %v2364 = vpack.c.b16 %v2230, %v2228
        %v2365 = vpack.c.b16 %v2231, %v2229
        %v2366 = vpack.c.b16 %v2234, %v2232
        %v2367 = vpack.c.b16 %v2235, %v2233
        %v2368 = vpack.c.b16 %v2238, %v2236
        %v2369 = vpack.c.b16 %v2239, %v2237
        %v2370 = vpack.c.b16 %v2242, %v2240
        %v2371 = vpack.c.b16 %v2243, %v2241
        %v2372 = vpack.c.b16 %v2246, %v2244
        %v2373 = vpack.c.b16 %v2247, %v2245
        %v2374 = vpack.c.b16 %v2250, %v2248
        %v2375 = vpack.c.b16 %v2251, %v2249
        %v2376 = vpack.c.b16 %v2254, %v2252
        %v2377 = vpack.c.b16 %v2255, %v2253
        %v2378 = vpack.c.b16 %v2258, %v2256
        %v2379 = vpack.c.b16 %v2259, %v2257
        %v2380 = vpack.c.b16 %v2262, %v2260
        %v2381 = vpack.c.b16 %v2263, %v2261
        %v2382 = vpack.c.b16 %v2266, %v2264
        %v2383 = vpack.c.b16 %v2267, %v2265
        %v2384 = vpack.c.b16 %v2270, %v2268
        %v2385 = vpack.c.b16 %v2271, %v2269
        %v2386 = vpack.c.b16 %v2274, %v2272
        %v2387 = vpack.c.b16 %v2275, %v2273
        %v2388 = vpack.c.b16 %v2278, %v2276
        %v2389 = vpack.c.b16 %v2279, %v2277
        %v2390 = vpack.c.b16 %v2282, %v2280
        %v2391 = vpack.c.b16 %v2283, %v2281
        %v2392 = vpack.c.b16 %v2286, %v2284
        %v2393 = vpack.c.b16 %v2287, %v2285
        %v2394 = vpack.c.b16 %v2290, %v2288
        %v2395 = vpack.c.b16 %v2291, %v2289
        %v2396 = vpack.c.b16 %v2294, %v2292
        %v2397 = vpack.c.b16 %v2295, %v2293
        %v2398 = vpack.c.b16 %v2298, %v2296
        %v2399 = vpack.c.b16 %v2299, %v2297
        %v2400 = vpack.c.b16 %v2302, %v2300
        %v2401 = vpack.c.b16 %v2303, %v2301
        %v2402 = vpack.c.b16 %v2306, %v2304
        %v2403 = vpack.c.b16 %v2307, %v2305
        %2500 = vmatprep.subr.bf16.mxu0 %v2323
        %2501 = vmatpush1.bf16.msra.mxu0 %v2322
        %2502 = vmatprep.subr.bf16.mxu0 %v2321
        %2503 = vmatpush1.bf16.msra.mxu0 %v2320
        %2504 = vmatprep.subr.bf16.mxu0 %v2319
        %2505 = vmatpush1.bf16.msra.mxu0 %v2318
        %2506 = vmatprep.subr.bf16.mxu0 %v2317
        %2507 = vmatpush1.bf16.msra.mxu0 %v2316
        %2508 = vmatprep.subr.bf16.mxu0 %v2315
        %2509 = vmatpush1.bf16.msra.mxu0 %v2314
        %2510 = vmatprep.subr.bf16.mxu0 %v2313
        %2511 = vmatpush1.bf16.msra.mxu0 %v2312
        %2512 = vmatprep.subr.bf16.mxu0 %v2311
        %2513 = vmatpush1.bf16.msra.mxu0 %v2310
        %2514 = vmatprep.subr.bf16.mxu0 %v2309
        %2515 = vmatpush1.bf16.msra.mxu0 %v2308
        %2516 = vmatprep.subr.bf16.mxu0 %v2339
        %2517 = vmatpush2.bf16.msra.mxu0 %v2338
        %2518 = vmatprep.subr.bf16.mxu0 %v2337
        %2519 = vmatpush2.bf16.msra.mxu0 %v2336
        %2520 = vmatprep.subr.bf16.mxu0 %v2335
        %2521 = vmatpush2.bf16.msra.mxu0 %v2334
        %2522 = vmatprep.subr.bf16.mxu0 %v2333
        %2523 = vmatpush2.bf16.msra.mxu0 %v2332
        %2524 = vmatprep.subr.bf16.mxu0 %v2331
        %2525 = vmatpush2.bf16.msra.mxu0 %v2330
        %2526 = vmatprep.subr.bf16.mxu0 %v2329
        %2527 = vmatpush2.bf16.msra.mxu0 %v2328
        %2528 = vmatprep.subr.bf16.mxu0 %v2327
        %2529 = vmatpush2.bf16.msra.mxu0 %v2326
        %2530 = vmatprep.subr.bf16.mxu0 %v2325
        %2531 = vmatpush2.bf16.msra.mxu0 %v2324
        %2532 = vmatprep.mubr.bf16.mxu0 %v1905
        %2533 = vmatmul.mubr.bf16.gmra.mxu0 %v1904
        %v2534 = vpop.f32.mrf.mxu0
        %v2535 = vadd.f32 %v2013, %v2534
        %v2536 = vpop.f32.mrf.mxu0
        %v2537 = vadd.f32 %v2017, %v2536
        %v2538 = vpop.f32.mrf.mxu0
        %v2539 = vadd.f32 %v2013, %v2538
        %v2540 = vpop.f32.mrf.mxu0
        %v2541 = vadd.f32 %v2017, %v2540
        %2542 = vdwg.mxu0
        %2543 = vmatprep.subr.bf16.mxu0 %v2355
        %2544 = vmatpush1.bf16.msra.mxu0 %v2354
        %2545 = vmatprep.subr.bf16.mxu0 %v2353
        %2546 = vmatpush1.bf16.msra.mxu0 %v2352
        %2547 = vmatprep.subr.bf16.mxu0 %v2351
        %2548 = vmatpush1.bf16.msra.mxu0 %v2350
        %2549 = vmatprep.subr.bf16.mxu0 %v2349
        %2550 = vmatpush1.bf16.msra.mxu0 %v2348
        %2551 = vmatprep.subr.bf16.mxu0 %v2347
        %2552 = vmatpush1.bf16.msra.mxu0 %v2346
        %2553 = vmatprep.subr.bf16.mxu0 %v2345
        %2554 = vmatpush1.bf16.msra.mxu0 %v2344
        %2555 = vmatprep.subr.bf16.mxu0 %v2343
        %2556 = vmatpush1.bf16.msra.mxu0 %v2342
        %2557 = vmatprep.subr.bf16.mxu0 %v2341
        %2558 = vmatpush1.bf16.msra.mxu0 %v2340
        %2559 = vmatprep.subr.bf16.mxu0 %v2371
        %2560 = vmatpush2.bf16.msra.mxu0 %v2370
        %2561 = vmatprep.subr.bf16.mxu0 %v2369
        %2562 = vmatpush2.bf16.msra.mxu0 %v2368
        %2563 = vmatprep.subr.bf16.mxu0 %v2367
        %2564 = vmatpush2.bf16.msra.mxu0 %v2366
        %2565 = vmatprep.subr.bf16.mxu0 %v2365
        %2566 = vmatpush2.bf16.msra.mxu0 %v2364
        %2567 = vmatprep.subr.bf16.mxu0 %v2363
        %2568 = vmatpush2.bf16.msra.mxu0 %v2362
        %2569 = vmatprep.subr.bf16.mxu0 %v2361
        %2570 = vmatpush2.bf16.msra.mxu0 %v2360
        %2571 = vmatprep.subr.bf16.mxu0 %v2359
        %2572 = vmatpush2.bf16.msra.mxu0 %v2358
        %2573 = vmatprep.subr.bf16.mxu0 %v2357
        %2574 = vmatpush2.bf16.msra.mxu0 %v2356
        %2575 = vmatprep.mubr.bf16.mxu0 %v1907
        %2576 = vmatmul.mubr.bf16.gmra.mxu0 %v1906
        %v2577 = vpop.f32.mrf.mxu0
        %v2578 = vadd.f32 %v2535, %v2577
        %v2579 = vpop.f32.mrf.mxu0
        %v2580 = vadd.f32 %v2537, %v2579
        %v2581 = vpop.f32.mrf.mxu0
        %v2582 = vadd.f32 %v2539, %v2581
        %v2583 = vpop.f32.mrf.mxu0
        %v2584 = vadd.f32 %v2541, %v2583
        %2585 = vdwg.mxu0
        %2586 = vmatprep.subr.bf16.mxu0 %v2387
        %2587 = vmatpush1.bf16.msra.mxu0 %v2386
        %2588 = vmatprep.subr.bf16.mxu0 %v2385
        %2589 = vmatpush1.bf16.msra.mxu0 %v2384
        %2590 = vmatprep.subr.bf16.mxu0 %v2383
        %2591 = vmatpush1.bf16.msra.mxu0 %v2382
        %2592 = vmatprep.subr.bf16.mxu0 %v2381
        %2593 = vmatpush1.bf16.msra.mxu0 %v2380
        %2594 = vmatprep.subr.bf16.mxu0 %v2379
        %2595 = vmatpush1.bf16.msra.mxu0 %v2378
        %2596 = vmatprep.subr.bf16.mxu0 %v2377
        %2597 = vmatpush1.bf16.msra.mxu0 %v2376
        %2598 = vmatprep.subr.bf16.mxu0 %v2375
        %2599 = vmatpush1.bf16.msra.mxu0 %v2374
        %2600 = vmatprep.subr.bf16.mxu0 %v2373
        %2601 = vmatpush1.bf16.msra.mxu0 %v2372
        %2602 = vmatprep.subr.bf16.mxu0 %v2403
        %2603 = vmatpush2.bf16.msra.mxu0 %v2402
        %2604 = vmatprep.subr.bf16.mxu0 %v2401
        %2605 = vmatpush2.bf16.msra.mxu0 %v2400
        %2606 = vmatprep.subr.bf16.mxu0 %v2399
        %2607 = vmatpush2.bf16.msra.mxu0 %v2398
        %2608 = vmatprep.subr.bf16.mxu0 %v2397
        %2609 = vmatpush2.bf16.msra.mxu0 %v2396
        %2610 = vmatprep.subr.bf16.mxu0 %v2395
        %2611 = vmatpush2.bf16.msra.mxu0 %v2394
        %2612 = vmatprep.subr.bf16.mxu0 %v2393
        %2613 = vmatpush2.bf16.msra.mxu0 %v2392
        %2614 = vmatprep.subr.bf16.mxu0 %v2391
        %2615 = vmatpush2.bf16.msra.mxu0 %v2390
        %2616 = vmatprep.subr.bf16.mxu0 %v2389
        %2617 = vmatpush2.bf16.msra.mxu0 %v2388
        %2618 = vmatprep.mubr.bf16.mxu0 %v1909
        %2619 = vmatmul.mubr.bf16.gmra.mxu0 %v1908
        %v2620 = vpop.f32.mrf.mxu0
        %v2621 = vadd.f32 %v2578, %v2620
        %v2622 = vpop.f32.mrf.mxu0
        %v2623 = vadd.f32 %v2580, %v2622
        %v2624 = vpop.f32.mrf.mxu0
        %v2625 = vadd.f32 %v2582, %v2624
        %v2626 = vpop.f32.mrf.mxu0
        %v2627 = vadd.f32 %v2584, %v2626
        %2628 = vdwg.mxu0
        %v2629 = vmax.f32 %v2621, 0.0
        %v2630 = vmax.f32 %v2623, 0.0
        %v2631 = vmax.f32 %v2625, 0.0
        %v2632 = vmax.f32 %v2627, 0.0
        %v2633 = vpack.c.bf16 %v2631, %v2629
        %v2634 = vpack.c.bf16 %v2632, %v2630
        %v2635 = vld [vmem:[#allocation6] sm:$0xf]
        %v2636 = vld [vmem:[#allocation6 + $0x4] sm:$0xf]
        %v2639 = vunpack.c.l.b16 %v2635
        %v2640 = vunpack.c.l.b16 %v2636
        %v2641 = vpack.c.b16 %v2640, %v2639
        %vm2642 = vcmask 130048
        %v2644 = vsel %vm2642, %v2641, 0
        %2646 = vmatprep.subr.bf16.mxu0 0
        %2647 = vmatpush1.bf16.msra.mxu0 0
        %2648 = vmatprep.subr.bf16.mxu0 0
        %2649 = vmatpush1.bf16.msra.mxu0 0
        %2650 = vmatprep.subr.bf16.mxu0 0
        %2651 = vmatpush1.bf16.msra.mxu0 0
        %2652 = vmatprep.subr.bf16.mxu0 0
        %2653 = vmatpush1.bf16.msra.mxu0 0
        %2654 = vmatprep.subr.bf16.mxu0 0
        %2655 = vmatpush1.bf16.msra.mxu0 0
        %2656 = vmatprep.subr.bf16.mxu0 0
        %2657 = vmatpush1.bf16.msra.mxu0 0
        %2658 = vmatprep.subr.bf16.mxu0 0
        %2659 = vmatpush1.bf16.msra.mxu0 0
        %2660 = vmatprep.subr.bf16.mxu0 %v2634
        %2661 = vmatpush1.bf16.msra.mxu0 %v2633
        %2662 = vmatprep.subr.bf16.mxu0 0
        %2663 = vmatpush2.bf16.msra.mxu0 0
        %2664 = vmatprep.subr.bf16.mxu0 0
        %2665 = vmatpush2.bf16.msra.mxu0 0
        %2666 = vmatprep.subr.bf16.mxu0 0
        %2667 = vmatpush2.bf16.msra.mxu0 0
        %2668 = vmatprep.subr.bf16.mxu0 0
        %2669 = vmatpush2.bf16.msra.mxu0 0
        %2670 = vmatprep.subr.bf16.mxu0 0
        %2671 = vmatpush2.bf16.msra.mxu0 0
        %2672 = vmatprep.subr.bf16.mxu0 0
        %2673 = vmatpush2.bf16.msra.mxu0 0
        %2674 = vmatprep.subr.bf16.mxu0 0
        %2675 = vmatpush2.bf16.msra.mxu0 0
        %2676 = vmatprep.subr.bf16.mxu0 0
        %2677 = vmatpush2.bf16.msra.mxu0 0
        %2678 = vmatprep.mubr.bf16.mxu0 0
        %2679 = vmatmul.mubr.bf16.gmra.mxu0 %v2644
        %v2680 = vpop.f32.mrf.mxu0
        %v2681 = vadd.f32 0.0, %v2680
        %v2682 = vpop.f32.mrf.mxu0
        %v2683 = vadd.f32 0.0, %v2682
        %v2684 = vpop.f32.mrf.mxu0
        %v2685 = vadd.f32 0.0, %v2684
        %v2686 = vpop.f32.mrf.mxu0
        %v2687 = vadd.f32 0.0, %v2686
        %2688 = vdwg.mxu0
        %s2689 = scalar_lea.vmem [#allocation6], 8
        %v2690 = vld [vmem:[%s2689] sm:$0xf]
        %v2691 = vld [vmem:[%s2689 + $0x4] sm:$0xf]
        %v2694 = vunpack.c.l.b16 %v2690
        %v2695 = vunpack.c.l.b16 %v2691
        %v2696 = vpack.c.b16 %v2695, %v2694
        %v2698 = vsel %vm2642, %v2696, 0
        %2700 = vmatprep.subr.bf16.mxu0 0
        %2701 = vmatpush1.bf16.msra.mxu0 0
        %2702 = vmatprep.subr.bf16.mxu0 0
        %2703 = vmatpush1.bf16.msra.mxu0 0
        %2704 = vmatprep.subr.bf16.mxu0 0
        %2705 = vmatpush1.bf16.msra.mxu0 0
        %2706 = vmatprep.subr.bf16.mxu0 0
        %2707 = vmatpush1.bf16.msra.mxu0 0
        %2708 = vmatprep.subr.bf16.mxu0 0
        %2709 = vmatpush1.bf16.msra.mxu0 0
        %2710 = vmatprep.subr.bf16.mxu0 0
        %2711 = vmatpush1.bf16.msra.mxu0 0
        %2712 = vmatprep.subr.bf16.mxu0 0
        %2713 = vmatpush1.bf16.msra.mxu0 0
        %2714 = vmatprep.subr.bf16.mxu0 %v2634
        %2715 = vmatpush1.bf16.msra.mxu0 %v2633
        %2716 = vmatprep.subr.bf16.mxu0 0
        %2717 = vmatpush2.bf16.msra.mxu0 0
        %2718 = vmatprep.subr.bf16.mxu0 0
        %2719 = vmatpush2.bf16.msra.mxu0 0
        %2720 = vmatprep.subr.bf16.mxu0 0
        %2721 = vmatpush2.bf16.msra.mxu0 0
        %2722 = vmatprep.subr.bf16.mxu0 0
        %2723 = vmatpush2.bf16.msra.mxu0 0
        %2724 = vmatprep.subr.bf16.mxu0 0
        %2725 = vmatpush2.bf16.msra.mxu0 0
        %2726 = vmatprep.subr.bf16.mxu0 0
        %2727 = vmatpush2.bf16.msra.mxu0 0
        %2728 = vmatprep.subr.bf16.mxu0 0
        %2729 = vmatpush2.bf16.msra.mxu0 0
        %2730 = vmatprep.subr.bf16.mxu0 0
        %2731 = vmatpush2.bf16.msra.mxu0 0
        %2732 = vmatprep.mubr.bf16.mxu0 0
        %2733 = vmatmul.mubr.bf16.gmra.mxu0 %v2698
        %v2734 = vpop.f32.mrf.mxu0
        %v2735 = vadd.f32 0.0, %v2734
        %v2736 = vpop.f32.mrf.mxu0
        %v2737 = vadd.f32 0.0, %v2736
        %v2738 = vpop.f32.mrf.mxu0
        %v2739 = vadd.f32 0.0, %v2738
        %v2740 = vpop.f32.mrf.mxu0
        %v2741 = vadd.f32 0.0, %v2740
        %2742 = vdwg.mxu0
        %s2743 = scalar_lea.vmem [#allocation6], 16
        %v2744 = vld [vmem:[%s2743] sm:$0xf]
        %v2745 = vld [vmem:[%s2743 + $0x4] sm:$0xf]
        %v2748 = vunpack.c.l.b16 %v2744
        %v2749 = vunpack.c.l.b16 %v2745
        %v2750 = vpack.c.b16 %v2749, %v2748
        %v2752 = vsel %vm2642, %v2750, 0
        %2754 = vmatprep.subr.bf16.mxu0 0
        %2755 = vmatpush1.bf16.msra.mxu0 0
        %2756 = vmatprep.subr.bf16.mxu0 0
        %2757 = vmatpush1.bf16.msra.mxu0 0
        %2758 = vmatprep.subr.bf16.mxu0 0
        %2759 = vmatpush1.bf16.msra.mxu0 0
        %2760 = vmatprep.subr.bf16.mxu0 0
        %2761 = vmatpush1.bf16.msra.mxu0 0
        %2762 = vmatprep.subr.bf16.mxu0 0
        %2763 = vmatpush1.bf16.msra.mxu0 0
        %2764 = vmatprep.subr.bf16.mxu0 0
        %2765 = vmatpush1.bf16.msra.mxu0 0
        %2766 = vmatprep.subr.bf16.mxu0 0
        %2767 = vmatpush1.bf16.msra.mxu0 0
        %2768 = vmatprep.subr.bf16.mxu0 %v2634
        %2769 = vmatpush1.bf16.msra.mxu0 %v2633
        %2770 = vmatprep.subr.bf16.mxu0 0
        %2771 = vmatpush2.bf16.msra.mxu0 0
        %2772 = vmatprep.subr.bf16.mxu0 0
        %2773 = vmatpush2.bf16.msra.mxu0 0
        %2774 = vmatprep.subr.bf16.mxu0 0
        %2775 = vmatpush2.bf16.msra.mxu0 0
        %2776 = vmatprep.subr.bf16.mxu0 0
        %2777 = vmatpush2.bf16.msra.mxu0 0
        %2778 = vmatprep.subr.bf16.mxu0 0
        %2779 = vmatpush2.bf16.msra.mxu0 0
        %2780 = vmatprep.subr.bf16.mxu0 0
        %2781 = vmatpush2.bf16.msra.mxu0 0
        %2782 = vmatprep.subr.bf16.mxu0 0
        %2783 = vmatpush2.bf16.msra.mxu0 0
        %2784 = vmatprep.subr.bf16.mxu0 0
        %2785 = vmatpush2.bf16.msra.mxu0 0
        %2786 = vmatprep.mubr.bf16.mxu0 0
        %2787 = vmatmul.mubr.bf16.gmra.mxu0 %v2752
        %v2788 = vpop.f32.mrf.mxu0
        %v2789 = vadd.f32 0.0, %v2788
        %v2790 = vpop.f32.mrf.mxu0
        %v2791 = vadd.f32 0.0, %v2790
        %v2792 = vpop.f32.mrf.mxu0
        %v2793 = vadd.f32 0.0, %v2792
        %v2794 = vpop.f32.mrf.mxu0
        %v2795 = vadd.f32 0.0, %v2794
        %2796 = vdwg.mxu0
        %v2797 = vpack.c.bf16 %v2685, %v2681
        %v2798 = vpack.c.bf16 %v2687, %v2683
        %v2799 = vpack.c.bf16 %v2739, %v2735
        %v2800 = vpack.c.bf16 %v2741, %v2737
        %v2801 = vpack.c.bf16 %v2793, %v2789
        %v2802 = vpack.c.bf16 %v2795, %v2791
        %s2803 = scalar_lea.vmem [#allocation16], 1536
        %v2804 = vld [vmem:[%s2803] sm:$0xff]
        %v2805 = vld [vmem:[%s2803 + $0x8] sm:$0xff]
        %v2806 = vld [vmem:[%s2803 + $0x10] sm:$0xff]
        %v2807 = vld [vmem:[%s2803 + $0x18] sm:$0xff]
        %v2808 = vld [vmem:[%s2803 + $0x20] sm:$0xff]
        %v2809 = vld [vmem:[%s2803 + $0x28] sm:$0xff]
        %v2810 = vld [vmem:[%s2803 + $0x30] sm:$0xff]
        %v2811 = vld [vmem:[%s2803 + $0x38] sm:$0xff]
        %v2812 = vld [vmem:[%s2803 + $0x40] sm:$0xff]
        %v2813 = vld [vmem:[%s2803 + $0x48] sm:$0xff]
        %v2814 = vld [vmem:[%s2803 + $0x50] sm:$0xff]
        %v2815 = vld [vmem:[%s2803 + $0x58] sm:$0xff]
        %v2816 = vld [vmem:[%s2803 + $0x60] sm:$0xff]
        %v2817 = vld [vmem:[%s2803 + $0x68] sm:$0xff]
        %v2818 = vld [vmem:[%s2803 + $0x70] sm:$0xff]
        %v2819 = vld [vmem:[%s2803 + $0x78] sm:$0xff]
        %v2820 = vld [vmem:[%s2803 + $0x80] sm:$0xff]
        %v2821 = vld [vmem:[%s2803 + $0x88] sm:$0xff]
        %v2822 = vld [vmem:[%s2803 + $0x90] sm:$0xff]
        %v2823 = vld [vmem:[%s2803 + $0x98] sm:$0xff]
        %v2824 = vld [vmem:[%s2803 + $0xa0] sm:$0xff]
        %v2825 = vld [vmem:[%s2803 + $0xa8] sm:$0xff]
        %v2826 = vld [vmem:[%s2803 + $0xb0] sm:$0xff]
        %v2827 = vld [vmem:[%s2803 + $0xb8] sm:$0xff]
        %v2828 = vld [vmem:[%s2803 + $0xc0] sm:$0xff]
        %v2829 = vld [vmem:[%s2803 + $0xc8] sm:$0xff]
        %v2830 = vld [vmem:[%s2803 + $0xd0] sm:$0xff]
        %v2831 = vld [vmem:[%s2803 + $0xd8] sm:$0xff]
        %v2832 = vld [vmem:[%s2803 + $0xe0] sm:$0xff]
        %v2833 = vld [vmem:[%s2803 + $0xe8] sm:$0xff]
        %v2834 = vld [vmem:[%s2803 + $0xf0] sm:$0xff]
        %v2835 = vld [vmem:[%s2803 + $0xf8] sm:$0xff]
        %v2836 = vld [vmem:[%s2803 + $0x100] sm:$0xff]
        %v2837 = vld [vmem:[%s2803 + $0x108] sm:$0xff]
        %v2838 = vld [vmem:[%s2803 + $0x110] sm:$0xff]
        %v2839 = vld [vmem:[%s2803 + $0x118] sm:$0xff]
        %v2840 = vld [vmem:[%s2803 + $0x120] sm:$0xff]
        %v2841 = vld [vmem:[%s2803 + $0x128] sm:$0xff]
        %v2842 = vld [vmem:[%s2803 + $0x130] sm:$0xff]
        %v2843 = vld [vmem:[%s2803 + $0x138] sm:$0xff]
        %v2844 = vld [vmem:[%s2803 + $0x140] sm:$0xff]
        %v2845 = vld [vmem:[%s2803 + $0x148] sm:$0xff]
        %v2846 = vld [vmem:[%s2803 + $0x150] sm:$0xff]
        %v2847 = vld [vmem:[%s2803 + $0x158] sm:$0xff]
        %v2848 = vld [vmem:[%s2803 + $0x160] sm:$0xff]
        %v2849 = vld [vmem:[%s2803 + $0x168] sm:$0xff]
        %v2850 = vld [vmem:[%s2803 + $0x170] sm:$0xff]
        %v2851 = vld [vmem:[%s2803 + $0x178] sm:$0xff]
        %v2852 = vld [vmem:[%s2803 + $0x180] sm:$0xff]
        %v2853 = vld [vmem:[%s2803 + $0x188] sm:$0xff]
        %v2854 = vld [vmem:[%s2803 + $0x190] sm:$0xff]
        %v2855 = vld [vmem:[%s2803 + $0x198] sm:$0xff]
        %v2856 = vld [vmem:[%s2803 + $0x1a0] sm:$0xff]
        %v2857 = vld [vmem:[%s2803 + $0x1a8] sm:$0xff]
        %v2858 = vld [vmem:[%s2803 + $0x1b0] sm:$0xff]
        %v2859 = vld [vmem:[%s2803 + $0x1b8] sm:$0xff]
        %v2860 = vld [vmem:[%s2803 + $0x1c0] sm:$0xff]
        %v2861 = vld [vmem:[%s2803 + $0x1c8] sm:$0xff]
        %v2862 = vld [vmem:[%s2803 + $0x1d0] sm:$0xff]
        %v2863 = vld [vmem:[%s2803 + $0x1d8] sm:$0xff]
        %v2864 = vld [vmem:[%s2803 + $0x1e0] sm:$0xff]
        %v2865 = vld [vmem:[%s2803 + $0x1e8] sm:$0xff]
        %v2866 = vld [vmem:[%s2803 + $0x1f0] sm:$0xff]
        %v2867 = vld [vmem:[%s2803 + $0x1f8] sm:$0xff]
        %v2868 = vld [vmem:[%s2803 + $0x200] sm:$0xff]
        %v2869 = vld [vmem:[%s2803 + $0x208] sm:$0xff]
        %v2870 = vld [vmem:[%s2803 + $0x210] sm:$0xff]
        %v2871 = vld [vmem:[%s2803 + $0x218] sm:$0xff]
        %v2872 = vld [vmem:[%s2803 + $0x220] sm:$0xff]
        %v2873 = vld [vmem:[%s2803 + $0x228] sm:$0xff]
        %v2874 = vld [vmem:[%s2803 + $0x230] sm:$0xff]
        %v2875 = vld [vmem:[%s2803 + $0x238] sm:$0xff]
        %v2876 = vld [vmem:[%s2803 + $0x240] sm:$0xff]
        %v2877 = vld [vmem:[%s2803 + $0x248] sm:$0xff]
        %v2878 = vld [vmem:[%s2803 + $0x250] sm:$0xff]
        %v2879 = vld [vmem:[%s2803 + $0x258] sm:$0xff]
        %v2880 = vld [vmem:[%s2803 + $0x260] sm:$0xff]
        %v2881 = vld [vmem:[%s2803 + $0x268] sm:$0xff]
        %v2882 = vld [vmem:[%s2803 + $0x270] sm:$0xff]
        %v2883 = vld [vmem:[%s2803 + $0x278] sm:$0xff]
        %v2884 = vld [vmem:[%s2803 + $0x280] sm:$0xff]
        %v2885 = vld [vmem:[%s2803 + $0x288] sm:$0xff]
        %v2886 = vld [vmem:[%s2803 + $0x290] sm:$0xff]
        %v2887 = vld [vmem:[%s2803 + $0x298] sm:$0xff]
        %v2888 = vld [vmem:[%s2803 + $0x2a0] sm:$0xff]
        %v2889 = vld [vmem:[%s2803 + $0x2a8] sm:$0xff]
        %v2890 = vld [vmem:[%s2803 + $0x2b0] sm:$0xff]
        %v2891 = vld [vmem:[%s2803 + $0x2b8] sm:$0xff]
        %v2892 = vld [vmem:[%s2803 + $0x2c0] sm:$0xff]
        %v2893 = vld [vmem:[%s2803 + $0x2c8] sm:$0xff]
        %v2894 = vld [vmem:[%s2803 + $0x2d0] sm:$0xff]
        %v2895 = vld [vmem:[%s2803 + $0x2d8] sm:$0xff]
        %v2896 = vld [vmem:[%s2803 + $0x2e0] sm:$0xff]
        %v2897 = vld [vmem:[%s2803 + $0x2e8] sm:$0xff]
        %v2898 = vld [vmem:[%s2803 + $0x2f0] sm:$0xff]
        %v2899 = vld [vmem:[%s2803 + $0x2f8] sm:$0xff]
        %s2900 = scalar_lea.vmem [#allocation18], 4
        %v2901 = vld [vmem:[%s2900] sm:$0x3]
        %v2903 = vlaneseq
        %v2904 = vshrl.u32 %v2903, 7
        %v2905 = vsub.s32 0, %v2904
        %v2906 = vrot.slane %v2901, %v2905
        %v2907 = vlaneseq
        %v2908 = vshrl.u32 %v2907, 7
        %v2909 = vsub.s32 1, %v2908
        %v2910 = vrot.slane %v2901, %v2909
        %v3009 = vunpack.c.l.b16 %v2804
        %v3010 = vunpack.c.h.b16 %v2804
        %v3011 = vunpack.c.l.b16 %v2805
        %v3012 = vunpack.c.h.b16 %v2805
        %v3013 = vunpack.c.l.b16 %v2806
        %v3014 = vunpack.c.h.b16 %v2806
        %v3015 = vunpack.c.l.b16 %v2807
        %v3016 = vunpack.c.h.b16 %v2807
        %v3017 = vunpack.c.l.b16 %v2808
        %v3018 = vunpack.c.h.b16 %v2808
        %v3019 = vunpack.c.l.b16 %v2809
        %v3020 = vunpack.c.h.b16 %v2809
        %v3021 = vunpack.c.l.b16 %v2810
        %v3022 = vunpack.c.h.b16 %v2810
        %v3023 = vunpack.c.l.b16 %v2811
        %v3024 = vunpack.c.h.b16 %v2811
        %v3025 = vunpack.c.l.b16 %v2812
        %v3026 = vunpack.c.h.b16 %v2812
        %v3027 = vunpack.c.l.b16 %v2813
        %v3028 = vunpack.c.h.b16 %v2813
        %v3029 = vunpack.c.l.b16 %v2814
        %v3030 = vunpack.c.h.b16 %v2814
        %v3031 = vunpack.c.l.b16 %v2815
        %v3032 = vunpack.c.h.b16 %v2815
        %v3033 = vunpack.c.l.b16 %v2816
        %v3034 = vunpack.c.h.b16 %v2816
        %v3035 = vunpack.c.l.b16 %v2817
        %v3036 = vunpack.c.h.b16 %v2817
        %v3037 = vunpack.c.l.b16 %v2818
        %v3038 = vunpack.c.h.b16 %v2818
        %v3039 = vunpack.c.l.b16 %v2819
        %v3040 = vunpack.c.h.b16 %v2819
        %v3041 = vunpack.c.l.b16 %v2820
        %v3042 = vunpack.c.h.b16 %v2820
        %v3043 = vunpack.c.l.b16 %v2821
        %v3044 = vunpack.c.h.b16 %v2821
        %v3045 = vunpack.c.l.b16 %v2822
        %v3046 = vunpack.c.h.b16 %v2822
        %v3047 = vunpack.c.l.b16 %v2823
        %v3048 = vunpack.c.h.b16 %v2823
        %v3049 = vunpack.c.l.b16 %v2824
        %v3050 = vunpack.c.h.b16 %v2824
        %v3051 = vunpack.c.l.b16 %v2825
        %v3052 = vunpack.c.h.b16 %v2825
        %v3053 = vunpack.c.l.b16 %v2826
        %v3054 = vunpack.c.h.b16 %v2826
        %v3055 = vunpack.c.l.b16 %v2827
        %v3056 = vunpack.c.h.b16 %v2827
        %v3057 = vunpack.c.l.b16 %v2828
        %v3058 = vunpack.c.h.b16 %v2828
        %v3059 = vunpack.c.l.b16 %v2829
        %v3060 = vunpack.c.h.b16 %v2829
        %v3061 = vunpack.c.l.b16 %v2830
        %v3062 = vunpack.c.h.b16 %v2830
        %v3063 = vunpack.c.l.b16 %v2831
        %v3064 = vunpack.c.h.b16 %v2831
        %v3065 = vunpack.c.l.b16 %v2832
        %v3066 = vunpack.c.h.b16 %v2832
        %v3067 = vunpack.c.l.b16 %v2833
        %v3068 = vunpack.c.h.b16 %v2833
        %v3069 = vunpack.c.l.b16 %v2834
        %v3070 = vunpack.c.h.b16 %v2834
        %v3071 = vunpack.c.l.b16 %v2835
        %v3072 = vunpack.c.h.b16 %v2835
        %v3073 = vunpack.c.l.b16 %v2836
        %v3074 = vunpack.c.h.b16 %v2836
        %v3075 = vunpack.c.l.b16 %v2837
        %v3076 = vunpack.c.h.b16 %v2837
        %v3077 = vunpack.c.l.b16 %v2838
        %v3078 = vunpack.c.h.b16 %v2838
        %v3079 = vunpack.c.l.b16 %v2839
        %v3080 = vunpack.c.h.b16 %v2839
        %v3081 = vunpack.c.l.b16 %v2840
        %v3082 = vunpack.c.h.b16 %v2840
        %v3083 = vunpack.c.l.b16 %v2841
        %v3084 = vunpack.c.h.b16 %v2841
        %v3085 = vunpack.c.l.b16 %v2842
        %v3086 = vunpack.c.h.b16 %v2842
        %v3087 = vunpack.c.l.b16 %v2843
        %v3088 = vunpack.c.h.b16 %v2843
        %v3089 = vunpack.c.l.b16 %v2844
        %v3090 = vunpack.c.h.b16 %v2844
        %v3091 = vunpack.c.l.b16 %v2845
        %v3092 = vunpack.c.h.b16 %v2845
        %v3093 = vunpack.c.l.b16 %v2846
        %v3094 = vunpack.c.h.b16 %v2846
        %v3095 = vunpack.c.l.b16 %v2847
        %v3096 = vunpack.c.h.b16 %v2847
        %v3097 = vunpack.c.l.b16 %v2848
        %v3098 = vunpack.c.h.b16 %v2848
        %v3099 = vunpack.c.l.b16 %v2849
        %v3100 = vunpack.c.h.b16 %v2849
        %v3101 = vunpack.c.l.b16 %v2850
        %v3102 = vunpack.c.h.b16 %v2850
        %v3103 = vunpack.c.l.b16 %v2851
        %v3104 = vunpack.c.h.b16 %v2851
        %v3105 = vunpack.c.l.b16 %v2852
        %v3106 = vunpack.c.h.b16 %v2852
        %v3107 = vunpack.c.l.b16 %v2853
        %v3108 = vunpack.c.h.b16 %v2853
        %v3109 = vunpack.c.l.b16 %v2854
        %v3110 = vunpack.c.h.b16 %v2854
        %v3111 = vunpack.c.l.b16 %v2855
        %v3112 = vunpack.c.h.b16 %v2855
        %v3113 = vunpack.c.l.b16 %v2856
        %v3114 = vunpack.c.h.b16 %v2856
        %v3115 = vunpack.c.l.b16 %v2857
        %v3116 = vunpack.c.h.b16 %v2857
        %v3117 = vunpack.c.l.b16 %v2858
        %v3118 = vunpack.c.h.b16 %v2858
        %v3119 = vunpack.c.l.b16 %v2859
        %v3120 = vunpack.c.h.b16 %v2859
        %v3121 = vunpack.c.l.b16 %v2860
        %v3122 = vunpack.c.h.b16 %v2860
        %v3123 = vunpack.c.l.b16 %v2861
        %v3124 = vunpack.c.h.b16 %v2861
        %v3125 = vunpack.c.l.b16 %v2862
        %v3126 = vunpack.c.h.b16 %v2862
        %v3127 = vunpack.c.l.b16 %v2863
        %v3128 = vunpack.c.h.b16 %v2863
        %v3129 = vunpack.c.l.b16 %v2864
        %v3130 = vunpack.c.h.b16 %v2864
        %v3131 = vunpack.c.l.b16 %v2865
        %v3132 = vunpack.c.h.b16 %v2865
        %v3133 = vunpack.c.l.b16 %v2866
        %v3134 = vunpack.c.h.b16 %v2866
        %v3135 = vunpack.c.l.b16 %v2867
        %v3136 = vunpack.c.h.b16 %v2867
        %v3137 = vunpack.c.l.b16 %v2868
        %v3138 = vunpack.c.h.b16 %v2868
        %v3139 = vunpack.c.l.b16 %v2869
        %v3140 = vunpack.c.h.b16 %v2869
        %v3141 = vunpack.c.l.b16 %v2870
        %v3142 = vunpack.c.h.b16 %v2870
        %v3143 = vunpack.c.l.b16 %v2871
        %v3144 = vunpack.c.h.b16 %v2871
        %v3145 = vunpack.c.l.b16 %v2872
        %v3146 = vunpack.c.h.b16 %v2872
        %v3147 = vunpack.c.l.b16 %v2873
        %v3148 = vunpack.c.h.b16 %v2873
        %v3149 = vunpack.c.l.b16 %v2874
        %v3150 = vunpack.c.h.b16 %v2874
        %v3151 = vunpack.c.l.b16 %v2875
        %v3152 = vunpack.c.h.b16 %v2875
        %v3153 = vunpack.c.l.b16 %v2876
        %v3154 = vunpack.c.h.b16 %v2876
        %v3155 = vunpack.c.l.b16 %v2877
        %v3156 = vunpack.c.h.b16 %v2877
        %v3157 = vunpack.c.l.b16 %v2878
        %v3158 = vunpack.c.h.b16 %v2878
        %v3159 = vunpack.c.l.b16 %v2879
        %v3160 = vunpack.c.h.b16 %v2879
        %v3161 = vunpack.c.l.b16 %v2880
        %v3162 = vunpack.c.h.b16 %v2880
        %v3163 = vunpack.c.l.b16 %v2881
        %v3164 = vunpack.c.h.b16 %v2881
        %v3165 = vunpack.c.l.b16 %v2882
        %v3166 = vunpack.c.h.b16 %v2882
        %v3167 = vunpack.c.l.b16 %v2883
        %v3168 = vunpack.c.h.b16 %v2883
        %v3169 = vunpack.c.l.b16 %v2884
        %v3170 = vunpack.c.h.b16 %v2884
        %v3171 = vunpack.c.l.b16 %v2885
        %v3172 = vunpack.c.h.b16 %v2885
        %v3173 = vunpack.c.l.b16 %v2886
        %v3174 = vunpack.c.h.b16 %v2886
        %v3175 = vunpack.c.l.b16 %v2887
        %v3176 = vunpack.c.h.b16 %v2887
        %v3177 = vunpack.c.l.b16 %v2888
        %v3178 = vunpack.c.h.b16 %v2888
        %v3179 = vunpack.c.l.b16 %v2889
        %v3180 = vunpack.c.h.b16 %v2889
        %v3181 = vunpack.c.l.b16 %v2890
        %v3182 = vunpack.c.h.b16 %v2890
        %v3183 = vunpack.c.l.b16 %v2891
        %v3184 = vunpack.c.h.b16 %v2891
        %v3185 = vunpack.c.l.b16 %v2892
        %v3186 = vunpack.c.h.b16 %v2892
        %v3187 = vunpack.c.l.b16 %v2893
        %v3188 = vunpack.c.h.b16 %v2893
        %v3189 = vunpack.c.l.b16 %v2894
        %v3190 = vunpack.c.h.b16 %v2894
        %v3191 = vunpack.c.l.b16 %v2895
        %v3192 = vunpack.c.h.b16 %v2895
        %v3193 = vunpack.c.l.b16 %v2896
        %v3194 = vunpack.c.h.b16 %v2896
        %v3195 = vunpack.c.l.b16 %v2897
        %v3196 = vunpack.c.h.b16 %v2897
        %v3197 = vunpack.c.l.b16 %v2898
        %v3198 = vunpack.c.h.b16 %v2898
        %v3199 = vunpack.c.l.b16 %v2899
        %v3200 = vunpack.c.h.b16 %v2899
        %v3201 = vpack.c.b16 %v3011, %v3009
        %v3202 = vpack.c.b16 %v3012, %v3010
        %v3203 = vpack.c.b16 %v3015, %v3013
        %v3204 = vpack.c.b16 %v3016, %v3014
        %v3205 = vpack.c.b16 %v3019, %v3017
        %v3206 = vpack.c.b16 %v3020, %v3018
        %v3207 = vpack.c.b16 %v3023, %v3021
        %v3208 = vpack.c.b16 %v3024, %v3022
        %v3209 = vpack.c.b16 %v3027, %v3025
        %v3210 = vpack.c.b16 %v3028, %v3026
        %v3211 = vpack.c.b16 %v3031, %v3029
        %v3212 = vpack.c.b16 %v3032, %v3030
        %v3213 = vpack.c.b16 %v3035, %v3033
        %v3214 = vpack.c.b16 %v3036, %v3034
        %v3215 = vpack.c.b16 %v3039, %v3037
        %v3216 = vpack.c.b16 %v3040, %v3038
        %v3217 = vpack.c.b16 %v3043, %v3041
        %v3218 = vpack.c.b16 %v3044, %v3042
        %v3219 = vpack.c.b16 %v3047, %v3045
        %v3220 = vpack.c.b16 %v3048, %v3046
        %v3221 = vpack.c.b16 %v3051, %v3049
        %v3222 = vpack.c.b16 %v3052, %v3050
        %v3223 = vpack.c.b16 %v3055, %v3053
        %v3224 = vpack.c.b16 %v3056, %v3054
        %v3225 = vpack.c.b16 %v3059, %v3057
        %v3226 = vpack.c.b16 %v3060, %v3058
        %v3227 = vpack.c.b16 %v3063, %v3061
        %v3228 = vpack.c.b16 %v3064, %v3062
        %v3229 = vpack.c.b16 %v3067, %v3065
        %v3230 = vpack.c.b16 %v3068, %v3066
        %v3231 = vpack.c.b16 %v3071, %v3069
        %v3232 = vpack.c.b16 %v3072, %v3070
        %v3233 = vpack.c.b16 %v3075, %v3073
        %v3234 = vpack.c.b16 %v3076, %v3074
        %v3235 = vpack.c.b16 %v3079, %v3077
        %v3236 = vpack.c.b16 %v3080, %v3078
        %v3237 = vpack.c.b16 %v3083, %v3081
        %v3238 = vpack.c.b16 %v3084, %v3082
        %v3239 = vpack.c.b16 %v3087, %v3085
        %v3240 = vpack.c.b16 %v3088, %v3086
        %v3241 = vpack.c.b16 %v3091, %v3089
        %v3242 = vpack.c.b16 %v3092, %v3090
        %v3243 = vpack.c.b16 %v3095, %v3093
        %v3244 = vpack.c.b16 %v3096, %v3094
        %v3245 = vpack.c.b16 %v3099, %v3097
        %v3246 = vpack.c.b16 %v3100, %v3098
        %v3247 = vpack.c.b16 %v3103, %v3101
        %v3248 = vpack.c.b16 %v3104, %v3102
        %v3249 = vpack.c.b16 %v3107, %v3105
        %v3250 = vpack.c.b16 %v3108, %v3106
        %v3251 = vpack.c.b16 %v3111, %v3109
        %v3252 = vpack.c.b16 %v3112, %v3110
        %v3253 = vpack.c.b16 %v3115, %v3113
        %v3254 = vpack.c.b16 %v3116, %v3114
        %v3255 = vpack.c.b16 %v3119, %v3117
        %v3256 = vpack.c.b16 %v3120, %v3118
        %v3257 = vpack.c.b16 %v3123, %v3121
        %v3258 = vpack.c.b16 %v3124, %v3122
        %v3259 = vpack.c.b16 %v3127, %v3125
        %v3260 = vpack.c.b16 %v3128, %v3126
        %v3261 = vpack.c.b16 %v3131, %v3129
        %v3262 = vpack.c.b16 %v3132, %v3130
        %v3263 = vpack.c.b16 %v3135, %v3133
        %v3264 = vpack.c.b16 %v3136, %v3134
        %v3265 = vpack.c.b16 %v3139, %v3137
        %v3266 = vpack.c.b16 %v3140, %v3138
        %v3267 = vpack.c.b16 %v3143, %v3141
        %v3268 = vpack.c.b16 %v3144, %v3142
        %v3269 = vpack.c.b16 %v3147, %v3145
        %v3270 = vpack.c.b16 %v3148, %v3146
        %v3271 = vpack.c.b16 %v3151, %v3149
        %v3272 = vpack.c.b16 %v3152, %v3150
        %v3273 = vpack.c.b16 %v3155, %v3153
        %v3274 = vpack.c.b16 %v3156, %v3154
        %v3275 = vpack.c.b16 %v3159, %v3157
        %v3276 = vpack.c.b16 %v3160, %v3158
        %v3277 = vpack.c.b16 %v3163, %v3161
        %v3278 = vpack.c.b16 %v3164, %v3162
        %v3279 = vpack.c.b16 %v3167, %v3165
        %v3280 = vpack.c.b16 %v3168, %v3166
        %v3281 = vpack.c.b16 %v3171, %v3169
        %v3282 = vpack.c.b16 %v3172, %v3170
        %v3283 = vpack.c.b16 %v3175, %v3173
        %v3284 = vpack.c.b16 %v3176, %v3174
        %v3285 = vpack.c.b16 %v3179, %v3177
        %v3286 = vpack.c.b16 %v3180, %v3178
        %v3287 = vpack.c.b16 %v3183, %v3181
        %v3288 = vpack.c.b16 %v3184, %v3182
        %v3289 = vpack.c.b16 %v3187, %v3185
        %v3290 = vpack.c.b16 %v3188, %v3186
        %v3291 = vpack.c.b16 %v3191, %v3189
        %v3292 = vpack.c.b16 %v3192, %v3190
        %v3293 = vpack.c.b16 %v3195, %v3193
        %v3294 = vpack.c.b16 %v3196, %v3194
        %v3295 = vpack.c.b16 %v3199, %v3197
        %v3296 = vpack.c.b16 %v3200, %v3198
        %3393 = vmatprep.subr.bf16.mxu0 %v3216
        %3394 = vmatpush1.bf16.msra.mxu0 %v3215
        %3395 = vmatprep.subr.bf16.mxu0 %v3214
        %3396 = vmatpush1.bf16.msra.mxu0 %v3213
        %3397 = vmatprep.subr.bf16.mxu0 %v3212
        %3398 = vmatpush1.bf16.msra.mxu0 %v3211
        %3399 = vmatprep.subr.bf16.mxu0 %v3210
        %3400 = vmatpush1.bf16.msra.mxu0 %v3209
        %3401 = vmatprep.subr.bf16.mxu0 %v3208
        %3402 = vmatpush1.bf16.msra.mxu0 %v3207
        %3403 = vmatprep.subr.bf16.mxu0 %v3206
        %3404 = vmatpush1.bf16.msra.mxu0 %v3205
        %3405 = vmatprep.subr.bf16.mxu0 %v3204
        %3406 = vmatpush1.bf16.msra.mxu0 %v3203
        %3407 = vmatprep.subr.bf16.mxu0 %v3202
        %3408 = vmatpush1.bf16.msra.mxu0 %v3201
        %3409 = vmatprep.subr.bf16.mxu0 %v3232
        %3410 = vmatpush2.bf16.msra.mxu0 %v3231
        %3411 = vmatprep.subr.bf16.mxu0 %v3230
        %3412 = vmatpush2.bf16.msra.mxu0 %v3229
        %3413 = vmatprep.subr.bf16.mxu0 %v3228
        %3414 = vmatpush2.bf16.msra.mxu0 %v3227
        %3415 = vmatprep.subr.bf16.mxu0 %v3226
        %3416 = vmatpush2.bf16.msra.mxu0 %v3225
        %3417 = vmatprep.subr.bf16.mxu0 %v3224
        %3418 = vmatpush2.bf16.msra.mxu0 %v3223
        %3419 = vmatprep.subr.bf16.mxu0 %v3222
        %3420 = vmatpush2.bf16.msra.mxu0 %v3221
        %3421 = vmatprep.subr.bf16.mxu0 %v3220
        %3422 = vmatpush2.bf16.msra.mxu0 %v3219
        %3423 = vmatprep.subr.bf16.mxu0 %v3218
        %3424 = vmatpush2.bf16.msra.mxu0 %v3217
        %3425 = vmatprep.mubr.bf16.mxu0 %v2798
        %3426 = vmatmul.mubr.bf16.gmra.mxu0 %v2797
        %v3427 = vpop.f32.mrf.mxu0
        %v3428 = vadd.f32 %v2906, %v3427
        %v3429 = vpop.f32.mrf.mxu0
        %v3430 = vadd.f32 %v2910, %v3429
        %v3431 = vpop.f32.mrf.mxu0
        %v3432 = vadd.f32 %v2906, %v3431
        %v3433 = vpop.f32.mrf.mxu0
        %v3434 = vadd.f32 %v2910, %v3433
        %3435 = vdwg.mxu0
        %3436 = vmatprep.subr.bf16.mxu0 %v3248
        %3437 = vmatpush1.bf16.msra.mxu0 %v3247
        %3438 = vmatprep.subr.bf16.mxu0 %v3246
        %3439 = vmatpush1.bf16.msra.mxu0 %v3245
        %3440 = vmatprep.subr.bf16.mxu0 %v3244
        %3441 = vmatpush1.bf16.msra.mxu0 %v3243
        %3442 = vmatprep.subr.bf16.mxu0 %v3242
        %3443 = vmatpush1.bf16.msra.mxu0 %v3241
        %3444 = vmatprep.subr.bf16.mxu0 %v3240
        %3445 = vmatpush1.bf16.msra.mxu0 %v3239
        %3446 = vmatprep.subr.bf16.mxu0 %v3238
        %3447 = vmatpush1.bf16.msra.mxu0 %v3237
        %3448 = vmatprep.subr.bf16.mxu0 %v3236
        %3449 = vmatpush1.bf16.msra.mxu0 %v3235
        %3450 = vmatprep.subr.bf16.mxu0 %v3234
        %3451 = vmatpush1.bf16.msra.mxu0 %v3233
        %3452 = vmatprep.subr.bf16.mxu0 %v3264
        %3453 = vmatpush2.bf16.msra.mxu0 %v3263
        %3454 = vmatprep.subr.bf16.mxu0 %v3262
        %3455 = vmatpush2.bf16.msra.mxu0 %v3261
        %3456 = vmatprep.subr.bf16.mxu0 %v3260
        %3457 = vmatpush2.bf16.msra.mxu0 %v3259
        %3458 = vmatprep.subr.bf16.mxu0 %v3258
        %3459 = vmatpush2.bf16.msra.mxu0 %v3257
        %3460 = vmatprep.subr.bf16.mxu0 %v3256
        %3461 = vmatpush2.bf16.msra.mxu0 %v3255
        %3462 = vmatprep.subr.bf16.mxu0 %v3254
        %3463 = vmatpush2.bf16.msra.mxu0 %v3253
        %3464 = vmatprep.subr.bf16.mxu0 %v3252
        %3465 = vmatpush2.bf16.msra.mxu0 %v3251
        %3466 = vmatprep.subr.bf16.mxu0 %v3250
        %3467 = vmatpush2.bf16.msra.mxu0 %v3249
        %3468 = vmatprep.mubr.bf16.mxu0 %v2800
        %3469 = vmatmul.mubr.bf16.gmra.mxu0 %v2799
        %v3470 = vpop.f32.mrf.mxu0
        %v3471 = vadd.f32 %v3428, %v3470
        %v3472 = vpop.f32.mrf.mxu0
        %v3473 = vadd.f32 %v3430, %v3472
        %v3474 = vpop.f32.mrf.mxu0
        %v3475 = vadd.f32 %v3432, %v3474
        %v3476 = vpop.f32.mrf.mxu0
        %v3477 = vadd.f32 %v3434, %v3476
        %3478 = vdwg.mxu0
        %3479 = vmatprep.subr.bf16.mxu0 %v3280
        %3480 = vmatpush1.bf16.msra.mxu0 %v3279
        %3481 = vmatprep.subr.bf16.mxu0 %v3278
        %3482 = vmatpush1.bf16.msra.mxu0 %v3277
        %3483 = vmatprep.subr.bf16.mxu0 %v3276
        %3484 = vmatpush1.bf16.msra.mxu0 %v3275
        %3485 = vmatprep.subr.bf16.mxu0 %v3274
        %3486 = vmatpush1.bf16.msra.mxu0 %v3273
        %3487 = vmatprep.subr.bf16.mxu0 %v3272
        %3488 = vmatpush1.bf16.msra.mxu0 %v3271
        %3489 = vmatprep.subr.bf16.mxu0 %v3270
        %3490 = vmatpush1.bf16.msra.mxu0 %v3269
        %3491 = vmatprep.subr.bf16.mxu0 %v3268
        %3492 = vmatpush1.bf16.msra.mxu0 %v3267
        %3493 = vmatprep.subr.bf16.mxu0 %v3266
        %3494 = vmatpush1.bf16.msra.mxu0 %v3265
        %3495 = vmatprep.subr.bf16.mxu0 %v3296
        %3496 = vmatpush2.bf16.msra.mxu0 %v3295
        %3497 = vmatprep.subr.bf16.mxu0 %v3294
        %3498 = vmatpush2.bf16.msra.mxu0 %v3293
        %3499 = vmatprep.subr.bf16.mxu0 %v3292
        %3500 = vmatpush2.bf16.msra.mxu0 %v3291
        %3501 = vmatprep.subr.bf16.mxu0 %v3290
        %3502 = vmatpush2.bf16.msra.mxu0 %v3289
        %3503 = vmatprep.subr.bf16.mxu0 %v3288
        %3504 = vmatpush2.bf16.msra.mxu0 %v3287
        %3505 = vmatprep.subr.bf16.mxu0 %v3286
        %3506 = vmatpush2.bf16.msra.mxu0 %v3285
        %3507 = vmatprep.subr.bf16.mxu0 %v3284
        %3508 = vmatpush2.bf16.msra.mxu0 %v3283
        %3509 = vmatprep.subr.bf16.mxu0 %v3282
        %3510 = vmatpush2.bf16.msra.mxu0 %v3281
        %3511 = vmatprep.mubr.bf16.mxu0 %v2802
        %3512 = vmatmul.mubr.bf16.gmra.mxu0 %v2801
        %v3513 = vpop.f32.mrf.mxu0
        %v3514 = vadd.f32 %v3471, %v3513
        %v3515 = vpop.f32.mrf.mxu0
        %v3516 = vadd.f32 %v3473, %v3515
        %v3517 = vpop.f32.mrf.mxu0
        %v3518 = vadd.f32 %v3475, %v3517
        %v3519 = vpop.f32.mrf.mxu0
        %v3520 = vadd.f32 %v3477, %v3519
        %3521 = vdwg.mxu0
        %v3522 = vmax.f32 %v3514, 0.0
        %v3523 = vmax.f32 %v3516, 0.0
        %v3524 = vmax.f32 %v3518, 0.0
        %v3525 = vmax.f32 %v3520, 0.0
        %3526 = vst [vmem:[%s683] sm:$0xff] %v3522
        %3527 = vst [vmem:[%s683 + $0x8] sm:$0xff] %v3523
        %3528 = vst [vmem:[%s683 + $0x10] sm:$0xff] %v3524
        %3529 = vst [vmem:[%s683 + $0x18] sm:$0xff] %v3525
        %v3530 = vpack.c.bf16 %v3524, %v3522
        %v3531 = vpack.c.bf16 %v3525, %v3523
        %v3532 = vld [vmem:[#allocation7] sm:$0xf]
        %v3534 = vsel %vm2642, %v3532, 0
        %3536 = vmatprep.subr.bf16.mxu0 0
        %3537 = vmatpush1.bf16.msra.mxu0 0
        %3538 = vmatprep.subr.bf16.mxu0 0
        %3539 = vmatpush1.bf16.msra.mxu0 0
        %3540 = vmatprep.subr.bf16.mxu0 0
        %3541 = vmatpush1.bf16.msra.mxu0 0
        %3542 = vmatprep.subr.bf16.mxu0 0
        %3543 = vmatpush1.bf16.msra.mxu0 0
        %3544 = vmatprep.subr.bf16.mxu0 0
        %3545 = vmatpush1.bf16.msra.mxu0 0
        %3546 = vmatprep.subr.bf16.mxu0 0
        %3547 = vmatpush1.bf16.msra.mxu0 0
        %3548 = vmatprep.subr.bf16.mxu0 0
        %3549 = vmatpush1.bf16.msra.mxu0 0
        %3550 = vmatprep.subr.bf16.mxu0 %v3531
        %3551 = vmatpush1.bf16.msra.mxu0 %v3530
        %3552 = vmatprep.subr.bf16.mxu0 0
        %3553 = vmatpush2.bf16.msra.mxu0 0
        %3554 = vmatprep.subr.bf16.mxu0 0
        %3555 = vmatpush2.bf16.msra.mxu0 0
        %3556 = vmatprep.subr.bf16.mxu0 0
        %3557 = vmatpush2.bf16.msra.mxu0 0
        %3558 = vmatprep.subr.bf16.mxu0 0
        %3559 = vmatpush2.bf16.msra.mxu0 0
        %3560 = vmatprep.subr.bf16.mxu0 0
        %3561 = vmatpush2.bf16.msra.mxu0 0
        %3562 = vmatprep.subr.bf16.mxu0 0
        %3563 = vmatpush2.bf16.msra.mxu0 0
        %3564 = vmatprep.subr.bf16.mxu0 0
        %3565 = vmatpush2.bf16.msra.mxu0 0
        %3566 = vmatprep.subr.bf16.mxu0 0
        %3567 = vmatpush2.bf16.msra.mxu0 0
        %3568 = vmatprep.mubr.bf16.mxu0 0
        %3569 = vmatmul.mubr.bf16.gmra.mxu0 %v3534
        %v3570 = vpop.f32.mrf.mxu0
        %v3571 = vadd.f32 0.0, %v3570
        %v3572 = vpop.f32.mrf.mxu0
        %v3573 = vadd.f32 0.0, %v3572
        %v3574 = vpop.f32.mrf.mxu0
        %v3575 = vpop.f32.mrf.mxu0
        %3576 = vdwg.mxu0
        %s3577 = scalar_lea.vmem [#allocation7], 4
        %v3578 = vld [vmem:[%s3577] sm:$0xf]
        %v3580 = vsel %vm2642, %v3578, 0
        %3582 = vmatprep.subr.bf16.mxu0 0
        %3583 = vmatpush1.bf16.msra.mxu0 0
        %3584 = vmatprep.subr.bf16.mxu0 0
        %3585 = vmatpush1.bf16.msra.mxu0 0
        %3586 = vmatprep.subr.bf16.mxu0 0
        %3587 = vmatpush1.bf16.msra.mxu0 0
        %3588 = vmatprep.subr.bf16.mxu0 0
        %3589 = vmatpush1.bf16.msra.mxu0 0
        %3590 = vmatprep.subr.bf16.mxu0 0
        %3591 = vmatpush1.bf16.msra.mxu0 0
        %3592 = vmatprep.subr.bf16.mxu0 0
        %3593 = vmatpush1.bf16.msra.mxu0 0
        %3594 = vmatprep.subr.bf16.mxu0 0
        %3595 = vmatpush1.bf16.msra.mxu0 0
        %3596 = vmatprep.subr.bf16.mxu0 %v3531
        %3597 = vmatpush1.bf16.msra.mxu0 %v3530
        %3598 = vmatprep.subr.bf16.mxu0 0
        %3599 = vmatpush2.bf16.msra.mxu0 0
        %3600 = vmatprep.subr.bf16.mxu0 0
        %3601 = vmatpush2.bf16.msra.mxu0 0
        %3602 = vmatprep.subr.bf16.mxu0 0
        %3603 = vmatpush2.bf16.msra.mxu0 0
        %3604 = vmatprep.subr.bf16.mxu0 0
        %3605 = vmatpush2.bf16.msra.mxu0 0
        %3606 = vmatprep.subr.bf16.mxu0 0
        %3607 = vmatpush2.bf16.msra.mxu0 0
        %3608 = vmatprep.subr.bf16.mxu0 0
        %3609 = vmatpush2.bf16.msra.mxu0 0
        %3610 = vmatprep.subr.bf16.mxu0 0
        %3611 = vmatpush2.bf16.msra.mxu0 0
        %3612 = vmatprep.subr.bf16.mxu0 0
        %3613 = vmatpush2.bf16.msra.mxu0 0
        %3614 = vmatprep.mubr.bf16.mxu0 0
        %3615 = vmatmul.mubr.bf16.gmra.mxu0 %v3580
        %v3616 = vpop.f32.mrf.mxu0
        %v3617 = vadd.f32 0.0, %v3616
        %v3618 = vpop.f32.mrf.mxu0
        %v3619 = vadd.f32 0.0, %v3618
        %v3620 = vpop.f32.mrf.mxu0
        %v3621 = vpop.f32.mrf.mxu0
        %3622 = vdwg.mxu0
        %s3623 = scalar_lea.vmem [#allocation7], 8
        %v3624 = vld [vmem:[%s3623] sm:$0xf]
        %v3626 = vsel %vm2642, %v3624, 0
        %3628 = vmatprep.subr.bf16.mxu0 0
        %3629 = vmatpush1.bf16.msra.mxu0 0
        %3630 = vmatprep.subr.bf16.mxu0 0
        %3631 = vmatpush1.bf16.msra.mxu0 0
        %3632 = vmatprep.subr.bf16.mxu0 0
        %3633 = vmatpush1.bf16.msra.mxu0 0
        %3634 = vmatprep.subr.bf16.mxu0 0
        %3635 = vmatpush1.bf16.msra.mxu0 0
        %3636 = vmatprep.subr.bf16.mxu0 0
        %3637 = vmatpush1.bf16.msra.mxu0 0
        %3638 = vmatprep.subr.bf16.mxu0 0
        %3639 = vmatpush1.bf16.msra.mxu0 0
        %3640 = vmatprep.subr.bf16.mxu0 0
        %3641 = vmatpush1.bf16.msra.mxu0 0
        %3642 = vmatprep.subr.bf16.mxu0 %v3531
        %3643 = vmatpush1.bf16.msra.mxu0 %v3530
        %3644 = vmatprep.subr.bf16.mxu0 0
        %3645 = vmatpush2.bf16.msra.mxu0 0
        %3646 = vmatprep.subr.bf16.mxu0 0
        %3647 = vmatpush2.bf16.msra.mxu0 0
        %3648 = vmatprep.subr.bf16.mxu0 0
        %3649 = vmatpush2.bf16.msra.mxu0 0
        %3650 = vmatprep.subr.bf16.mxu0 0
        %3651 = vmatpush2.bf16.msra.mxu0 0
        %3652 = vmatprep.subr.bf16.mxu0 0
        %3653 = vmatpush2.bf16.msra.mxu0 0
        %3654 = vmatprep.subr.bf16.mxu0 0
        %3655 = vmatpush2.bf16.msra.mxu0 0
        %3656 = vmatprep.subr.bf16.mxu0 0
        %3657 = vmatpush2.bf16.msra.mxu0 0
        %3658 = vmatprep.subr.bf16.mxu0 0
        %3659 = vmatpush2.bf16.msra.mxu0 0
        %3660 = vmatprep.mubr.bf16.mxu0 0
        %3661 = vmatmul.mubr.bf16.gmra.mxu0 %v3626
        %v3662 = vpop.f32.mrf.mxu0
        %v3663 = vadd.f32 0.0, %v3662
        %v3664 = vpop.f32.mrf.mxu0
        %v3665 = vadd.f32 0.0, %v3664
        %v3666 = vpop.f32.mrf.mxu0
        %v3667 = vpop.f32.mrf.mxu0
        %3668 = vdwg.mxu0
        %v3669 = vpack.c.bf16 %v3571, %v3571
        %v3670 = vpack.c.bf16 %v3573, %v3573
        %v3671 = vpack.c.bf16 %v3617, %v3617
        %v3672 = vpack.c.bf16 %v3619, %v3619
        %v3673 = vpack.c.bf16 %v3663, %v3663
        %v3674 = vpack.c.bf16 %v3665, %v3665
        %s3675 = scalar_lea.vmem [#allocation16], 2304
        %v3676 = vld [vmem:[%s3675] sm:$0xff]
        %v3677 = vld [vmem:[%s3675 + $0x8] sm:$0xff]
        %v3678 = vld [vmem:[%s3675 + $0x10] sm:$0xff]
        %v3679 = vld [vmem:[%s3675 + $0x18] sm:$0xff]
        %v3680 = vld [vmem:[%s3675 + $0x20] sm:$0xff]
        %v3681 = vld [vmem:[%s3675 + $0x28] sm:$0xff]
        %v3682 = vld [vmem:[%s3675 + $0x30] sm:$0xff]
        %v3683 = vld [vmem:[%s3675 + $0x38] sm:$0xff]
        %v3684 = vld [vmem:[%s3675 + $0x40] sm:$0xff]
        %v3685 = vld [vmem:[%s3675 + $0x48] sm:$0xff]
        %v3686 = vld [vmem:[%s3675 + $0x50] sm:$0xff]
        %v3687 = vld [vmem:[%s3675 + $0x58] sm:$0xff]
        %v3688 = vld [vmem:[%s3675 + $0x60] sm:$0xff]
        %v3689 = vld [vmem:[%s3675 + $0x68] sm:$0xff]
        %v3690 = vld [vmem:[%s3675 + $0x70] sm:$0xff]
        %v3691 = vld [vmem:[%s3675 + $0x78] sm:$0xff]
        %v3692 = vld [vmem:[%s3675 + $0x80] sm:$0xff]
        %v3693 = vld [vmem:[%s3675 + $0x88] sm:$0xff]
        %v3694 = vld [vmem:[%s3675 + $0x90] sm:$0xff]
        %v3695 = vld [vmem:[%s3675 + $0x98] sm:$0xff]
        %v3696 = vld [vmem:[%s3675 + $0xa0] sm:$0xff]
        %v3697 = vld [vmem:[%s3675 + $0xa8] sm:$0xff]
        %v3698 = vld [vmem:[%s3675 + $0xb0] sm:$0xff]
        %v3699 = vld [vmem:[%s3675 + $0xb8] sm:$0xff]
        %v3700 = vld [vmem:[%s3675 + $0xc0] sm:$0xff]
        %v3701 = vld [vmem:[%s3675 + $0xc8] sm:$0xff]
        %v3702 = vld [vmem:[%s3675 + $0xd0] sm:$0xff]
        %v3703 = vld [vmem:[%s3675 + $0xd8] sm:$0xff]
        %v3704 = vld [vmem:[%s3675 + $0xe0] sm:$0xff]
        %v3705 = vld [vmem:[%s3675 + $0xe8] sm:$0xff]
        %v3706 = vld [vmem:[%s3675 + $0xf0] sm:$0xff]
        %v3707 = vld [vmem:[%s3675 + $0xf8] sm:$0xff]
        %v3708 = vld [vmem:[%s3675 + $0x100] sm:$0xff]
        %v3709 = vld [vmem:[%s3675 + $0x108] sm:$0xff]
        %v3710 = vld [vmem:[%s3675 + $0x110] sm:$0xff]
        %v3711 = vld [vmem:[%s3675 + $0x118] sm:$0xff]
        %v3712 = vld [vmem:[%s3675 + $0x120] sm:$0xff]
        %v3713 = vld [vmem:[%s3675 + $0x128] sm:$0xff]
        %v3714 = vld [vmem:[%s3675 + $0x130] sm:$0xff]
        %v3715 = vld [vmem:[%s3675 + $0x138] sm:$0xff]
        %v3716 = vld [vmem:[%s3675 + $0x140] sm:$0xff]
        %v3717 = vld [vmem:[%s3675 + $0x148] sm:$0xff]
        %v3718 = vld [vmem:[%s3675 + $0x150] sm:$0xff]
        %v3719 = vld [vmem:[%s3675 + $0x158] sm:$0xff]
        %v3720 = vld [vmem:[%s3675 + $0x160] sm:$0xff]
        %v3721 = vld [vmem:[%s3675 + $0x168] sm:$0xff]
        %v3722 = vld [vmem:[%s3675 + $0x170] sm:$0xff]
        %v3723 = vld [vmem:[%s3675 + $0x178] sm:$0xff]
        %v3724 = vld [vmem:[%s3675 + $0x180] sm:$0xff]
        %v3725 = vld [vmem:[%s3675 + $0x188] sm:$0xff]
        %v3726 = vld [vmem:[%s3675 + $0x190] sm:$0xff]
        %v3727 = vld [vmem:[%s3675 + $0x198] sm:$0xff]
        %v3728 = vld [vmem:[%s3675 + $0x1a0] sm:$0xff]
        %v3729 = vld [vmem:[%s3675 + $0x1a8] sm:$0xff]
        %v3730 = vld [vmem:[%s3675 + $0x1b0] sm:$0xff]
        %v3731 = vld [vmem:[%s3675 + $0x1b8] sm:$0xff]
        %v3732 = vld [vmem:[%s3675 + $0x1c0] sm:$0xff]
        %v3733 = vld [vmem:[%s3675 + $0x1c8] sm:$0xff]
        %v3734 = vld [vmem:[%s3675 + $0x1d0] sm:$0xff]
        %v3735 = vld [vmem:[%s3675 + $0x1d8] sm:$0xff]
        %v3736 = vld [vmem:[%s3675 + $0x1e0] sm:$0xff]
        %v3737 = vld [vmem:[%s3675 + $0x1e8] sm:$0xff]
        %v3738 = vld [vmem:[%s3675 + $0x1f0] sm:$0xff]
        %v3739 = vld [vmem:[%s3675 + $0x1f8] sm:$0xff]
        %v3740 = vld [vmem:[%s3675 + $0x200] sm:$0xff]
        %v3741 = vld [vmem:[%s3675 + $0x208] sm:$0xff]
        %v3742 = vld [vmem:[%s3675 + $0x210] sm:$0xff]
        %v3743 = vld [vmem:[%s3675 + $0x218] sm:$0xff]
        %v3744 = vld [vmem:[%s3675 + $0x220] sm:$0xff]
        %v3745 = vld [vmem:[%s3675 + $0x228] sm:$0xff]
        %v3746 = vld [vmem:[%s3675 + $0x230] sm:$0xff]
        %v3747 = vld [vmem:[%s3675 + $0x238] sm:$0xff]
        %v3748 = vld [vmem:[%s3675 + $0x240] sm:$0xff]
        %v3749 = vld [vmem:[%s3675 + $0x248] sm:$0xff]
        %v3750 = vld [vmem:[%s3675 + $0x250] sm:$0xff]
        %v3751 = vld [vmem:[%s3675 + $0x258] sm:$0xff]
        %v3752 = vld [vmem:[%s3675 + $0x260] sm:$0xff]
        %v3753 = vld [vmem:[%s3675 + $0x268] sm:$0xff]
        %v3754 = vld [vmem:[%s3675 + $0x270] sm:$0xff]
        %v3755 = vld [vmem:[%s3675 + $0x278] sm:$0xff]
        %v3756 = vld [vmem:[%s3675 + $0x280] sm:$0xff]
        %v3757 = vld [vmem:[%s3675 + $0x288] sm:$0xff]
        %v3758 = vld [vmem:[%s3675 + $0x290] sm:$0xff]
        %v3759 = vld [vmem:[%s3675 + $0x298] sm:$0xff]
        %v3760 = vld [vmem:[%s3675 + $0x2a0] sm:$0xff]
        %v3761 = vld [vmem:[%s3675 + $0x2a8] sm:$0xff]
        %v3762 = vld [vmem:[%s3675 + $0x2b0] sm:$0xff]
        %v3763 = vld [vmem:[%s3675 + $0x2b8] sm:$0xff]
        %v3764 = vld [vmem:[%s3675 + $0x2c0] sm:$0xff]
        %v3765 = vld [vmem:[%s3675 + $0x2c8] sm:$0xff]
        %v3766 = vld [vmem:[%s3675 + $0x2d0] sm:$0xff]
        %v3767 = vld [vmem:[%s3675 + $0x2d8] sm:$0xff]
        %v3768 = vld [vmem:[%s3675 + $0x2e0] sm:$0xff]
        %v3769 = vld [vmem:[%s3675 + $0x2e8] sm:$0xff]
        %v3770 = vld [vmem:[%s3675 + $0x2f0] sm:$0xff]
        %v3771 = vld [vmem:[%s3675 + $0x2f8] sm:$0xff]
        %s3772 = scalar_lea.vmem [#allocation18], 6
        %v3773 = vld [vmem:[%s3772] sm:$0x3]
        %v3775 = vlaneseq
        %v3776 = vshrl.u32 %v3775, 7
        %v3777 = vsub.s32 0, %v3776
        %v3778 = vrot.slane %v3773, %v3777
        %v3779 = vlaneseq
        %v3780 = vshrl.u32 %v3779, 7
        %v3781 = vsub.s32 1, %v3780
        %v3782 = vrot.slane %v3773, %v3781
        %v3881 = vunpack.c.l.b16 %v3676
        %v3882 = vunpack.c.h.b16 %v3676
        %v3883 = vunpack.c.l.b16 %v3677
        %v3884 = vunpack.c.h.b16 %v3677
        %v3885 = vunpack.c.l.b16 %v3678
        %v3886 = vunpack.c.h.b16 %v3678
        %v3887 = vunpack.c.l.b16 %v3679
        %v3888 = vunpack.c.h.b16 %v3679
        %v3889 = vunpack.c.l.b16 %v3680
        %v3890 = vunpack.c.h.b16 %v3680
        %v3891 = vunpack.c.l.b16 %v3681
        %v3892 = vunpack.c.h.b16 %v3681
        %v3893 = vunpack.c.l.b16 %v3682
        %v3894 = vunpack.c.h.b16 %v3682
        %v3895 = vunpack.c.l.b16 %v3683
        %v3896 = vunpack.c.h.b16 %v3683
        %v3897 = vunpack.c.l.b16 %v3684
        %v3898 = vunpack.c.h.b16 %v3684
        %v3899 = vunpack.c.l.b16 %v3685
        %v3900 = vunpack.c.h.b16 %v3685
        %v3901 = vunpack.c.l.b16 %v3686
        %v3902 = vunpack.c.h.b16 %v3686
        %v3903 = vunpack.c.l.b16 %v3687
        %v3904 = vunpack.c.h.b16 %v3687
        %v3905 = vunpack.c.l.b16 %v3688
        %v3906 = vunpack.c.h.b16 %v3688
        %v3907 = vunpack.c.l.b16 %v3689
        %v3908 = vunpack.c.h.b16 %v3689
        %v3909 = vunpack.c.l.b16 %v3690
        %v3910 = vunpack.c.h.b16 %v3690
        %v3911 = vunpack.c.l.b16 %v3691
        %v3912 = vunpack.c.h.b16 %v3691
        %v3913 = vunpack.c.l.b16 %v3692
        %v3914 = vunpack.c.h.b16 %v3692
        %v3915 = vunpack.c.l.b16 %v3693
        %v3916 = vunpack.c.h.b16 %v3693
        %v3917 = vunpack.c.l.b16 %v3694
        %v3918 = vunpack.c.h.b16 %v3694
        %v3919 = vunpack.c.l.b16 %v3695
        %v3920 = vunpack.c.h.b16 %v3695
        %v3921 = vunpack.c.l.b16 %v3696
        %v3922 = vunpack.c.h.b16 %v3696
        %v3923 = vunpack.c.l.b16 %v3697
        %v3924 = vunpack.c.h.b16 %v3697
        %v3925 = vunpack.c.l.b16 %v3698
        %v3926 = vunpack.c.h.b16 %v3698
        %v3927 = vunpack.c.l.b16 %v3699
        %v3928 = vunpack.c.h.b16 %v3699
        %v3929 = vunpack.c.l.b16 %v3700
        %v3930 = vunpack.c.h.b16 %v3700
        %v3931 = vunpack.c.l.b16 %v3701
        %v3932 = vunpack.c.h.b16 %v3701
        %v3933 = vunpack.c.l.b16 %v3702
        %v3934 = vunpack.c.h.b16 %v3702
        %v3935 = vunpack.c.l.b16 %v3703
        %v3936 = vunpack.c.h.b16 %v3703
        %v3937 = vunpack.c.l.b16 %v3704
        %v3938 = vunpack.c.h.b16 %v3704
        %v3939 = vunpack.c.l.b16 %v3705
        %v3940 = vunpack.c.h.b16 %v3705
        %v3941 = vunpack.c.l.b16 %v3706
        %v3942 = vunpack.c.h.b16 %v3706
        %v3943 = vunpack.c.l.b16 %v3707
        %v3944 = vunpack.c.h.b16 %v3707
        %v3945 = vunpack.c.l.b16 %v3708
        %v3946 = vunpack.c.h.b16 %v3708
        %v3947 = vunpack.c.l.b16 %v3709
        %v3948 = vunpack.c.h.b16 %v3709
        %v3949 = vunpack.c.l.b16 %v3710
        %v3950 = vunpack.c.h.b16 %v3710
        %v3951 = vunpack.c.l.b16 %v3711
        %v3952 = vunpack.c.h.b16 %v3711
        %v3953 = vunpack.c.l.b16 %v3712
        %v3954 = vunpack.c.h.b16 %v3712
        %v3955 = vunpack.c.l.b16 %v3713
        %v3956 = vunpack.c.h.b16 %v3713
        %v3957 = vunpack.c.l.b16 %v3714
        %v3958 = vunpack.c.h.b16 %v3714
        %v3959 = vunpack.c.l.b16 %v3715
        %v3960 = vunpack.c.h.b16 %v3715
        %v3961 = vunpack.c.l.b16 %v3716
        %v3962 = vunpack.c.h.b16 %v3716
        %v3963 = vunpack.c.l.b16 %v3717
        %v3964 = vunpack.c.h.b16 %v3717
        %v3965 = vunpack.c.l.b16 %v3718
        %v3966 = vunpack.c.h.b16 %v3718
        %v3967 = vunpack.c.l.b16 %v3719
        %v3968 = vunpack.c.h.b16 %v3719
        %v3969 = vunpack.c.l.b16 %v3720
        %v3970 = vunpack.c.h.b16 %v3720
        %v3971 = vunpack.c.l.b16 %v3721
        %v3972 = vunpack.c.h.b16 %v3721
        %v3973 = vunpack.c.l.b16 %v3722
        %v3974 = vunpack.c.h.b16 %v3722
        %v3975 = vunpack.c.l.b16 %v3723
        %v3976 = vunpack.c.h.b16 %v3723
        %v3977 = vunpack.c.l.b16 %v3724
        %v3978 = vunpack.c.h.b16 %v3724
        %v3979 = vunpack.c.l.b16 %v3725
        %v3980 = vunpack.c.h.b16 %v3725
        %v3981 = vunpack.c.l.b16 %v3726
        %v3982 = vunpack.c.h.b16 %v3726
        %v3983 = vunpack.c.l.b16 %v3727
        %v3984 = vunpack.c.h.b16 %v3727
        %v3985 = vunpack.c.l.b16 %v3728
        %v3986 = vunpack.c.h.b16 %v3728
        %v3987 = vunpack.c.l.b16 %v3729
        %v3988 = vunpack.c.h.b16 %v3729
        %v3989 = vunpack.c.l.b16 %v3730
        %v3990 = vunpack.c.h.b16 %v3730
        %v3991 = vunpack.c.l.b16 %v3731
        %v3992 = vunpack.c.h.b16 %v3731
        %v3993 = vunpack.c.l.b16 %v3732
        %v3994 = vunpack.c.h.b16 %v3732
        %v3995 = vunpack.c.l.b16 %v3733
        %v3996 = vunpack.c.h.b16 %v3733
        %v3997 = vunpack.c.l.b16 %v3734
        %v3998 = vunpack.c.h.b16 %v3734
        %v3999 = vunpack.c.l.b16 %v3735
        %v4000 = vunpack.c.h.b16 %v3735
        %v4001 = vunpack.c.l.b16 %v3736
        %v4002 = vunpack.c.h.b16 %v3736
        %v4003 = vunpack.c.l.b16 %v3737
        %v4004 = vunpack.c.h.b16 %v3737
        %v4005 = vunpack.c.l.b16 %v3738
        %v4006 = vunpack.c.h.b16 %v3738
        %v4007 = vunpack.c.l.b16 %v3739
        %v4008 = vunpack.c.h.b16 %v3739
        %v4009 = vunpack.c.l.b16 %v3740
        %v4010 = vunpack.c.h.b16 %v3740
        %v4011 = vunpack.c.l.b16 %v3741
        %v4012 = vunpack.c.h.b16 %v3741
        %v4013 = vunpack.c.l.b16 %v3742
        %v4014 = vunpack.c.h.b16 %v3742
        %v4015 = vunpack.c.l.b16 %v3743
        %v4016 = vunpack.c.h.b16 %v3743
        %v4017 = vunpack.c.l.b16 %v3744
        %v4018 = vunpack.c.h.b16 %v3744
        %v4019 = vunpack.c.l.b16 %v3745
        %v4020 = vunpack.c.h.b16 %v3745
        %v4021 = vunpack.c.l.b16 %v3746
        %v4022 = vunpack.c.h.b16 %v3746
        %v4023 = vunpack.c.l.b16 %v3747
        %v4024 = vunpack.c.h.b16 %v3747
        %v4025 = vunpack.c.l.b16 %v3748
        %v4026 = vunpack.c.h.b16 %v3748
        %v4027 = vunpack.c.l.b16 %v3749
        %v4028 = vunpack.c.h.b16 %v3749
        %v4029 = vunpack.c.l.b16 %v3750
        %v4030 = vunpack.c.h.b16 %v3750
        %v4031 = vunpack.c.l.b16 %v3751
        %v4032 = vunpack.c.h.b16 %v3751
        %v4033 = vunpack.c.l.b16 %v3752
        %v4034 = vunpack.c.h.b16 %v3752
        %v4035 = vunpack.c.l.b16 %v3753
        %v4036 = vunpack.c.h.b16 %v3753
        %v4037 = vunpack.c.l.b16 %v3754
        %v4038 = vunpack.c.h.b16 %v3754
        %v4039 = vunpack.c.l.b16 %v3755
        %v4040 = vunpack.c.h.b16 %v3755
        %v4041 = vunpack.c.l.b16 %v3756
        %v4042 = vunpack.c.h.b16 %v3756
        %v4043 = vunpack.c.l.b16 %v3757
        %v4044 = vunpack.c.h.b16 %v3757
        %v4045 = vunpack.c.l.b16 %v3758
        %v4046 = vunpack.c.h.b16 %v3758
        %v4047 = vunpack.c.l.b16 %v3759
        %v4048 = vunpack.c.h.b16 %v3759
        %v4049 = vunpack.c.l.b16 %v3760
        %v4050 = vunpack.c.h.b16 %v3760
        %v4051 = vunpack.c.l.b16 %v3761
        %v4052 = vunpack.c.h.b16 %v3761
        %v4053 = vunpack.c.l.b16 %v3762
        %v4054 = vunpack.c.h.b16 %v3762
        %v4055 = vunpack.c.l.b16 %v3763
        %v4056 = vunpack.c.h.b16 %v3763
        %v4057 = vunpack.c.l.b16 %v3764
        %v4058 = vunpack.c.h.b16 %v3764
        %v4059 = vunpack.c.l.b16 %v3765
        %v4060 = vunpack.c.h.b16 %v3765
        %v4061 = vunpack.c.l.b16 %v3766
        %v4062 = vunpack.c.h.b16 %v3766
        %v4063 = vunpack.c.l.b16 %v3767
        %v4064 = vunpack.c.h.b16 %v3767
        %v4065 = vunpack.c.l.b16 %v3768
        %v4066 = vunpack.c.h.b16 %v3768
        %v4067 = vunpack.c.l.b16 %v3769
        %v4068 = vunpack.c.h.b16 %v3769
        %v4069 = vunpack.c.l.b16 %v3770
        %v4070 = vunpack.c.h.b16 %v3770
        %v4071 = vunpack.c.l.b16 %v3771
        %v4072 = vunpack.c.h.b16 %v3771
        %v4073 = vpack.c.b16 %v3883, %v3881
        %v4074 = vpack.c.b16 %v3884, %v3882
        %v4075 = vpack.c.b16 %v3887, %v3885
        %v4076 = vpack.c.b16 %v3888, %v3886
        %v4077 = vpack.c.b16 %v3891, %v3889
        %v4078 = vpack.c.b16 %v3892, %v3890
        %v4079 = vpack.c.b16 %v3895, %v3893
        %v4080 = vpack.c.b16 %v3896, %v3894
        %v4081 = vpack.c.b16 %v3899, %v3897
        %v4082 = vpack.c.b16 %v3900, %v3898
        %v4083 = vpack.c.b16 %v3903, %v3901
        %v4084 = vpack.c.b16 %v3904, %v3902
        %v4085 = vpack.c.b16 %v3907, %v3905
        %v4086 = vpack.c.b16 %v3908, %v3906
        %v4087 = vpack.c.b16 %v3911, %v3909
        %v4088 = vpack.c.b16 %v3912, %v3910
        %v4089 = vpack.c.b16 %v3915, %v3913
        %v4090 = vpack.c.b16 %v3916, %v3914
        %v4091 = vpack.c.b16 %v3919, %v3917
        %v4092 = vpack.c.b16 %v3920, %v3918
        %v4093 = vpack.c.b16 %v3923, %v3921
        %v4094 = vpack.c.b16 %v3924, %v3922
        %v4095 = vpack.c.b16 %v3927, %v3925
        %v4096 = vpack.c.b16 %v3928, %v3926
        %v4097 = vpack.c.b16 %v3931, %v3929
        %v4098 = vpack.c.b16 %v3932, %v3930
        %v4099 = vpack.c.b16 %v3935, %v3933
        %v4100 = vpack.c.b16 %v3936, %v3934
        %v4101 = vpack.c.b16 %v3939, %v3937
        %v4102 = vpack.c.b16 %v3940, %v3938
        %v4103 = vpack.c.b16 %v3943, %v3941
        %v4104 = vpack.c.b16 %v3944, %v3942
        %v4105 = vpack.c.b16 %v3947, %v3945
        %v4106 = vpack.c.b16 %v3948, %v3946
        %v4107 = vpack.c.b16 %v3951, %v3949
        %v4108 = vpack.c.b16 %v3952, %v3950
        %v4109 = vpack.c.b16 %v3955, %v3953
        %v4110 = vpack.c.b16 %v3956, %v3954
        %v4111 = vpack.c.b16 %v3959, %v3957
        %v4112 = vpack.c.b16 %v3960, %v3958
        %v4113 = vpack.c.b16 %v3963, %v3961
        %v4114 = vpack.c.b16 %v3964, %v3962
        %v4115 = vpack.c.b16 %v3967, %v3965
        %v4116 = vpack.c.b16 %v3968, %v3966
        %v4117 = vpack.c.b16 %v3971, %v3969
        %v4118 = vpack.c.b16 %v3972, %v3970
        %v4119 = vpack.c.b16 %v3975, %v3973
        %v4120 = vpack.c.b16 %v3976, %v3974
        %v4121 = vpack.c.b16 %v3979, %v3977
        %v4122 = vpack.c.b16 %v3980, %v3978
        %v4123 = vpack.c.b16 %v3983, %v3981
        %v4124 = vpack.c.b16 %v3984, %v3982
        %v4125 = vpack.c.b16 %v3987, %v3985
        %v4126 = vpack.c.b16 %v3988, %v3986
        %v4127 = vpack.c.b16 %v3991, %v3989
        %v4128 = vpack.c.b16 %v3992, %v3990
        %v4129 = vpack.c.b16 %v3995, %v3993
        %v4130 = vpack.c.b16 %v3996, %v3994
        %v4131 = vpack.c.b16 %v3999, %v3997
        %v4132 = vpack.c.b16 %v4000, %v3998
        %v4133 = vpack.c.b16 %v4003, %v4001
        %v4134 = vpack.c.b16 %v4004, %v4002
        %v4135 = vpack.c.b16 %v4007, %v4005
        %v4136 = vpack.c.b16 %v4008, %v4006
        %v4137 = vpack.c.b16 %v4011, %v4009
        %v4138 = vpack.c.b16 %v4012, %v4010
        %v4139 = vpack.c.b16 %v4015, %v4013
        %v4140 = vpack.c.b16 %v4016, %v4014
        %v4141 = vpack.c.b16 %v4019, %v4017
        %v4142 = vpack.c.b16 %v4020, %v4018
        %v4143 = vpack.c.b16 %v4023, %v4021
        %v4144 = vpack.c.b16 %v4024, %v4022
        %v4145 = vpack.c.b16 %v4027, %v4025
        %v4146 = vpack.c.b16 %v4028, %v4026
        %v4147 = vpack.c.b16 %v4031, %v4029
        %v4148 = vpack.c.b16 %v4032, %v4030
        %v4149 = vpack.c.b16 %v4035, %v4033
        %v4150 = vpack.c.b16 %v4036, %v4034
        %v4151 = vpack.c.b16 %v4039, %v4037
        %v4152 = vpack.c.b16 %v4040, %v4038
        %v4153 = vpack.c.b16 %v4043, %v4041
        %v4154 = vpack.c.b16 %v4044, %v4042
        %v4155 = vpack.c.b16 %v4047, %v4045
        %v4156 = vpack.c.b16 %v4048, %v4046
        %v4157 = vpack.c.b16 %v4051, %v4049
        %v4158 = vpack.c.b16 %v4052, %v4050
        %v4159 = vpack.c.b16 %v4055, %v4053
        %v4160 = vpack.c.b16 %v4056, %v4054
        %v4161 = vpack.c.b16 %v4059, %v4057
        %v4162 = vpack.c.b16 %v4060, %v4058
        %v4163 = vpack.c.b16 %v4063, %v4061
        %v4164 = vpack.c.b16 %v4064, %v4062
        %v4165 = vpack.c.b16 %v4067, %v4065
        %v4166 = vpack.c.b16 %v4068, %v4066
        %v4167 = vpack.c.b16 %v4071, %v4069
        %v4168 = vpack.c.b16 %v4072, %v4070
        %4265 = vmatprep.subr.bf16.mxu0 %v4088
        %4266 = vmatpush1.bf16.msra.mxu0 %v4087
        %4267 = vmatprep.subr.bf16.mxu0 %v4086
        %4268 = vmatpush1.bf16.msra.mxu0 %v4085
        %4269 = vmatprep.subr.bf16.mxu0 %v4084
        %4270 = vmatpush1.bf16.msra.mxu0 %v4083
        %4271 = vmatprep.subr.bf16.mxu0 %v4082
        %4272 = vmatpush1.bf16.msra.mxu0 %v4081
        %4273 = vmatprep.subr.bf16.mxu0 %v4080
        %4274 = vmatpush1.bf16.msra.mxu0 %v4079
        %4275 = vmatprep.subr.bf16.mxu0 %v4078
        %4276 = vmatpush1.bf16.msra.mxu0 %v4077
        %4277 = vmatprep.subr.bf16.mxu0 %v4076
        %4278 = vmatpush1.bf16.msra.mxu0 %v4075
        %4279 = vmatprep.subr.bf16.mxu0 %v4074
        %4280 = vmatpush1.bf16.msra.mxu0 %v4073
        %4281 = vmatprep.subr.bf16.mxu0 %v4104
        %4282 = vmatpush2.bf16.msra.mxu0 %v4103
        %4283 = vmatprep.subr.bf16.mxu0 %v4102
        %4284 = vmatpush2.bf16.msra.mxu0 %v4101
        %4285 = vmatprep.subr.bf16.mxu0 %v4100
        %4286 = vmatpush2.bf16.msra.mxu0 %v4099
        %4287 = vmatprep.subr.bf16.mxu0 %v4098
        %4288 = vmatpush2.bf16.msra.mxu0 %v4097
        %4289 = vmatprep.subr.bf16.mxu0 %v4096
        %4290 = vmatpush2.bf16.msra.mxu0 %v4095
        %4291 = vmatprep.subr.bf16.mxu0 %v4094
        %4292 = vmatpush2.bf16.msra.mxu0 %v4093
        %4293 = vmatprep.subr.bf16.mxu0 %v4092
        %4294 = vmatpush2.bf16.msra.mxu0 %v4091
        %4295 = vmatprep.subr.bf16.mxu0 %v4090
        %4296 = vmatpush2.bf16.msra.mxu0 %v4089
        %4297 = vmatprep.mubr.bf16.mxu0 %v3670
        %4298 = vmatmul.mubr.bf16.gmra.mxu0 %v3669
        %v4299 = vpop.f32.mrf.mxu0
        %v4300 = vadd.f32 %v3778, %v4299
        %v4301 = vpop.f32.mrf.mxu0
        %v4302 = vadd.f32 %v3782, %v4301
        %v4303 = vpop.f32.mrf.mxu0
        %v4304 = vpop.f32.mrf.mxu0
        %4305 = vdwg.mxu0
        %4306 = vmatprep.subr.bf16.mxu0 %v4120
        %4307 = vmatpush1.bf16.msra.mxu0 %v4119
        %4308 = vmatprep.subr.bf16.mxu0 %v4118
        %4309 = vmatpush1.bf16.msra.mxu0 %v4117
        %4310 = vmatprep.subr.bf16.mxu0 %v4116
        %4311 = vmatpush1.bf16.msra.mxu0 %v4115
        %4312 = vmatprep.subr.bf16.mxu0 %v4114
        %4313 = vmatpush1.bf16.msra.mxu0 %v4113
        %4314 = vmatprep.subr.bf16.mxu0 %v4112
        %4315 = vmatpush1.bf16.msra.mxu0 %v4111
        %4316 = vmatprep.subr.bf16.mxu0 %v4110
        %4317 = vmatpush1.bf16.msra.mxu0 %v4109
        %4318 = vmatprep.subr.bf16.mxu0 %v4108
        %4319 = vmatpush1.bf16.msra.mxu0 %v4107
        %4320 = vmatprep.subr.bf16.mxu0 %v4106
        %4321 = vmatpush1.bf16.msra.mxu0 %v4105
        %4322 = vmatprep.subr.bf16.mxu0 %v4136
        %4323 = vmatpush2.bf16.msra.mxu0 %v4135
        %4324 = vmatprep.subr.bf16.mxu0 %v4134
        %4325 = vmatpush2.bf16.msra.mxu0 %v4133
        %4326 = vmatprep.subr.bf16.mxu0 %v4132
        %4327 = vmatpush2.bf16.msra.mxu0 %v4131
        %4328 = vmatprep.subr.bf16.mxu0 %v4130
        %4329 = vmatpush2.bf16.msra.mxu0 %v4129
        %4330 = vmatprep.subr.bf16.mxu0 %v4128
        %4331 = vmatpush2.bf16.msra.mxu0 %v4127
        %4332 = vmatprep.subr.bf16.mxu0 %v4126
        %4333 = vmatpush2.bf16.msra.mxu0 %v4125
        %4334 = vmatprep.subr.bf16.mxu0 %v4124
        %4335 = vmatpush2.bf16.msra.mxu0 %v4123
        %4336 = vmatprep.subr.bf16.mxu0 %v4122
        %4337 = vmatpush2.bf16.msra.mxu0 %v4121
        %4338 = vmatprep.mubr.bf16.mxu0 %v3672
        %4339 = vmatmul.mubr.bf16.gmra.mxu0 %v3671
        %v4340 = vpop.f32.mrf.mxu0
        %v4341 = vadd.f32 %v4300, %v4340
        %v4342 = vpop.f32.mrf.mxu0
        %v4343 = vadd.f32 %v4302, %v4342
        %v4344 = vpop.f32.mrf.mxu0
        %v4345 = vpop.f32.mrf.mxu0
        %4346 = vdwg.mxu0
        %4347 = vmatprep.subr.bf16.mxu0 %v4152
        %4348 = vmatpush1.bf16.msra.mxu0 %v4151
        %4349 = vmatprep.subr.bf16.mxu0 %v4150
        %4350 = vmatpush1.bf16.msra.mxu0 %v4149
        %4351 = vmatprep.subr.bf16.mxu0 %v4148
        %4352 = vmatpush1.bf16.msra.mxu0 %v4147
        %4353 = vmatprep.subr.bf16.mxu0 %v4146
        %4354 = vmatpush1.bf16.msra.mxu0 %v4145
        %4355 = vmatprep.subr.bf16.mxu0 %v4144
        %4356 = vmatpush1.bf16.msra.mxu0 %v4143
        %4357 = vmatprep.subr.bf16.mxu0 %v4142
        %4358 = vmatpush1.bf16.msra.mxu0 %v4141
        %4359 = vmatprep.subr.bf16.mxu0 %v4140
        %4360 = vmatpush1.bf16.msra.mxu0 %v4139
        %4361 = vmatprep.subr.bf16.mxu0 %v4138
        %4362 = vmatpush1.bf16.msra.mxu0 %v4137
        %4363 = vmatprep.subr.bf16.mxu0 %v4168
        %4364 = vmatpush2.bf16.msra.mxu0 %v4167
        %4365 = vmatprep.subr.bf16.mxu0 %v4166
        %4366 = vmatpush2.bf16.msra.mxu0 %v4165
        %4367 = vmatprep.subr.bf16.mxu0 %v4164
        %4368 = vmatpush2.bf16.msra.mxu0 %v4163
        %4369 = vmatprep.subr.bf16.mxu0 %v4162
        %4370 = vmatpush2.bf16.msra.mxu0 %v4161
        %4371 = vmatprep.subr.bf16.mxu0 %v4160
        %4372 = vmatpush2.bf16.msra.mxu0 %v4159
        %4373 = vmatprep.subr.bf16.mxu0 %v4158
        %4374 = vmatpush2.bf16.msra.mxu0 %v4157
        %4375 = vmatprep.subr.bf16.mxu0 %v4156
        %4376 = vmatpush2.bf16.msra.mxu0 %v4155
        %4377 = vmatprep.subr.bf16.mxu0 %v4154
        %4378 = vmatpush2.bf16.msra.mxu0 %v4153
        %4379 = vmatprep.mubr.bf16.mxu0 %v3674
        %4380 = vmatmul.mubr.bf16.gmra.mxu0 %v3673
        %v4381 = vpop.f32.mrf.mxu0
        %v4382 = vadd.f32 %v4341, %v4381
        %v4383 = vpop.f32.mrf.mxu0
        %v4384 = vadd.f32 %v4343, %v4383
        %v4385 = vpop.f32.mrf.mxu0
        %v4386 = vpop.f32.mrf.mxu0
        %4387 = vdwg.mxu0
        %v4388 = vmax.f32 %v4382, 0.0
        %v4389 = vmax.f32 %v4384, 0.0
        %v4390 = vpack.c.bf16 %v4388, %v4388
        %v4391 = vpack.c.bf16 %v4389, %v4389
        %v4392 = vld [vmem:[#allocation9] sm:$0xf]
        %vm4393 = vcmask 64512
        %v4395 = vsel %vm4393, %v4392, 0
        %vm4397 = vcmask 1043456
        %v4399 = vsel %vm4397, %v4390, 0
        %v4402 = vsel %vm4397, %v4391, 0
        %4404 = vmatprep.subr.bf16.mxu0 0
        %4405 = vmatpush1.bf16.msra.mxu0 0
        %4406 = vmatprep.subr.bf16.mxu0 0
        %4407 = vmatpush1.bf16.msra.mxu0 0
        %4408 = vmatprep.subr.bf16.mxu0 0
        %4409 = vmatpush1.bf16.msra.mxu0 0
        %4410 = vmatprep.subr.bf16.mxu0 0
        %4411 = vmatpush1.bf16.msra.mxu0 0
        %4412 = vmatprep.subr.bf16.mxu0 0
        %4413 = vmatpush1.bf16.msra.mxu0 0
        %4414 = vmatprep.subr.bf16.mxu0 0
        %4415 = vmatpush1.bf16.msra.mxu0 0
        %4416 = vmatprep.subr.bf16.mxu0 0
        %4417 = vmatpush1.bf16.msra.mxu0 0
        %4418 = vmatprep.subr.bf16.mxu0 %v4402
        %4419 = vmatpush1.bf16.msra.mxu0 %v4399
        %4420 = vmatprep.subr.bf16.mxu0 0
        %4421 = vmatpush2.bf16.msra.mxu0 0
        %4422 = vmatprep.subr.bf16.mxu0 0
        %4423 = vmatpush2.bf16.msra.mxu0 0
        %4424 = vmatprep.subr.bf16.mxu0 0
        %4425 = vmatpush2.bf16.msra.mxu0 0
        %4426 = vmatprep.subr.bf16.mxu0 0
        %4427 = vmatpush2.bf16.msra.mxu0 0
        %4428 = vmatprep.subr.bf16.mxu0 0
        %4429 = vmatpush2.bf16.msra.mxu0 0
        %4430 = vmatprep.subr.bf16.mxu0 0
        %4431 = vmatpush2.bf16.msra.mxu0 0
        %4432 = vmatprep.subr.bf16.mxu0 0
        %4433 = vmatpush2.bf16.msra.mxu0 0
        %4434 = vmatprep.subr.bf16.mxu0 0
        %4435 = vmatpush2.bf16.msra.mxu0 0
        %4436 = vmatprep.mubr.bf16.mxu0 0
        %4437 = vmatmul.mubr.bf16.gmra.mxu0 %v4395
        %v4438 = vpop.f32.mrf.mxu0
        %v4439 = vadd.f32 0.0, %v4438
        %v4440 = vpop.f32.mrf.mxu0
        %v4441 = vadd.f32 0.0, %v4440
        %v4442 = vpop.f32.mrf.mxu0
        %v4443 = vpop.f32.mrf.mxu0
        %4444 = vdwg.mxu0
        %s4445 = scalar_lea.vmem [#allocation9], 4
        %v4446 = vld [vmem:[%s4445] sm:$0xf]
        %v4448 = vsel %vm4393, %v4446, 0
        %4450 = vmatprep.subr.bf16.mxu0 0
        %4451 = vmatpush1.bf16.msra.mxu0 0
        %4452 = vmatprep.subr.bf16.mxu0 0
        %4453 = vmatpush1.bf16.msra.mxu0 0
        %4454 = vmatprep.subr.bf16.mxu0 0
        %4455 = vmatpush1.bf16.msra.mxu0 0
        %4456 = vmatprep.subr.bf16.mxu0 0
        %4457 = vmatpush1.bf16.msra.mxu0 0
        %4458 = vmatprep.subr.bf16.mxu0 0
        %4459 = vmatpush1.bf16.msra.mxu0 0
        %4460 = vmatprep.subr.bf16.mxu0 0
        %4461 = vmatpush1.bf16.msra.mxu0 0
        %4462 = vmatprep.subr.bf16.mxu0 0
        %4463 = vmatpush1.bf16.msra.mxu0 0
        %4464 = vmatprep.subr.bf16.mxu0 %v4402
        %4465 = vmatpush1.bf16.msra.mxu0 %v4399
        %4466 = vmatprep.subr.bf16.mxu0 0
        %4467 = vmatpush2.bf16.msra.mxu0 0
        %4468 = vmatprep.subr.bf16.mxu0 0
        %4469 = vmatpush2.bf16.msra.mxu0 0
        %4470 = vmatprep.subr.bf16.mxu0 0
        %4471 = vmatpush2.bf16.msra.mxu0 0
        %4472 = vmatprep.subr.bf16.mxu0 0
        %4473 = vmatpush2.bf16.msra.mxu0 0
        %4474 = vmatprep.subr.bf16.mxu0 0
        %4475 = vmatpush2.bf16.msra.mxu0 0
        %4476 = vmatprep.subr.bf16.mxu0 0
        %4477 = vmatpush2.bf16.msra.mxu0 0
        %4478 = vmatprep.subr.bf16.mxu0 0
        %4479 = vmatpush2.bf16.msra.mxu0 0
        %4480 = vmatprep.subr.bf16.mxu0 0
        %4481 = vmatpush2.bf16.msra.mxu0 0
        %4482 = vmatprep.mubr.bf16.mxu0 0
        %4483 = vmatmul.mubr.bf16.gmra.mxu0 %v4448
        %v4484 = vpop.f32.mrf.mxu0
        %v4485 = vadd.f32 0.0, %v4484
        %v4486 = vpop.f32.mrf.mxu0
        %v4487 = vadd.f32 0.0, %v4486
        %v4488 = vpop.f32.mrf.mxu0
        %v4489 = vpop.f32.mrf.mxu0
        %4490 = vdwg.mxu0
        %s4491 = scalar_lea.vmem [#allocation9], 8
        %v4492 = vld [vmem:[%s4491] sm:$0xf]
        %v4494 = vsel %vm4393, %v4492, 0
        %4496 = vmatprep.subr.bf16.mxu0 0
        %4497 = vmatpush1.bf16.msra.mxu0 0
        %4498 = vmatprep.subr.bf16.mxu0 0
        %4499 = vmatpush1.bf16.msra.mxu0 0
        %4500 = vmatprep.subr.bf16.mxu0 0
        %4501 = vmatpush1.bf16.msra.mxu0 0
        %4502 = vmatprep.subr.bf16.mxu0 0
        %4503 = vmatpush1.bf16.msra.mxu0 0
        %4504 = vmatprep.subr.bf16.mxu0 0
        %4505 = vmatpush1.bf16.msra.mxu0 0
        %4506 = vmatprep.subr.bf16.mxu0 0
        %4507 = vmatpush1.bf16.msra.mxu0 0
        %4508 = vmatprep.subr.bf16.mxu0 0
        %4509 = vmatpush1.bf16.msra.mxu0 0
        %4510 = vmatprep.subr.bf16.mxu0 %v4402
        %4511 = vmatpush1.bf16.msra.mxu0 %v4399
        %4512 = vmatprep.subr.bf16.mxu0 0
        %4513 = vmatpush2.bf16.msra.mxu0 0
        %4514 = vmatprep.subr.bf16.mxu0 0
        %4515 = vmatpush2.bf16.msra.mxu0 0
        %4516 = vmatprep.subr.bf16.mxu0 0
        %4517 = vmatpush2.bf16.msra.mxu0 0
        %4518 = vmatprep.subr.bf16.mxu0 0
        %4519 = vmatpush2.bf16.msra.mxu0 0
        %4520 = vmatprep.subr.bf16.mxu0 0
        %4521 = vmatpush2.bf16.msra.mxu0 0
        %4522 = vmatprep.subr.bf16.mxu0 0
        %4523 = vmatpush2.bf16.msra.mxu0 0
        %4524 = vmatprep.subr.bf16.mxu0 0
        %4525 = vmatpush2.bf16.msra.mxu0 0
        %4526 = vmatprep.subr.bf16.mxu0 0
        %4527 = vmatpush2.bf16.msra.mxu0 0
        %4528 = vmatprep.mubr.bf16.mxu0 0
        %4529 = vmatmul.mubr.bf16.gmra.mxu0 %v4494
        %v4530 = vpop.f32.mrf.mxu0
        %v4531 = vadd.f32 0.0, %v4530
        %v4532 = vpop.f32.mrf.mxu0
        %v4533 = vadd.f32 0.0, %v4532
        %v4534 = vpop.f32.mrf.mxu0
        %v4535 = vpop.f32.mrf.mxu0
        %4536 = vdwg.mxu0
        %v4537 = vpack.c.bf16 %v4439, %v4439
        %v4538 = vpack.c.bf16 %v4441, %v4441
        %v4539 = vpack.c.bf16 %v4485, %v4485
        %v4540 = vpack.c.bf16 %v4487, %v4487
        %v4541 = vpack.c.bf16 %v4531, %v4531
        %v4542 = vpack.c.bf16 %v4533, %v4533
        %s4543 = scalar_lea.vmem [#allocation16], 3072
        %v4544 = vld [vmem:[%s4543] sm:$0xff]
        %v4545 = vld [vmem:[%s4543 + $0x8] sm:$0xff]
        %v4546 = vld [vmem:[%s4543 + $0x10] sm:$0xff]
        %v4547 = vld [vmem:[%s4543 + $0x18] sm:$0xff]
        %v4548 = vld [vmem:[%s4543 + $0x20] sm:$0xff]
        %v4549 = vld [vmem:[%s4543 + $0x28] sm:$0xff]
        %v4550 = vld [vmem:[%s4543 + $0x30] sm:$0xff]
        %v4551 = vld [vmem:[%s4543 + $0x38] sm:$0xff]
        %v4552 = vld [vmem:[%s4543 + $0x40] sm:$0xff]
        %v4553 = vld [vmem:[%s4543 + $0x48] sm:$0xff]
        %v4554 = vld [vmem:[%s4543 + $0x50] sm:$0xff]
        %v4555 = vld [vmem:[%s4543 + $0x58] sm:$0xff]
        %v4556 = vld [vmem:[%s4543 + $0x60] sm:$0xff]
        %v4557 = vld [vmem:[%s4543 + $0x68] sm:$0xff]
        %v4558 = vld [vmem:[%s4543 + $0x70] sm:$0xff]
        %v4559 = vld [vmem:[%s4543 + $0x78] sm:$0xff]
        %v4560 = vld [vmem:[%s4543 + $0x80] sm:$0xff]
        %v4561 = vld [vmem:[%s4543 + $0x88] sm:$0xff]
        %v4562 = vld [vmem:[%s4543 + $0x90] sm:$0xff]
        %v4563 = vld [vmem:[%s4543 + $0x98] sm:$0xff]
        %v4564 = vld [vmem:[%s4543 + $0xa0] sm:$0xff]
        %v4565 = vld [vmem:[%s4543 + $0xa8] sm:$0xff]
        %v4566 = vld [vmem:[%s4543 + $0xb0] sm:$0xff]
        %v4567 = vld [vmem:[%s4543 + $0xb8] sm:$0xff]
        %v4568 = vld [vmem:[%s4543 + $0xc0] sm:$0xff]
        %v4569 = vld [vmem:[%s4543 + $0xc8] sm:$0xff]
        %v4570 = vld [vmem:[%s4543 + $0xd0] sm:$0xff]
        %v4571 = vld [vmem:[%s4543 + $0xd8] sm:$0xff]
        %v4572 = vld [vmem:[%s4543 + $0xe0] sm:$0xff]
        %v4573 = vld [vmem:[%s4543 + $0xe8] sm:$0xff]
        %v4574 = vld [vmem:[%s4543 + $0xf0] sm:$0xff]
        %v4575 = vld [vmem:[%s4543 + $0xf8] sm:$0xff]
        %v4576 = vld [vmem:[%s4543 + $0x100] sm:$0xff]
        %v4577 = vld [vmem:[%s4543 + $0x108] sm:$0xff]
        %v4578 = vld [vmem:[%s4543 + $0x110] sm:$0xff]
        %v4579 = vld [vmem:[%s4543 + $0x118] sm:$0xff]
        %v4580 = vld [vmem:[%s4543 + $0x120] sm:$0xff]
        %v4581 = vld [vmem:[%s4543 + $0x128] sm:$0xff]
        %v4582 = vld [vmem:[%s4543 + $0x130] sm:$0xff]
        %v4583 = vld [vmem:[%s4543 + $0x138] sm:$0xff]
        %v4584 = vld [vmem:[%s4543 + $0x140] sm:$0xff]
        %v4585 = vld [vmem:[%s4543 + $0x148] sm:$0xff]
        %v4586 = vld [vmem:[%s4543 + $0x150] sm:$0xff]
        %v4587 = vld [vmem:[%s4543 + $0x158] sm:$0xff]
        %v4588 = vld [vmem:[%s4543 + $0x160] sm:$0xff]
        %v4589 = vld [vmem:[%s4543 + $0x168] sm:$0xff]
        %v4590 = vld [vmem:[%s4543 + $0x170] sm:$0xff]
        %v4591 = vld [vmem:[%s4543 + $0x178] sm:$0xff]
        %v4592 = vld [vmem:[%s4543 + $0x180] sm:$0xff]
        %v4593 = vld [vmem:[%s4543 + $0x188] sm:$0xff]
        %v4594 = vld [vmem:[%s4543 + $0x190] sm:$0xff]
        %v4595 = vld [vmem:[%s4543 + $0x198] sm:$0xff]
        %v4596 = vld [vmem:[%s4543 + $0x1a0] sm:$0xff]
        %v4597 = vld [vmem:[%s4543 + $0x1a8] sm:$0xff]
        %v4598 = vld [vmem:[%s4543 + $0x1b0] sm:$0xff]
        %v4599 = vld [vmem:[%s4543 + $0x1b8] sm:$0xff]
        %v4600 = vld [vmem:[%s4543 + $0x1c0] sm:$0xff]
        %v4601 = vld [vmem:[%s4543 + $0x1c8] sm:$0xff]
        %v4602 = vld [vmem:[%s4543 + $0x1d0] sm:$0xff]
        %v4603 = vld [vmem:[%s4543 + $0x1d8] sm:$0xff]
        %v4604 = vld [vmem:[%s4543 + $0x1e0] sm:$0xff]
        %v4605 = vld [vmem:[%s4543 + $0x1e8] sm:$0xff]
        %v4606 = vld [vmem:[%s4543 + $0x1f0] sm:$0xff]
        %v4607 = vld [vmem:[%s4543 + $0x1f8] sm:$0xff]
        %v4608 = vld [vmem:[%s4543 + $0x200] sm:$0xff]
        %v4609 = vld [vmem:[%s4543 + $0x208] sm:$0xff]
        %v4610 = vld [vmem:[%s4543 + $0x210] sm:$0xff]
        %v4611 = vld [vmem:[%s4543 + $0x218] sm:$0xff]
        %v4612 = vld [vmem:[%s4543 + $0x220] sm:$0xff]
        %v4613 = vld [vmem:[%s4543 + $0x228] sm:$0xff]
        %v4614 = vld [vmem:[%s4543 + $0x230] sm:$0xff]
        %v4615 = vld [vmem:[%s4543 + $0x238] sm:$0xff]
        %v4616 = vld [vmem:[%s4543 + $0x240] sm:$0xff]
        %v4617 = vld [vmem:[%s4543 + $0x248] sm:$0xff]
        %v4618 = vld [vmem:[%s4543 + $0x250] sm:$0xff]
        %v4619 = vld [vmem:[%s4543 + $0x258] sm:$0xff]
        %v4620 = vld [vmem:[%s4543 + $0x260] sm:$0xff]
        %v4621 = vld [vmem:[%s4543 + $0x268] sm:$0xff]
        %v4622 = vld [vmem:[%s4543 + $0x270] sm:$0xff]
        %v4623 = vld [vmem:[%s4543 + $0x278] sm:$0xff]
        %v4624 = vld [vmem:[%s4543 + $0x280] sm:$0xff]
        %v4625 = vld [vmem:[%s4543 + $0x288] sm:$0xff]
        %v4626 = vld [vmem:[%s4543 + $0x290] sm:$0xff]
        %v4627 = vld [vmem:[%s4543 + $0x298] sm:$0xff]
        %v4628 = vld [vmem:[%s4543 + $0x2a0] sm:$0xff]
        %v4629 = vld [vmem:[%s4543 + $0x2a8] sm:$0xff]
        %v4630 = vld [vmem:[%s4543 + $0x2b0] sm:$0xff]
        %v4631 = vld [vmem:[%s4543 + $0x2b8] sm:$0xff]
        %v4632 = vld [vmem:[%s4543 + $0x2c0] sm:$0xff]
        %v4633 = vld [vmem:[%s4543 + $0x2c8] sm:$0xff]
        %v4634 = vld [vmem:[%s4543 + $0x2d0] sm:$0xff]
        %v4635 = vld [vmem:[%s4543 + $0x2d8] sm:$0xff]
        %v4636 = vld [vmem:[%s4543 + $0x2e0] sm:$0xff]
        %v4637 = vld [vmem:[%s4543 + $0x2e8] sm:$0xff]
        %v4638 = vld [vmem:[%s4543 + $0x2f0] sm:$0xff]
        %v4639 = vld [vmem:[%s4543 + $0x2f8] sm:$0xff]
        %s4640 = scalar_lea.vmem [#allocation18], 8
        %v4641 = vld [vmem:[%s4640] sm:$0x3]
        %v4643 = vlaneseq
        %v4644 = vshrl.u32 %v4643, 7
        %v4645 = vsub.s32 0, %v4644
        %v4646 = vrot.slane %v4641, %v4645
        %v4647 = vlaneseq
        %v4648 = vshrl.u32 %v4647, 7
        %v4649 = vsub.s32 1, %v4648
        %v4650 = vrot.slane %v4641, %v4649
        %v4749 = vunpack.c.l.b16 %v4544
        %v4750 = vunpack.c.h.b16 %v4544
        %v4751 = vunpack.c.l.b16 %v4545
        %v4752 = vunpack.c.h.b16 %v4545
        %v4753 = vunpack.c.l.b16 %v4546
        %v4754 = vunpack.c.h.b16 %v4546
        %v4755 = vunpack.c.l.b16 %v4547
        %v4756 = vunpack.c.h.b16 %v4547
        %v4757 = vunpack.c.l.b16 %v4548
        %v4758 = vunpack.c.h.b16 %v4548
        %v4759 = vunpack.c.l.b16 %v4549
        %v4760 = vunpack.c.h.b16 %v4549
        %v4761 = vunpack.c.l.b16 %v4550
        %v4762 = vunpack.c.h.b16 %v4550
        %v4763 = vunpack.c.l.b16 %v4551
        %v4764 = vunpack.c.h.b16 %v4551
        %v4765 = vunpack.c.l.b16 %v4552
        %v4766 = vunpack.c.h.b16 %v4552
        %v4767 = vunpack.c.l.b16 %v4553
        %v4768 = vunpack.c.h.b16 %v4553
        %v4769 = vunpack.c.l.b16 %v4554
        %v4770 = vunpack.c.h.b16 %v4554
        %v4771 = vunpack.c.l.b16 %v4555
        %v4772 = vunpack.c.h.b16 %v4555
        %v4773 = vunpack.c.l.b16 %v4556
        %v4774 = vunpack.c.h.b16 %v4556
        %v4775 = vunpack.c.l.b16 %v4557
        %v4776 = vunpack.c.h.b16 %v4557
        %v4777 = vunpack.c.l.b16 %v4558
        %v4778 = vunpack.c.h.b16 %v4558
        %v4779 = vunpack.c.l.b16 %v4559
        %v4780 = vunpack.c.h.b16 %v4559
        %v4781 = vunpack.c.l.b16 %v4560
        %v4782 = vunpack.c.h.b16 %v4560
        %v4783 = vunpack.c.l.b16 %v4561
        %v4784 = vunpack.c.h.b16 %v4561
        %v4785 = vunpack.c.l.b16 %v4562
        %v4786 = vunpack.c.h.b16 %v4562
        %v4787 = vunpack.c.l.b16 %v4563
        %v4788 = vunpack.c.h.b16 %v4563
        %v4789 = vunpack.c.l.b16 %v4564
        %v4790 = vunpack.c.h.b16 %v4564
        %v4791 = vunpack.c.l.b16 %v4565
        %v4792 = vunpack.c.h.b16 %v4565
        %v4793 = vunpack.c.l.b16 %v4566
        %v4794 = vunpack.c.h.b16 %v4566
        %v4795 = vunpack.c.l.b16 %v4567
        %v4796 = vunpack.c.h.b16 %v4567
        %v4797 = vunpack.c.l.b16 %v4568
        %v4798 = vunpack.c.h.b16 %v4568
        %v4799 = vunpack.c.l.b16 %v4569
        %v4800 = vunpack.c.h.b16 %v4569
        %v4801 = vunpack.c.l.b16 %v4570
        %v4802 = vunpack.c.h.b16 %v4570
        %v4803 = vunpack.c.l.b16 %v4571
        %v4804 = vunpack.c.h.b16 %v4571
        %v4805 = vunpack.c.l.b16 %v4572
        %v4806 = vunpack.c.h.b16 %v4572
        %v4807 = vunpack.c.l.b16 %v4573
        %v4808 = vunpack.c.h.b16 %v4573
        %v4809 = vunpack.c.l.b16 %v4574
        %v4810 = vunpack.c.h.b16 %v4574
        %v4811 = vunpack.c.l.b16 %v4575
        %v4812 = vunpack.c.h.b16 %v4575
        %v4813 = vunpack.c.l.b16 %v4576
        %v4814 = vunpack.c.h.b16 %v4576
        %v4815 = vunpack.c.l.b16 %v4577
        %v4816 = vunpack.c.h.b16 %v4577
        %v4817 = vunpack.c.l.b16 %v4578
        %v4818 = vunpack.c.h.b16 %v4578
        %v4819 = vunpack.c.l.b16 %v4579
        %v4820 = vunpack.c.h.b16 %v4579
        %v4821 = vunpack.c.l.b16 %v4580
        %v4822 = vunpack.c.h.b16 %v4580
        %v4823 = vunpack.c.l.b16 %v4581
        %v4824 = vunpack.c.h.b16 %v4581
        %v4825 = vunpack.c.l.b16 %v4582
        %v4826 = vunpack.c.h.b16 %v4582
        %v4827 = vunpack.c.l.b16 %v4583
        %v4828 = vunpack.c.h.b16 %v4583
        %v4829 = vunpack.c.l.b16 %v4584
        %v4830 = vunpack.c.h.b16 %v4584
        %v4831 = vunpack.c.l.b16 %v4585
        %v4832 = vunpack.c.h.b16 %v4585
        %v4833 = vunpack.c.l.b16 %v4586
        %v4834 = vunpack.c.h.b16 %v4586
        %v4835 = vunpack.c.l.b16 %v4587
        %v4836 = vunpack.c.h.b16 %v4587
        %v4837 = vunpack.c.l.b16 %v4588
        %v4838 = vunpack.c.h.b16 %v4588
        %v4839 = vunpack.c.l.b16 %v4589
        %v4840 = vunpack.c.h.b16 %v4589
        %v4841 = vunpack.c.l.b16 %v4590
        %v4842 = vunpack.c.h.b16 %v4590
        %v4843 = vunpack.c.l.b16 %v4591
        %v4844 = vunpack.c.h.b16 %v4591
        %v4845 = vunpack.c.l.b16 %v4592
        %v4846 = vunpack.c.h.b16 %v4592
        %v4847 = vunpack.c.l.b16 %v4593
        %v4848 = vunpack.c.h.b16 %v4593
        %v4849 = vunpack.c.l.b16 %v4594
        %v4850 = vunpack.c.h.b16 %v4594
        %v4851 = vunpack.c.l.b16 %v4595
        %v4852 = vunpack.c.h.b16 %v4595
        %v4853 = vunpack.c.l.b16 %v4596
        %v4854 = vunpack.c.h.b16 %v4596
        %v4855 = vunpack.c.l.b16 %v4597
        %v4856 = vunpack.c.h.b16 %v4597
        %v4857 = vunpack.c.l.b16 %v4598
        %v4858 = vunpack.c.h.b16 %v4598
        %v4859 = vunpack.c.l.b16 %v4599
        %v4860 = vunpack.c.h.b16 %v4599
        %v4861 = vunpack.c.l.b16 %v4600
        %v4862 = vunpack.c.h.b16 %v4600
        %v4863 = vunpack.c.l.b16 %v4601
        %v4864 = vunpack.c.h.b16 %v4601
        %v4865 = vunpack.c.l.b16 %v4602
        %v4866 = vunpack.c.h.b16 %v4602
        %v4867 = vunpack.c.l.b16 %v4603
        %v4868 = vunpack.c.h.b16 %v4603
        %v4869 = vunpack.c.l.b16 %v4604
        %v4870 = vunpack.c.h.b16 %v4604
        %v4871 = vunpack.c.l.b16 %v4605
        %v4872 = vunpack.c.h.b16 %v4605
        %v4873 = vunpack.c.l.b16 %v4606
        %v4874 = vunpack.c.h.b16 %v4606
        %v4875 = vunpack.c.l.b16 %v4607
        %v4876 = vunpack.c.h.b16 %v4607
        %v4877 = vunpack.c.l.b16 %v4608
        %v4878 = vunpack.c.h.b16 %v4608
        %v4879 = vunpack.c.l.b16 %v4609
        %v4880 = vunpack.c.h.b16 %v4609
        %v4881 = vunpack.c.l.b16 %v4610
        %v4882 = vunpack.c.h.b16 %v4610
        %v4883 = vunpack.c.l.b16 %v4611
        %v4884 = vunpack.c.h.b16 %v4611
        %v4885 = vunpack.c.l.b16 %v4612
        %v4886 = vunpack.c.h.b16 %v4612
        %v4887 = vunpack.c.l.b16 %v4613
        %v4888 = vunpack.c.h.b16 %v4613
        %v4889 = vunpack.c.l.b16 %v4614
        %v4890 = vunpack.c.h.b16 %v4614
        %v4891 = vunpack.c.l.b16 %v4615
        %v4892 = vunpack.c.h.b16 %v4615
        %v4893 = vunpack.c.l.b16 %v4616
        %v4894 = vunpack.c.h.b16 %v4616
        %v4895 = vunpack.c.l.b16 %v4617
        %v4896 = vunpack.c.h.b16 %v4617
        %v4897 = vunpack.c.l.b16 %v4618
        %v4898 = vunpack.c.h.b16 %v4618
        %v4899 = vunpack.c.l.b16 %v4619
        %v4900 = vunpack.c.h.b16 %v4619
        %v4901 = vunpack.c.l.b16 %v4620
        %v4902 = vunpack.c.h.b16 %v4620
        %v4903 = vunpack.c.l.b16 %v4621
        %v4904 = vunpack.c.h.b16 %v4621
        %v4905 = vunpack.c.l.b16 %v4622
        %v4906 = vunpack.c.h.b16 %v4622
        %v4907 = vunpack.c.l.b16 %v4623
        %v4908 = vunpack.c.h.b16 %v4623
        %v4909 = vunpack.c.l.b16 %v4624
        %v4910 = vunpack.c.h.b16 %v4624
        %v4911 = vunpack.c.l.b16 %v4625
        %v4912 = vunpack.c.h.b16 %v4625
        %v4913 = vunpack.c.l.b16 %v4626
        %v4914 = vunpack.c.h.b16 %v4626
        %v4915 = vunpack.c.l.b16 %v4627
        %v4916 = vunpack.c.h.b16 %v4627
        %v4917 = vunpack.c.l.b16 %v4628
        %v4918 = vunpack.c.h.b16 %v4628
        %v4919 = vunpack.c.l.b16 %v4629
        %v4920 = vunpack.c.h.b16 %v4629
        %v4921 = vunpack.c.l.b16 %v4630
        %v4922 = vunpack.c.h.b16 %v4630
        %v4923 = vunpack.c.l.b16 %v4631
        %v4924 = vunpack.c.h.b16 %v4631
        %v4925 = vunpack.c.l.b16 %v4632
        %v4926 = vunpack.c.h.b16 %v4632
        %v4927 = vunpack.c.l.b16 %v4633
        %v4928 = vunpack.c.h.b16 %v4633
        %v4929 = vunpack.c.l.b16 %v4634
        %v4930 = vunpack.c.h.b16 %v4634
        %v4931 = vunpack.c.l.b16 %v4635
        %v4932 = vunpack.c.h.b16 %v4635
        %v4933 = vunpack.c.l.b16 %v4636
        %v4934 = vunpack.c.h.b16 %v4636
        %v4935 = vunpack.c.l.b16 %v4637
        %v4936 = vunpack.c.h.b16 %v4637
        %v4937 = vunpack.c.l.b16 %v4638
        %v4938 = vunpack.c.h.b16 %v4638
        %v4939 = vunpack.c.l.b16 %v4639
        %v4940 = vunpack.c.h.b16 %v4639
        %v4941 = vpack.c.b16 %v4751, %v4749
        %v4942 = vpack.c.b16 %v4752, %v4750
        %v4943 = vpack.c.b16 %v4755, %v4753
        %v4944 = vpack.c.b16 %v4756, %v4754
        %v4945 = vpack.c.b16 %v4759, %v4757
        %v4946 = vpack.c.b16 %v4760, %v4758
        %v4947 = vpack.c.b16 %v4763, %v4761
        %v4948 = vpack.c.b16 %v4764, %v4762
        %v4949 = vpack.c.b16 %v4767, %v4765
        %v4950 = vpack.c.b16 %v4768, %v4766
        %v4951 = vpack.c.b16 %v4771, %v4769
        %v4952 = vpack.c.b16 %v4772, %v4770
        %v4953 = vpack.c.b16 %v4775, %v4773
        %v4954 = vpack.c.b16 %v4776, %v4774
        %v4955 = vpack.c.b16 %v4779, %v4777
        %v4956 = vpack.c.b16 %v4780, %v4778
        %v4957 = vpack.c.b16 %v4783, %v4781
        %v4958 = vpack.c.b16 %v4784, %v4782
        %v4959 = vpack.c.b16 %v4787, %v4785
        %v4960 = vpack.c.b16 %v4788, %v4786
        %v4961 = vpack.c.b16 %v4791, %v4789
        %v4962 = vpack.c.b16 %v4792, %v4790
        %v4963 = vpack.c.b16 %v4795, %v4793
        %v4964 = vpack.c.b16 %v4796, %v4794
        %v4965 = vpack.c.b16 %v4799, %v4797
        %v4966 = vpack.c.b16 %v4800, %v4798
        %v4967 = vpack.c.b16 %v4803, %v4801
        %v4968 = vpack.c.b16 %v4804, %v4802
        %v4969 = vpack.c.b16 %v4807, %v4805
        %v4970 = vpack.c.b16 %v4808, %v4806
        %v4971 = vpack.c.b16 %v4811, %v4809
        %v4972 = vpack.c.b16 %v4812, %v4810
        %v4973 = vpack.c.b16 %v4815, %v4813
        %v4974 = vpack.c.b16 %v4816, %v4814
        %v4975 = vpack.c.b16 %v4819, %v4817
        %v4976 = vpack.c.b16 %v4820, %v4818
        %v4977 = vpack.c.b16 %v4823, %v4821
        %v4978 = vpack.c.b16 %v4824, %v4822
        %v4979 = vpack.c.b16 %v4827, %v4825
        %v4980 = vpack.c.b16 %v4828, %v4826
        %v4981 = vpack.c.b16 %v4831, %v4829
        %v4982 = vpack.c.b16 %v4832, %v4830
        %v4983 = vpack.c.b16 %v4835, %v4833
        %v4984 = vpack.c.b16 %v4836, %v4834
        %v4985 = vpack.c.b16 %v4839, %v4837
        %v4986 = vpack.c.b16 %v4840, %v4838
        %v4987 = vpack.c.b16 %v4843, %v4841
        %v4988 = vpack.c.b16 %v4844, %v4842
        %v4989 = vpack.c.b16 %v4847, %v4845
        %v4990 = vpack.c.b16 %v4848, %v4846
        %v4991 = vpack.c.b16 %v4851, %v4849
        %v4992 = vpack.c.b16 %v4852, %v4850
        %v4993 = vpack.c.b16 %v4855, %v4853
        %v4994 = vpack.c.b16 %v4856, %v4854
        %v4995 = vpack.c.b16 %v4859, %v4857
        %v4996 = vpack.c.b16 %v4860, %v4858
        %v4997 = vpack.c.b16 %v4863, %v4861
        %v4998 = vpack.c.b16 %v4864, %v4862
        %v4999 = vpack.c.b16 %v4867, %v4865
        %v5000 = vpack.c.b16 %v4868, %v4866
        %v5001 = vpack.c.b16 %v4871, %v4869
        %v5002 = vpack.c.b16 %v4872, %v4870
        %v5003 = vpack.c.b16 %v4875, %v4873
        %v5004 = vpack.c.b16 %v4876, %v4874
        %v5005 = vpack.c.b16 %v4879, %v4877
        %v5006 = vpack.c.b16 %v4880, %v4878
        %v5007 = vpack.c.b16 %v4883, %v4881
        %v5008 = vpack.c.b16 %v4884, %v4882
        %v5009 = vpack.c.b16 %v4887, %v4885
        %v5010 = vpack.c.b16 %v4888, %v4886
        %v5011 = vpack.c.b16 %v4891, %v4889
        %v5012 = vpack.c.b16 %v4892, %v4890
        %v5013 = vpack.c.b16 %v4895, %v4893
        %v5014 = vpack.c.b16 %v4896, %v4894
        %v5015 = vpack.c.b16 %v4899, %v4897
        %v5016 = vpack.c.b16 %v4900, %v4898
        %v5017 = vpack.c.b16 %v4903, %v4901
        %v5018 = vpack.c.b16 %v4904, %v4902
        %v5019 = vpack.c.b16 %v4907, %v4905
        %v5020 = vpack.c.b16 %v4908, %v4906
        %v5021 = vpack.c.b16 %v4911, %v4909
        %v5022 = vpack.c.b16 %v4912, %v4910
        %v5023 = vpack.c.b16 %v4915, %v4913
        %v5024 = vpack.c.b16 %v4916, %v4914
        %v5025 = vpack.c.b16 %v4919, %v4917
        %v5026 = vpack.c.b16 %v4920, %v4918
        %v5027 = vpack.c.b16 %v4923, %v4921
        %v5028 = vpack.c.b16 %v4924, %v4922
        %v5029 = vpack.c.b16 %v4927, %v4925
        %v5030 = vpack.c.b16 %v4928, %v4926
        %v5031 = vpack.c.b16 %v4931, %v4929
        %v5032 = vpack.c.b16 %v4932, %v4930
        %v5033 = vpack.c.b16 %v4935, %v4933
        %v5034 = vpack.c.b16 %v4936, %v4934
        %v5035 = vpack.c.b16 %v4939, %v4937
        %v5036 = vpack.c.b16 %v4940, %v4938
        %5133 = vmatprep.subr.bf16.mxu0 %v4956
        %5134 = vmatpush1.bf16.msra.mxu0 %v4955
        %5135 = vmatprep.subr.bf16.mxu0 %v4954
        %5136 = vmatpush1.bf16.msra.mxu0 %v4953
        %5137 = vmatprep.subr.bf16.mxu0 %v4952
        %5138 = vmatpush1.bf16.msra.mxu0 %v4951
        %5139 = vmatprep.subr.bf16.mxu0 %v4950
        %5140 = vmatpush1.bf16.msra.mxu0 %v4949
        %5141 = vmatprep.subr.bf16.mxu0 %v4948
        %5142 = vmatpush1.bf16.msra.mxu0 %v4947
        %5143 = vmatprep.subr.bf16.mxu0 %v4946
        %5144 = vmatpush1.bf16.msra.mxu0 %v4945
        %5145 = vmatprep.subr.bf16.mxu0 %v4944
        %5146 = vmatpush1.bf16.msra.mxu0 %v4943
        %5147 = vmatprep.subr.bf16.mxu0 %v4942
        %5148 = vmatpush1.bf16.msra.mxu0 %v4941
        %5149 = vmatprep.subr.bf16.mxu0 %v4972
        %5150 = vmatpush2.bf16.msra.mxu0 %v4971
        %5151 = vmatprep.subr.bf16.mxu0 %v4970
        %5152 = vmatpush2.bf16.msra.mxu0 %v4969
        %5153 = vmatprep.subr.bf16.mxu0 %v4968
        %5154 = vmatpush2.bf16.msra.mxu0 %v4967
        %5155 = vmatprep.subr.bf16.mxu0 %v4966
        %5156 = vmatpush2.bf16.msra.mxu0 %v4965
        %5157 = vmatprep.subr.bf16.mxu0 %v4964
        %5158 = vmatpush2.bf16.msra.mxu0 %v4963
        %5159 = vmatprep.subr.bf16.mxu0 %v4962
        %5160 = vmatpush2.bf16.msra.mxu0 %v4961
        %5161 = vmatprep.subr.bf16.mxu0 %v4960
        %5162 = vmatpush2.bf16.msra.mxu0 %v4959
        %5163 = vmatprep.subr.bf16.mxu0 %v4958
        %5164 = vmatpush2.bf16.msra.mxu0 %v4957
        %5165 = vmatprep.mubr.bf16.mxu0 %v4538
        %5166 = vmatmul.mubr.bf16.gmra.mxu0 %v4537
        %v5167 = vpop.f32.mrf.mxu0
        %v5168 = vadd.f32 %v4646, %v5167
        %v5169 = vpop.f32.mrf.mxu0
        %v5170 = vadd.f32 %v4650, %v5169
        %v5171 = vpop.f32.mrf.mxu0
        %v5172 = vpop.f32.mrf.mxu0
        %5173 = vdwg.mxu0
        %5174 = vmatprep.subr.bf16.mxu0 %v4988
        %5175 = vmatpush1.bf16.msra.mxu0 %v4987
        %5176 = vmatprep.subr.bf16.mxu0 %v4986
        %5177 = vmatpush1.bf16.msra.mxu0 %v4985
        %5178 = vmatprep.subr.bf16.mxu0 %v4984
        %5179 = vmatpush1.bf16.msra.mxu0 %v4983
        %5180 = vmatprep.subr.bf16.mxu0 %v4982
        %5181 = vmatpush1.bf16.msra.mxu0 %v4981
        %5182 = vmatprep.subr.bf16.mxu0 %v4980
        %5183 = vmatpush1.bf16.msra.mxu0 %v4979
        %5184 = vmatprep.subr.bf16.mxu0 %v4978
        %5185 = vmatpush1.bf16.msra.mxu0 %v4977
        %5186 = vmatprep.subr.bf16.mxu0 %v4976
        %5187 = vmatpush1.bf16.msra.mxu0 %v4975
        %5188 = vmatprep.subr.bf16.mxu0 %v4974
        %5189 = vmatpush1.bf16.msra.mxu0 %v4973
        %5190 = vmatprep.subr.bf16.mxu0 %v5004
        %5191 = vmatpush2.bf16.msra.mxu0 %v5003
        %5192 = vmatprep.subr.bf16.mxu0 %v5002
        %5193 = vmatpush2.bf16.msra.mxu0 %v5001
        %5194 = vmatprep.subr.bf16.mxu0 %v5000
        %5195 = vmatpush2.bf16.msra.mxu0 %v4999
        %5196 = vmatprep.subr.bf16.mxu0 %v4998
        %5197 = vmatpush2.bf16.msra.mxu0 %v4997
        %5198 = vmatprep.subr.bf16.mxu0 %v4996
        %5199 = vmatpush2.bf16.msra.mxu0 %v4995
        %5200 = vmatprep.subr.bf16.mxu0 %v4994
        %5201 = vmatpush2.bf16.msra.mxu0 %v4993
        %5202 = vmatprep.subr.bf16.mxu0 %v4992
        %5203 = vmatpush2.bf16.msra.mxu0 %v4991
        %5204 = vmatprep.subr.bf16.mxu0 %v4990
        %5205 = vmatpush2.bf16.msra.mxu0 %v4989
        %5206 = vmatprep.mubr.bf16.mxu0 %v4540
        %5207 = vmatmul.mubr.bf16.gmra.mxu0 %v4539
        %v5208 = vpop.f32.mrf.mxu0
        %v5209 = vadd.f32 %v5168, %v5208
        %v5210 = vpop.f32.mrf.mxu0
        %v5211 = vadd.f32 %v5170, %v5210
        %v5212 = vpop.f32.mrf.mxu0
        %v5213 = vpop.f32.mrf.mxu0
        %5214 = vdwg.mxu0
        %5215 = vmatprep.subr.bf16.mxu0 %v5020
        %5216 = vmatpush1.bf16.msra.mxu0 %v5019
        %5217 = vmatprep.subr.bf16.mxu0 %v5018
        %5218 = vmatpush1.bf16.msra.mxu0 %v5017
        %5219 = vmatprep.subr.bf16.mxu0 %v5016
        %5220 = vmatpush1.bf16.msra.mxu0 %v5015
        %5221 = vmatprep.subr.bf16.mxu0 %v5014
        %5222 = vmatpush1.bf16.msra.mxu0 %v5013
        %5223 = vmatprep.subr.bf16.mxu0 %v5012
        %5224 = vmatpush1.bf16.msra.mxu0 %v5011
        %5225 = vmatprep.subr.bf16.mxu0 %v5010
        %5226 = vmatpush1.bf16.msra.mxu0 %v5009
        %5227 = vmatprep.subr.bf16.mxu0 %v5008
        %5228 = vmatpush1.bf16.msra.mxu0 %v5007
        %5229 = vmatprep.subr.bf16.mxu0 %v5006
        %5230 = vmatpush1.bf16.msra.mxu0 %v5005
        %5231 = vmatprep.subr.bf16.mxu0 %v5036
        %5232 = vmatpush2.bf16.msra.mxu0 %v5035
        %5233 = vmatprep.subr.bf16.mxu0 %v5034
        %5234 = vmatpush2.bf16.msra.mxu0 %v5033
        %5235 = vmatprep.subr.bf16.mxu0 %v5032
        %5236 = vmatpush2.bf16.msra.mxu0 %v5031
        %5237 = vmatprep.subr.bf16.mxu0 %v5030
        %5238 = vmatpush2.bf16.msra.mxu0 %v5029
        %5239 = vmatprep.subr.bf16.mxu0 %v5028
        %5240 = vmatpush2.bf16.msra.mxu0 %v5027
        %5241 = vmatprep.subr.bf16.mxu0 %v5026
        %5242 = vmatpush2.bf16.msra.mxu0 %v5025
        %5243 = vmatprep.subr.bf16.mxu0 %v5024
        %5244 = vmatpush2.bf16.msra.mxu0 %v5023
        %5245 = vmatprep.subr.bf16.mxu0 %v5022
        %5246 = vmatpush2.bf16.msra.mxu0 %v5021
        %5247 = vmatprep.mubr.bf16.mxu0 %v4542
        %5248 = vmatmul.mubr.bf16.gmra.mxu0 %v4541
        %v5249 = vpop.f32.mrf.mxu0
        %v5250 = vadd.f32 %v5209, %v5249
        %v5251 = vpop.f32.mrf.mxu0
        %v5252 = vadd.f32 %v5211, %v5251
        %v5253 = vpop.f32.mrf.mxu0
        %v5254 = vpop.f32.mrf.mxu0
        %5255 = vdwg.mxu0
        %v5256 = vmax.f32 %v5250, 0.0
        %v5257 = vmax.f32 %v5252, 0.0
        %5258 = vst [vmem:[%s689] sm:$0xff] %v5256
        %5259 = vst [vmem:[%s689 + $0x8] sm:$0xff] %v5257
        %v5260 = vpack.c.bf16 %v5256, %v5256
        %v5261 = vpack.c.bf16 %v5257, %v5257
        %v5262 = vld [vmem:[#allocation10] sm:$0xf]
        %v5264 = vsel %vm4393, %v5262, 0
        %v5267 = vsel %vm4397, %v5260, 0
        %v5270 = vsel %vm4397, %v5261, 0
        %5272 = vmatprep.subr.bf16.mxu0 0
        %5273 = vmatpush1.bf16.msra.mxu0 0
        %5274 = vmatprep.subr.bf16.mxu0 0
        %5275 = vmatpush1.bf16.msra.mxu0 0
        %5276 = vmatprep.subr.bf16.mxu0 0
        %5277 = vmatpush1.bf16.msra.mxu0 0
        %5278 = vmatprep.subr.bf16.mxu0 0
        %5279 = vmatpush1.bf16.msra.mxu0 0
        %5280 = vmatprep.subr.bf16.mxu0 0
        %5281 = vmatpush1.bf16.msra.mxu0 0
        %5282 = vmatprep.subr.bf16.mxu0 0
        %5283 = vmatpush1.bf16.msra.mxu0 0
        %5284 = vmatprep.subr.bf16.mxu0 0
        %5285 = vmatpush1.bf16.msra.mxu0 0
        %5286 = vmatprep.subr.bf16.mxu0 %v5270
        %5287 = vmatpush1.bf16.msra.mxu0 %v5267
        %5288 = vmatprep.subr.bf16.mxu0 0
        %5289 = vmatpush2.bf16.msra.mxu0 0
        %5290 = vmatprep.subr.bf16.mxu0 0
        %5291 = vmatpush2.bf16.msra.mxu0 0
        %5292 = vmatprep.subr.bf16.mxu0 0
        %5293 = vmatpush2.bf16.msra.mxu0 0
        %5294 = vmatprep.subr.bf16.mxu0 0
        %5295 = vmatpush2.bf16.msra.mxu0 0
        %5296 = vmatprep.subr.bf16.mxu0 0
        %5297 = vmatpush2.bf16.msra.mxu0 0
        %5298 = vmatprep.subr.bf16.mxu0 0
        %5299 = vmatpush2.bf16.msra.mxu0 0
        %5300 = vmatprep.subr.bf16.mxu0 0
        %5301 = vmatpush2.bf16.msra.mxu0 0
        %5302 = vmatprep.subr.bf16.mxu0 0
        %5303 = vmatpush2.bf16.msra.mxu0 0
        %5304 = vmatprep.mubr.bf16.mxu0 0
        %5305 = vmatmul.mubr.bf16.gmra.mxu0 %v5264
        %v5306 = vpop.f32.mrf.mxu0
        %v5307 = vadd.f32 0.0, %v5306
        %v5308 = vpop.f32.mrf.mxu0
        %v5309 = vadd.f32 0.0, %v5308
        %v5310 = vpop.f32.mrf.mxu0
        %v5311 = vpop.f32.mrf.mxu0
        %5312 = vdwg.mxu0
        %s5313 = scalar_lea.vmem [#allocation10], 4
        %v5314 = vld [vmem:[%s5313] sm:$0xf]
        %v5316 = vsel %vm4393, %v5314, 0
        %5318 = vmatprep.subr.bf16.mxu0 0
        %5319 = vmatpush1.bf16.msra.mxu0 0
        %5320 = vmatprep.subr.bf16.mxu0 0
        %5321 = vmatpush1.bf16.msra.mxu0 0
        %5322 = vmatprep.subr.bf16.mxu0 0
        %5323 = vmatpush1.bf16.msra.mxu0 0
        %5324 = vmatprep.subr.bf16.mxu0 0
        %5325 = vmatpush1.bf16.msra.mxu0 0
        %5326 = vmatprep.subr.bf16.mxu0 0
        %5327 = vmatpush1.bf16.msra.mxu0 0
        %5328 = vmatprep.subr.bf16.mxu0 0
        %5329 = vmatpush1.bf16.msra.mxu0 0
        %5330 = vmatprep.subr.bf16.mxu0 0
        %5331 = vmatpush1.bf16.msra.mxu0 0
        %5332 = vmatprep.subr.bf16.mxu0 %v5270
        %5333 = vmatpush1.bf16.msra.mxu0 %v5267
        %5334 = vmatprep.subr.bf16.mxu0 0
        %5335 = vmatpush2.bf16.msra.mxu0 0
        %5336 = vmatprep.subr.bf16.mxu0 0
        %5337 = vmatpush2.bf16.msra.mxu0 0
        %5338 = vmatprep.subr.bf16.mxu0 0
        %5339 = vmatpush2.bf16.msra.mxu0 0
        %5340 = vmatprep.subr.bf16.mxu0 0
        %5341 = vmatpush2.bf16.msra.mxu0 0
        %5342 = vmatprep.subr.bf16.mxu0 0
        %5343 = vmatpush2.bf16.msra.mxu0 0
        %5344 = vmatprep.subr.bf16.mxu0 0
        %5345 = vmatpush2.bf16.msra.mxu0 0
        %5346 = vmatprep.subr.bf16.mxu0 0
        %5347 = vmatpush2.bf16.msra.mxu0 0
        %5348 = vmatprep.subr.bf16.mxu0 0
        %5349 = vmatpush2.bf16.msra.mxu0 0
        %5350 = vmatprep.mubr.bf16.mxu0 0
        %5351 = vmatmul.mubr.bf16.gmra.mxu0 %v5316
        %v5352 = vpop.f32.mrf.mxu0
        %v5353 = vadd.f32 0.0, %v5352
        %v5354 = vpop.f32.mrf.mxu0
        %v5355 = vadd.f32 0.0, %v5354
        %v5356 = vpop.f32.mrf.mxu0
        %v5357 = vpop.f32.mrf.mxu0
        %5358 = vdwg.mxu0
        %s5359 = scalar_lea.vmem [#allocation10], 8
        %v5360 = vld [vmem:[%s5359] sm:$0xf]
        %v5362 = vsel %vm4393, %v5360, 0
        %5364 = vmatprep.subr.bf16.mxu0 0
        %5365 = vmatpush1.bf16.msra.mxu0 0
        %5366 = vmatprep.subr.bf16.mxu0 0
        %5367 = vmatpush1.bf16.msra.mxu0 0
        %5368 = vmatprep.subr.bf16.mxu0 0
        %5369 = vmatpush1.bf16.msra.mxu0 0
        %5370 = vmatprep.subr.bf16.mxu0 0
        %5371 = vmatpush1.bf16.msra.mxu0 0
        %5372 = vmatprep.subr.bf16.mxu0 0
        %5373 = vmatpush1.bf16.msra.mxu0 0
        %5374 = vmatprep.subr.bf16.mxu0 0
        %5375 = vmatpush1.bf16.msra.mxu0 0
        %5376 = vmatprep.subr.bf16.mxu0 0
        %5377 = vmatpush1.bf16.msra.mxu0 0
        %5378 = vmatprep.subr.bf16.mxu0 %v5270
        %5379 = vmatpush1.bf16.msra.mxu0 %v5267
        %5380 = vmatprep.subr.bf16.mxu0 0
        %5381 = vmatpush2.bf16.msra.mxu0 0
        %5382 = vmatprep.subr.bf16.mxu0 0
        %5383 = vmatpush2.bf16.msra.mxu0 0
        %5384 = vmatprep.subr.bf16.mxu0 0
        %5385 = vmatpush2.bf16.msra.mxu0 0
        %5386 = vmatprep.subr.bf16.mxu0 0
        %5387 = vmatpush2.bf16.msra.mxu0 0
        %5388 = vmatprep.subr.bf16.mxu0 0
        %5389 = vmatpush2.bf16.msra.mxu0 0
        %5390 = vmatprep.subr.bf16.mxu0 0
        %5391 = vmatpush2.bf16.msra.mxu0 0
        %5392 = vmatprep.subr.bf16.mxu0 0
        %5393 = vmatpush2.bf16.msra.mxu0 0
        %5394 = vmatprep.subr.bf16.mxu0 0
        %5395 = vmatpush2.bf16.msra.mxu0 0
        %5396 = vmatprep.mubr.bf16.mxu0 0
        %5397 = vmatmul.mubr.bf16.gmra.mxu0 %v5362
        %v5398 = vpop.f32.mrf.mxu0
        %v5399 = vadd.f32 0.0, %v5398
        %v5400 = vpop.f32.mrf.mxu0
        %v5401 = vadd.f32 0.0, %v5400
        %v5402 = vpop.f32.mrf.mxu0
        %v5403 = vpop.f32.mrf.mxu0
        %5404 = vdwg.mxu0
        %v5405 = vpack.c.bf16 %v5307, %v5307
        %v5406 = vpack.c.bf16 %v5309, %v5309
        %v5407 = vpack.c.bf16 %v5353, %v5353
        %v5408 = vpack.c.bf16 %v5355, %v5355
        %v5409 = vpack.c.bf16 %v5399, %v5399
        %v5410 = vpack.c.bf16 %v5401, %v5401
        %s5411 = scalar_lea.vmem [#allocation16], 3840
        %v5412 = vld [vmem:[%s5411] sm:$0xff]
        %v5413 = vld [vmem:[%s5411 + $0x8] sm:$0xff]
        %v5414 = vld [vmem:[%s5411 + $0x10] sm:$0xff]
        %v5415 = vld [vmem:[%s5411 + $0x18] sm:$0xff]
        %v5416 = vld [vmem:[%s5411 + $0x20] sm:$0xff]
        %v5417 = vld [vmem:[%s5411 + $0x28] sm:$0xff]
        %v5418 = vld [vmem:[%s5411 + $0x30] sm:$0xff]
        %v5419 = vld [vmem:[%s5411 + $0x38] sm:$0xff]
        %v5420 = vld [vmem:[%s5411 + $0x40] sm:$0xff]
        %v5421 = vld [vmem:[%s5411 + $0x48] sm:$0xff]
        %v5422 = vld [vmem:[%s5411 + $0x50] sm:$0xff]
        %v5423 = vld [vmem:[%s5411 + $0x58] sm:$0xff]
        %v5424 = vld [vmem:[%s5411 + $0x60] sm:$0xff]
        %v5425 = vld [vmem:[%s5411 + $0x68] sm:$0xff]
        %v5426 = vld [vmem:[%s5411 + $0x70] sm:$0xff]
        %v5427 = vld [vmem:[%s5411 + $0x78] sm:$0xff]
        %v5428 = vld [vmem:[%s5411 + $0x80] sm:$0xff]
        %v5429 = vld [vmem:[%s5411 + $0x88] sm:$0xff]
        %v5430 = vld [vmem:[%s5411 + $0x90] sm:$0xff]
        %v5431 = vld [vmem:[%s5411 + $0x98] sm:$0xff]
        %v5432 = vld [vmem:[%s5411 + $0xa0] sm:$0xff]
        %v5433 = vld [vmem:[%s5411 + $0xa8] sm:$0xff]
        %v5434 = vld [vmem:[%s5411 + $0xb0] sm:$0xff]
        %v5435 = vld [vmem:[%s5411 + $0xb8] sm:$0xff]
        %v5436 = vld [vmem:[%s5411 + $0xc0] sm:$0xff]
        %v5437 = vld [vmem:[%s5411 + $0xc8] sm:$0xff]
        %v5438 = vld [vmem:[%s5411 + $0xd0] sm:$0xff]
        %v5439 = vld [vmem:[%s5411 + $0xd8] sm:$0xff]
        %v5440 = vld [vmem:[%s5411 + $0xe0] sm:$0xff]
        %v5441 = vld [vmem:[%s5411 + $0xe8] sm:$0xff]
        %v5442 = vld [vmem:[%s5411 + $0xf0] sm:$0xff]
        %v5443 = vld [vmem:[%s5411 + $0xf8] sm:$0xff]
        %v5444 = vld [vmem:[%s5411 + $0x100] sm:$0xff]
        %v5445 = vld [vmem:[%s5411 + $0x108] sm:$0xff]
        %v5446 = vld [vmem:[%s5411 + $0x110] sm:$0xff]
        %v5447 = vld [vmem:[%s5411 + $0x118] sm:$0xff]
        %v5448 = vld [vmem:[%s5411 + $0x120] sm:$0xff]
        %v5449 = vld [vmem:[%s5411 + $0x128] sm:$0xff]
        %v5450 = vld [vmem:[%s5411 + $0x130] sm:$0xff]
        %v5451 = vld [vmem:[%s5411 + $0x138] sm:$0xff]
        %v5452 = vld [vmem:[%s5411 + $0x140] sm:$0xff]
        %v5453 = vld [vmem:[%s5411 + $0x148] sm:$0xff]
        %v5454 = vld [vmem:[%s5411 + $0x150] sm:$0xff]
        %v5455 = vld [vmem:[%s5411 + $0x158] sm:$0xff]
        %v5456 = vld [vmem:[%s5411 + $0x160] sm:$0xff]
        %v5457 = vld [vmem:[%s5411 + $0x168] sm:$0xff]
        %v5458 = vld [vmem:[%s5411 + $0x170] sm:$0xff]
        %v5459 = vld [vmem:[%s5411 + $0x178] sm:$0xff]
        %v5460 = vld [vmem:[%s5411 + $0x180] sm:$0xff]
        %v5461 = vld [vmem:[%s5411 + $0x188] sm:$0xff]
        %v5462 = vld [vmem:[%s5411 + $0x190] sm:$0xff]
        %v5463 = vld [vmem:[%s5411 + $0x198] sm:$0xff]
        %v5464 = vld [vmem:[%s5411 + $0x1a0] sm:$0xff]
        %v5465 = vld [vmem:[%s5411 + $0x1a8] sm:$0xff]
        %v5466 = vld [vmem:[%s5411 + $0x1b0] sm:$0xff]
        %v5467 = vld [vmem:[%s5411 + $0x1b8] sm:$0xff]
        %v5468 = vld [vmem:[%s5411 + $0x1c0] sm:$0xff]
        %v5469 = vld [vmem:[%s5411 + $0x1c8] sm:$0xff]
        %v5470 = vld [vmem:[%s5411 + $0x1d0] sm:$0xff]
        %v5471 = vld [vmem:[%s5411 + $0x1d8] sm:$0xff]
        %v5472 = vld [vmem:[%s5411 + $0x1e0] sm:$0xff]
        %v5473 = vld [vmem:[%s5411 + $0x1e8] sm:$0xff]
        %v5474 = vld [vmem:[%s5411 + $0x1f0] sm:$0xff]
        %v5475 = vld [vmem:[%s5411 + $0x1f8] sm:$0xff]
        %v5476 = vld [vmem:[%s5411 + $0x200] sm:$0xff]
        %v5477 = vld [vmem:[%s5411 + $0x208] sm:$0xff]
        %v5478 = vld [vmem:[%s5411 + $0x210] sm:$0xff]
        %v5479 = vld [vmem:[%s5411 + $0x218] sm:$0xff]
        %v5480 = vld [vmem:[%s5411 + $0x220] sm:$0xff]
        %v5481 = vld [vmem:[%s5411 + $0x228] sm:$0xff]
        %v5482 = vld [vmem:[%s5411 + $0x230] sm:$0xff]
        %v5483 = vld [vmem:[%s5411 + $0x238] sm:$0xff]
        %v5484 = vld [vmem:[%s5411 + $0x240] sm:$0xff]
        %v5485 = vld [vmem:[%s5411 + $0x248] sm:$0xff]
        %v5486 = vld [vmem:[%s5411 + $0x250] sm:$0xff]
        %v5487 = vld [vmem:[%s5411 + $0x258] sm:$0xff]
        %v5488 = vld [vmem:[%s5411 + $0x260] sm:$0xff]
        %v5489 = vld [vmem:[%s5411 + $0x268] sm:$0xff]
        %v5490 = vld [vmem:[%s5411 + $0x270] sm:$0xff]
        %v5491 = vld [vmem:[%s5411 + $0x278] sm:$0xff]
        %v5492 = vld [vmem:[%s5411 + $0x280] sm:$0xff]
        %v5493 = vld [vmem:[%s5411 + $0x288] sm:$0xff]
        %v5494 = vld [vmem:[%s5411 + $0x290] sm:$0xff]
        %v5495 = vld [vmem:[%s5411 + $0x298] sm:$0xff]
        %v5496 = vld [vmem:[%s5411 + $0x2a0] sm:$0xff]
        %v5497 = vld [vmem:[%s5411 + $0x2a8] sm:$0xff]
        %v5498 = vld [vmem:[%s5411 + $0x2b0] sm:$0xff]
        %v5499 = vld [vmem:[%s5411 + $0x2b8] sm:$0xff]
        %v5500 = vld [vmem:[%s5411 + $0x2c0] sm:$0xff]
        %v5501 = vld [vmem:[%s5411 + $0x2c8] sm:$0xff]
        %v5502 = vld [vmem:[%s5411 + $0x2d0] sm:$0xff]
        %v5503 = vld [vmem:[%s5411 + $0x2d8] sm:$0xff]
        %v5504 = vld [vmem:[%s5411 + $0x2e0] sm:$0xff]
        %v5505 = vld [vmem:[%s5411 + $0x2e8] sm:$0xff]
        %v5506 = vld [vmem:[%s5411 + $0x2f0] sm:$0xff]
        %v5507 = vld [vmem:[%s5411 + $0x2f8] sm:$0xff]
        %s5508 = scalar_lea.vmem [#allocation18], 10
        %v5509 = vld [vmem:[%s5508] sm:$0x3]
        %v5511 = vlaneseq
        %v5512 = vshrl.u32 %v5511, 7
        %v5513 = vsub.s32 0, %v5512
        %v5514 = vrot.slane %v5509, %v5513
        %v5515 = vlaneseq
        %v5516 = vshrl.u32 %v5515, 7
        %v5517 = vsub.s32 1, %v5516
        %v5518 = vrot.slane %v5509, %v5517
        %v5617 = vunpack.c.l.b16 %v5412
        %v5618 = vunpack.c.h.b16 %v5412
        %v5619 = vunpack.c.l.b16 %v5413
        %v5620 = vunpack.c.h.b16 %v5413
        %v5621 = vunpack.c.l.b16 %v5414
        %v5622 = vunpack.c.h.b16 %v5414
        %v5623 = vunpack.c.l.b16 %v5415
        %v5624 = vunpack.c.h.b16 %v5415
        %v5625 = vunpack.c.l.b16 %v5416
        %v5626 = vunpack.c.h.b16 %v5416
        %v5627 = vunpack.c.l.b16 %v5417
        %v5628 = vunpack.c.h.b16 %v5417
        %v5629 = vunpack.c.l.b16 %v5418
        %v5630 = vunpack.c.h.b16 %v5418
        %v5631 = vunpack.c.l.b16 %v5419
        %v5632 = vunpack.c.h.b16 %v5419
        %v5633 = vunpack.c.l.b16 %v5420
        %v5634 = vunpack.c.h.b16 %v5420
        %v5635 = vunpack.c.l.b16 %v5421
        %v5636 = vunpack.c.h.b16 %v5421
        %v5637 = vunpack.c.l.b16 %v5422
        %v5638 = vunpack.c.h.b16 %v5422
        %v5639 = vunpack.c.l.b16 %v5423
        %v5640 = vunpack.c.h.b16 %v5423
        %v5641 = vunpack.c.l.b16 %v5424
        %v5642 = vunpack.c.h.b16 %v5424
        %v5643 = vunpack.c.l.b16 %v5425
        %v5644 = vunpack.c.h.b16 %v5425
        %v5645 = vunpack.c.l.b16 %v5426
        %v5646 = vunpack.c.h.b16 %v5426
        %v5647 = vunpack.c.l.b16 %v5427
        %v5648 = vunpack.c.h.b16 %v5427
        %v5649 = vunpack.c.l.b16 %v5428
        %v5650 = vunpack.c.h.b16 %v5428
        %v5651 = vunpack.c.l.b16 %v5429
        %v5652 = vunpack.c.h.b16 %v5429
        %v5653 = vunpack.c.l.b16 %v5430
        %v5654 = vunpack.c.h.b16 %v5430
        %v5655 = vunpack.c.l.b16 %v5431
        %v5656 = vunpack.c.h.b16 %v5431
        %v5657 = vunpack.c.l.b16 %v5432
        %v5658 = vunpack.c.h.b16 %v5432
        %v5659 = vunpack.c.l.b16 %v5433
        %v5660 = vunpack.c.h.b16 %v5433
        %v5661 = vunpack.c.l.b16 %v5434
        %v5662 = vunpack.c.h.b16 %v5434
        %v5663 = vunpack.c.l.b16 %v5435
        %v5664 = vunpack.c.h.b16 %v5435
        %v5665 = vunpack.c.l.b16 %v5436
        %v5666 = vunpack.c.h.b16 %v5436
        %v5667 = vunpack.c.l.b16 %v5437
        %v5668 = vunpack.c.h.b16 %v5437
        %v5669 = vunpack.c.l.b16 %v5438
        %v5670 = vunpack.c.h.b16 %v5438
        %v5671 = vunpack.c.l.b16 %v5439
        %v5672 = vunpack.c.h.b16 %v5439
        %v5673 = vunpack.c.l.b16 %v5440
        %v5674 = vunpack.c.h.b16 %v5440
        %v5675 = vunpack.c.l.b16 %v5441
        %v5676 = vunpack.c.h.b16 %v5441
        %v5677 = vunpack.c.l.b16 %v5442
        %v5678 = vunpack.c.h.b16 %v5442
        %v5679 = vunpack.c.l.b16 %v5443
        %v5680 = vunpack.c.h.b16 %v5443
        %v5681 = vunpack.c.l.b16 %v5444
        %v5682 = vunpack.c.h.b16 %v5444
        %v5683 = vunpack.c.l.b16 %v5445
        %v5684 = vunpack.c.h.b16 %v5445
        %v5685 = vunpack.c.l.b16 %v5446
        %v5686 = vunpack.c.h.b16 %v5446
        %v5687 = vunpack.c.l.b16 %v5447
        %v5688 = vunpack.c.h.b16 %v5447
        %v5689 = vunpack.c.l.b16 %v5448
        %v5690 = vunpack.c.h.b16 %v5448
        %v5691 = vunpack.c.l.b16 %v5449
        %v5692 = vunpack.c.h.b16 %v5449
        %v5693 = vunpack.c.l.b16 %v5450
        %v5694 = vunpack.c.h.b16 %v5450
        %v5695 = vunpack.c.l.b16 %v5451
        %v5696 = vunpack.c.h.b16 %v5451
        %v5697 = vunpack.c.l.b16 %v5452
        %v5698 = vunpack.c.h.b16 %v5452
        %v5699 = vunpack.c.l.b16 %v5453
        %v5700 = vunpack.c.h.b16 %v5453
        %v5701 = vunpack.c.l.b16 %v5454
        %v5702 = vunpack.c.h.b16 %v5454
        %v5703 = vunpack.c.l.b16 %v5455
        %v5704 = vunpack.c.h.b16 %v5455
        %v5705 = vunpack.c.l.b16 %v5456
        %v5706 = vunpack.c.h.b16 %v5456
        %v5707 = vunpack.c.l.b16 %v5457
        %v5708 = vunpack.c.h.b16 %v5457
        %v5709 = vunpack.c.l.b16 %v5458
        %v5710 = vunpack.c.h.b16 %v5458
        %v5711 = vunpack.c.l.b16 %v5459
        %v5712 = vunpack.c.h.b16 %v5459
        %v5713 = vunpack.c.l.b16 %v5460
        %v5714 = vunpack.c.h.b16 %v5460
        %v5715 = vunpack.c.l.b16 %v5461
        %v5716 = vunpack.c.h.b16 %v5461
        %v5717 = vunpack.c.l.b16 %v5462
        %v5718 = vunpack.c.h.b16 %v5462
        %v5719 = vunpack.c.l.b16 %v5463
        %v5720 = vunpack.c.h.b16 %v5463
        %v5721 = vunpack.c.l.b16 %v5464
        %v5722 = vunpack.c.h.b16 %v5464
        %v5723 = vunpack.c.l.b16 %v5465
        %v5724 = vunpack.c.h.b16 %v5465
        %v5725 = vunpack.c.l.b16 %v5466
        %v5726 = vunpack.c.h.b16 %v5466
        %v5727 = vunpack.c.l.b16 %v5467
        %v5728 = vunpack.c.h.b16 %v5467
        %v5729 = vunpack.c.l.b16 %v5468
        %v5730 = vunpack.c.h.b16 %v5468
        %v5731 = vunpack.c.l.b16 %v5469
        %v5732 = vunpack.c.h.b16 %v5469
        %v5733 = vunpack.c.l.b16 %v5470
        %v5734 = vunpack.c.h.b16 %v5470
        %v5735 = vunpack.c.l.b16 %v5471
        %v5736 = vunpack.c.h.b16 %v5471
        %v5737 = vunpack.c.l.b16 %v5472
        %v5738 = vunpack.c.h.b16 %v5472
        %v5739 = vunpack.c.l.b16 %v5473
        %v5740 = vunpack.c.h.b16 %v5473
        %v5741 = vunpack.c.l.b16 %v5474
        %v5742 = vunpack.c.h.b16 %v5474
        %v5743 = vunpack.c.l.b16 %v5475
        %v5744 = vunpack.c.h.b16 %v5475
        %v5745 = vunpack.c.l.b16 %v5476
        %v5746 = vunpack.c.h.b16 %v5476
        %v5747 = vunpack.c.l.b16 %v5477
        %v5748 = vunpack.c.h.b16 %v5477
        %v5749 = vunpack.c.l.b16 %v5478
        %v5750 = vunpack.c.h.b16 %v5478
        %v5751 = vunpack.c.l.b16 %v5479
        %v5752 = vunpack.c.h.b16 %v5479
        %v5753 = vunpack.c.l.b16 %v5480
        %v5754 = vunpack.c.h.b16 %v5480
        %v5755 = vunpack.c.l.b16 %v5481
        %v5756 = vunpack.c.h.b16 %v5481
        %v5757 = vunpack.c.l.b16 %v5482
        %v5758 = vunpack.c.h.b16 %v5482
        %v5759 = vunpack.c.l.b16 %v5483
        %v5760 = vunpack.c.h.b16 %v5483
        %v5761 = vunpack.c.l.b16 %v5484
        %v5762 = vunpack.c.h.b16 %v5484
        %v5763 = vunpack.c.l.b16 %v5485
        %v5764 = vunpack.c.h.b16 %v5485
        %v5765 = vunpack.c.l.b16 %v5486
        %v5766 = vunpack.c.h.b16 %v5486
        %v5767 = vunpack.c.l.b16 %v5487
        %v5768 = vunpack.c.h.b16 %v5487
        %v5769 = vunpack.c.l.b16 %v5488
        %v5770 = vunpack.c.h.b16 %v5488
        %v5771 = vunpack.c.l.b16 %v5489
        %v5772 = vunpack.c.h.b16 %v5489
        %v5773 = vunpack.c.l.b16 %v5490
        %v5774 = vunpack.c.h.b16 %v5490
        %v5775 = vunpack.c.l.b16 %v5491
        %v5776 = vunpack.c.h.b16 %v5491
        %v5777 = vunpack.c.l.b16 %v5492
        %v5778 = vunpack.c.h.b16 %v5492
        %v5779 = vunpack.c.l.b16 %v5493
        %v5780 = vunpack.c.h.b16 %v5493
        %v5781 = vunpack.c.l.b16 %v5494
        %v5782 = vunpack.c.h.b16 %v5494
        %v5783 = vunpack.c.l.b16 %v5495
        %v5784 = vunpack.c.h.b16 %v5495
        %v5785 = vunpack.c.l.b16 %v5496
        %v5786 = vunpack.c.h.b16 %v5496
        %v5787 = vunpack.c.l.b16 %v5497
        %v5788 = vunpack.c.h.b16 %v5497
        %v5789 = vunpack.c.l.b16 %v5498
        %v5790 = vunpack.c.h.b16 %v5498
        %v5791 = vunpack.c.l.b16 %v5499
        %v5792 = vunpack.c.h.b16 %v5499
        %v5793 = vunpack.c.l.b16 %v5500
        %v5794 = vunpack.c.h.b16 %v5500
        %v5795 = vunpack.c.l.b16 %v5501
        %v5796 = vunpack.c.h.b16 %v5501
        %v5797 = vunpack.c.l.b16 %v5502
        %v5798 = vunpack.c.h.b16 %v5502
        %v5799 = vunpack.c.l.b16 %v5503
        %v5800 = vunpack.c.h.b16 %v5503
        %v5801 = vunpack.c.l.b16 %v5504
        %v5802 = vunpack.c.h.b16 %v5504
        %v5803 = vunpack.c.l.b16 %v5505
        %v5804 = vunpack.c.h.b16 %v5505
        %v5805 = vunpack.c.l.b16 %v5506
        %v5806 = vunpack.c.h.b16 %v5506
        %v5807 = vunpack.c.l.b16 %v5507
        %v5808 = vunpack.c.h.b16 %v5507
        %v5809 = vpack.c.b16 %v5619, %v5617
        %v5810 = vpack.c.b16 %v5620, %v5618
        %v5811 = vpack.c.b16 %v5623, %v5621
        %v5812 = vpack.c.b16 %v5624, %v5622
        %v5813 = vpack.c.b16 %v5627, %v5625
        %v5814 = vpack.c.b16 %v5628, %v5626
        %v5815 = vpack.c.b16 %v5631, %v5629
        %v5816 = vpack.c.b16 %v5632, %v5630
        %v5817 = vpack.c.b16 %v5635, %v5633
        %v5818 = vpack.c.b16 %v5636, %v5634
        %v5819 = vpack.c.b16 %v5639, %v5637
        %v5820 = vpack.c.b16 %v5640, %v5638
        %v5821 = vpack.c.b16 %v5643, %v5641
        %v5822 = vpack.c.b16 %v5644, %v5642
        %v5823 = vpack.c.b16 %v5647, %v5645
        %v5824 = vpack.c.b16 %v5648, %v5646
        %v5825 = vpack.c.b16 %v5651, %v5649
        %v5826 = vpack.c.b16 %v5652, %v5650
        %v5827 = vpack.c.b16 %v5655, %v5653
        %v5828 = vpack.c.b16 %v5656, %v5654
        %v5829 = vpack.c.b16 %v5659, %v5657
        %v5830 = vpack.c.b16 %v5660, %v5658
        %v5831 = vpack.c.b16 %v5663, %v5661
        %v5832 = vpack.c.b16 %v5664, %v5662
        %v5833 = vpack.c.b16 %v5667, %v5665
        %v5834 = vpack.c.b16 %v5668, %v5666
        %v5835 = vpack.c.b16 %v5671, %v5669
        %v5836 = vpack.c.b16 %v5672, %v5670
        %v5837 = vpack.c.b16 %v5675, %v5673
        %v5838 = vpack.c.b16 %v5676, %v5674
        %v5839 = vpack.c.b16 %v5679, %v5677
        %v5840 = vpack.c.b16 %v5680, %v5678
        %v5841 = vpack.c.b16 %v5683, %v5681
        %v5842 = vpack.c.b16 %v5684, %v5682
        %v5843 = vpack.c.b16 %v5687, %v5685
        %v5844 = vpack.c.b16 %v5688, %v5686
        %v5845 = vpack.c.b16 %v5691, %v5689
        %v5846 = vpack.c.b16 %v5692, %v5690
        %v5847 = vpack.c.b16 %v5695, %v5693
        %v5848 = vpack.c.b16 %v5696, %v5694
        %v5849 = vpack.c.b16 %v5699, %v5697
        %v5850 = vpack.c.b16 %v5700, %v5698
        %v5851 = vpack.c.b16 %v5703, %v5701
        %v5852 = vpack.c.b16 %v5704, %v5702
        %v5853 = vpack.c.b16 %v5707, %v5705
        %v5854 = vpack.c.b16 %v5708, %v5706
        %v5855 = vpack.c.b16 %v5711, %v5709
        %v5856 = vpack.c.b16 %v5712, %v5710
        %v5857 = vpack.c.b16 %v5715, %v5713
        %v5858 = vpack.c.b16 %v5716, %v5714
        %v5859 = vpack.c.b16 %v5719, %v5717
        %v5860 = vpack.c.b16 %v5720, %v5718
        %v5861 = vpack.c.b16 %v5723, %v5721
        %v5862 = vpack.c.b16 %v5724, %v5722
        %v5863 = vpack.c.b16 %v5727, %v5725
        %v5864 = vpack.c.b16 %v5728, %v5726
        %v5865 = vpack.c.b16 %v5731, %v5729
        %v5866 = vpack.c.b16 %v5732, %v5730
        %v5867 = vpack.c.b16 %v5735, %v5733
        %v5868 = vpack.c.b16 %v5736, %v5734
        %v5869 = vpack.c.b16 %v5739, %v5737
        %v5870 = vpack.c.b16 %v5740, %v5738
        %v5871 = vpack.c.b16 %v5743, %v5741
        %v5872 = vpack.c.b16 %v5744, %v5742
        %v5873 = vpack.c.b16 %v5747, %v5745
        %v5874 = vpack.c.b16 %v5748, %v5746
        %v5875 = vpack.c.b16 %v5751, %v5749
        %v5876 = vpack.c.b16 %v5752, %v5750
        %v5877 = vpack.c.b16 %v5755, %v5753
        %v5878 = vpack.c.b16 %v5756, %v5754
        %v5879 = vpack.c.b16 %v5759, %v5757
        %v5880 = vpack.c.b16 %v5760, %v5758
        %v5881 = vpack.c.b16 %v5763, %v5761
        %v5882 = vpack.c.b16 %v5764, %v5762
        %v5883 = vpack.c.b16 %v5767, %v5765
        %v5884 = vpack.c.b16 %v5768, %v5766
        %v5885 = vpack.c.b16 %v5771, %v5769
        %v5886 = vpack.c.b16 %v5772, %v5770
        %v5887 = vpack.c.b16 %v5775, %v5773
        %v5888 = vpack.c.b16 %v5776, %v5774
        %v5889 = vpack.c.b16 %v5779, %v5777
        %v5890 = vpack.c.b16 %v5780, %v5778
        %v5891 = vpack.c.b16 %v5783, %v5781
        %v5892 = vpack.c.b16 %v5784, %v5782
        %v5893 = vpack.c.b16 %v5787, %v5785
        %v5894 = vpack.c.b16 %v5788, %v5786
        %v5895 = vpack.c.b16 %v5791, %v5789
        %v5896 = vpack.c.b16 %v5792, %v5790
        %v5897 = vpack.c.b16 %v5795, %v5793
        %v5898 = vpack.c.b16 %v5796, %v5794
        %v5899 = vpack.c.b16 %v5799, %v5797
        %v5900 = vpack.c.b16 %v5800, %v5798
        %v5901 = vpack.c.b16 %v5803, %v5801
        %v5902 = vpack.c.b16 %v5804, %v5802
        %v5903 = vpack.c.b16 %v5807, %v5805
        %v5904 = vpack.c.b16 %v5808, %v5806
        %6001 = vmatprep.subr.bf16.mxu0 %v5824
        %6002 = vmatpush1.bf16.msra.mxu0 %v5823
        %6003 = vmatprep.subr.bf16.mxu0 %v5822
        %6004 = vmatpush1.bf16.msra.mxu0 %v5821
        %6005 = vmatprep.subr.bf16.mxu0 %v5820
        %6006 = vmatpush1.bf16.msra.mxu0 %v5819
        %6007 = vmatprep.subr.bf16.mxu0 %v5818
        %6008 = vmatpush1.bf16.msra.mxu0 %v5817
        %6009 = vmatprep.subr.bf16.mxu0 %v5816
        %6010 = vmatpush1.bf16.msra.mxu0 %v5815
        %6011 = vmatprep.subr.bf16.mxu0 %v5814
        %6012 = vmatpush1.bf16.msra.mxu0 %v5813
        %6013 = vmatprep.subr.bf16.mxu0 %v5812
        %6014 = vmatpush1.bf16.msra.mxu0 %v5811
        %6015 = vmatprep.subr.bf16.mxu0 %v5810
        %6016 = vmatpush1.bf16.msra.mxu0 %v5809
        %6017 = vmatprep.subr.bf16.mxu0 %v5840
        %6018 = vmatpush2.bf16.msra.mxu0 %v5839
        %6019 = vmatprep.subr.bf16.mxu0 %v5838
        %6020 = vmatpush2.bf16.msra.mxu0 %v5837
        %6021 = vmatprep.subr.bf16.mxu0 %v5836
        %6022 = vmatpush2.bf16.msra.mxu0 %v5835
        %6023 = vmatprep.subr.bf16.mxu0 %v5834
        %6024 = vmatpush2.bf16.msra.mxu0 %v5833
        %6025 = vmatprep.subr.bf16.mxu0 %v5832
        %6026 = vmatpush2.bf16.msra.mxu0 %v5831
        %6027 = vmatprep.subr.bf16.mxu0 %v5830
        %6028 = vmatpush2.bf16.msra.mxu0 %v5829
        %6029 = vmatprep.subr.bf16.mxu0 %v5828
        %6030 = vmatpush2.bf16.msra.mxu0 %v5827
        %6031 = vmatprep.subr.bf16.mxu0 %v5826
        %6032 = vmatpush2.bf16.msra.mxu0 %v5825
        %6033 = vmatprep.mubr.bf16.mxu0 %v5406
        %6034 = vmatmul.mubr.bf16.gmra.mxu0 %v5405
        %v6035 = vpop.f32.mrf.mxu0
        %v6036 = vadd.f32 %v5514, %v6035
        %v6037 = vpop.f32.mrf.mxu0
        %v6038 = vadd.f32 %v5518, %v6037
        %v6039 = vpop.f32.mrf.mxu0
        %v6040 = vpop.f32.mrf.mxu0
        %6041 = vdwg.mxu0
        %6042 = vmatprep.subr.bf16.mxu0 %v5856
        %6043 = vmatpush1.bf16.msra.mxu0 %v5855
        %6044 = vmatprep.subr.bf16.mxu0 %v5854
        %6045 = vmatpush1.bf16.msra.mxu0 %v5853
        %6046 = vmatprep.subr.bf16.mxu0 %v5852
        %6047 = vmatpush1.bf16.msra.mxu0 %v5851
        %6048 = vmatprep.subr.bf16.mxu0 %v5850
        %6049 = vmatpush1.bf16.msra.mxu0 %v5849
        %6050 = vmatprep.subr.bf16.mxu0 %v5848
        %6051 = vmatpush1.bf16.msra.mxu0 %v5847
        %6052 = vmatprep.subr.bf16.mxu0 %v5846
        %6053 = vmatpush1.bf16.msra.mxu0 %v5845
        %6054 = vmatprep.subr.bf16.mxu0 %v5844
        %6055 = vmatpush1.bf16.msra.mxu0 %v5843
        %6056 = vmatprep.subr.bf16.mxu0 %v5842
        %6057 = vmatpush1.bf16.msra.mxu0 %v5841
        %6058 = vmatprep.subr.bf16.mxu0 %v5872
        %6059 = vmatpush2.bf16.msra.mxu0 %v5871
        %6060 = vmatprep.subr.bf16.mxu0 %v5870
        %6061 = vmatpush2.bf16.msra.mxu0 %v5869
        %6062 = vmatprep.subr.bf16.mxu0 %v5868
        %6063 = vmatpush2.bf16.msra.mxu0 %v5867
        %6064 = vmatprep.subr.bf16.mxu0 %v5866
        %6065 = vmatpush2.bf16.msra.mxu0 %v5865
        %6066 = vmatprep.subr.bf16.mxu0 %v5864
        %6067 = vmatpush2.bf16.msra.mxu0 %v5863
        %6068 = vmatprep.subr.bf16.mxu0 %v5862
        %6069 = vmatpush2.bf16.msra.mxu0 %v5861
        %6070 = vmatprep.subr.bf16.mxu0 %v5860
        %6071 = vmatpush2.bf16.msra.mxu0 %v5859
        %6072 = vmatprep.subr.bf16.mxu0 %v5858
        %6073 = vmatpush2.bf16.msra.mxu0 %v5857
        %6074 = vmatprep.mubr.bf16.mxu0 %v5408
        %6075 = vmatmul.mubr.bf16.gmra.mxu0 %v5407
        %v6076 = vpop.f32.mrf.mxu0
        %v6077 = vadd.f32 %v6036, %v6076
        %v6078 = vpop.f32.mrf.mxu0
        %v6079 = vadd.f32 %v6038, %v6078
        %v6080 = vpop.f32.mrf.mxu0
        %v6081 = vpop.f32.mrf.mxu0
        %6082 = vdwg.mxu0
        %6083 = vmatprep.subr.bf16.mxu0 %v5888
        %6084 = vmatpush1.bf16.msra.mxu0 %v5887
        %6085 = vmatprep.subr.bf16.mxu0 %v5886
        %6086 = vmatpush1.bf16.msra.mxu0 %v5885
        %6087 = vmatprep.subr.bf16.mxu0 %v5884
        %6088 = vmatpush1.bf16.msra.mxu0 %v5883
        %6089 = vmatprep.subr.bf16.mxu0 %v5882
        %6090 = vmatpush1.bf16.msra.mxu0 %v5881
        %6091 = vmatprep.subr.bf16.mxu0 %v5880
        %6092 = vmatpush1.bf16.msra.mxu0 %v5879
        %6093 = vmatprep.subr.bf16.mxu0 %v5878
        %6094 = vmatpush1.bf16.msra.mxu0 %v5877
        %6095 = vmatprep.subr.bf16.mxu0 %v5876
        %6096 = vmatpush1.bf16.msra.mxu0 %v5875
        %6097 = vmatprep.subr.bf16.mxu0 %v5874
        %6098 = vmatpush1.bf16.msra.mxu0 %v5873
        %6099 = vmatprep.subr.bf16.mxu0 %v5904
        %6100 = vmatpush2.bf16.msra.mxu0 %v5903
        %6101 = vmatprep.subr.bf16.mxu0 %v5902
        %6102 = vmatpush2.bf16.msra.mxu0 %v5901
        %6103 = vmatprep.subr.bf16.mxu0 %v5900
        %6104 = vmatpush2.bf16.msra.mxu0 %v5899
        %6105 = vmatprep.subr.bf16.mxu0 %v5898
        %6106 = vmatpush2.bf16.msra.mxu0 %v5897
        %6107 = vmatprep.subr.bf16.mxu0 %v5896
        %6108 = vmatpush2.bf16.msra.mxu0 %v5895
        %6109 = vmatprep.subr.bf16.mxu0 %v5894
        %6110 = vmatpush2.bf16.msra.mxu0 %v5893
        %6111 = vmatprep.subr.bf16.mxu0 %v5892
        %6112 = vmatpush2.bf16.msra.mxu0 %v5891
        %6113 = vmatprep.subr.bf16.mxu0 %v5890
        %6114 = vmatpush2.bf16.msra.mxu0 %v5889
        %6115 = vmatprep.mubr.bf16.mxu0 %v5410
        %6116 = vmatmul.mubr.bf16.gmra.mxu0 %v5409
        %v6117 = vpop.f32.mrf.mxu0
        %v6118 = vadd.f32 %v6077, %v6117
        %v6119 = vpop.f32.mrf.mxu0
        %v6120 = vadd.f32 %v6079, %v6119
        %v6121 = vpop.f32.mrf.mxu0
        %v6122 = vpop.f32.mrf.mxu0
        %6123 = vdwg.mxu0
        %v6124 = vmax.f32 %v6118, 0.0
        %v6125 = vmax.f32 %v6120, 0.0
        %v6126 = vpack.c.bf16 %v6124, %v6124
        %v6127 = vpack.c.bf16 %v6125, %v6125
        %v6128 = vld [vmem:[#allocation12] sm:$0xf]
        %v6130 = vsel %vm4393, %v6128, 0
        %v6133 = vsel %vm4397, %v6126, 0
        %v6136 = vsel %vm4397, %v6127, 0
        %6138 = vmatprep.subr.bf16.mxu0 0
        %6139 = vmatpush1.bf16.msra.mxu0 0
        %6140 = vmatprep.subr.bf16.mxu0 0
        %6141 = vmatpush1.bf16.msra.mxu0 0
        %6142 = vmatprep.subr.bf16.mxu0 0
        %6143 = vmatpush1.bf16.msra.mxu0 0
        %6144 = vmatprep.subr.bf16.mxu0 0
        %6145 = vmatpush1.bf16.msra.mxu0 0
        %6146 = vmatprep.subr.bf16.mxu0 0
        %6147 = vmatpush1.bf16.msra.mxu0 0
        %6148 = vmatprep.subr.bf16.mxu0 0
        %6149 = vmatpush1.bf16.msra.mxu0 0
        %6150 = vmatprep.subr.bf16.mxu0 0
        %6151 = vmatpush1.bf16.msra.mxu0 0
        %6152 = vmatprep.subr.bf16.mxu0 %v6136
        %6153 = vmatpush1.bf16.msra.mxu0 %v6133
        %6154 = vmatprep.subr.bf16.mxu0 0
        %6155 = vmatpush2.bf16.msra.mxu0 0
        %6156 = vmatprep.subr.bf16.mxu0 0
        %6157 = vmatpush2.bf16.msra.mxu0 0
        %6158 = vmatprep.subr.bf16.mxu0 0
        %6159 = vmatpush2.bf16.msra.mxu0 0
        %6160 = vmatprep.subr.bf16.mxu0 0
        %6161 = vmatpush2.bf16.msra.mxu0 0
        %6162 = vmatprep.subr.bf16.mxu0 0
        %6163 = vmatpush2.bf16.msra.mxu0 0
        %6164 = vmatprep.subr.bf16.mxu0 0
        %6165 = vmatpush2.bf16.msra.mxu0 0
        %6166 = vmatprep.subr.bf16.mxu0 0
        %6167 = vmatpush2.bf16.msra.mxu0 0
        %6168 = vmatprep.subr.bf16.mxu0 0
        %6169 = vmatpush2.bf16.msra.mxu0 0
        %6170 = vmatprep.mubr.bf16.mxu0 0
        %6171 = vmatmul.mubr.bf16.gmra.mxu0 %v6130
        %v6172 = vpop.f32.mrf.mxu0
        %v6173 = vadd.f32 0.0, %v6172
        %v6174 = vpop.f32.mrf.mxu0
        %v6175 = vadd.f32 0.0, %v6174
        %v6176 = vpop.f32.mrf.mxu0
        %v6177 = vpop.f32.mrf.mxu0
        %6178 = vdwg.mxu0
        %s6179 = scalar_lea.vmem [#allocation12], 4
        %v6180 = vld [vmem:[%s6179] sm:$0xf]
        %v6182 = vsel %vm4393, %v6180, 0
        %6184 = vmatprep.subr.bf16.mxu0 0
        %6185 = vmatpush1.bf16.msra.mxu0 0
        %6186 = vmatprep.subr.bf16.mxu0 0
        %6187 = vmatpush1.bf16.msra.mxu0 0
        %6188 = vmatprep.subr.bf16.mxu0 0
        %6189 = vmatpush1.bf16.msra.mxu0 0
        %6190 = vmatprep.subr.bf16.mxu0 0
        %6191 = vmatpush1.bf16.msra.mxu0 0
        %6192 = vmatprep.subr.bf16.mxu0 0
        %6193 = vmatpush1.bf16.msra.mxu0 0
        %6194 = vmatprep.subr.bf16.mxu0 0
        %6195 = vmatpush1.bf16.msra.mxu0 0
        %6196 = vmatprep.subr.bf16.mxu0 0
        %6197 = vmatpush1.bf16.msra.mxu0 0
        %6198 = vmatprep.subr.bf16.mxu0 %v6136
        %6199 = vmatpush1.bf16.msra.mxu0 %v6133
        %6200 = vmatprep.subr.bf16.mxu0 0
        %6201 = vmatpush2.bf16.msra.mxu0 0
        %6202 = vmatprep.subr.bf16.mxu0 0
        %6203 = vmatpush2.bf16.msra.mxu0 0
        %6204 = vmatprep.subr.bf16.mxu0 0
        %6205 = vmatpush2.bf16.msra.mxu0 0
        %6206 = vmatprep.subr.bf16.mxu0 0
        %6207 = vmatpush2.bf16.msra.mxu0 0
        %6208 = vmatprep.subr.bf16.mxu0 0
        %6209 = vmatpush2.bf16.msra.mxu0 0
        %6210 = vmatprep.subr.bf16.mxu0 0
        %6211 = vmatpush2.bf16.msra.mxu0 0
        %6212 = vmatprep.subr.bf16.mxu0 0
        %6213 = vmatpush2.bf16.msra.mxu0 0
        %6214 = vmatprep.subr.bf16.mxu0 0
        %6215 = vmatpush2.bf16.msra.mxu0 0
        %6216 = vmatprep.mubr.bf16.mxu0 0
        %6217 = vmatmul.mubr.bf16.gmra.mxu0 %v6182
        %v6218 = vpop.f32.mrf.mxu0
        %v6219 = vadd.f32 0.0, %v6218
        %v6220 = vpop.f32.mrf.mxu0
        %v6221 = vadd.f32 0.0, %v6220
        %v6222 = vpop.f32.mrf.mxu0
        %v6223 = vpop.f32.mrf.mxu0
        %6224 = vdwg.mxu0
        %s6225 = scalar_lea.vmem [#allocation12], 8
        %v6226 = vld [vmem:[%s6225] sm:$0xf]
        %v6228 = vsel %vm4393, %v6226, 0
        %6230 = vmatprep.subr.bf16.mxu0 0
        %6231 = vmatpush1.bf16.msra.mxu0 0
        %6232 = vmatprep.subr.bf16.mxu0 0
        %6233 = vmatpush1.bf16.msra.mxu0 0
        %6234 = vmatprep.subr.bf16.mxu0 0
        %6235 = vmatpush1.bf16.msra.mxu0 0
        %6236 = vmatprep.subr.bf16.mxu0 0
        %6237 = vmatpush1.bf16.msra.mxu0 0
        %6238 = vmatprep.subr.bf16.mxu0 0
        %6239 = vmatpush1.bf16.msra.mxu0 0
        %6240 = vmatprep.subr.bf16.mxu0 0
        %6241 = vmatpush1.bf16.msra.mxu0 0
        %6242 = vmatprep.subr.bf16.mxu0 0
        %6243 = vmatpush1.bf16.msra.mxu0 0
        %6244 = vmatprep.subr.bf16.mxu0 %v6136
        %6245 = vmatpush1.bf16.msra.mxu0 %v6133
        %6246 = vmatprep.subr.bf16.mxu0 0
        %6247 = vmatpush2.bf16.msra.mxu0 0
        %6248 = vmatprep.subr.bf16.mxu0 0
        %6249 = vmatpush2.bf16.msra.mxu0 0
        %6250 = vmatprep.subr.bf16.mxu0 0
        %6251 = vmatpush2.bf16.msra.mxu0 0
        %6252 = vmatprep.subr.bf16.mxu0 0
        %6253 = vmatpush2.bf16.msra.mxu0 0
        %6254 = vmatprep.subr.bf16.mxu0 0
        %6255 = vmatpush2.bf16.msra.mxu0 0
        %6256 = vmatprep.subr.bf16.mxu0 0
        %6257 = vmatpush2.bf16.msra.mxu0 0
        %6258 = vmatprep.subr.bf16.mxu0 0
        %6259 = vmatpush2.bf16.msra.mxu0 0
        %6260 = vmatprep.subr.bf16.mxu0 0
        %6261 = vmatpush2.bf16.msra.mxu0 0
        %6262 = vmatprep.mubr.bf16.mxu0 0
        %6263 = vmatmul.mubr.bf16.gmra.mxu0 %v6228
        %v6264 = vpop.f32.mrf.mxu0
        %v6265 = vadd.f32 0.0, %v6264
        %v6266 = vpop.f32.mrf.mxu0
        %v6267 = vadd.f32 0.0, %v6266
        %v6268 = vpop.f32.mrf.mxu0
        %v6269 = vpop.f32.mrf.mxu0
        %6270 = vdwg.mxu0
        %v6271 = vpack.c.bf16 %v6173, %v6173
        %v6272 = vpack.c.bf16 %v6175, %v6175
        %v6273 = vpack.c.bf16 %v6219, %v6219
        %v6274 = vpack.c.bf16 %v6221, %v6221
        %v6275 = vpack.c.bf16 %v6265, %v6265
        %v6276 = vpack.c.bf16 %v6267, %v6267
        %s6277 = scalar_lea.vmem [#allocation16], 4608
        %v6278 = vld [vmem:[%s6277] sm:$0xff]
        %v6279 = vld [vmem:[%s6277 + $0x8] sm:$0xff]
        %v6280 = vld [vmem:[%s6277 + $0x10] sm:$0xff]
        %v6281 = vld [vmem:[%s6277 + $0x18] sm:$0xff]
        %v6282 = vld [vmem:[%s6277 + $0x20] sm:$0xff]
        %v6283 = vld [vmem:[%s6277 + $0x28] sm:$0xff]
        %v6284 = vld [vmem:[%s6277 + $0x30] sm:$0xff]
        %v6285 = vld [vmem:[%s6277 + $0x38] sm:$0xff]
        %v6286 = vld [vmem:[%s6277 + $0x40] sm:$0xff]
        %v6287 = vld [vmem:[%s6277 + $0x48] sm:$0xff]
        %v6288 = vld [vmem:[%s6277 + $0x50] sm:$0xff]
        %v6289 = vld [vmem:[%s6277 + $0x58] sm:$0xff]
        %v6290 = vld [vmem:[%s6277 + $0x60] sm:$0xff]
        %v6291 = vld [vmem:[%s6277 + $0x68] sm:$0xff]
        %v6292 = vld [vmem:[%s6277 + $0x70] sm:$0xff]
        %v6293 = vld [vmem:[%s6277 + $0x78] sm:$0xff]
        %v6294 = vld [vmem:[%s6277 + $0x80] sm:$0xff]
        %v6295 = vld [vmem:[%s6277 + $0x88] sm:$0xff]
        %v6296 = vld [vmem:[%s6277 + $0x90] sm:$0xff]
        %v6297 = vld [vmem:[%s6277 + $0x98] sm:$0xff]
        %v6298 = vld [vmem:[%s6277 + $0xa0] sm:$0xff]
        %v6299 = vld [vmem:[%s6277 + $0xa8] sm:$0xff]
        %v6300 = vld [vmem:[%s6277 + $0xb0] sm:$0xff]
        %v6301 = vld [vmem:[%s6277 + $0xb8] sm:$0xff]
        %v6302 = vld [vmem:[%s6277 + $0xc0] sm:$0xff]
        %v6303 = vld [vmem:[%s6277 + $0xc8] sm:$0xff]
        %v6304 = vld [vmem:[%s6277 + $0xd0] sm:$0xff]
        %v6305 = vld [vmem:[%s6277 + $0xd8] sm:$0xff]
        %v6306 = vld [vmem:[%s6277 + $0xe0] sm:$0xff]
        %v6307 = vld [vmem:[%s6277 + $0xe8] sm:$0xff]
        %v6308 = vld [vmem:[%s6277 + $0xf0] sm:$0xff]
        %v6309 = vld [vmem:[%s6277 + $0xf8] sm:$0xff]
        %v6310 = vld [vmem:[%s6277 + $0x100] sm:$0xff]
        %v6311 = vld [vmem:[%s6277 + $0x108] sm:$0xff]
        %v6312 = vld [vmem:[%s6277 + $0x110] sm:$0xff]
        %v6313 = vld [vmem:[%s6277 + $0x118] sm:$0xff]
        %v6314 = vld [vmem:[%s6277 + $0x120] sm:$0xff]
        %v6315 = vld [vmem:[%s6277 + $0x128] sm:$0xff]
        %v6316 = vld [vmem:[%s6277 + $0x130] sm:$0xff]
        %v6317 = vld [vmem:[%s6277 + $0x138] sm:$0xff]
        %v6318 = vld [vmem:[%s6277 + $0x140] sm:$0xff]
        %v6319 = vld [vmem:[%s6277 + $0x148] sm:$0xff]
        %v6320 = vld [vmem:[%s6277 + $0x150] sm:$0xff]
        %v6321 = vld [vmem:[%s6277 + $0x158] sm:$0xff]
        %v6322 = vld [vmem:[%s6277 + $0x160] sm:$0xff]
        %v6323 = vld [vmem:[%s6277 + $0x168] sm:$0xff]
        %v6324 = vld [vmem:[%s6277 + $0x170] sm:$0xff]
        %v6325 = vld [vmem:[%s6277 + $0x178] sm:$0xff]
        %v6326 = vld [vmem:[%s6277 + $0x180] sm:$0xff]
        %v6327 = vld [vmem:[%s6277 + $0x188] sm:$0xff]
        %v6328 = vld [vmem:[%s6277 + $0x190] sm:$0xff]
        %v6329 = vld [vmem:[%s6277 + $0x198] sm:$0xff]
        %v6330 = vld [vmem:[%s6277 + $0x1a0] sm:$0xff]
        %v6331 = vld [vmem:[%s6277 + $0x1a8] sm:$0xff]
        %v6332 = vld [vmem:[%s6277 + $0x1b0] sm:$0xff]
        %v6333 = vld [vmem:[%s6277 + $0x1b8] sm:$0xff]
        %v6334 = vld [vmem:[%s6277 + $0x1c0] sm:$0xff]
        %v6335 = vld [vmem:[%s6277 + $0x1c8] sm:$0xff]
        %v6336 = vld [vmem:[%s6277 + $0x1d0] sm:$0xff]
        %v6337 = vld [vmem:[%s6277 + $0x1d8] sm:$0xff]
        %v6338 = vld [vmem:[%s6277 + $0x1e0] sm:$0xff]
        %v6339 = vld [vmem:[%s6277 + $0x1e8] sm:$0xff]
        %v6340 = vld [vmem:[%s6277 + $0x1f0] sm:$0xff]
        %v6341 = vld [vmem:[%s6277 + $0x1f8] sm:$0xff]
        %v6342 = vld [vmem:[%s6277 + $0x200] sm:$0xff]
        %v6343 = vld [vmem:[%s6277 + $0x208] sm:$0xff]
        %v6344 = vld [vmem:[%s6277 + $0x210] sm:$0xff]
        %v6345 = vld [vmem:[%s6277 + $0x218] sm:$0xff]
        %v6346 = vld [vmem:[%s6277 + $0x220] sm:$0xff]
        %v6347 = vld [vmem:[%s6277 + $0x228] sm:$0xff]
        %v6348 = vld [vmem:[%s6277 + $0x230] sm:$0xff]
        %v6349 = vld [vmem:[%s6277 + $0x238] sm:$0xff]
        %v6350 = vld [vmem:[%s6277 + $0x240] sm:$0xff]
        %v6351 = vld [vmem:[%s6277 + $0x248] sm:$0xff]
        %v6352 = vld [vmem:[%s6277 + $0x250] sm:$0xff]
        %v6353 = vld [vmem:[%s6277 + $0x258] sm:$0xff]
        %v6354 = vld [vmem:[%s6277 + $0x260] sm:$0xff]
        %v6355 = vld [vmem:[%s6277 + $0x268] sm:$0xff]
        %v6356 = vld [vmem:[%s6277 + $0x270] sm:$0xff]
        %v6357 = vld [vmem:[%s6277 + $0x278] sm:$0xff]
        %v6358 = vld [vmem:[%s6277 + $0x280] sm:$0xff]
        %v6359 = vld [vmem:[%s6277 + $0x288] sm:$0xff]
        %v6360 = vld [vmem:[%s6277 + $0x290] sm:$0xff]
        %v6361 = vld [vmem:[%s6277 + $0x298] sm:$0xff]
        %v6362 = vld [vmem:[%s6277 + $0x2a0] sm:$0xff]
        %v6363 = vld [vmem:[%s6277 + $0x2a8] sm:$0xff]
        %v6364 = vld [vmem:[%s6277 + $0x2b0] sm:$0xff]
        %v6365 = vld [vmem:[%s6277 + $0x2b8] sm:$0xff]
        %v6366 = vld [vmem:[%s6277 + $0x2c0] sm:$0xff]
        %v6367 = vld [vmem:[%s6277 + $0x2c8] sm:$0xff]
        %v6368 = vld [vmem:[%s6277 + $0x2d0] sm:$0xff]
        %v6369 = vld [vmem:[%s6277 + $0x2d8] sm:$0xff]
        %v6370 = vld [vmem:[%s6277 + $0x2e0] sm:$0xff]
        %v6371 = vld [vmem:[%s6277 + $0x2e8] sm:$0xff]
        %v6372 = vld [vmem:[%s6277 + $0x2f0] sm:$0xff]
        %v6373 = vld [vmem:[%s6277 + $0x2f8] sm:$0xff]
        %s6374 = scalar_lea.vmem [#allocation18], 12
        %v6375 = vld [vmem:[%s6374] sm:$0x3]
        %v6377 = vlaneseq
        %v6378 = vshrl.u32 %v6377, 7
        %v6379 = vsub.s32 0, %v6378
        %v6380 = vrot.slane %v6375, %v6379
        %v6381 = vlaneseq
        %v6382 = vshrl.u32 %v6381, 7
        %v6383 = vsub.s32 1, %v6382
        %v6384 = vrot.slane %v6375, %v6383
        %v6483 = vunpack.c.l.b16 %v6278
        %v6484 = vunpack.c.h.b16 %v6278
        %v6485 = vunpack.c.l.b16 %v6279
        %v6486 = vunpack.c.h.b16 %v6279
        %v6487 = vunpack.c.l.b16 %v6280
        %v6488 = vunpack.c.h.b16 %v6280
        %v6489 = vunpack.c.l.b16 %v6281
        %v6490 = vunpack.c.h.b16 %v6281
        %v6491 = vunpack.c.l.b16 %v6282
        %v6492 = vunpack.c.h.b16 %v6282
        %v6493 = vunpack.c.l.b16 %v6283
        %v6494 = vunpack.c.h.b16 %v6283
        %v6495 = vunpack.c.l.b16 %v6284
        %v6496 = vunpack.c.h.b16 %v6284
        %v6497 = vunpack.c.l.b16 %v6285
        %v6498 = vunpack.c.h.b16 %v6285
        %v6499 = vunpack.c.l.b16 %v6286
        %v6500 = vunpack.c.h.b16 %v6286
        %v6501 = vunpack.c.l.b16 %v6287
        %v6502 = vunpack.c.h.b16 %v6287
        %v6503 = vunpack.c.l.b16 %v6288
        %v6504 = vunpack.c.h.b16 %v6288
        %v6505 = vunpack.c.l.b16 %v6289
        %v6506 = vunpack.c.h.b16 %v6289
        %v6507 = vunpack.c.l.b16 %v6290
        %v6508 = vunpack.c.h.b16 %v6290
        %v6509 = vunpack.c.l.b16 %v6291
        %v6510 = vunpack.c.h.b16 %v6291
        %v6511 = vunpack.c.l.b16 %v6292
        %v6512 = vunpack.c.h.b16 %v6292
        %v6513 = vunpack.c.l.b16 %v6293
        %v6514 = vunpack.c.h.b16 %v6293
        %v6515 = vunpack.c.l.b16 %v6294
        %v6516 = vunpack.c.h.b16 %v6294
        %v6517 = vunpack.c.l.b16 %v6295
        %v6518 = vunpack.c.h.b16 %v6295
        %v6519 = vunpack.c.l.b16 %v6296
        %v6520 = vunpack.c.h.b16 %v6296
        %v6521 = vunpack.c.l.b16 %v6297
        %v6522 = vunpack.c.h.b16 %v6297
        %v6523 = vunpack.c.l.b16 %v6298
        %v6524 = vunpack.c.h.b16 %v6298
        %v6525 = vunpack.c.l.b16 %v6299
        %v6526 = vunpack.c.h.b16 %v6299
        %v6527 = vunpack.c.l.b16 %v6300
        %v6528 = vunpack.c.h.b16 %v6300
        %v6529 = vunpack.c.l.b16 %v6301
        %v6530 = vunpack.c.h.b16 %v6301
        %v6531 = vunpack.c.l.b16 %v6302
        %v6532 = vunpack.c.h.b16 %v6302
        %v6533 = vunpack.c.l.b16 %v6303
        %v6534 = vunpack.c.h.b16 %v6303
        %v6535 = vunpack.c.l.b16 %v6304
        %v6536 = vunpack.c.h.b16 %v6304
        %v6537 = vunpack.c.l.b16 %v6305
        %v6538 = vunpack.c.h.b16 %v6305
        %v6539 = vunpack.c.l.b16 %v6306
        %v6540 = vunpack.c.h.b16 %v6306
        %v6541 = vunpack.c.l.b16 %v6307
        %v6542 = vunpack.c.h.b16 %v6307
        %v6543 = vunpack.c.l.b16 %v6308
        %v6544 = vunpack.c.h.b16 %v6308
        %v6545 = vunpack.c.l.b16 %v6309
        %v6546 = vunpack.c.h.b16 %v6309
        %v6547 = vunpack.c.l.b16 %v6310
        %v6548 = vunpack.c.h.b16 %v6310
        %v6549 = vunpack.c.l.b16 %v6311
        %v6550 = vunpack.c.h.b16 %v6311
        %v6551 = vunpack.c.l.b16 %v6312
        %v6552 = vunpack.c.h.b16 %v6312
        %v6553 = vunpack.c.l.b16 %v6313
        %v6554 = vunpack.c.h.b16 %v6313
        %v6555 = vunpack.c.l.b16 %v6314
        %v6556 = vunpack.c.h.b16 %v6314
        %v6557 = vunpack.c.l.b16 %v6315
        %v6558 = vunpack.c.h.b16 %v6315
        %v6559 = vunpack.c.l.b16 %v6316
        %v6560 = vunpack.c.h.b16 %v6316
        %v6561 = vunpack.c.l.b16 %v6317
        %v6562 = vunpack.c.h.b16 %v6317
        %v6563 = vunpack.c.l.b16 %v6318
        %v6564 = vunpack.c.h.b16 %v6318
        %v6565 = vunpack.c.l.b16 %v6319
        %v6566 = vunpack.c.h.b16 %v6319
        %v6567 = vunpack.c.l.b16 %v6320
        %v6568 = vunpack.c.h.b16 %v6320
        %v6569 = vunpack.c.l.b16 %v6321
        %v6570 = vunpack.c.h.b16 %v6321
        %v6571 = vunpack.c.l.b16 %v6322
        %v6572 = vunpack.c.h.b16 %v6322
        %v6573 = vunpack.c.l.b16 %v6323
        %v6574 = vunpack.c.h.b16 %v6323
        %v6575 = vunpack.c.l.b16 %v6324
        %v6576 = vunpack.c.h.b16 %v6324
        %v6577 = vunpack.c.l.b16 %v6325
        %v6578 = vunpack.c.h.b16 %v6325
        %v6579 = vunpack.c.l.b16 %v6326
        %v6580 = vunpack.c.h.b16 %v6326
        %v6581 = vunpack.c.l.b16 %v6327
        %v6582 = vunpack.c.h.b16 %v6327
        %v6583 = vunpack.c.l.b16 %v6328
        %v6584 = vunpack.c.h.b16 %v6328
        %v6585 = vunpack.c.l.b16 %v6329
        %v6586 = vunpack.c.h.b16 %v6329
        %v6587 = vunpack.c.l.b16 %v6330
        %v6588 = vunpack.c.h.b16 %v6330
        %v6589 = vunpack.c.l.b16 %v6331
        %v6590 = vunpack.c.h.b16 %v6331
        %v6591 = vunpack.c.l.b16 %v6332
        %v6592 = vunpack.c.h.b16 %v6332
        %v6593 = vunpack.c.l.b16 %v6333
        %v6594 = vunpack.c.h.b16 %v6333
        %v6595 = vunpack.c.l.b16 %v6334
        %v6596 = vunpack.c.h.b16 %v6334
        %v6597 = vunpack.c.l.b16 %v6335
        %v6598 = vunpack.c.h.b16 %v6335
        %v6599 = vunpack.c.l.b16 %v6336
        %v6600 = vunpack.c.h.b16 %v6336
        %v6601 = vunpack.c.l.b16 %v6337
        %v6602 = vunpack.c.h.b16 %v6337
        %v6603 = vunpack.c.l.b16 %v6338
        %v6604 = vunpack.c.h.b16 %v6338
        %v6605 = vunpack.c.l.b16 %v6339
        %v6606 = vunpack.c.h.b16 %v6339
        %v6607 = vunpack.c.l.b16 %v6340
        %v6608 = vunpack.c.h.b16 %v6340
        %v6609 = vunpack.c.l.b16 %v6341
        %v6610 = vunpack.c.h.b16 %v6341
        %v6611 = vunpack.c.l.b16 %v6342
        %v6612 = vunpack.c.h.b16 %v6342
        %v6613 = vunpack.c.l.b16 %v6343
        %v6614 = vunpack.c.h.b16 %v6343
        %v6615 = vunpack.c.l.b16 %v6344
        %v6616 = vunpack.c.h.b16 %v6344
        %v6617 = vunpack.c.l.b16 %v6345
        %v6618 = vunpack.c.h.b16 %v6345
        %v6619 = vunpack.c.l.b16 %v6346
        %v6620 = vunpack.c.h.b16 %v6346
        %v6621 = vunpack.c.l.b16 %v6347
        %v6622 = vunpack.c.h.b16 %v6347
        %v6623 = vunpack.c.l.b16 %v6348
        %v6624 = vunpack.c.h.b16 %v6348
        %v6625 = vunpack.c.l.b16 %v6349
        %v6626 = vunpack.c.h.b16 %v6349
        %v6627 = vunpack.c.l.b16 %v6350
        %v6628 = vunpack.c.h.b16 %v6350
        %v6629 = vunpack.c.l.b16 %v6351
        %v6630 = vunpack.c.h.b16 %v6351
        %v6631 = vunpack.c.l.b16 %v6352
        %v6632 = vunpack.c.h.b16 %v6352
        %v6633 = vunpack.c.l.b16 %v6353
        %v6634 = vunpack.c.h.b16 %v6353
        %v6635 = vunpack.c.l.b16 %v6354
        %v6636 = vunpack.c.h.b16 %v6354
        %v6637 = vunpack.c.l.b16 %v6355
        %v6638 = vunpack.c.h.b16 %v6355
        %v6639 = vunpack.c.l.b16 %v6356
        %v6640 = vunpack.c.h.b16 %v6356
        %v6641 = vunpack.c.l.b16 %v6357
        %v6642 = vunpack.c.h.b16 %v6357
        %v6643 = vunpack.c.l.b16 %v6358
        %v6644 = vunpack.c.h.b16 %v6358
        %v6645 = vunpack.c.l.b16 %v6359
        %v6646 = vunpack.c.h.b16 %v6359
        %v6647 = vunpack.c.l.b16 %v6360
        %v6648 = vunpack.c.h.b16 %v6360
        %v6649 = vunpack.c.l.b16 %v6361
        %v6650 = vunpack.c.h.b16 %v6361
        %v6651 = vunpack.c.l.b16 %v6362
        %v6652 = vunpack.c.h.b16 %v6362
        %v6653 = vunpack.c.l.b16 %v6363
        %v6654 = vunpack.c.h.b16 %v6363
        %v6655 = vunpack.c.l.b16 %v6364
        %v6656 = vunpack.c.h.b16 %v6364
        %v6657 = vunpack.c.l.b16 %v6365
        %v6658 = vunpack.c.h.b16 %v6365
        %v6659 = vunpack.c.l.b16 %v6366
        %v6660 = vunpack.c.h.b16 %v6366
        %v6661 = vunpack.c.l.b16 %v6367
        %v6662 = vunpack.c.h.b16 %v6367
        %v6663 = vunpack.c.l.b16 %v6368
        %v6664 = vunpack.c.h.b16 %v6368
        %v6665 = vunpack.c.l.b16 %v6369
        %v6666 = vunpack.c.h.b16 %v6369
        %v6667 = vunpack.c.l.b16 %v6370
        %v6668 = vunpack.c.h.b16 %v6370
        %v6669 = vunpack.c.l.b16 %v6371
        %v6670 = vunpack.c.h.b16 %v6371
        %v6671 = vunpack.c.l.b16 %v6372
        %v6672 = vunpack.c.h.b16 %v6372
        %v6673 = vunpack.c.l.b16 %v6373
        %v6674 = vunpack.c.h.b16 %v6373
        %v6675 = vpack.c.b16 %v6485, %v6483
        %v6676 = vpack.c.b16 %v6486, %v6484
        %v6677 = vpack.c.b16 %v6489, %v6487
        %v6678 = vpack.c.b16 %v6490, %v6488
        %v6679 = vpack.c.b16 %v6493, %v6491
        %v6680 = vpack.c.b16 %v6494, %v6492
        %v6681 = vpack.c.b16 %v6497, %v6495
        %v6682 = vpack.c.b16 %v6498, %v6496
        %v6683 = vpack.c.b16 %v6501, %v6499
        %v6684 = vpack.c.b16 %v6502, %v6500
        %v6685 = vpack.c.b16 %v6505, %v6503
        %v6686 = vpack.c.b16 %v6506, %v6504
        %v6687 = vpack.c.b16 %v6509, %v6507
        %v6688 = vpack.c.b16 %v6510, %v6508
        %v6689 = vpack.c.b16 %v6513, %v6511
        %v6690 = vpack.c.b16 %v6514, %v6512
        %v6691 = vpack.c.b16 %v6517, %v6515
        %v6692 = vpack.c.b16 %v6518, %v6516
        %v6693 = vpack.c.b16 %v6521, %v6519
        %v6694 = vpack.c.b16 %v6522, %v6520
        %v6695 = vpack.c.b16 %v6525, %v6523
        %v6696 = vpack.c.b16 %v6526, %v6524
        %v6697 = vpack.c.b16 %v6529, %v6527
        %v6698 = vpack.c.b16 %v6530, %v6528
        %v6699 = vpack.c.b16 %v6533, %v6531
        %v6700 = vpack.c.b16 %v6534, %v6532
        %v6701 = vpack.c.b16 %v6537, %v6535
        %v6702 = vpack.c.b16 %v6538, %v6536
        %v6703 = vpack.c.b16 %v6541, %v6539
        %v6704 = vpack.c.b16 %v6542, %v6540
        %v6705 = vpack.c.b16 %v6545, %v6543
        %v6706 = vpack.c.b16 %v6546, %v6544
        %v6707 = vpack.c.b16 %v6549, %v6547
        %v6708 = vpack.c.b16 %v6550, %v6548
        %v6709 = vpack.c.b16 %v6553, %v6551
        %v6710 = vpack.c.b16 %v6554, %v6552
        %v6711 = vpack.c.b16 %v6557, %v6555
        %v6712 = vpack.c.b16 %v6558, %v6556
        %v6713 = vpack.c.b16 %v6561, %v6559
        %v6714 = vpack.c.b16 %v6562, %v6560
        %v6715 = vpack.c.b16 %v6565, %v6563
        %v6716 = vpack.c.b16 %v6566, %v6564
        %v6717 = vpack.c.b16 %v6569, %v6567
        %v6718 = vpack.c.b16 %v6570, %v6568
        %v6719 = vpack.c.b16 %v6573, %v6571
        %v6720 = vpack.c.b16 %v6574, %v6572
        %v6721 = vpack.c.b16 %v6577, %v6575
        %v6722 = vpack.c.b16 %v6578, %v6576
        %v6723 = vpack.c.b16 %v6581, %v6579
        %v6724 = vpack.c.b16 %v6582, %v6580
        %v6725 = vpack.c.b16 %v6585, %v6583
        %v6726 = vpack.c.b16 %v6586, %v6584
        %v6727 = vpack.c.b16 %v6589, %v6587
        %v6728 = vpack.c.b16 %v6590, %v6588
        %v6729 = vpack.c.b16 %v6593, %v6591
        %v6730 = vpack.c.b16 %v6594, %v6592
        %v6731 = vpack.c.b16 %v6597, %v6595
        %v6732 = vpack.c.b16 %v6598, %v6596
        %v6733 = vpack.c.b16 %v6601, %v6599
        %v6734 = vpack.c.b16 %v6602, %v6600
        %v6735 = vpack.c.b16 %v6605, %v6603
        %v6736 = vpack.c.b16 %v6606, %v6604
        %v6737 = vpack.c.b16 %v6609, %v6607
        %v6738 = vpack.c.b16 %v6610, %v6608
        %v6739 = vpack.c.b16 %v6613, %v6611
        %v6740 = vpack.c.b16 %v6614, %v6612
        %v6741 = vpack.c.b16 %v6617, %v6615
        %v6742 = vpack.c.b16 %v6618, %v6616
        %v6743 = vpack.c.b16 %v6621, %v6619
        %v6744 = vpack.c.b16 %v6622, %v6620
        %v6745 = vpack.c.b16 %v6625, %v6623
        %v6746 = vpack.c.b16 %v6626, %v6624
        %v6747 = vpack.c.b16 %v6629, %v6627
        %v6748 = vpack.c.b16 %v6630, %v6628
        %v6749 = vpack.c.b16 %v6633, %v6631
        %v6750 = vpack.c.b16 %v6634, %v6632
        %v6751 = vpack.c.b16 %v6637, %v6635
        %v6752 = vpack.c.b16 %v6638, %v6636
        %v6753 = vpack.c.b16 %v6641, %v6639
        %v6754 = vpack.c.b16 %v6642, %v6640
        %v6755 = vpack.c.b16 %v6645, %v6643
        %v6756 = vpack.c.b16 %v6646, %v6644
        %v6757 = vpack.c.b16 %v6649, %v6647
        %v6758 = vpack.c.b16 %v6650, %v6648
        %v6759 = vpack.c.b16 %v6653, %v6651
        %v6760 = vpack.c.b16 %v6654, %v6652
        %v6761 = vpack.c.b16 %v6657, %v6655
        %v6762 = vpack.c.b16 %v6658, %v6656
        %v6763 = vpack.c.b16 %v6661, %v6659
        %v6764 = vpack.c.b16 %v6662, %v6660
        %v6765 = vpack.c.b16 %v6665, %v6663
        %v6766 = vpack.c.b16 %v6666, %v6664
        %v6767 = vpack.c.b16 %v6669, %v6667
        %v6768 = vpack.c.b16 %v6670, %v6668
        %v6769 = vpack.c.b16 %v6673, %v6671
        %v6770 = vpack.c.b16 %v6674, %v6672
        %6867 = vmatprep.subr.bf16.mxu0 %v6690
        %6868 = vmatpush1.bf16.msra.mxu0 %v6689
        %6869 = vmatprep.subr.bf16.mxu0 %v6688
        %6870 = vmatpush1.bf16.msra.mxu0 %v6687
        %6871 = vmatprep.subr.bf16.mxu0 %v6686
        %6872 = vmatpush1.bf16.msra.mxu0 %v6685
        %6873 = vmatprep.subr.bf16.mxu0 %v6684
        %6874 = vmatpush1.bf16.msra.mxu0 %v6683
        %6875 = vmatprep.subr.bf16.mxu0 %v6682
        %6876 = vmatpush1.bf16.msra.mxu0 %v6681
        %6877 = vmatprep.subr.bf16.mxu0 %v6680
        %6878 = vmatpush1.bf16.msra.mxu0 %v6679
        %6879 = vmatprep.subr.bf16.mxu0 %v6678
        %6880 = vmatpush1.bf16.msra.mxu0 %v6677
        %6881 = vmatprep.subr.bf16.mxu0 %v6676
        %6882 = vmatpush1.bf16.msra.mxu0 %v6675
        %6883 = vmatprep.subr.bf16.mxu0 %v6706
        %6884 = vmatpush2.bf16.msra.mxu0 %v6705
        %6885 = vmatprep.subr.bf16.mxu0 %v6704
        %6886 = vmatpush2.bf16.msra.mxu0 %v6703
        %6887 = vmatprep.subr.bf16.mxu0 %v6702
        %6888 = vmatpush2.bf16.msra.mxu0 %v6701
        %6889 = vmatprep.subr.bf16.mxu0 %v6700
        %6890 = vmatpush2.bf16.msra.mxu0 %v6699
        %6891 = vmatprep.subr.bf16.mxu0 %v6698
        %6892 = vmatpush2.bf16.msra.mxu0 %v6697
        %6893 = vmatprep.subr.bf16.mxu0 %v6696
        %6894 = vmatpush2.bf16.msra.mxu0 %v6695
        %6895 = vmatprep.subr.bf16.mxu0 %v6694
        %6896 = vmatpush2.bf16.msra.mxu0 %v6693
        %6897 = vmatprep.subr.bf16.mxu0 %v6692
        %6898 = vmatpush2.bf16.msra.mxu0 %v6691
        %6899 = vmatprep.mubr.bf16.mxu0 %v6272
        %6900 = vmatmul.mubr.bf16.gmra.mxu0 %v6271
        %v6901 = vpop.f32.mrf.mxu0
        %v6902 = vadd.f32 %v6380, %v6901
        %v6903 = vpop.f32.mrf.mxu0
        %v6904 = vadd.f32 %v6384, %v6903
        %v6905 = vpop.f32.mrf.mxu0
        %v6906 = vpop.f32.mrf.mxu0
        %6907 = vdwg.mxu0
        %6908 = vmatprep.subr.bf16.mxu0 %v6722
        %6909 = vmatpush1.bf16.msra.mxu0 %v6721
        %6910 = vmatprep.subr.bf16.mxu0 %v6720
        %6911 = vmatpush1.bf16.msra.mxu0 %v6719
        %6912 = vmatprep.subr.bf16.mxu0 %v6718
        %6913 = vmatpush1.bf16.msra.mxu0 %v6717
        %6914 = vmatprep.subr.bf16.mxu0 %v6716
        %6915 = vmatpush1.bf16.msra.mxu0 %v6715
        %6916 = vmatprep.subr.bf16.mxu0 %v6714
        %6917 = vmatpush1.bf16.msra.mxu0 %v6713
        %6918 = vmatprep.subr.bf16.mxu0 %v6712
        %6919 = vmatpush1.bf16.msra.mxu0 %v6711
        %6920 = vmatprep.subr.bf16.mxu0 %v6710
        %6921 = vmatpush1.bf16.msra.mxu0 %v6709
        %6922 = vmatprep.subr.bf16.mxu0 %v6708
        %6923 = vmatpush1.bf16.msra.mxu0 %v6707
        %6924 = vmatprep.subr.bf16.mxu0 %v6738
        %6925 = vmatpush2.bf16.msra.mxu0 %v6737
        %6926 = vmatprep.subr.bf16.mxu0 %v6736
        %6927 = vmatpush2.bf16.msra.mxu0 %v6735
        %6928 = vmatprep.subr.bf16.mxu0 %v6734
        %6929 = vmatpush2.bf16.msra.mxu0 %v6733
        %6930 = vmatprep.subr.bf16.mxu0 %v6732
        %6931 = vmatpush2.bf16.msra.mxu0 %v6731
        %6932 = vmatprep.subr.bf16.mxu0 %v6730
        %6933 = vmatpush2.bf16.msra.mxu0 %v6729
        %6934 = vmatprep.subr.bf16.mxu0 %v6728
        %6935 = vmatpush2.bf16.msra.mxu0 %v6727
        %6936 = vmatprep.subr.bf16.mxu0 %v6726
        %6937 = vmatpush2.bf16.msra.mxu0 %v6725
        %6938 = vmatprep.subr.bf16.mxu0 %v6724
        %6939 = vmatpush2.bf16.msra.mxu0 %v6723
        %6940 = vmatprep.mubr.bf16.mxu0 %v6274
        %6941 = vmatmul.mubr.bf16.gmra.mxu0 %v6273
        %v6942 = vpop.f32.mrf.mxu0
        %v6943 = vadd.f32 %v6902, %v6942
        %v6944 = vpop.f32.mrf.mxu0
        %v6945 = vadd.f32 %v6904, %v6944
        %v6946 = vpop.f32.mrf.mxu0
        %v6947 = vpop.f32.mrf.mxu0
        %6948 = vdwg.mxu0
        %6949 = vmatprep.subr.bf16.mxu0 %v6754
        %6950 = vmatpush1.bf16.msra.mxu0 %v6753
        %6951 = vmatprep.subr.bf16.mxu0 %v6752
        %6952 = vmatpush1.bf16.msra.mxu0 %v6751
        %6953 = vmatprep.subr.bf16.mxu0 %v6750
        %6954 = vmatpush1.bf16.msra.mxu0 %v6749
        %6955 = vmatprep.subr.bf16.mxu0 %v6748
        %6956 = vmatpush1.bf16.msra.mxu0 %v6747
        %6957 = vmatprep.subr.bf16.mxu0 %v6746
        %6958 = vmatpush1.bf16.msra.mxu0 %v6745
        %6959 = vmatprep.subr.bf16.mxu0 %v6744
        %6960 = vmatpush1.bf16.msra.mxu0 %v6743
        %6961 = vmatprep.subr.bf16.mxu0 %v6742
        %6962 = vmatpush1.bf16.msra.mxu0 %v6741
        %6963 = vmatprep.subr.bf16.mxu0 %v6740
        %6964 = vmatpush1.bf16.msra.mxu0 %v6739
        %6965 = vmatprep.subr.bf16.mxu0 %v6770
        %6966 = vmatpush2.bf16.msra.mxu0 %v6769
        %6967 = vmatprep.subr.bf16.mxu0 %v6768
        %6968 = vmatpush2.bf16.msra.mxu0 %v6767
        %6969 = vmatprep.subr.bf16.mxu0 %v6766
        %6970 = vmatpush2.bf16.msra.mxu0 %v6765
        %6971 = vmatprep.subr.bf16.mxu0 %v6764
        %6972 = vmatpush2.bf16.msra.mxu0 %v6763
        %6973 = vmatprep.subr.bf16.mxu0 %v6762
        %6974 = vmatpush2.bf16.msra.mxu0 %v6761
        %6975 = vmatprep.subr.bf16.mxu0 %v6760
        %6976 = vmatpush2.bf16.msra.mxu0 %v6759
        %6977 = vmatprep.subr.bf16.mxu0 %v6758
        %6978 = vmatpush2.bf16.msra.mxu0 %v6757
        %6979 = vmatprep.subr.bf16.mxu0 %v6756
        %6980 = vmatpush2.bf16.msra.mxu0 %v6755
        %6981 = vmatprep.mubr.bf16.mxu0 %v6276
        %6982 = vmatmul.mubr.bf16.gmra.mxu0 %v6275
        %v6983 = vpop.f32.mrf.mxu0
        %v6984 = vadd.f32 %v6943, %v6983
        %v6985 = vpop.f32.mrf.mxu0
        %v6986 = vadd.f32 %v6945, %v6985
        %v6987 = vpop.f32.mrf.mxu0
        %v6988 = vpop.f32.mrf.mxu0
        %6989 = vdwg.mxu0
        %v6990 = vmax.f32 %v6984, 0.0
        %v6991 = vmax.f32 %v6986, 0.0
        %6992 = vst [vmem:[%s694] sm:$0xff] %v6990
        %6993 = vst [vmem:[%s694 + $0x8] sm:$0xff] %v6991
        %v6994 = vpack.c.bf16 %v6990, %v6990
        %v6995 = vpack.c.bf16 %v6991, %v6991
        %v6996 = vld [vmem:[#allocation13] sm:$0xf]
        %v6998 = vsel %vm4393, %v6996, 0
        %v7001 = vsel %vm4397, %v6994, 0
        %v7004 = vsel %vm4397, %v6995, 0
        %7006 = vmatprep.subr.bf16.mxu0 0
        %7007 = vmatpush1.bf16.msra.mxu0 0
        %7008 = vmatprep.subr.bf16.mxu0 0
        %7009 = vmatpush1.bf16.msra.mxu0 0
        %7010 = vmatprep.subr.bf16.mxu0 0
        %7011 = vmatpush1.bf16.msra.mxu0 0
        %7012 = vmatprep.subr.bf16.mxu0 0
        %7013 = vmatpush1.bf16.msra.mxu0 0
        %7014 = vmatprep.subr.bf16.mxu0 0
        %7015 = vmatpush1.bf16.msra.mxu0 0
        %7016 = vmatprep.subr.bf16.mxu0 0
        %7017 = vmatpush1.bf16.msra.mxu0 0
        %7018 = vmatprep.subr.bf16.mxu0 0
        %7019 = vmatpush1.bf16.msra.mxu0 0
        %7020 = vmatprep.subr.bf16.mxu0 %v7004
        %7021 = vmatpush1.bf16.msra.mxu0 %v7001
        %7022 = vmatprep.subr.bf16.mxu0 0
        %7023 = vmatpush2.bf16.msra.mxu0 0
        %7024 = vmatprep.subr.bf16.mxu0 0
        %7025 = vmatpush2.bf16.msra.mxu0 0
        %7026 = vmatprep.subr.bf16.mxu0 0
        %7027 = vmatpush2.bf16.msra.mxu0 0
        %7028 = vmatprep.subr.bf16.mxu0 0
        %7029 = vmatpush2.bf16.msra.mxu0 0
        %7030 = vmatprep.subr.bf16.mxu0 0
        %7031 = vmatpush2.bf16.msra.mxu0 0
        %7032 = vmatprep.subr.bf16.mxu0 0
        %7033 = vmatpush2.bf16.msra.mxu0 0
        %7034 = vmatprep.subr.bf16.mxu0 0
        %7035 = vmatpush2.bf16.msra.mxu0 0
        %7036 = vmatprep.subr.bf16.mxu0 0
        %7037 = vmatpush2.bf16.msra.mxu0 0
        %7038 = vmatprep.mubr.bf16.mxu0 0
        %7039 = vmatmul.mubr.bf16.gmra.mxu0 %v6998
        %v7040 = vpop.f32.mrf.mxu0
        %v7041 = vadd.f32 0.0, %v7040
        %v7042 = vpop.f32.mrf.mxu0
        %v7043 = vadd.f32 0.0, %v7042
        %v7044 = vpop.f32.mrf.mxu0
        %v7045 = vpop.f32.mrf.mxu0
        %7046 = vdwg.mxu0
        %s7047 = scalar_lea.vmem [#allocation13], 4
        %v7048 = vld [vmem:[%s7047] sm:$0xf]
        %v7050 = vsel %vm4393, %v7048, 0
        %7052 = vmatprep.subr.bf16.mxu0 0
        %7053 = vmatpush1.bf16.msra.mxu0 0
        %7054 = vmatprep.subr.bf16.mxu0 0
        %7055 = vmatpush1.bf16.msra.mxu0 0
        %7056 = vmatprep.subr.bf16.mxu0 0
        %7057 = vmatpush1.bf16.msra.mxu0 0
        %7058 = vmatprep.subr.bf16.mxu0 0
        %7059 = vmatpush1.bf16.msra.mxu0 0
        %7060 = vmatprep.subr.bf16.mxu0 0
        %7061 = vmatpush1.bf16.msra.mxu0 0
        %7062 = vmatprep.subr.bf16.mxu0 0
        %7063 = vmatpush1.bf16.msra.mxu0 0
        %7064 = vmatprep.subr.bf16.mxu0 0
        %7065 = vmatpush1.bf16.msra.mxu0 0
        %7066 = vmatprep.subr.bf16.mxu0 %v7004
        %7067 = vmatpush1.bf16.msra.mxu0 %v7001
        %7068 = vmatprep.subr.bf16.mxu0 0
        %7069 = vmatpush2.bf16.msra.mxu0 0
        %7070 = vmatprep.subr.bf16.mxu0 0
        %7071 = vmatpush2.bf16.msra.mxu0 0
        %7072 = vmatprep.subr.bf16.mxu0 0
        %7073 = vmatpush2.bf16.msra.mxu0 0
        %7074 = vmatprep.subr.bf16.mxu0 0
        %7075 = vmatpush2.bf16.msra.mxu0 0
        %7076 = vmatprep.subr.bf16.mxu0 0
        %7077 = vmatpush2.bf16.msra.mxu0 0
        %7078 = vmatprep.subr.bf16.mxu0 0
        %7079 = vmatpush2.bf16.msra.mxu0 0
        %7080 = vmatprep.subr.bf16.mxu0 0
        %7081 = vmatpush2.bf16.msra.mxu0 0
        %7082 = vmatprep.subr.bf16.mxu0 0
        %7083 = vmatpush2.bf16.msra.mxu0 0
        %7084 = vmatprep.mubr.bf16.mxu0 0
        %7085 = vmatmul.mubr.bf16.gmra.mxu0 %v7050
        %v7086 = vpop.f32.mrf.mxu0
        %v7087 = vadd.f32 0.0, %v7086
        %v7088 = vpop.f32.mrf.mxu0
        %v7089 = vadd.f32 0.0, %v7088
        %v7090 = vpop.f32.mrf.mxu0
        %v7091 = vpop.f32.mrf.mxu0
        %7092 = vdwg.mxu0
        %s7093 = scalar_lea.vmem [#allocation13], 8
        %v7094 = vld [vmem:[%s7093] sm:$0xf]
        %v7096 = vsel %vm4393, %v7094, 0
        %7098 = vmatprep.subr.bf16.mxu0 0
        %7099 = vmatpush1.bf16.msra.mxu0 0
        %7100 = vmatprep.subr.bf16.mxu0 0
        %7101 = vmatpush1.bf16.msra.mxu0 0
        %7102 = vmatprep.subr.bf16.mxu0 0
        %7103 = vmatpush1.bf16.msra.mxu0 0
        %7104 = vmatprep.subr.bf16.mxu0 0
        %7105 = vmatpush1.bf16.msra.mxu0 0
        %7106 = vmatprep.subr.bf16.mxu0 0
        %7107 = vmatpush1.bf16.msra.mxu0 0
        %7108 = vmatprep.subr.bf16.mxu0 0
        %7109 = vmatpush1.bf16.msra.mxu0 0
        %7110 = vmatprep.subr.bf16.mxu0 0
        %7111 = vmatpush1.bf16.msra.mxu0 0
        %7112 = vmatprep.subr.bf16.mxu0 %v7004
        %7113 = vmatpush1.bf16.msra.mxu0 %v7001
        %7114 = vmatprep.subr.bf16.mxu0 0
        %7115 = vmatpush2.bf16.msra.mxu0 0
        %7116 = vmatprep.subr.bf16.mxu0 0
        %7117 = vmatpush2.bf16.msra.mxu0 0
        %7118 = vmatprep.subr.bf16.mxu0 0
        %7119 = vmatpush2.bf16.msra.mxu0 0
        %7120 = vmatprep.subr.bf16.mxu0 0
        %7121 = vmatpush2.bf16.msra.mxu0 0
        %7122 = vmatprep.subr.bf16.mxu0 0
        %7123 = vmatpush2.bf16.msra.mxu0 0
        %7124 = vmatprep.subr.bf16.mxu0 0
        %7125 = vmatpush2.bf16.msra.mxu0 0
        %7126 = vmatprep.subr.bf16.mxu0 0
        %7127 = vmatpush2.bf16.msra.mxu0 0
        %7128 = vmatprep.subr.bf16.mxu0 0
        %7129 = vmatpush2.bf16.msra.mxu0 0
        %7130 = vmatprep.mubr.bf16.mxu0 0
        %7131 = vmatmul.mubr.bf16.gmra.mxu0 %v7096
        %v7132 = vpop.f32.mrf.mxu0
        %v7133 = vadd.f32 0.0, %v7132
        %v7134 = vpop.f32.mrf.mxu0
        %v7135 = vadd.f32 0.0, %v7134
        %v7136 = vpop.f32.mrf.mxu0
        %v7137 = vpop.f32.mrf.mxu0
        %7138 = vdwg.mxu0
        %v7139 = vpack.c.bf16 %v7041, %v7041
        %v7140 = vpack.c.bf16 %v7043, %v7043
        %v7141 = vpack.c.bf16 %v7087, %v7087
        %v7142 = vpack.c.bf16 %v7089, %v7089
        %v7143 = vpack.c.bf16 %v7133, %v7133
        %v7144 = vpack.c.bf16 %v7135, %v7135
        %s7145 = scalar_lea.vmem [#allocation16], 5376
        %v7146 = vld [vmem:[%s7145] sm:$0xff]
        %v7147 = vld [vmem:[%s7145 + $0x8] sm:$0xff]
        %v7148 = vld [vmem:[%s7145 + $0x10] sm:$0xff]
        %v7149 = vld [vmem:[%s7145 + $0x18] sm:$0xff]
        %v7150 = vld [vmem:[%s7145 + $0x20] sm:$0xff]
        %v7151 = vld [vmem:[%s7145 + $0x28] sm:$0xff]
        %v7152 = vld [vmem:[%s7145 + $0x30] sm:$0xff]
        %v7153 = vld [vmem:[%s7145 + $0x38] sm:$0xff]
        %v7154 = vld [vmem:[%s7145 + $0x40] sm:$0xff]
        %v7155 = vld [vmem:[%s7145 + $0x48] sm:$0xff]
        %v7156 = vld [vmem:[%s7145 + $0x50] sm:$0xff]
        %v7157 = vld [vmem:[%s7145 + $0x58] sm:$0xff]
        %v7158 = vld [vmem:[%s7145 + $0x60] sm:$0xff]
        %v7159 = vld [vmem:[%s7145 + $0x68] sm:$0xff]
        %v7160 = vld [vmem:[%s7145 + $0x70] sm:$0xff]
        %v7161 = vld [vmem:[%s7145 + $0x78] sm:$0xff]
        %v7162 = vld [vmem:[%s7145 + $0x80] sm:$0xff]
        %v7163 = vld [vmem:[%s7145 + $0x88] sm:$0xff]
        %v7164 = vld [vmem:[%s7145 + $0x90] sm:$0xff]
        %v7165 = vld [vmem:[%s7145 + $0x98] sm:$0xff]
        %v7166 = vld [vmem:[%s7145 + $0xa0] sm:$0xff]
        %v7167 = vld [vmem:[%s7145 + $0xa8] sm:$0xff]
        %v7168 = vld [vmem:[%s7145 + $0xb0] sm:$0xff]
        %v7169 = vld [vmem:[%s7145 + $0xb8] sm:$0xff]
        %v7170 = vld [vmem:[%s7145 + $0xc0] sm:$0xff]
        %v7171 = vld [vmem:[%s7145 + $0xc8] sm:$0xff]
        %v7172 = vld [vmem:[%s7145 + $0xd0] sm:$0xff]
        %v7173 = vld [vmem:[%s7145 + $0xd8] sm:$0xff]
        %v7174 = vld [vmem:[%s7145 + $0xe0] sm:$0xff]
        %v7175 = vld [vmem:[%s7145 + $0xe8] sm:$0xff]
        %v7176 = vld [vmem:[%s7145 + $0xf0] sm:$0xff]
        %v7177 = vld [vmem:[%s7145 + $0xf8] sm:$0xff]
        %v7178 = vld [vmem:[%s7145 + $0x100] sm:$0xff]
        %v7179 = vld [vmem:[%s7145 + $0x108] sm:$0xff]
        %v7180 = vld [vmem:[%s7145 + $0x110] sm:$0xff]
        %v7181 = vld [vmem:[%s7145 + $0x118] sm:$0xff]
        %v7182 = vld [vmem:[%s7145 + $0x120] sm:$0xff]
        %v7183 = vld [vmem:[%s7145 + $0x128] sm:$0xff]
        %v7184 = vld [vmem:[%s7145 + $0x130] sm:$0xff]
        %v7185 = vld [vmem:[%s7145 + $0x138] sm:$0xff]
        %v7186 = vld [vmem:[%s7145 + $0x140] sm:$0xff]
        %v7187 = vld [vmem:[%s7145 + $0x148] sm:$0xff]
        %v7188 = vld [vmem:[%s7145 + $0x150] sm:$0xff]
        %v7189 = vld [vmem:[%s7145 + $0x158] sm:$0xff]
        %v7190 = vld [vmem:[%s7145 + $0x160] sm:$0xff]
        %v7191 = vld [vmem:[%s7145 + $0x168] sm:$0xff]
        %v7192 = vld [vmem:[%s7145 + $0x170] sm:$0xff]
        %v7193 = vld [vmem:[%s7145 + $0x178] sm:$0xff]
        %v7194 = vld [vmem:[%s7145 + $0x180] sm:$0xff]
        %v7195 = vld [vmem:[%s7145 + $0x188] sm:$0xff]
        %v7196 = vld [vmem:[%s7145 + $0x190] sm:$0xff]
        %v7197 = vld [vmem:[%s7145 + $0x198] sm:$0xff]
        %v7198 = vld [vmem:[%s7145 + $0x1a0] sm:$0xff]
        %v7199 = vld [vmem:[%s7145 + $0x1a8] sm:$0xff]
        %v7200 = vld [vmem:[%s7145 + $0x1b0] sm:$0xff]
        %v7201 = vld [vmem:[%s7145 + $0x1b8] sm:$0xff]
        %v7202 = vld [vmem:[%s7145 + $0x1c0] sm:$0xff]
        %v7203 = vld [vmem:[%s7145 + $0x1c8] sm:$0xff]
        %v7204 = vld [vmem:[%s7145 + $0x1d0] sm:$0xff]
        %v7205 = vld [vmem:[%s7145 + $0x1d8] sm:$0xff]
        %v7206 = vld [vmem:[%s7145 + $0x1e0] sm:$0xff]
        %v7207 = vld [vmem:[%s7145 + $0x1e8] sm:$0xff]
        %v7208 = vld [vmem:[%s7145 + $0x1f0] sm:$0xff]
        %v7209 = vld [vmem:[%s7145 + $0x1f8] sm:$0xff]
        %v7210 = vld [vmem:[%s7145 + $0x200] sm:$0xff]
        %v7211 = vld [vmem:[%s7145 + $0x208] sm:$0xff]
        %v7212 = vld [vmem:[%s7145 + $0x210] sm:$0xff]
        %v7213 = vld [vmem:[%s7145 + $0x218] sm:$0xff]
        %v7214 = vld [vmem:[%s7145 + $0x220] sm:$0xff]
        %v7215 = vld [vmem:[%s7145 + $0x228] sm:$0xff]
        %v7216 = vld [vmem:[%s7145 + $0x230] sm:$0xff]
        %v7217 = vld [vmem:[%s7145 + $0x238] sm:$0xff]
        %v7218 = vld [vmem:[%s7145 + $0x240] sm:$0xff]
        %v7219 = vld [vmem:[%s7145 + $0x248] sm:$0xff]
        %v7220 = vld [vmem:[%s7145 + $0x250] sm:$0xff]
        %v7221 = vld [vmem:[%s7145 + $0x258] sm:$0xff]
        %v7222 = vld [vmem:[%s7145 + $0x260] sm:$0xff]
        %v7223 = vld [vmem:[%s7145 + $0x268] sm:$0xff]
        %v7224 = vld [vmem:[%s7145 + $0x270] sm:$0xff]
        %v7225 = vld [vmem:[%s7145 + $0x278] sm:$0xff]
        %v7226 = vld [vmem:[%s7145 + $0x280] sm:$0xff]
        %v7227 = vld [vmem:[%s7145 + $0x288] sm:$0xff]
        %v7228 = vld [vmem:[%s7145 + $0x290] sm:$0xff]
        %v7229 = vld [vmem:[%s7145 + $0x298] sm:$0xff]
        %v7230 = vld [vmem:[%s7145 + $0x2a0] sm:$0xff]
        %v7231 = vld [vmem:[%s7145 + $0x2a8] sm:$0xff]
        %v7232 = vld [vmem:[%s7145 + $0x2b0] sm:$0xff]
        %v7233 = vld [vmem:[%s7145 + $0x2b8] sm:$0xff]
        %v7234 = vld [vmem:[%s7145 + $0x2c0] sm:$0xff]
        %v7235 = vld [vmem:[%s7145 + $0x2c8] sm:$0xff]
        %v7236 = vld [vmem:[%s7145 + $0x2d0] sm:$0xff]
        %v7237 = vld [vmem:[%s7145 + $0x2d8] sm:$0xff]
        %v7238 = vld [vmem:[%s7145 + $0x2e0] sm:$0xff]
        %v7239 = vld [vmem:[%s7145 + $0x2e8] sm:$0xff]
        %v7240 = vld [vmem:[%s7145 + $0x2f0] sm:$0xff]
        %v7241 = vld [vmem:[%s7145 + $0x2f8] sm:$0xff]
        %s7242 = scalar_lea.vmem [#allocation18], 14
        %v7243 = vld [vmem:[%s7242] sm:$0x3]
        %v7245 = vlaneseq
        %v7246 = vshrl.u32 %v7245, 7
        %v7247 = vsub.s32 0, %v7246
        %v7248 = vrot.slane %v7243, %v7247
        %v7249 = vlaneseq
        %v7250 = vshrl.u32 %v7249, 7
        %v7251 = vsub.s32 1, %v7250
        %v7252 = vrot.slane %v7243, %v7251
        %v7351 = vunpack.c.l.b16 %v7146
        %v7352 = vunpack.c.h.b16 %v7146
        %v7353 = vunpack.c.l.b16 %v7147
        %v7354 = vunpack.c.h.b16 %v7147
        %v7355 = vunpack.c.l.b16 %v7148
        %v7356 = vunpack.c.h.b16 %v7148
        %v7357 = vunpack.c.l.b16 %v7149
        %v7358 = vunpack.c.h.b16 %v7149
        %v7359 = vunpack.c.l.b16 %v7150
        %v7360 = vunpack.c.h.b16 %v7150
        %v7361 = vunpack.c.l.b16 %v7151
        %v7362 = vunpack.c.h.b16 %v7151
        %v7363 = vunpack.c.l.b16 %v7152
        %v7364 = vunpack.c.h.b16 %v7152
        %v7365 = vunpack.c.l.b16 %v7153
        %v7366 = vunpack.c.h.b16 %v7153
        %v7367 = vunpack.c.l.b16 %v7154
        %v7368 = vunpack.c.h.b16 %v7154
        %v7369 = vunpack.c.l.b16 %v7155
        %v7370 = vunpack.c.h.b16 %v7155
        %v7371 = vunpack.c.l.b16 %v7156
        %v7372 = vunpack.c.h.b16 %v7156
        %v7373 = vunpack.c.l.b16 %v7157
        %v7374 = vunpack.c.h.b16 %v7157
        %v7375 = vunpack.c.l.b16 %v7158
        %v7376 = vunpack.c.h.b16 %v7158
        %v7377 = vunpack.c.l.b16 %v7159
        %v7378 = vunpack.c.h.b16 %v7159
        %v7379 = vunpack.c.l.b16 %v7160
        %v7380 = vunpack.c.h.b16 %v7160
        %v7381 = vunpack.c.l.b16 %v7161
        %v7382 = vunpack.c.h.b16 %v7161
        %v7383 = vunpack.c.l.b16 %v7162
        %v7384 = vunpack.c.h.b16 %v7162
        %v7385 = vunpack.c.l.b16 %v7163
        %v7386 = vunpack.c.h.b16 %v7163
        %v7387 = vunpack.c.l.b16 %v7164
        %v7388 = vunpack.c.h.b16 %v7164
        %v7389 = vunpack.c.l.b16 %v7165
        %v7390 = vunpack.c.h.b16 %v7165
        %v7391 = vunpack.c.l.b16 %v7166
        %v7392 = vunpack.c.h.b16 %v7166
        %v7393 = vunpack.c.l.b16 %v7167
        %v7394 = vunpack.c.h.b16 %v7167
        %v7395 = vunpack.c.l.b16 %v7168
        %v7396 = vunpack.c.h.b16 %v7168
        %v7397 = vunpack.c.l.b16 %v7169
        %v7398 = vunpack.c.h.b16 %v7169
        %v7399 = vunpack.c.l.b16 %v7170
        %v7400 = vunpack.c.h.b16 %v7170
        %v7401 = vunpack.c.l.b16 %v7171
        %v7402 = vunpack.c.h.b16 %v7171
        %v7403 = vunpack.c.l.b16 %v7172
        %v7404 = vunpack.c.h.b16 %v7172
        %v7405 = vunpack.c.l.b16 %v7173
        %v7406 = vunpack.c.h.b16 %v7173
        %v7407 = vunpack.c.l.b16 %v7174
        %v7408 = vunpack.c.h.b16 %v7174
        %v7409 = vunpack.c.l.b16 %v7175
        %v7410 = vunpack.c.h.b16 %v7175
        %v7411 = vunpack.c.l.b16 %v7176
        %v7412 = vunpack.c.h.b16 %v7176
        %v7413 = vunpack.c.l.b16 %v7177
        %v7414 = vunpack.c.h.b16 %v7177
        %v7415 = vunpack.c.l.b16 %v7178
        %v7416 = vunpack.c.h.b16 %v7178
        %v7417 = vunpack.c.l.b16 %v7179
        %v7418 = vunpack.c.h.b16 %v7179
        %v7419 = vunpack.c.l.b16 %v7180
        %v7420 = vunpack.c.h.b16 %v7180
        %v7421 = vunpack.c.l.b16 %v7181
        %v7422 = vunpack.c.h.b16 %v7181
        %v7423 = vunpack.c.l.b16 %v7182
        %v7424 = vunpack.c.h.b16 %v7182
        %v7425 = vunpack.c.l.b16 %v7183
        %v7426 = vunpack.c.h.b16 %v7183
        %v7427 = vunpack.c.l.b16 %v7184
        %v7428 = vunpack.c.h.b16 %v7184
        %v7429 = vunpack.c.l.b16 %v7185
        %v7430 = vunpack.c.h.b16 %v7185
        %v7431 = vunpack.c.l.b16 %v7186
        %v7432 = vunpack.c.h.b16 %v7186
        %v7433 = vunpack.c.l.b16 %v7187
        %v7434 = vunpack.c.h.b16 %v7187
        %v7435 = vunpack.c.l.b16 %v7188
        %v7436 = vunpack.c.h.b16 %v7188
        %v7437 = vunpack.c.l.b16 %v7189
        %v7438 = vunpack.c.h.b16 %v7189
        %v7439 = vunpack.c.l.b16 %v7190
        %v7440 = vunpack.c.h.b16 %v7190
        %v7441 = vunpack.c.l.b16 %v7191
        %v7442 = vunpack.c.h.b16 %v7191
        %v7443 = vunpack.c.l.b16 %v7192
        %v7444 = vunpack.c.h.b16 %v7192
        %v7445 = vunpack.c.l.b16 %v7193
        %v7446 = vunpack.c.h.b16 %v7193
        %v7447 = vunpack.c.l.b16 %v7194
        %v7448 = vunpack.c.h.b16 %v7194
        %v7449 = vunpack.c.l.b16 %v7195
        %v7450 = vunpack.c.h.b16 %v7195
        %v7451 = vunpack.c.l.b16 %v7196
        %v7452 = vunpack.c.h.b16 %v7196
        %v7453 = vunpack.c.l.b16 %v7197
        %v7454 = vunpack.c.h.b16 %v7197
        %v7455 = vunpack.c.l.b16 %v7198
        %v7456 = vunpack.c.h.b16 %v7198
        %v7457 = vunpack.c.l.b16 %v7199
        %v7458 = vunpack.c.h.b16 %v7199
        %v7459 = vunpack.c.l.b16 %v7200
        %v7460 = vunpack.c.h.b16 %v7200
        %v7461 = vunpack.c.l.b16 %v7201
        %v7462 = vunpack.c.h.b16 %v7201
        %v7463 = vunpack.c.l.b16 %v7202
        %v7464 = vunpack.c.h.b16 %v7202
        %v7465 = vunpack.c.l.b16 %v7203
        %v7466 = vunpack.c.h.b16 %v7203
        %v7467 = vunpack.c.l.b16 %v7204
        %v7468 = vunpack.c.h.b16 %v7204
        %v7469 = vunpack.c.l.b16 %v7205
        %v7470 = vunpack.c.h.b16 %v7205
        %v7471 = vunpack.c.l.b16 %v7206
        %v7472 = vunpack.c.h.b16 %v7206
        %v7473 = vunpack.c.l.b16 %v7207
        %v7474 = vunpack.c.h.b16 %v7207
        %v7475 = vunpack.c.l.b16 %v7208
        %v7476 = vunpack.c.h.b16 %v7208
        %v7477 = vunpack.c.l.b16 %v7209
        %v7478 = vunpack.c.h.b16 %v7209
        %v7479 = vunpack.c.l.b16 %v7210
        %v7480 = vunpack.c.h.b16 %v7210
        %v7481 = vunpack.c.l.b16 %v7211
        %v7482 = vunpack.c.h.b16 %v7211
        %v7483 = vunpack.c.l.b16 %v7212
        %v7484 = vunpack.c.h.b16 %v7212
        %v7485 = vunpack.c.l.b16 %v7213
        %v7486 = vunpack.c.h.b16 %v7213
        %v7487 = vunpack.c.l.b16 %v7214
        %v7488 = vunpack.c.h.b16 %v7214
        %v7489 = vunpack.c.l.b16 %v7215
        %v7490 = vunpack.c.h.b16 %v7215
        %v7491 = vunpack.c.l.b16 %v7216
        %v7492 = vunpack.c.h.b16 %v7216
        %v7493 = vunpack.c.l.b16 %v7217
        %v7494 = vunpack.c.h.b16 %v7217
        %v7495 = vunpack.c.l.b16 %v7218
        %v7496 = vunpack.c.h.b16 %v7218
        %v7497 = vunpack.c.l.b16 %v7219
        %v7498 = vunpack.c.h.b16 %v7219
        %v7499 = vunpack.c.l.b16 %v7220
        %v7500 = vunpack.c.h.b16 %v7220
        %v7501 = vunpack.c.l.b16 %v7221
        %v7502 = vunpack.c.h.b16 %v7221
        %v7503 = vunpack.c.l.b16 %v7222
        %v7504 = vunpack.c.h.b16 %v7222
        %v7505 = vunpack.c.l.b16 %v7223
        %v7506 = vunpack.c.h.b16 %v7223
        %v7507 = vunpack.c.l.b16 %v7224
        %v7508 = vunpack.c.h.b16 %v7224
        %v7509 = vunpack.c.l.b16 %v7225
        %v7510 = vunpack.c.h.b16 %v7225
        %v7511 = vunpack.c.l.b16 %v7226
        %v7512 = vunpack.c.h.b16 %v7226
        %v7513 = vunpack.c.l.b16 %v7227
        %v7514 = vunpack.c.h.b16 %v7227
        %v7515 = vunpack.c.l.b16 %v7228
        %v7516 = vunpack.c.h.b16 %v7228
        %v7517 = vunpack.c.l.b16 %v7229
        %v7518 = vunpack.c.h.b16 %v7229
        %v7519 = vunpack.c.l.b16 %v7230
        %v7520 = vunpack.c.h.b16 %v7230
        %v7521 = vunpack.c.l.b16 %v7231
        %v7522 = vunpack.c.h.b16 %v7231
        %v7523 = vunpack.c.l.b16 %v7232
        %v7524 = vunpack.c.h.b16 %v7232
        %v7525 = vunpack.c.l.b16 %v7233
        %v7526 = vunpack.c.h.b16 %v7233
        %v7527 = vunpack.c.l.b16 %v7234
        %v7528 = vunpack.c.h.b16 %v7234
        %v7529 = vunpack.c.l.b16 %v7235
        %v7530 = vunpack.c.h.b16 %v7235
        %v7531 = vunpack.c.l.b16 %v7236
        %v7532 = vunpack.c.h.b16 %v7236
        %v7533 = vunpack.c.l.b16 %v7237
        %v7534 = vunpack.c.h.b16 %v7237
        %v7535 = vunpack.c.l.b16 %v7238
        %v7536 = vunpack.c.h.b16 %v7238
        %v7537 = vunpack.c.l.b16 %v7239
        %v7538 = vunpack.c.h.b16 %v7239
        %v7539 = vunpack.c.l.b16 %v7240
        %v7540 = vunpack.c.h.b16 %v7240
        %v7541 = vunpack.c.l.b16 %v7241
        %v7542 = vunpack.c.h.b16 %v7241
        %v7543 = vpack.c.b16 %v7353, %v7351
        %v7544 = vpack.c.b16 %v7354, %v7352
        %v7545 = vpack.c.b16 %v7357, %v7355
        %v7546 = vpack.c.b16 %v7358, %v7356
        %v7547 = vpack.c.b16 %v7361, %v7359
        %v7548 = vpack.c.b16 %v7362, %v7360
        %v7549 = vpack.c.b16 %v7365, %v7363
        %v7550 = vpack.c.b16 %v7366, %v7364
        %v7551 = vpack.c.b16 %v7369, %v7367
        %v7552 = vpack.c.b16 %v7370, %v7368
        %v7553 = vpack.c.b16 %v7373, %v7371
        %v7554 = vpack.c.b16 %v7374, %v7372
        %v7555 = vpack.c.b16 %v7377, %v7375
        %v7556 = vpack.c.b16 %v7378, %v7376
        %v7557 = vpack.c.b16 %v7381, %v7379
        %v7558 = vpack.c.b16 %v7382, %v7380
        %v7559 = vpack.c.b16 %v7385, %v7383
        %v7560 = vpack.c.b16 %v7386, %v7384
        %v7561 = vpack.c.b16 %v7389, %v7387
        %v7562 = vpack.c.b16 %v7390, %v7388
        %v7563 = vpack.c.b16 %v7393, %v7391
        %v7564 = vpack.c.b16 %v7394, %v7392
        %v7565 = vpack.c.b16 %v7397, %v7395
        %v7566 = vpack.c.b16 %v7398, %v7396
        %v7567 = vpack.c.b16 %v7401, %v7399
        %v7568 = vpack.c.b16 %v7402, %v7400
        %v7569 = vpack.c.b16 %v7405, %v7403
        %v7570 = vpack.c.b16 %v7406, %v7404
        %v7571 = vpack.c.b16 %v7409, %v7407
        %v7572 = vpack.c.b16 %v7410, %v7408
        %v7573 = vpack.c.b16 %v7413, %v7411
        %v7574 = vpack.c.b16 %v7414, %v7412
        %v7575 = vpack.c.b16 %v7417, %v7415
        %v7576 = vpack.c.b16 %v7418, %v7416
        %v7577 = vpack.c.b16 %v7421, %v7419
        %v7578 = vpack.c.b16 %v7422, %v7420
        %v7579 = vpack.c.b16 %v7425, %v7423
        %v7580 = vpack.c.b16 %v7426, %v7424
        %v7581 = vpack.c.b16 %v7429, %v7427
        %v7582 = vpack.c.b16 %v7430, %v7428
        %v7583 = vpack.c.b16 %v7433, %v7431
        %v7584 = vpack.c.b16 %v7434, %v7432
        %v7585 = vpack.c.b16 %v7437, %v7435
        %v7586 = vpack.c.b16 %v7438, %v7436
        %v7587 = vpack.c.b16 %v7441, %v7439
        %v7588 = vpack.c.b16 %v7442, %v7440
        %v7589 = vpack.c.b16 %v7445, %v7443
        %v7590 = vpack.c.b16 %v7446, %v7444
        %v7591 = vpack.c.b16 %v7449, %v7447
        %v7592 = vpack.c.b16 %v7450, %v7448
        %v7593 = vpack.c.b16 %v7453, %v7451
        %v7594 = vpack.c.b16 %v7454, %v7452
        %v7595 = vpack.c.b16 %v7457, %v7455
        %v7596 = vpack.c.b16 %v7458, %v7456
        %v7597 = vpack.c.b16 %v7461, %v7459
        %v7598 = vpack.c.b16 %v7462, %v7460
        %v7599 = vpack.c.b16 %v7465, %v7463
        %v7600 = vpack.c.b16 %v7466, %v7464
        %v7601 = vpack.c.b16 %v7469, %v7467
        %v7602 = vpack.c.b16 %v7470, %v7468
        %v7603 = vpack.c.b16 %v7473, %v7471
        %v7604 = vpack.c.b16 %v7474, %v7472
        %v7605 = vpack.c.b16 %v7477, %v7475
        %v7606 = vpack.c.b16 %v7478, %v7476
        %v7607 = vpack.c.b16 %v7481, %v7479
        %v7608 = vpack.c.b16 %v7482, %v7480
        %v7609 = vpack.c.b16 %v7485, %v7483
        %v7610 = vpack.c.b16 %v7486, %v7484
        %v7611 = vpack.c.b16 %v7489, %v7487
        %v7612 = vpack.c.b16 %v7490, %v7488
        %v7613 = vpack.c.b16 %v7493, %v7491
        %v7614 = vpack.c.b16 %v7494, %v7492
        %v7615 = vpack.c.b16 %v7497, %v7495
        %v7616 = vpack.c.b16 %v7498, %v7496
        %v7617 = vpack.c.b16 %v7501, %v7499
        %v7618 = vpack.c.b16 %v7502, %v7500
        %v7619 = vpack.c.b16 %v7505, %v7503
        %v7620 = vpack.c.b16 %v7506, %v7504
        %v7621 = vpack.c.b16 %v7509, %v7507
        %v7622 = vpack.c.b16 %v7510, %v7508
        %v7623 = vpack.c.b16 %v7513, %v7511
        %v7624 = vpack.c.b16 %v7514, %v7512
        %v7625 = vpack.c.b16 %v7517, %v7515
        %v7626 = vpack.c.b16 %v7518, %v7516
        %v7627 = vpack.c.b16 %v7521, %v7519
        %v7628 = vpack.c.b16 %v7522, %v7520
        %v7629 = vpack.c.b16 %v7525, %v7523
        %v7630 = vpack.c.b16 %v7526, %v7524
        %v7631 = vpack.c.b16 %v7529, %v7527
        %v7632 = vpack.c.b16 %v7530, %v7528
        %v7633 = vpack.c.b16 %v7533, %v7531
        %v7634 = vpack.c.b16 %v7534, %v7532
        %v7635 = vpack.c.b16 %v7537, %v7535
        %v7636 = vpack.c.b16 %v7538, %v7536
        %v7637 = vpack.c.b16 %v7541, %v7539
        %v7638 = vpack.c.b16 %v7542, %v7540
        %7735 = vmatprep.subr.bf16.mxu0 %v7558
        %7736 = vmatpush1.bf16.msra.mxu0 %v7557
        %7737 = vmatprep.subr.bf16.mxu0 %v7556
        %7738 = vmatpush1.bf16.msra.mxu0 %v7555
        %7739 = vmatprep.subr.bf16.mxu0 %v7554
        %7740 = vmatpush1.bf16.msra.mxu0 %v7553
        %7741 = vmatprep.subr.bf16.mxu0 %v7552
        %7742 = vmatpush1.bf16.msra.mxu0 %v7551
        %7743 = vmatprep.subr.bf16.mxu0 %v7550
        %7744 = vmatpush1.bf16.msra.mxu0 %v7549
        %7745 = vmatprep.subr.bf16.mxu0 %v7548
        %7746 = vmatpush1.bf16.msra.mxu0 %v7547
        %7747 = vmatprep.subr.bf16.mxu0 %v7546
        %7748 = vmatpush1.bf16.msra.mxu0 %v7545
        %7749 = vmatprep.subr.bf16.mxu0 %v7544
        %7750 = vmatpush1.bf16.msra.mxu0 %v7543
        %7751 = vmatprep.subr.bf16.mxu0 %v7574
        %7752 = vmatpush2.bf16.msra.mxu0 %v7573
        %7753 = vmatprep.subr.bf16.mxu0 %v7572
        %7754 = vmatpush2.bf16.msra.mxu0 %v7571
        %7755 = vmatprep.subr.bf16.mxu0 %v7570
        %7756 = vmatpush2.bf16.msra.mxu0 %v7569
        %7757 = vmatprep.subr.bf16.mxu0 %v7568
        %7758 = vmatpush2.bf16.msra.mxu0 %v7567
        %7759 = vmatprep.subr.bf16.mxu0 %v7566
        %7760 = vmatpush2.bf16.msra.mxu0 %v7565
        %7761 = vmatprep.subr.bf16.mxu0 %v7564
        %7762 = vmatpush2.bf16.msra.mxu0 %v7563
        %7763 = vmatprep.subr.bf16.mxu0 %v7562
        %7764 = vmatpush2.bf16.msra.mxu0 %v7561
        %7765 = vmatprep.subr.bf16.mxu0 %v7560
        %7766 = vmatpush2.bf16.msra.mxu0 %v7559
        %7767 = vmatprep.mubr.bf16.mxu0 %v7140
        %7768 = vmatmul.mubr.bf16.gmra.mxu0 %v7139
        %v7769 = vpop.f32.mrf.mxu0
        %v7770 = vadd.f32 %v7248, %v7769
        %v7771 = vpop.f32.mrf.mxu0
        %v7772 = vadd.f32 %v7252, %v7771
        %v7773 = vpop.f32.mrf.mxu0
        %v7774 = vpop.f32.mrf.mxu0
        %7775 = vdwg.mxu0
        %7776 = vmatprep.subr.bf16.mxu0 %v7590
        %7777 = vmatpush1.bf16.msra.mxu0 %v7589
        %7778 = vmatprep.subr.bf16.mxu0 %v7588
        %7779 = vmatpush1.bf16.msra.mxu0 %v7587
        %7780 = vmatprep.subr.bf16.mxu0 %v7586
        %7781 = vmatpush1.bf16.msra.mxu0 %v7585
        %7782 = vmatprep.subr.bf16.mxu0 %v7584
        %7783 = vmatpush1.bf16.msra.mxu0 %v7583
        %7784 = vmatprep.subr.bf16.mxu0 %v7582
        %7785 = vmatpush1.bf16.msra.mxu0 %v7581
        %7786 = vmatprep.subr.bf16.mxu0 %v7580
        %7787 = vmatpush1.bf16.msra.mxu0 %v7579
        %7788 = vmatprep.subr.bf16.mxu0 %v7578
        %7789 = vmatpush1.bf16.msra.mxu0 %v7577
        %7790 = vmatprep.subr.bf16.mxu0 %v7576
        %7791 = vmatpush1.bf16.msra.mxu0 %v7575
        %7792 = vmatprep.subr.bf16.mxu0 %v7606
        %7793 = vmatpush2.bf16.msra.mxu0 %v7605
        %7794 = vmatprep.subr.bf16.mxu0 %v7604
        %7795 = vmatpush2.bf16.msra.mxu0 %v7603
        %7796 = vmatprep.subr.bf16.mxu0 %v7602
        %7797 = vmatpush2.bf16.msra.mxu0 %v7601
        %7798 = vmatprep.subr.bf16.mxu0 %v7600
        %7799 = vmatpush2.bf16.msra.mxu0 %v7599
        %7800 = vmatprep.subr.bf16.mxu0 %v7598
        %7801 = vmatpush2.bf16.msra.mxu0 %v7597
        %7802 = vmatprep.subr.bf16.mxu0 %v7596
        %7803 = vmatpush2.bf16.msra.mxu0 %v7595
        %7804 = vmatprep.subr.bf16.mxu0 %v7594
        %7805 = vmatpush2.bf16.msra.mxu0 %v7593
        %7806 = vmatprep.subr.bf16.mxu0 %v7592
        %7807 = vmatpush2.bf16.msra.mxu0 %v7591
        %7808 = vmatprep.mubr.bf16.mxu0 %v7142
        %7809 = vmatmul.mubr.bf16.gmra.mxu0 %v7141
        %v7810 = vpop.f32.mrf.mxu0
        %v7811 = vadd.f32 %v7770, %v7810
        %v7812 = vpop.f32.mrf.mxu0
        %v7813 = vadd.f32 %v7772, %v7812
        %v7814 = vpop.f32.mrf.mxu0
        %v7815 = vpop.f32.mrf.mxu0
        %7816 = vdwg.mxu0
        %7817 = vmatprep.subr.bf16.mxu0 %v7622
        %7818 = vmatpush1.bf16.msra.mxu0 %v7621
        %7819 = vmatprep.subr.bf16.mxu0 %v7620
        %7820 = vmatpush1.bf16.msra.mxu0 %v7619
        %7821 = vmatprep.subr.bf16.mxu0 %v7618
        %7822 = vmatpush1.bf16.msra.mxu0 %v7617
        %7823 = vmatprep.subr.bf16.mxu0 %v7616
        %7824 = vmatpush1.bf16.msra.mxu0 %v7615
        %7825 = vmatprep.subr.bf16.mxu0 %v7614
        %7826 = vmatpush1.bf16.msra.mxu0 %v7613
        %7827 = vmatprep.subr.bf16.mxu0 %v7612
        %7828 = vmatpush1.bf16.msra.mxu0 %v7611
        %7829 = vmatprep.subr.bf16.mxu0 %v7610
        %7830 = vmatpush1.bf16.msra.mxu0 %v7609
        %7831 = vmatprep.subr.bf16.mxu0 %v7608
        %7832 = vmatpush1.bf16.msra.mxu0 %v7607
        %7833 = vmatprep.subr.bf16.mxu0 %v7638
        %7834 = vmatpush2.bf16.msra.mxu0 %v7637
        %7835 = vmatprep.subr.bf16.mxu0 %v7636
        %7836 = vmatpush2.bf16.msra.mxu0 %v7635
        %7837 = vmatprep.subr.bf16.mxu0 %v7634
        %7838 = vmatpush2.bf16.msra.mxu0 %v7633
        %7839 = vmatprep.subr.bf16.mxu0 %v7632
        %7840 = vmatpush2.bf16.msra.mxu0 %v7631
        %7841 = vmatprep.subr.bf16.mxu0 %v7630
        %7842 = vmatpush2.bf16.msra.mxu0 %v7629
        %7843 = vmatprep.subr.bf16.mxu0 %v7628
        %7844 = vmatpush2.bf16.msra.mxu0 %v7627
        %7845 = vmatprep.subr.bf16.mxu0 %v7626
        %7846 = vmatpush2.bf16.msra.mxu0 %v7625
        %7847 = vmatprep.subr.bf16.mxu0 %v7624
        %7848 = vmatpush2.bf16.msra.mxu0 %v7623
        %7849 = vmatprep.mubr.bf16.mxu0 %v7144
        %7850 = vmatmul.mubr.bf16.gmra.mxu0 %v7143
        %v7851 = vpop.f32.mrf.mxu0
        %v7852 = vadd.f32 %v7811, %v7851
        %v7853 = vpop.f32.mrf.mxu0
        %v7854 = vadd.f32 %v7813, %v7853
        %v7855 = vpop.f32.mrf.mxu0
        %v7856 = vpop.f32.mrf.mxu0
        %7857 = vdwg.mxu0
        %v7858 = vmax.f32 %v7852, 0.0
        %v7859 = vmax.f32 %v7854, 0.0
        %v7860 = vpack.c.bf16 %v7858, %v7858
        %v7861 = vpack.c.bf16 %v7859, %v7859
        %v7862 = vld [vmem:[#allocation15] sm:$0xf]
        %v7864 = vsel %vm4393, %v7862, 0
        %v7867 = vsel %vm4397, %v7860, 0
        %v7870 = vsel %vm4397, %v7861, 0
        %7872 = vmatprep.subr.bf16.mxu0 0
        %7873 = vmatpush1.bf16.msra.mxu0 0
        %7874 = vmatprep.subr.bf16.mxu0 0
        %7875 = vmatpush1.bf16.msra.mxu0 0
        %7876 = vmatprep.subr.bf16.mxu0 0
        %7877 = vmatpush1.bf16.msra.mxu0 0
        %7878 = vmatprep.subr.bf16.mxu0 0
        %7879 = vmatpush1.bf16.msra.mxu0 0
        %7880 = vmatprep.subr.bf16.mxu0 0
        %7881 = vmatpush1.bf16.msra.mxu0 0
        %7882 = vmatprep.subr.bf16.mxu0 0
        %7883 = vmatpush1.bf16.msra.mxu0 0
        %7884 = vmatprep.subr.bf16.mxu0 0
        %7885 = vmatpush1.bf16.msra.mxu0 0
        %7886 = vmatprep.subr.bf16.mxu0 %v7870
        %7887 = vmatpush1.bf16.msra.mxu0 %v7867
        %7888 = vmatprep.subr.bf16.mxu0 0
        %7889 = vmatpush2.bf16.msra.mxu0 0
        %7890 = vmatprep.subr.bf16.mxu0 0
        %7891 = vmatpush2.bf16.msra.mxu0 0
        %7892 = vmatprep.subr.bf16.mxu0 0
        %7893 = vmatpush2.bf16.msra.mxu0 0
        %7894 = vmatprep.subr.bf16.mxu0 0
        %7895 = vmatpush2.bf16.msra.mxu0 0
        %7896 = vmatprep.subr.bf16.mxu0 0
        %7897 = vmatpush2.bf16.msra.mxu0 0
        %7898 = vmatprep.subr.bf16.mxu0 0
        %7899 = vmatpush2.bf16.msra.mxu0 0
        %7900 = vmatprep.subr.bf16.mxu0 0
        %7901 = vmatpush2.bf16.msra.mxu0 0
        %7902 = vmatprep.subr.bf16.mxu0 0
        %7903 = vmatpush2.bf16.msra.mxu0 0
        %7904 = vmatprep.mubr.bf16.mxu0 0
        %7905 = vmatmul.mubr.bf16.gmra.mxu0 %v7864
        %v7906 = vpop.f32.mrf.mxu0
        %v7907 = vadd.f32 0.0, %v7906
        %v7908 = vpop.f32.mrf.mxu0
        %v7909 = vadd.f32 0.0, %v7908
        %v7910 = vpop.f32.mrf.mxu0
        %v7911 = vpop.f32.mrf.mxu0
        %7912 = vdwg.mxu0
        %s7913 = scalar_lea.vmem [#allocation15], 4
        %v7914 = vld [vmem:[%s7913] sm:$0xf]
        %v7916 = vsel %vm4393, %v7914, 0
        %7918 = vmatprep.subr.bf16.mxu0 0
        %7919 = vmatpush1.bf16.msra.mxu0 0
        %7920 = vmatprep.subr.bf16.mxu0 0
        %7921 = vmatpush1.bf16.msra.mxu0 0
        %7922 = vmatprep.subr.bf16.mxu0 0
        %7923 = vmatpush1.bf16.msra.mxu0 0
        %7924 = vmatprep.subr.bf16.mxu0 0
        %7925 = vmatpush1.bf16.msra.mxu0 0
        %7926 = vmatprep.subr.bf16.mxu0 0
        %7927 = vmatpush1.bf16.msra.mxu0 0
        %7928 = vmatprep.subr.bf16.mxu0 0
        %7929 = vmatpush1.bf16.msra.mxu0 0
        %7930 = vmatprep.subr.bf16.mxu0 0
        %7931 = vmatpush1.bf16.msra.mxu0 0
        %7932 = vmatprep.subr.bf16.mxu0 %v7870
        %7933 = vmatpush1.bf16.msra.mxu0 %v7867
        %7934 = vmatprep.subr.bf16.mxu0 0
        %7935 = vmatpush2.bf16.msra.mxu0 0
        %7936 = vmatprep.subr.bf16.mxu0 0
        %7937 = vmatpush2.bf16.msra.mxu0 0
        %7938 = vmatprep.subr.bf16.mxu0 0
        %7939 = vmatpush2.bf16.msra.mxu0 0
        %7940 = vmatprep.subr.bf16.mxu0 0
        %7941 = vmatpush2.bf16.msra.mxu0 0
        %7942 = vmatprep.subr.bf16.mxu0 0
        %7943 = vmatpush2.bf16.msra.mxu0 0
        %7944 = vmatprep.subr.bf16.mxu0 0
        %7945 = vmatpush2.bf16.msra.mxu0 0
        %7946 = vmatprep.subr.bf16.mxu0 0
        %7947 = vmatpush2.bf16.msra.mxu0 0
        %7948 = vmatprep.subr.bf16.mxu0 0
        %7949 = vmatpush2.bf16.msra.mxu0 0
        %7950 = vmatprep.mubr.bf16.mxu0 0
        %7951 = vmatmul.mubr.bf16.gmra.mxu0 %v7916
        %v7952 = vpop.f32.mrf.mxu0
        %v7953 = vadd.f32 0.0, %v7952
        %v7954 = vpop.f32.mrf.mxu0
        %v7955 = vadd.f32 0.0, %v7954
        %v7956 = vpop.f32.mrf.mxu0
        %v7957 = vpop.f32.mrf.mxu0
        %7958 = vdwg.mxu0
        %s7959 = scalar_lea.vmem [#allocation15], 8
        %v7960 = vld [vmem:[%s7959] sm:$0xf]
        %v7962 = vsel %vm4393, %v7960, 0
        %7964 = vmatprep.subr.bf16.mxu0 0
        %7965 = vmatpush1.bf16.msra.mxu0 0
        %7966 = vmatprep.subr.bf16.mxu0 0
        %7967 = vmatpush1.bf16.msra.mxu0 0
        %7968 = vmatprep.subr.bf16.mxu0 0
        %7969 = vmatpush1.bf16.msra.mxu0 0
        %7970 = vmatprep.subr.bf16.mxu0 0
        %7971 = vmatpush1.bf16.msra.mxu0 0
        %7972 = vmatprep.subr.bf16.mxu0 0
        %7973 = vmatpush1.bf16.msra.mxu0 0
        %7974 = vmatprep.subr.bf16.mxu0 0
        %7975 = vmatpush1.bf16.msra.mxu0 0
        %7976 = vmatprep.subr.bf16.mxu0 0
        %7977 = vmatpush1.bf16.msra.mxu0 0
        %7978 = vmatprep.subr.bf16.mxu0 %v7870
        %7979 = vmatpush1.bf16.msra.mxu0 %v7867
        %7980 = vmatprep.subr.bf16.mxu0 0
        %7981 = vmatpush2.bf16.msra.mxu0 0
        %7982 = vmatprep.subr.bf16.mxu0 0
        %7983 = vmatpush2.bf16.msra.mxu0 0
        %7984 = vmatprep.subr.bf16.mxu0 0
        %7985 = vmatpush2.bf16.msra.mxu0 0
        %7986 = vmatprep.subr.bf16.mxu0 0
        %7987 = vmatpush2.bf16.msra.mxu0 0
        %7988 = vmatprep.subr.bf16.mxu0 0
        %7989 = vmatpush2.bf16.msra.mxu0 0
        %7990 = vmatprep.subr.bf16.mxu0 0
        %7991 = vmatpush2.bf16.msra.mxu0 0
        %7992 = vmatprep.subr.bf16.mxu0 0
        %7993 = vmatpush2.bf16.msra.mxu0 0
        %7994 = vmatprep.subr.bf16.mxu0 0
        %7995 = vmatpush2.bf16.msra.mxu0 0
        %7996 = vmatprep.mubr.bf16.mxu0 0
        %7997 = vmatmul.mubr.bf16.gmra.mxu0 %v7962
        %v7998 = vpop.f32.mrf.mxu0
        %v7999 = vadd.f32 0.0, %v7998
        %v8000 = vpop.f32.mrf.mxu0
        %v8001 = vadd.f32 0.0, %v8000
        %v8002 = vpop.f32.mrf.mxu0
        %v8003 = vpop.f32.mrf.mxu0
        %8004 = vdwg.mxu0
        %v8005 = vpack.c.bf16 %v7907, %v7907
        %v8006 = vpack.c.bf16 %v7909, %v7909
        %v8007 = vpack.c.bf16 %v7953, %v7953
        %v8008 = vpack.c.bf16 %v7955, %v7955
        %v8009 = vpack.c.bf16 %v7999, %v7999
        %v8010 = vpack.c.bf16 %v8001, %v8001
        %s8011 = scalar_lea.vmem [#allocation16], 6144
        %v8012 = vld [vmem:[%s8011] sm:$0xff]
        %v8013 = vld [vmem:[%s8011 + $0x8] sm:$0xff]
        %v8014 = vld [vmem:[%s8011 + $0x10] sm:$0xff]
        %v8015 = vld [vmem:[%s8011 + $0x18] sm:$0xff]
        %v8016 = vld [vmem:[%s8011 + $0x20] sm:$0xff]
        %v8017 = vld [vmem:[%s8011 + $0x28] sm:$0xff]
        %v8018 = vld [vmem:[%s8011 + $0x30] sm:$0xff]
        %v8019 = vld [vmem:[%s8011 + $0x38] sm:$0xff]
        %v8020 = vld [vmem:[%s8011 + $0x40] sm:$0xff]
        %v8021 = vld [vmem:[%s8011 + $0x48] sm:$0xff]
        %v8022 = vld [vmem:[%s8011 + $0x50] sm:$0xff]
        %v8023 = vld [vmem:[%s8011 + $0x58] sm:$0xff]
        %v8024 = vld [vmem:[%s8011 + $0x60] sm:$0xff]
        %v8025 = vld [vmem:[%s8011 + $0x68] sm:$0xff]
        %v8026 = vld [vmem:[%s8011 + $0x70] sm:$0xff]
        %v8027 = vld [vmem:[%s8011 + $0x78] sm:$0xff]
        %v8028 = vld [vmem:[%s8011 + $0x80] sm:$0xff]
        %v8029 = vld [vmem:[%s8011 + $0x88] sm:$0xff]
        %v8030 = vld [vmem:[%s8011 + $0x90] sm:$0xff]
        %v8031 = vld [vmem:[%s8011 + $0x98] sm:$0xff]
        %v8032 = vld [vmem:[%s8011 + $0xa0] sm:$0xff]
        %v8033 = vld [vmem:[%s8011 + $0xa8] sm:$0xff]
        %v8034 = vld [vmem:[%s8011 + $0xb0] sm:$0xff]
        %v8035 = vld [vmem:[%s8011 + $0xb8] sm:$0xff]
        %v8036 = vld [vmem:[%s8011 + $0xc0] sm:$0xff]
        %v8037 = vld [vmem:[%s8011 + $0xc8] sm:$0xff]
        %v8038 = vld [vmem:[%s8011 + $0xd0] sm:$0xff]
        %v8039 = vld [vmem:[%s8011 + $0xd8] sm:$0xff]
        %v8040 = vld [vmem:[%s8011 + $0xe0] sm:$0xff]
        %v8041 = vld [vmem:[%s8011 + $0xe8] sm:$0xff]
        %v8042 = vld [vmem:[%s8011 + $0xf0] sm:$0xff]
        %v8043 = vld [vmem:[%s8011 + $0xf8] sm:$0xff]
        %v8044 = vld [vmem:[%s8011 + $0x100] sm:$0xff]
        %v8045 = vld [vmem:[%s8011 + $0x108] sm:$0xff]
        %v8046 = vld [vmem:[%s8011 + $0x110] sm:$0xff]
        %v8047 = vld [vmem:[%s8011 + $0x118] sm:$0xff]
        %v8048 = vld [vmem:[%s8011 + $0x120] sm:$0xff]
        %v8049 = vld [vmem:[%s8011 + $0x128] sm:$0xff]
        %v8050 = vld [vmem:[%s8011 + $0x130] sm:$0xff]
        %v8051 = vld [vmem:[%s8011 + $0x138] sm:$0xff]
        %v8052 = vld [vmem:[%s8011 + $0x140] sm:$0xff]
        %v8053 = vld [vmem:[%s8011 + $0x148] sm:$0xff]
        %v8054 = vld [vmem:[%s8011 + $0x150] sm:$0xff]
        %v8055 = vld [vmem:[%s8011 + $0x158] sm:$0xff]
        %v8056 = vld [vmem:[%s8011 + $0x160] sm:$0xff]
        %v8057 = vld [vmem:[%s8011 + $0x168] sm:$0xff]
        %v8058 = vld [vmem:[%s8011 + $0x170] sm:$0xff]
        %v8059 = vld [vmem:[%s8011 + $0x178] sm:$0xff]
        %v8060 = vld [vmem:[%s8011 + $0x180] sm:$0xff]
        %v8061 = vld [vmem:[%s8011 + $0x188] sm:$0xff]
        %v8062 = vld [vmem:[%s8011 + $0x190] sm:$0xff]
        %v8063 = vld [vmem:[%s8011 + $0x198] sm:$0xff]
        %v8064 = vld [vmem:[%s8011 + $0x1a0] sm:$0xff]
        %v8065 = vld [vmem:[%s8011 + $0x1a8] sm:$0xff]
        %v8066 = vld [vmem:[%s8011 + $0x1b0] sm:$0xff]
        %v8067 = vld [vmem:[%s8011 + $0x1b8] sm:$0xff]
        %v8068 = vld [vmem:[%s8011 + $0x1c0] sm:$0xff]
        %v8069 = vld [vmem:[%s8011 + $0x1c8] sm:$0xff]
        %v8070 = vld [vmem:[%s8011 + $0x1d0] sm:$0xff]
        %v8071 = vld [vmem:[%s8011 + $0x1d8] sm:$0xff]
        %v8072 = vld [vmem:[%s8011 + $0x1e0] sm:$0xff]
        %v8073 = vld [vmem:[%s8011 + $0x1e8] sm:$0xff]
        %v8074 = vld [vmem:[%s8011 + $0x1f0] sm:$0xff]
        %v8075 = vld [vmem:[%s8011 + $0x1f8] sm:$0xff]
        %v8076 = vld [vmem:[%s8011 + $0x200] sm:$0xff]
        %v8077 = vld [vmem:[%s8011 + $0x208] sm:$0xff]
        %v8078 = vld [vmem:[%s8011 + $0x210] sm:$0xff]
        %v8079 = vld [vmem:[%s8011 + $0x218] sm:$0xff]
        %v8080 = vld [vmem:[%s8011 + $0x220] sm:$0xff]
        %v8081 = vld [vmem:[%s8011 + $0x228] sm:$0xff]
        %v8082 = vld [vmem:[%s8011 + $0x230] sm:$0xff]
        %v8083 = vld [vmem:[%s8011 + $0x238] sm:$0xff]
        %v8084 = vld [vmem:[%s8011 + $0x240] sm:$0xff]
        %v8085 = vld [vmem:[%s8011 + $0x248] sm:$0xff]
        %v8086 = vld [vmem:[%s8011 + $0x250] sm:$0xff]
        %v8087 = vld [vmem:[%s8011 + $0x258] sm:$0xff]
        %v8088 = vld [vmem:[%s8011 + $0x260] sm:$0xff]
        %v8089 = vld [vmem:[%s8011 + $0x268] sm:$0xff]
        %v8090 = vld [vmem:[%s8011 + $0x270] sm:$0xff]
        %v8091 = vld [vmem:[%s8011 + $0x278] sm:$0xff]
        %v8092 = vld [vmem:[%s8011 + $0x280] sm:$0xff]
        %v8093 = vld [vmem:[%s8011 + $0x288] sm:$0xff]
        %v8094 = vld [vmem:[%s8011 + $0x290] sm:$0xff]
        %v8095 = vld [vmem:[%s8011 + $0x298] sm:$0xff]
        %v8096 = vld [vmem:[%s8011 + $0x2a0] sm:$0xff]
        %v8097 = vld [vmem:[%s8011 + $0x2a8] sm:$0xff]
        %v8098 = vld [vmem:[%s8011 + $0x2b0] sm:$0xff]
        %v8099 = vld [vmem:[%s8011 + $0x2b8] sm:$0xff]
        %v8100 = vld [vmem:[%s8011 + $0x2c0] sm:$0xff]
        %v8101 = vld [vmem:[%s8011 + $0x2c8] sm:$0xff]
        %v8102 = vld [vmem:[%s8011 + $0x2d0] sm:$0xff]
        %v8103 = vld [vmem:[%s8011 + $0x2d8] sm:$0xff]
        %v8104 = vld [vmem:[%s8011 + $0x2e0] sm:$0xff]
        %v8105 = vld [vmem:[%s8011 + $0x2e8] sm:$0xff]
        %v8106 = vld [vmem:[%s8011 + $0x2f0] sm:$0xff]
        %v8107 = vld [vmem:[%s8011 + $0x2f8] sm:$0xff]
        %s8108 = scalar_lea.vmem [#allocation18], 16
        %v8109 = vld [vmem:[%s8108] sm:$0x3]
        %v8111 = vlaneseq
        %v8112 = vshrl.u32 %v8111, 7
        %v8113 = vsub.s32 0, %v8112
        %v8114 = vrot.slane %v8109, %v8113
        %v8115 = vlaneseq
        %v8116 = vshrl.u32 %v8115, 7
        %v8117 = vsub.s32 1, %v8116
        %v8118 = vrot.slane %v8109, %v8117
        %v8217 = vunpack.c.l.b16 %v8012
        %v8218 = vunpack.c.h.b16 %v8012
        %v8219 = vunpack.c.l.b16 %v8013
        %v8220 = vunpack.c.h.b16 %v8013
        %v8221 = vunpack.c.l.b16 %v8014
        %v8222 = vunpack.c.h.b16 %v8014
        %v8223 = vunpack.c.l.b16 %v8015
        %v8224 = vunpack.c.h.b16 %v8015
        %v8225 = vunpack.c.l.b16 %v8016
        %v8226 = vunpack.c.h.b16 %v8016
        %v8227 = vunpack.c.l.b16 %v8017
        %v8228 = vunpack.c.h.b16 %v8017
        %v8229 = vunpack.c.l.b16 %v8018
        %v8230 = vunpack.c.h.b16 %v8018
        %v8231 = vunpack.c.l.b16 %v8019
        %v8232 = vunpack.c.h.b16 %v8019
        %v8233 = vunpack.c.l.b16 %v8020
        %v8234 = vunpack.c.h.b16 %v8020
        %v8235 = vunpack.c.l.b16 %v8021
        %v8236 = vunpack.c.h.b16 %v8021
        %v8237 = vunpack.c.l.b16 %v8022
        %v8238 = vunpack.c.h.b16 %v8022
        %v8239 = vunpack.c.l.b16 %v8023
        %v8240 = vunpack.c.h.b16 %v8023
        %v8241 = vunpack.c.l.b16 %v8024
        %v8242 = vunpack.c.h.b16 %v8024
        %v8243 = vunpack.c.l.b16 %v8025
        %v8244 = vunpack.c.h.b16 %v8025
        %v8245 = vunpack.c.l.b16 %v8026
        %v8246 = vunpack.c.h.b16 %v8026
        %v8247 = vunpack.c.l.b16 %v8027
        %v8248 = vunpack.c.h.b16 %v8027
        %v8249 = vunpack.c.l.b16 %v8028
        %v8250 = vunpack.c.h.b16 %v8028
        %v8251 = vunpack.c.l.b16 %v8029
        %v8252 = vunpack.c.h.b16 %v8029
        %v8253 = vunpack.c.l.b16 %v8030
        %v8254 = vunpack.c.h.b16 %v8030
        %v8255 = vunpack.c.l.b16 %v8031
        %v8256 = vunpack.c.h.b16 %v8031
        %v8257 = vunpack.c.l.b16 %v8032
        %v8258 = vunpack.c.h.b16 %v8032
        %v8259 = vunpack.c.l.b16 %v8033
        %v8260 = vunpack.c.h.b16 %v8033
        %v8261 = vunpack.c.l.b16 %v8034
        %v8262 = vunpack.c.h.b16 %v8034
        %v8263 = vunpack.c.l.b16 %v8035
        %v8264 = vunpack.c.h.b16 %v8035
        %v8265 = vunpack.c.l.b16 %v8036
        %v8266 = vunpack.c.h.b16 %v8036
        %v8267 = vunpack.c.l.b16 %v8037
        %v8268 = vunpack.c.h.b16 %v8037
        %v8269 = vunpack.c.l.b16 %v8038
        %v8270 = vunpack.c.h.b16 %v8038
        %v8271 = vunpack.c.l.b16 %v8039
        %v8272 = vunpack.c.h.b16 %v8039
        %v8273 = vunpack.c.l.b16 %v8040
        %v8274 = vunpack.c.h.b16 %v8040
        %v8275 = vunpack.c.l.b16 %v8041
        %v8276 = vunpack.c.h.b16 %v8041
        %v8277 = vunpack.c.l.b16 %v8042
        %v8278 = vunpack.c.h.b16 %v8042
        %v8279 = vunpack.c.l.b16 %v8043
        %v8280 = vunpack.c.h.b16 %v8043
        %v8281 = vunpack.c.l.b16 %v8044
        %v8282 = vunpack.c.h.b16 %v8044
        %v8283 = vunpack.c.l.b16 %v8045
        %v8284 = vunpack.c.h.b16 %v8045
        %v8285 = vunpack.c.l.b16 %v8046
        %v8286 = vunpack.c.h.b16 %v8046
        %v8287 = vunpack.c.l.b16 %v8047
        %v8288 = vunpack.c.h.b16 %v8047
        %v8289 = vunpack.c.l.b16 %v8048
        %v8290 = vunpack.c.h.b16 %v8048
        %v8291 = vunpack.c.l.b16 %v8049
        %v8292 = vunpack.c.h.b16 %v8049
        %v8293 = vunpack.c.l.b16 %v8050
        %v8294 = vunpack.c.h.b16 %v8050
        %v8295 = vunpack.c.l.b16 %v8051
        %v8296 = vunpack.c.h.b16 %v8051
        %v8297 = vunpack.c.l.b16 %v8052
        %v8298 = vunpack.c.h.b16 %v8052
        %v8299 = vunpack.c.l.b16 %v8053
        %v8300 = vunpack.c.h.b16 %v8053
        %v8301 = vunpack.c.l.b16 %v8054
        %v8302 = vunpack.c.h.b16 %v8054
        %v8303 = vunpack.c.l.b16 %v8055
        %v8304 = vunpack.c.h.b16 %v8055
        %v8305 = vunpack.c.l.b16 %v8056
        %v8306 = vunpack.c.h.b16 %v8056
        %v8307 = vunpack.c.l.b16 %v8057
        %v8308 = vunpack.c.h.b16 %v8057
        %v8309 = vunpack.c.l.b16 %v8058
        %v8310 = vunpack.c.h.b16 %v8058
        %v8311 = vunpack.c.l.b16 %v8059
        %v8312 = vunpack.c.h.b16 %v8059
        %v8313 = vunpack.c.l.b16 %v8060
        %v8314 = vunpack.c.h.b16 %v8060
        %v8315 = vunpack.c.l.b16 %v8061
        %v8316 = vunpack.c.h.b16 %v8061
        %v8317 = vunpack.c.l.b16 %v8062
        %v8318 = vunpack.c.h.b16 %v8062
        %v8319 = vunpack.c.l.b16 %v8063
        %v8320 = vunpack.c.h.b16 %v8063
        %v8321 = vunpack.c.l.b16 %v8064
        %v8322 = vunpack.c.h.b16 %v8064
        %v8323 = vunpack.c.l.b16 %v8065
        %v8324 = vunpack.c.h.b16 %v8065
        %v8325 = vunpack.c.l.b16 %v8066
        %v8326 = vunpack.c.h.b16 %v8066
        %v8327 = vunpack.c.l.b16 %v8067
        %v8328 = vunpack.c.h.b16 %v8067
        %v8329 = vunpack.c.l.b16 %v8068
        %v8330 = vunpack.c.h.b16 %v8068
        %v8331 = vunpack.c.l.b16 %v8069
        %v8332 = vunpack.c.h.b16 %v8069
        %v8333 = vunpack.c.l.b16 %v8070
        %v8334 = vunpack.c.h.b16 %v8070
        %v8335 = vunpack.c.l.b16 %v8071
        %v8336 = vunpack.c.h.b16 %v8071
        %v8337 = vunpack.c.l.b16 %v8072
        %v8338 = vunpack.c.h.b16 %v8072
        %v8339 = vunpack.c.l.b16 %v8073
        %v8340 = vunpack.c.h.b16 %v8073
        %v8341 = vunpack.c.l.b16 %v8074
        %v8342 = vunpack.c.h.b16 %v8074
        %v8343 = vunpack.c.l.b16 %v8075
        %v8344 = vunpack.c.h.b16 %v8075
        %v8345 = vunpack.c.l.b16 %v8076
        %v8346 = vunpack.c.h.b16 %v8076
        %v8347 = vunpack.c.l.b16 %v8077
        %v8348 = vunpack.c.h.b16 %v8077
        %v8349 = vunpack.c.l.b16 %v8078
        %v8350 = vunpack.c.h.b16 %v8078
        %v8351 = vunpack.c.l.b16 %v8079
        %v8352 = vunpack.c.h.b16 %v8079
        %v8353 = vunpack.c.l.b16 %v8080
        %v8354 = vunpack.c.h.b16 %v8080
        %v8355 = vunpack.c.l.b16 %v8081
        %v8356 = vunpack.c.h.b16 %v8081
        %v8357 = vunpack.c.l.b16 %v8082
        %v8358 = vunpack.c.h.b16 %v8082
        %v8359 = vunpack.c.l.b16 %v8083
        %v8360 = vunpack.c.h.b16 %v8083
        %v8361 = vunpack.c.l.b16 %v8084
        %v8362 = vunpack.c.h.b16 %v8084
        %v8363 = vunpack.c.l.b16 %v8085
        %v8364 = vunpack.c.h.b16 %v8085
        %v8365 = vunpack.c.l.b16 %v8086
        %v8366 = vunpack.c.h.b16 %v8086
        %v8367 = vunpack.c.l.b16 %v8087
        %v8368 = vunpack.c.h.b16 %v8087
        %v8369 = vunpack.c.l.b16 %v8088
        %v8370 = vunpack.c.h.b16 %v8088
        %v8371 = vunpack.c.l.b16 %v8089
        %v8372 = vunpack.c.h.b16 %v8089
        %v8373 = vunpack.c.l.b16 %v8090
        %v8374 = vunpack.c.h.b16 %v8090
        %v8375 = vunpack.c.l.b16 %v8091
        %v8376 = vunpack.c.h.b16 %v8091
        %v8377 = vunpack.c.l.b16 %v8092
        %v8378 = vunpack.c.h.b16 %v8092
        %v8379 = vunpack.c.l.b16 %v8093
        %v8380 = vunpack.c.h.b16 %v8093
        %v8381 = vunpack.c.l.b16 %v8094
        %v8382 = vunpack.c.h.b16 %v8094
        %v8383 = vunpack.c.l.b16 %v8095
        %v8384 = vunpack.c.h.b16 %v8095
        %v8385 = vunpack.c.l.b16 %v8096
        %v8386 = vunpack.c.h.b16 %v8096
        %v8387 = vunpack.c.l.b16 %v8097
        %v8388 = vunpack.c.h.b16 %v8097
        %v8389 = vunpack.c.l.b16 %v8098
        %v8390 = vunpack.c.h.b16 %v8098
        %v8391 = vunpack.c.l.b16 %v8099
        %v8392 = vunpack.c.h.b16 %v8099
        %v8393 = vunpack.c.l.b16 %v8100
        %v8394 = vunpack.c.h.b16 %v8100
        %v8395 = vunpack.c.l.b16 %v8101
        %v8396 = vunpack.c.h.b16 %v8101
        %v8397 = vunpack.c.l.b16 %v8102
        %v8398 = vunpack.c.h.b16 %v8102
        %v8399 = vunpack.c.l.b16 %v8103
        %v8400 = vunpack.c.h.b16 %v8103
        %v8401 = vunpack.c.l.b16 %v8104
        %v8402 = vunpack.c.h.b16 %v8104
        %v8403 = vunpack.c.l.b16 %v8105
        %v8404 = vunpack.c.h.b16 %v8105
        %v8405 = vunpack.c.l.b16 %v8106
        %v8406 = vunpack.c.h.b16 %v8106
        %v8407 = vunpack.c.l.b16 %v8107
        %v8408 = vunpack.c.h.b16 %v8107
        %v8409 = vpack.c.b16 %v8219, %v8217
        %v8410 = vpack.c.b16 %v8220, %v8218
        %v8411 = vpack.c.b16 %v8223, %v8221
        %v8412 = vpack.c.b16 %v8224, %v8222
        %v8413 = vpack.c.b16 %v8227, %v8225
        %v8414 = vpack.c.b16 %v8228, %v8226
        %v8415 = vpack.c.b16 %v8231, %v8229
        %v8416 = vpack.c.b16 %v8232, %v8230
        %v8417 = vpack.c.b16 %v8235, %v8233
        %v8418 = vpack.c.b16 %v8236, %v8234
        %v8419 = vpack.c.b16 %v8239, %v8237
        %v8420 = vpack.c.b16 %v8240, %v8238
        %v8421 = vpack.c.b16 %v8243, %v8241
        %v8422 = vpack.c.b16 %v8244, %v8242
        %v8423 = vpack.c.b16 %v8247, %v8245
        %v8424 = vpack.c.b16 %v8248, %v8246
        %v8425 = vpack.c.b16 %v8251, %v8249
        %v8426 = vpack.c.b16 %v8252, %v8250
        %v8427 = vpack.c.b16 %v8255, %v8253
        %v8428 = vpack.c.b16 %v8256, %v8254
        %v8429 = vpack.c.b16 %v8259, %v8257
        %v8430 = vpack.c.b16 %v8260, %v8258
        %v8431 = vpack.c.b16 %v8263, %v8261
        %v8432 = vpack.c.b16 %v8264, %v8262
        %v8433 = vpack.c.b16 %v8267, %v8265
        %v8434 = vpack.c.b16 %v8268, %v8266
        %v8435 = vpack.c.b16 %v8271, %v8269
        %v8436 = vpack.c.b16 %v8272, %v8270
        %v8437 = vpack.c.b16 %v8275, %v8273
        %v8438 = vpack.c.b16 %v8276, %v8274
        %v8439 = vpack.c.b16 %v8279, %v8277
        %v8440 = vpack.c.b16 %v8280, %v8278
        %v8441 = vpack.c.b16 %v8283, %v8281
        %v8442 = vpack.c.b16 %v8284, %v8282
        %v8443 = vpack.c.b16 %v8287, %v8285
        %v8444 = vpack.c.b16 %v8288, %v8286
        %v8445 = vpack.c.b16 %v8291, %v8289
        %v8446 = vpack.c.b16 %v8292, %v8290
        %v8447 = vpack.c.b16 %v8295, %v8293
        %v8448 = vpack.c.b16 %v8296, %v8294
        %v8449 = vpack.c.b16 %v8299, %v8297
        %v8450 = vpack.c.b16 %v8300, %v8298
        %v8451 = vpack.c.b16 %v8303, %v8301
        %v8452 = vpack.c.b16 %v8304, %v8302
        %v8453 = vpack.c.b16 %v8307, %v8305
        %v8454 = vpack.c.b16 %v8308, %v8306
        %v8455 = vpack.c.b16 %v8311, %v8309
        %v8456 = vpack.c.b16 %v8312, %v8310
        %v8457 = vpack.c.b16 %v8315, %v8313
        %v8458 = vpack.c.b16 %v8316, %v8314
        %v8459 = vpack.c.b16 %v8319, %v8317
        %v8460 = vpack.c.b16 %v8320, %v8318
        %v8461 = vpack.c.b16 %v8323, %v8321
        %v8462 = vpack.c.b16 %v8324, %v8322
        %v8463 = vpack.c.b16 %v8327, %v8325
        %v8464 = vpack.c.b16 %v8328, %v8326
        %v8465 = vpack.c.b16 %v8331, %v8329
        %v8466 = vpack.c.b16 %v8332, %v8330
        %v8467 = vpack.c.b16 %v8335, %v8333
        %v8468 = vpack.c.b16 %v8336, %v8334
        %v8469 = vpack.c.b16 %v8339, %v8337
        %v8470 = vpack.c.b16 %v8340, %v8338
        %v8471 = vpack.c.b16 %v8343, %v8341
        %v8472 = vpack.c.b16 %v8344, %v8342
        %v8473 = vpack.c.b16 %v8347, %v8345
        %v8474 = vpack.c.b16 %v8348, %v8346
        %v8475 = vpack.c.b16 %v8351, %v8349
        %v8476 = vpack.c.b16 %v8352, %v8350
        %v8477 = vpack.c.b16 %v8355, %v8353
        %v8478 = vpack.c.b16 %v8356, %v8354
        %v8479 = vpack.c.b16 %v8359, %v8357
        %v8480 = vpack.c.b16 %v8360, %v8358
        %v8481 = vpack.c.b16 %v8363, %v8361
        %v8482 = vpack.c.b16 %v8364, %v8362
        %v8483 = vpack.c.b16 %v8367, %v8365
        %v8484 = vpack.c.b16 %v8368, %v8366
        %v8485 = vpack.c.b16 %v8371, %v8369
        %v8486 = vpack.c.b16 %v8372, %v8370
        %v8487 = vpack.c.b16 %v8375, %v8373
        %v8488 = vpack.c.b16 %v8376, %v8374
        %v8489 = vpack.c.b16 %v8379, %v8377
        %v8490 = vpack.c.b16 %v8380, %v8378
        %v8491 = vpack.c.b16 %v8383, %v8381
        %v8492 = vpack.c.b16 %v8384, %v8382
        %v8493 = vpack.c.b16 %v8387, %v8385
        %v8494 = vpack.c.b16 %v8388, %v8386
        %v8495 = vpack.c.b16 %v8391, %v8389
        %v8496 = vpack.c.b16 %v8392, %v8390
        %v8497 = vpack.c.b16 %v8395, %v8393
        %v8498 = vpack.c.b16 %v8396, %v8394
        %v8499 = vpack.c.b16 %v8399, %v8397
        %v8500 = vpack.c.b16 %v8400, %v8398
        %v8501 = vpack.c.b16 %v8403, %v8401
        %v8502 = vpack.c.b16 %v8404, %v8402
        %v8503 = vpack.c.b16 %v8407, %v8405
        %v8504 = vpack.c.b16 %v8408, %v8406
        %8601 = vmatprep.subr.bf16.mxu0 %v8424
        %8602 = vmatpush1.bf16.msra.mxu0 %v8423
        %8603 = vmatprep.subr.bf16.mxu0 %v8422
        %8604 = vmatpush1.bf16.msra.mxu0 %v8421
        %8605 = vmatprep.subr.bf16.mxu0 %v8420
        %8606 = vmatpush1.bf16.msra.mxu0 %v8419
        %8607 = vmatprep.subr.bf16.mxu0 %v8418
        %8608 = vmatpush1.bf16.msra.mxu0 %v8417
        %8609 = vmatprep.subr.bf16.mxu0 %v8416
        %8610 = vmatpush1.bf16.msra.mxu0 %v8415
        %8611 = vmatprep.subr.bf16.mxu0 %v8414
        %8612 = vmatpush1.bf16.msra.mxu0 %v8413
        %8613 = vmatprep.subr.bf16.mxu0 %v8412
        %8614 = vmatpush1.bf16.msra.mxu0 %v8411
        %8615 = vmatprep.subr.bf16.mxu0 %v8410
        %8616 = vmatpush1.bf16.msra.mxu0 %v8409
        %8617 = vmatprep.subr.bf16.mxu0 %v8440
        %8618 = vmatpush2.bf16.msra.mxu0 %v8439
        %8619 = vmatprep.subr.bf16.mxu0 %v8438
        %8620 = vmatpush2.bf16.msra.mxu0 %v8437
        %8621 = vmatprep.subr.bf16.mxu0 %v8436
        %8622 = vmatpush2.bf16.msra.mxu0 %v8435
        %8623 = vmatprep.subr.bf16.mxu0 %v8434
        %8624 = vmatpush2.bf16.msra.mxu0 %v8433
        %8625 = vmatprep.subr.bf16.mxu0 %v8432
        %8626 = vmatpush2.bf16.msra.mxu0 %v8431
        %8627 = vmatprep.subr.bf16.mxu0 %v8430
        %8628 = vmatpush2.bf16.msra.mxu0 %v8429
        %8629 = vmatprep.subr.bf16.mxu0 %v8428
        %8630 = vmatpush2.bf16.msra.mxu0 %v8427
        %8631 = vmatprep.subr.bf16.mxu0 %v8426
        %8632 = vmatpush2.bf16.msra.mxu0 %v8425
        %8633 = vmatprep.mubr.bf16.mxu0 %v8006
        %8634 = vmatmul.mubr.bf16.gmra.mxu0 %v8005
        %v8635 = vpop.f32.mrf.mxu0
        %v8636 = vadd.f32 %v8114, %v8635
        %v8637 = vpop.f32.mrf.mxu0
        %v8638 = vadd.f32 %v8118, %v8637
        %v8639 = vpop.f32.mrf.mxu0
        %v8640 = vpop.f32.mrf.mxu0
        %8641 = vdwg.mxu0
        %8642 = vmatprep.subr.bf16.mxu0 %v8456
        %8643 = vmatpush1.bf16.msra.mxu0 %v8455
        %8644 = vmatprep.subr.bf16.mxu0 %v8454
        %8645 = vmatpush1.bf16.msra.mxu0 %v8453
        %8646 = vmatprep.subr.bf16.mxu0 %v8452
        %8647 = vmatpush1.bf16.msra.mxu0 %v8451
        %8648 = vmatprep.subr.bf16.mxu0 %v8450
        %8649 = vmatpush1.bf16.msra.mxu0 %v8449
        %8650 = vmatprep.subr.bf16.mxu0 %v8448
        %8651 = vmatpush1.bf16.msra.mxu0 %v8447
        %8652 = vmatprep.subr.bf16.mxu0 %v8446
        %8653 = vmatpush1.bf16.msra.mxu0 %v8445
        %8654 = vmatprep.subr.bf16.mxu0 %v8444
        %8655 = vmatpush1.bf16.msra.mxu0 %v8443
        %8656 = vmatprep.subr.bf16.mxu0 %v8442
        %8657 = vmatpush1.bf16.msra.mxu0 %v8441
        %8658 = vmatprep.subr.bf16.mxu0 %v8472
        %8659 = vmatpush2.bf16.msra.mxu0 %v8471
        %8660 = vmatprep.subr.bf16.mxu0 %v8470
        %8661 = vmatpush2.bf16.msra.mxu0 %v8469
        %8662 = vmatprep.subr.bf16.mxu0 %v8468
        %8663 = vmatpush2.bf16.msra.mxu0 %v8467
        %8664 = vmatprep.subr.bf16.mxu0 %v8466
        %8665 = vmatpush2.bf16.msra.mxu0 %v8465
        %8666 = vmatprep.subr.bf16.mxu0 %v8464
        %8667 = vmatpush2.bf16.msra.mxu0 %v8463
        %8668 = vmatprep.subr.bf16.mxu0 %v8462
        %8669 = vmatpush2.bf16.msra.mxu0 %v8461
        %8670 = vmatprep.subr.bf16.mxu0 %v8460
        %8671 = vmatpush2.bf16.msra.mxu0 %v8459
        %8672 = vmatprep.subr.bf16.mxu0 %v8458
        %8673 = vmatpush2.bf16.msra.mxu0 %v8457
        %8674 = vmatprep.mubr.bf16.mxu0 %v8008
        %8675 = vmatmul.mubr.bf16.gmra.mxu0 %v8007
        %v8676 = vpop.f32.mrf.mxu0
        %v8677 = vadd.f32 %v8636, %v8676
        %v8678 = vpop.f32.mrf.mxu0
        %v8679 = vadd.f32 %v8638, %v8678
        %v8680 = vpop.f32.mrf.mxu0
        %v8681 = vpop.f32.mrf.mxu0
        %8682 = vdwg.mxu0
        %8683 = vmatprep.subr.bf16.mxu0 %v8488
        %8684 = vmatpush1.bf16.msra.mxu0 %v8487
        %8685 = vmatprep.subr.bf16.mxu0 %v8486
        %8686 = vmatpush1.bf16.msra.mxu0 %v8485
        %8687 = vmatprep.subr.bf16.mxu0 %v8484
        %8688 = vmatpush1.bf16.msra.mxu0 %v8483
        %8689 = vmatprep.subr.bf16.mxu0 %v8482
        %8690 = vmatpush1.bf16.msra.mxu0 %v8481
        %8691 = vmatprep.subr.bf16.mxu0 %v8480
        %8692 = vmatpush1.bf16.msra.mxu0 %v8479
        %8693 = vmatprep.subr.bf16.mxu0 %v8478
        %8694 = vmatpush1.bf16.msra.mxu0 %v8477
        %8695 = vmatprep.subr.bf16.mxu0 %v8476
        %8696 = vmatpush1.bf16.msra.mxu0 %v8475
        %8697 = vmatprep.subr.bf16.mxu0 %v8474
        %8698 = vmatpush1.bf16.msra.mxu0 %v8473
        %8699 = vmatprep.subr.bf16.mxu0 %v8504
        %8700 = vmatpush2.bf16.msra.mxu0 %v8503
        %8701 = vmatprep.subr.bf16.mxu0 %v8502
        %8702 = vmatpush2.bf16.msra.mxu0 %v8501
        %8703 = vmatprep.subr.bf16.mxu0 %v8500
        %8704 = vmatpush2.bf16.msra.mxu0 %v8499
        %8705 = vmatprep.subr.bf16.mxu0 %v8498
        %8706 = vmatpush2.bf16.msra.mxu0 %v8497
        %8707 = vmatprep.subr.bf16.mxu0 %v8496
        %8708 = vmatpush2.bf16.msra.mxu0 %v8495
        %8709 = vmatprep.subr.bf16.mxu0 %v8494
        %8710 = vmatpush2.bf16.msra.mxu0 %v8493
        %8711 = vmatprep.subr.bf16.mxu0 %v8492
        %8712 = vmatpush2.bf16.msra.mxu0 %v8491
        %8713 = vmatprep.subr.bf16.mxu0 %v8490
        %8714 = vmatpush2.bf16.msra.mxu0 %v8489
        %8715 = vmatprep.mubr.bf16.mxu0 %v8010
        %8716 = vmatmul.mubr.bf16.gmra.mxu0 %v8009
        %v8717 = vpop.f32.mrf.mxu0
        %v8718 = vadd.f32 %v8677, %v8717
        %v8719 = vpop.f32.mrf.mxu0
        %v8720 = vadd.f32 %v8679, %v8719
        %v8721 = vpop.f32.mrf.mxu0
        %v8722 = vpop.f32.mrf.mxu0
        %8723 = vdwg.mxu0
        %v8724 = vmax.f32 %v8718, 0.0
        %v8725 = vmax.f32 %v8720, 0.0
        %8726 = vst [vmem:[%s699] sm:$0xff] %v8724
        %8727 = vst [vmem:[%s699 + $0x8] sm:$0xff] %v8725
        %s8728 = smul.u32 2, %s33
        %p8729 = scmp.lt.s32.totalorder %s8728, 3
        %s8730 = scalar_select %p8729, %s8728, 3
        %s8731 = smul.addr %s8730, 2
        %s8732 = smul.addr %s8731, 8
        %s8733 = scalar_lea.vmem %s12, %s8732
        %p8734 = scmp.lt.s32.totalorder %s33, 1
        %s8735 = scalar_select %p8734, %s33, 1
        %s8736 = smul.addr %s8735, 2
        %s8737 = smul.addr %s8736, 8
        %s8738 = scalar_lea.vmem %s13, %s8737
        %p8739 = scmp.lt.s32.totalorder %s33, 1
        %s8740 = scalar_select %p8739, %s33, 1
        %s8741 = smul.addr %s8740, 2
        %s8742 = smul.addr %s8741, 8
        %s8743 = scalar_lea.vmem %s14, %s8742
        %p8744 = scmp.lt.s32.totalorder %s33, 1
        %s8745 = scalar_select %p8744, %s33, 1
        %s8746 = smul.addr %s8745, 2
        %s8747 = smul.addr %s8746, 8
        %s8748 = scalar_lea.vmem %s15, %s8747
        // Predicated region
        $region113: #{backbone_base_forward.1} parent=67 // pred_check
          %p8749 = pneg %p308
        $region114: #{backbone_base_forward.1} parent=67 // pred_check_branch
          %8751 = sbr.rel (%p8749) target = $region116
        $region115: #{backbone_base_forward.1} parent=67 // pred_region
          %s8752 = smul.u32 2, %s33
        $region116: #{backbone_base_forward.1} parent=67 // pred_fallthru
          _
        // Predicated region
        $region117: #{backbone_base_forward.1} parent=67 // pred_check
          %p8753 = pneg %p334
        $region118: #{backbone_base_forward.1} parent=67 // pred_check_branch
          %8755 = sbr.rel (%p8753) target = $region120
        $region119: #{backbone_base_forward.1} parent=67 // pred_region
          _
        $region120: #{backbone_base_forward.1} parent=67 // pred_fallthru
          _
        // Predicated region
        $region121: #{backbone_base_forward.1} parent=67 // pred_check
          %p8756 = pneg %p360
        $region122: #{backbone_base_forward.1} parent=67 // pred_check_branch
          %8758 = sbr.rel (%p8756) target = $region124
        $region123: #{backbone_base_forward.1} parent=67 // pred_region
          _
        $region124: #{backbone_base_forward.1} parent=67 // pred_fallthru
          _
        // Predicated region
        $region125: #{backbone_base_forward.1} parent=67 // pred_check
          %p8759 = pneg %p386
        $region126: #{backbone_base_forward.1} parent=67 // pred_check_branch
          %8761 = sbr.rel (%p8759) target = $region128
        $region127: #{backbone_base_forward.1} parent=67 // pred_region
          _
        $region128: #{backbone_base_forward.1} parent=67 // pred_fallthru
          _
      $region68: #{backbone_base_forward.1} parent=5 // pred_fallthru
        _
      %p8762 = scmp.le.s32.totalorder 2, %s28
      // Predicated region
      $region129: #{backbone_base_forward.1} parent=5 // pred_check
        %p8763 = pneg %p8762
      $region130: #{backbone_base_forward.1} parent=5 // pred_check_branch
        %8765 = sbr.rel (%p8763) target = $region132
      $region131: #{backbone_base_forward.1} parent=5 // pred_region
        %s8766 = ssub.s32 %s28, 2
        // Predicated region
        $region133: #{backbone_base_forward.1} parent=131 // pred_check
          %p8767 = pneg %p314
        $region134: #{backbone_base_forward.1} parent=131 // pred_check_branch
          %8769 = sbr.rel (%p8767) target = $region136
        $region135: #{backbone_base_forward.1} parent=131 // pred_region
          %s8770 = smul.u32 2, %s34
          %p8771 = scmp.lt.s32.totalorder %s8770, 3
          %s8772 = scalar_select %p8771, %s8770, 3
          %s8773 = smul.addr %s8772, 2
          %s8774 = smul.addr %s8773, 8
          %s8775 = scalar_lea.vmem %s12, %s8774
        $region136: #{backbone_base_forward.1} parent=131 // pred_fallthru
          _
        // Predicated region
        $region137: #{backbone_base_forward.1} parent=131 // pred_check
          %p8776 = pneg %p340
        $region138: #{backbone_base_forward.1} parent=131 // pred_check_branch
          %8778 = sbr.rel (%p8776) target = $region140
        $region139: #{backbone_base_forward.1} parent=131 // pred_region
          %p8779 = scmp.lt.s32.totalorder %s34, 1
          %s8780 = scalar_select %p8779, %s34, 1
          %s8781 = smul.addr %s8780, 2
          %s8782 = smul.addr %s8781, 8
          %s8783 = scalar_lea.vmem %s13, %s8782
        $region140: #{backbone_base_forward.1} parent=131 // pred_fallthru
          _
        // Predicated region
        $region141: #{backbone_base_forward.1} parent=131 // pred_check
          %p8784 = pneg %p366
        $region142: #{backbone_base_forward.1} parent=131 // pred_check_branch
          %8786 = sbr.rel (%p8784) target = $region144
        $region143: #{backbone_base_forward.1} parent=131 // pred_region
          %p8787 = scmp.lt.s32.totalorder %s34, 1
          %s8788 = scalar_select %p8787, %s34, 1
          %s8789 = smul.addr %s8788, 2
          %s8790 = smul.addr %s8789, 8
          %s8791 = scalar_lea.vmem %s14, %s8790
        $region144: #{backbone_base_forward.1} parent=131 // pred_fallthru
          _
        // Predicated region
        $region145: #{backbone_base_forward.1} parent=131 // pred_check
          %p8792 = pneg %p392
        $region146: #{backbone_base_forward.1} parent=131 // pred_check_branch
          %8794 = sbr.rel (%p8792) target = $region148
        $region147: #{backbone_base_forward.1} parent=131 // pred_region
          %p8795 = scmp.lt.s32.totalorder %s34, 1
          %s8796 = scalar_select %p8795, %s34, 1
          %s8797 = smul.addr %s8796, 2
          %s8798 = smul.addr %s8797, 8
          %s8799 = scalar_lea.vmem %s15, %s8798
        $region148: #{backbone_base_forward.1} parent=131 // pred_fallthru
          _
      $region132: #{backbone_base_forward.1} parent=5 // pred_fallthru
        _
    $region6: #{backbone_base_forward.1} parent=1 // loop_footer
      %s32 = sadd.s32 1, %s28
    $region7: #{backbone_base_forward.1} parent=1 // loop_footer_branch
      %27 = sbr.rel target = $region3
    $region8: #{backbone_base_forward.1} parent=1 // loop_exit
      _
    %8800 = vsyncpa [#allocation3], 1
    %s8801 = scalar_lea.sflag [#allocation3], 1
    %8802 = vsyncpa %s8801, 1
    %8803 = vsyncpa [#allocation5], 1
    %8804 = vsyncpa [#allocation8], 1
    %8805 = vsyncpa [#allocation11], 1
    %8806 = vsyncpa [#allocation14], 1
    %8807 = vsyncpa [#allocation17], 1

</llo_original>
